<compile_context>
chip_gen: v7x
topology: tpu7x:2x2x1
jax: 0.10.0
libtpu: 0.0.40
codegen_flags: <defaults>
</compile_context>

<pallas_src>
import jax
import jax.numpy as jnp
from jax.experimental import pallas as pl
from jax.experimental.pallas import tpu as pltpu

LANE = 128
MXU_DTYPE = jnp.bfloat16     # MXU-native on v5e/v6e/v7x (set jnp.float32 for exact ref numerics)
SEQ_DTYPE = jnp.bfloat16     # streamed activations (gates_x, encoder outputs)
TC_CHUNK = 64                # LSTM time steps per grid step
UNROLL = 8                   # partial unroll of the in-chunk recurrence


# ----------------------------- padding helpers ------------------------------

def _round_up(x, m):
    return ((x + m - 1) // m) * m


def _pad_axis(a, axis, new_size):
    pad = [(0, 0)] * a.ndim
    pad[axis] = (0, new_size - a.shape[axis])
    return jnp.pad(a, pad)


def _pad_gates(w, n_gates, axis):
    """Split `axis` into n_gates chunks of size H, zero-pad each chunk to a
    multiple of 128 lanes, re-concatenate (gate k lives at offset k*Hp)."""
    H = w.shape[axis] // n_gates
    Hp = _round_up(H, LANE)
    chunks = jnp.split(w, n_gates, axis=axis)
    return jnp.concatenate([_pad_axis(c, axis, Hp) for c in chunks], axis=axis)


# ----------------------------- LSTM cell (shared) ----------------------------

def _lstm_cell(gates, h, c, m, Hp):
    """PyTorch gate order i, f, g, o. m is the (rows,1) validity mask."""
    i_g = jax.nn.sigmoid(gates[:, 0 * Hp:1 * Hp])
    f_g = jax.nn.sigmoid(gates[:, 1 * Hp:2 * Hp])
    g_g = jnp.tanh(gates[:, 2 * Hp:3 * Hp])
    o_g = jax.nn.sigmoid(gates[:, 3 * Hp:4 * Hp])
    c_new = f_g * c + i_g * g_g
    h_new = o_g * jnp.tanh(c_new)
    h_out = m * h_new + (1.0 - m) * h
    c_out = m * c_new + (1.0 - m) * c
    return h_out, c_out, m * h_new        # m*h_new == pad_packed zero padding


# ---------------------- fused bidirectional LSTM scan ------------------------

def _make_bilstm_kernel(tc, Hp):
    """One time chunk of the word bi-LSTM: forward and backward recurrences
    interleaved in the same step so their MXU/EUP latencies overlap."""

    def kernel(gxf_ref, mf_ref, whhf_ref, gxb_ref, mb_ref, whhb_ref,
               of_ref, ob_ref, hf_sc, cf_sc, hb_sc, cb_sc):
        g = pl.program_id(0)

        @pl.when(g == 0)
        def _init():
            for s in (hf_sc, cf_sc, hb_sc, cb_sc):
                s[...] = jnp.zeros_like(s)

        def step(i, carry):
            hf, cf, hb, cb = carry
            rf = i
            rb = tc - 1 - i
            # Input projection is hoisted (gx); per-step only the recurrent matmuls.
            gates_f = gxf_ref[rf] + jnp.dot(hf.astype(MXU_DTYPE), whhf_ref[...],
                                            preferred_element_type=jnp.float32)
            gates_b = gxb_ref[rb] + jnp.dot(hb.astype(MXU_DTYPE), whhb_ref[...],
                                            preferred_element_type=jnp.float32)
            hf2, cf2, hfo = _lstm_cell(gates_f, hf, cf, mf_ref[rf], Hp)
            hb2, cb2, hbo = _lstm_cell(gates_b, hb, cb, mb_ref[rb], Hp)
            of_ref[rf] = hfo.astype(of_ref.dtype)
            ob_ref[rb] = hbo.astype(ob_ref.dtype)
            return (hf2, cf2, hb2, cb2)

        carry0 = (hf_sc[...], cf_sc[...], hb_sc[...], cb_sc[...])
        hf, cf, hb, cb = jax.lax.fori_loop(0, tc, step, carry0,
                                           unroll=min(UNROLL, tc))
        hf_sc[...] = hf
        cf_sc[...] = cf
        hb_sc[...] = hb
        cb_sc[...] = cb

    return kernel


def bilstm_scan(gx_f, gx_b, mask, whh_f, whh_b, *, tc):
    """gx_* : (T, B, 4*Hp) bf16 hoisted x@W_ih + b (gate-padded)
       mask : (T, B, 1) f32; whh_* : (Hp, 4*Hp) bf16.
       Returns (seq_f, seq_b), each (T, B, Hp) in SEQ_DTYPE."""
    T, B, G4 = gx_f.shape
    Hp = whh_f.shape[0]
    tc = min(tc, T)
    Tpad = -(-T // tc) * tc
    if Tpad != T:
        pad = ((0, Tpad - T), (0, 0), (0, 0))
        gx_f = jnp.pad(gx_f, pad)
        gx_b = jnp.pad(gx_b, pad)
        mask = jnp.pad(mask, pad)
    G = Tpad // tc

    idx_f = lambda g: (g, 0, 0)               # noqa: E731
    idx_b = lambda g: (G - 1 - g, 0, 0)       # noqa: E731
    cst2 = lambda g: (0, 0)                   # noqa: E731

    out_f, out_b = pl.pallas_call(
        _make_bilstm_kernel(tc, Hp),
        grid=(G,),
        in_specs=[pl.BlockSpec((tc, B, G4), idx_f),
                  pl.BlockSpec((tc, B, 1), idx_f),
                  pl.BlockSpec((Hp, G4), cst2),
                  pl.BlockSpec((tc, B, G4), idx_b),
                  pl.BlockSpec((tc, B, 1), idx_b),
                  pl.BlockSpec((Hp, G4), cst2)],
        out_specs=[pl.BlockSpec((tc, B, Hp), idx_f),
                   pl.BlockSpec((tc, B, Hp), idx_b)],
        out_shape=[jax.ShapeDtypeStruct((Tpad, B, Hp), SEQ_DTYPE),
                   jax.ShapeDtypeStruct((Tpad, B, Hp), SEQ_DTYPE)],
        scratch_shapes=[pltpu.VMEM((B, Hp), jnp.float32)] * 4,
        compiler_params=pltpu.CompilerParams(dimension_semantics=("arbitrary",)),
    )(gx_f, mask, whh_f, gx_b, mask, whh_b)

    if Tpad != T:
        out_f = out_f[:T]
        out_b = out_b[:T]
    return out_f, out_b


# ------------------ unidirectional LSTM, final hidden only -------------------

def _make_lstm_final_kernel(tc, Hp):
    def kernel(gx_ref, m_ref, whh_ref, out_ref, h_sc, c_sc):
        g = pl.program_id(0)

        @pl.when(g == 0)
        def _init():
            h_sc[...] = jnp.zeros_like(h_sc)
            c_sc[...] = jnp.zeros_like(c_sc)

        def step(i, carry):
            h, c = carry
            gates = gx_ref[i] + jnp.dot(h.astype(MXU_DTYPE), whh_ref[...],
                                        preferred_element_type=jnp.float32)
            h2, c2, _ = _lstm_cell(gates, h, c, m_ref[i], Hp)
            return (h2, c2)

        h_fin, c_fin = jax.lax.fori_loop(0, tc, step, (h_sc[...], c_sc[...]),
                                         unroll=min(UNROLL, tc))
        h_sc[...] = h_fin
        c_sc[...] = c_fin
        # Write every grid step (running hidden); last write is the final value,
        # so a per-iteration writeback never DMAs uninitialized VMEM.
        out_ref[...] = h_fin.astype(out_ref.dtype)

    return kernel


def lstm_final_scan(gx, mask, whh, *, tc):
    T, N, G4 = gx.shape
    Hp = whh.shape[0]
    tc = min(tc, T)
    Tpad = -(-T // tc) * tc
    if Tpad != T:
        pad = ((0, Tpad - T), (0, 0), (0, 0))
        gx = jnp.pad(gx, pad)
        mask = jnp.pad(mask, pad)
    G = Tpad // tc
    idx3 = lambda g: (g, 0, 0)                # noqa: E731

    return pl.pallas_call(
        _make_lstm_final_kernel(tc, Hp),
        grid=(G,),
        in_specs=[pl.BlockSpec((tc, N, G4), idx3),
                  pl.BlockSpec((tc, N, 1), idx3),
                  pl.BlockSpec((Hp, G4), lambda g: (0, 0))],
        out_specs=pl.BlockSpec((N, Hp), lambda g: (0, 0)),
        out_shape=jax.ShapeDtypeStruct((N, Hp), SEQ_DTYPE),
        scratch_shapes=[pltpu.VMEM((N, Hp), jnp.float32),
                        pltpu.VMEM((N, Hp), jnp.float32)],
        compiler_params=pltpu.CompilerParams(dimension_semantics=("arbitrary",)),
    )(gx, mask, whh)


# ------------------------- fused greedy decoder kernel ----------------------

def _decoder_kernel(h0_ref, enc_ref, mask_ref, whh_ref, bhh_ref, demb_ref,
                    wih_ref, bih_ref, wouth_ref, woutc_ref, bout_ref,
                    logits_ref, h_sc, tok_sc):
    """One decoding step (grid = (batch blocks, time)): GRU cell + Luong
    attention + output Linear + greedy argmax, everything resident in VMEM."""
    t = pl.program_id(1)
    bB, Cp = tok_sc.shape
    H2p = h_sc.shape[-1]

    @pl.when(t == 0)
    def _init():
        h_sc[...] = h0_ref[...].astype(jnp.float32)
        col0 = jax.lax.broadcasted_iota(jnp.int32, (bB, Cp), 1)
        tok_sc[...] = (col0 == 0).astype(jnp.float32)        # start token id 0

    h = h_sc[...]
    onehot = tok_sc[...]

    # Token embedding as two small matmuls: one-hot @ dec_emb, then @ W_ih.
    # (Resident table is (Cp,Ep)+(Ep,3H2p) instead of the folded (Cp,3H2p).)
    # TODO(synk): at large vocab replace the one-hot matmul with an SMEM-index
    #             row gather / DMA of the selected embedding rows, and tile the
    #             output projection over Cp with a running argmax.
    x_e = jnp.dot(onehot.astype(MXU_DTYPE), demb_ref[...],
                  preferred_element_type=jnp.float32)                 # (bB, Ep)
    gi = jnp.dot(x_e.astype(MXU_DTYPE), wih_ref[...],
                 preferred_element_type=jnp.float32) + bih_ref[...]   # (bB, 3*H2p)
    gh = jnp.dot(h.astype(MXU_DTYPE), whh_ref[...],
                 preferred_element_type=jnp.float32) + bhh_ref[...]   # (bB, 3*H2p)
    r = jax.nn.sigmoid(gi[:, 0 * H2p:1 * H2p] + gh[:, 0 * H2p:1 * H2p])
    z = jax.nn.sigmoid(gi[:, 1 * H2p:2 * H2p] + gh[:, 1 * H2p:2 * H2p])
    n = jnp.tanh(gi[:, 2 * H2p:3 * H2p] + r * gh[:, 2 * H2p:3 * H2p])
    h_new = (1.0 - z) * n + z * h                                     # (bB, H2p)

    # Luong attention: masked softmax over encoder positions (finite mask).
    enc = enc_ref[...].astype(jnp.float32)                            # (bB, T, H2p)
    e = jnp.sum(h_new[:, None, :] * enc, axis=-1)                     # (bB, T)
    e = jnp.where(mask_ref[...] > 0.5, e, -1e30)
    e_max = jnp.max(e, axis=-1, keepdims=True)
    p = jnp.exp(e - e_max)
    inv = pl.reciprocal(jnp.sum(p, axis=-1, keepdims=True), approx=True)
    alpha = p * inv
    ctx = jnp.sum(alpha[:, :, None] * enc, axis=1)                    # (bB, H2p)

    # Output projection, split weights instead of concat(h, ctx).
    logits = (jnp.dot(h_new.astype(MXU_DTYPE), wouth_ref[...],
                      preferred_element_type=jnp.float32)
              + jnp.dot(ctx.astype(MXU_DTYPE), woutc_ref[...],
                        preferred_element_type=jnp.float32)
              + bout_ref[...])                                        # (bB, Cp)
    logits_ref[0] = logits

    # Greedy next token: first index achieving the max (== argmax / topk(1)).
    col = jax.lax.broadcasted_iota(jnp.int32, (bB, Cp), 1)
    lmax = jnp.max(logits, axis=-1, keepdims=True)
    first = jnp.min(jnp.where(logits >= lmax, col, Cp), axis=-1, keepdims=True)
    tok_sc[...] = (col == first).astype(jnp.float32)
    h_sc[...] = h_new


def decoder_forward(pp, enc_pad, mask_f, h0, max_len):
    B, Tm, H2p = enc_pad.shape
    Cp = pp['b_out_p'].shape[-1]
    Ep = pp['dec_emb_p'].shape[-1]
    G3 = 3 * H2p
    bB = 8 if (B % 8 == 0 and B > 8) else B    # batch block (megacore axis on v7x)
    nb = B // bB
    cst = lambda b, t: (0, 0)                  # noqa: E731
    # TODO(synk): tile enc over Tm (online softmax) and the output weights over
    #             Cp for production sizes (v7x 64 MiB VMEM); single-buffer the
    #             invariant weight blocks (pipeline_mode=pl.Buffered(1)).
    return pl.pallas_call(
        _decoder_kernel,
        grid=(nb, max_len),
        in_specs=[
            pl.BlockSpec((bB, H2p), lambda b, t: (b, 0)),       # initial hidden
            pl.BlockSpec((bB, Tm, H2p), lambda b, t: (b, 0, 0)),  # encoder outputs
            pl.BlockSpec((bB, Tm), lambda b, t: (b, 0)),        # validity mask
            pl.BlockSpec((H2p, G3), cst),                       # GRU W_hh
            pl.BlockSpec((1, G3), cst),                         # GRU b_hh
            pl.BlockSpec((Cp, Ep), cst),                        # decoder embedding
            pl.BlockSpec((Ep, G3), cst),                        # GRU W_ih
            pl.BlockSpec((1, G3), cst),                         # GRU b_ih
            pl.BlockSpec((H2p, Cp), cst),                       # out weights (hidden)
            pl.BlockSpec((H2p, Cp), cst),                       # out weights (context)
            pl.BlockSpec((1, Cp), cst),                         # out bias (pad = -1e30)
        ],
        out_specs=pl.BlockSpec((1, bB, Cp), lambda b, t: (t, b, 0)),
        out_shape=jax.ShapeDtypeStruct((max_len, B, Cp), jnp.float32),
        scratch_shapes=[pltpu.VMEM((bB, H2p), jnp.float32),     # hidden state
                        pltpu.VMEM((bB, Cp), jnp.float32)],     # one-hot of input tok
        compiler_params=pltpu.CompilerParams(
            dimension_semantics=("parallel", "arbitrary")),
    )(h0, enc_pad, mask_f, pp['gru_whh_p'], pp['gru_bhh_p'], pp['dec_emb_p'],
      pp['gru_wih_p'], pp['gru_bih_p'], pp['w_out_h_p'], pp['w_out_c_p'],
      pp['b_out_p'])


# ------------------------------ model (glue) --------------------------------

def encoder_forward(pp, words, words_num, chars_pad, char_lens, He):
    B, T = words.shape
    Lc = chars_pad.shape[-1]
    H2 = 2 * He

    # ---- word path: embedding -> hoisted bf16 input projection -> fused bi-LSTM ----
    x_emb = pp['word_emb'][words]                        # (B, T, E) bf16
    xt = jnp.transpose(x_emb, (1, 0, 2))                 # (T, B, E), time-major
    gx_f = (jnp.einsum('tbe,eg->tbg', xt, pp['wl_f_wih_p'],
                       preferred_element_type=jnp.float32)
            + pp['wl_f_b_p']).astype(SEQ_DTYPE)
    gx_b = (jnp.einsum('tbe,eg->tbg', xt, pp['wl_b_wih_p'],
                       preferred_element_type=jnp.float32)
            + pp['wl_b_b_p']).astype(SEQ_DTYPE)
    tmask = (jnp.arange(T)[:, None] < words_num[None, :]
             ).astype(jnp.float32)[:, :, None]           # (T, B, 1)

    seq_f, seq_b = bilstm_scan(gx_f, gx_b, tmask,
                               pp['wl_f_whh_p'], pp['wl_b_whh_p'], tc=TC_CHUNK)
    word_out = jnp.concatenate([seq_f[..., :He], seq_b[..., :He]], axis=-1)
    word_out = jnp.transpose(word_out, (1, 0, 2))        # (B, T, 2*He)

    # ---- char path: per-word char LSTM, final hidden only ----
    c_emb = pp['char_emb'][chars_pad].reshape(B * T, Lc, -1)
    ct = jnp.transpose(c_emb, (1, 0, 2))                 # (Lc, B*T, E)
    gx_c = (jnp.einsum('lne,eg->lng', ct, pp['cl_wih_p'],
                       preferred_element_type=jnp.float32)
            + pp['cl_b_p']).astype(SEQ_DTYPE)
    cmask = (jnp.arange(Lc)[:, None] < char_lens.reshape(-1)[None, :]
             ).astype(jnp.float32)[:, :, None]
    char_fin = lstm_final_scan(gx_c, cmask, pp['cl_whh_p'], tc=TC_CHUNK)
    char_out = char_fin[:, :H2].reshape(B, T, H2)        # pad_sequence -> zeros

    return word_out + char_out                           # z = x + y


def seq2seq_forward(pp, words, words_num, chars_pad, char_lens, mask, *,
                    He, num_classes, max_len):
    enc = encoder_forward(pp, words, words_num, chars_pad, char_lens, He)
    H2p = pp['gru_whh_p'].shape[0]
    enc_d = enc[:, :max_len, :]                 # PyTorch enc output spans max(words_num)
    enc_pad = _pad_axis(enc_d, 2, H2p)          # (B, max_len, H2p) bf16
    h0 = enc_pad[:, max_len - 1, :]             # encoder_outputs[:, -1, :]
    mask_f = mask[:, :max_len].astype(jnp.float32)
    logits_tm = decoder_forward(pp, enc_pad, mask_f, h0, max_len)  # (max_len, B, Cp)
    return jnp.transpose(logits_tm, (1, 0, 2))[:, :, :num_classes]


# ------------------------------ parameters ----------------------------------

def init_params(key, word_vocab, char_vocab, we_dim, enc_hidden, num_classes):
    He = enc_hidden
    H2 = 2 * He
    shapes = {
        'word_emb': (word_vocab, we_dim),
        'char_emb': (char_vocab, we_dim),
        'wl_f_wih': (we_dim, 4 * He), 'wl_f_whh': (He, 4 * He), 'wl_f_b': (4 * He,),
        'wl_b_wih': (we_dim, 4 * He), 'wl_b_whh': (He, 4 * He), 'wl_b_b': (4 * He,),
        'cl_wih': (we_dim, 4 * H2), 'cl_whh': (H2, 4 * H2), 'cl_b': (4 * H2,),
        'dec_emb': (num_classes, we_dim),
        'gru_w_ih': (we_dim, 3 * H2), 'gru_w_hh': (H2, 3 * H2),
        'gru_b_ih': (3 * H2,), 'gru_b_hh': (3 * H2,),
        'w_out': (2 * H2, num_classes), 'b_out': (num_classes,),
    }
    params = {}
    keys = jax.random.split(key, len(shapes))
    for k, (name, shp) in zip(keys, sorted(shapes.items())):
        params[name] = (0.1 * jax.random.normal(k, shp)).astype(jnp.float32)
    return params


def prepare_params(p, He, num_classes):
    """Build the lane-padded / bf16 parameter set consumed by the kernels."""
    E = p['word_emb'].shape[1]
    H2 = 2 * He
    Hp = _round_up(He, LANE)
    H2p = _round_up(H2, LANE)
    Cp = _round_up(num_classes, LANE)
    Ep = _round_up(E, LANE)

    def lstm_pack(wih, whh, b, Hpad):
        wih_p = _pad_gates(wih, 4, 1).astype(MXU_DTYPE)              # (E, 4*Hpad)
        b_p = _pad_gates(b[None, :], 4, 1)                           # (1, 4*Hpad) f32
        whh_p = _pad_axis(_pad_gates(whh, 4, 1), 0, Hpad).astype(MXU_DTYPE)
        return wih_p, whh_p, b_p

    pp = {'word_emb': p['word_emb'].astype(MXU_DTYPE),
          'char_emb': p['char_emb'].astype(MXU_DTYPE)}
    pp['wl_f_wih_p'], pp['wl_f_whh_p'], pp['wl_f_b_p'] = lstm_pack(
        p['wl_f_wih'], p['wl_f_whh'], p['wl_f_b'], Hp)
    pp['wl_b_wih_p'], pp['wl_b_whh_p'], pp['wl_b_b_p'] = lstm_pack(
        p['wl_b_wih'], p['wl_b_whh'], p['wl_b_b'], Hp)
    pp['cl_wih_p'], pp['cl_whh_p'], pp['cl_b_p'] = lstm_pack(
        p['cl_wih'], p['cl_whh'], p['cl_b'], H2p)

    # Decoder: embedding table + GRU weights (gate order r, z, n).
    pp['dec_emb_p'] = _pad_axis(_pad_axis(p['dec_emb'], 1, Ep), 0, Cp
                                ).astype(MXU_DTYPE)                  # (Cp, Ep)
    pp['gru_wih_p'] = _pad_axis(_pad_gates(p['gru_w_ih'], 3, 1), 0, Ep
                                ).astype(MXU_DTYPE)                  # (Ep, 3*H2p)
    pp['gru_bih_p'] = _pad_gates(p['gru_b_ih'][None, :], 3, 1)       # (1, 3*H2p)
    pp['gru_whh_p'] = _pad_axis(_pad_gates(p['gru_w_hh'], 3, 1), 0, H2p
                                ).astype(MXU_DTYPE)                  # (H2p, 3*H2p)
    pp['gru_bhh_p'] = _pad_gates(p['gru_b_hh'][None, :], 3, 1)       # (1, 3*H2p)
    pp['w_out_h_p'] = _pad_axis(_pad_axis(p['w_out'][:H2], 1, Cp), 0, H2p
                                ).astype(MXU_DTYPE)
    pp['w_out_c_p'] = _pad_axis(_pad_axis(p['w_out'][H2:], 1, Cp), 0, H2p
                                ).astype(MXU_DTYPE)
    pp['b_out_p'] = jnp.full((1, Cp), -1e30, jnp.float32
                             ).at[0, :num_classes].set(p['b_out'])
    return pp


# --------------------------------- main --------------------------------------

if __name__ == "__main__":
    # small deterministic config
    B, T, Lc = 2, 8, 6
    we_dim, enc_hidden, num_classes = 16, 16, 10
    word_vocab, char_vocab = 50, 30

    root = jax.random.PRNGKey(0)
    kp, kw, kc, kl = jax.random.split(root, 4)

    raw = init_params(kp, word_vocab, char_vocab, we_dim, enc_hidden, num_classes)
    pp = prepare_params(raw, enc_hidden, num_classes)

    words = jax.random.randint(kw, (B, T), 0, word_vocab, dtype=jnp.int32)
    words_num = jnp.array([8, 5], dtype=jnp.int32)
    valid = jnp.arange(T)[None, :] < words_num[:, None]              # (B, T) bool
    chars_pad = jax.random.randint(kc, (B, T, Lc), 0, char_vocab, dtype=jnp.int32)
    char_lens = jax.random.randint(kl, (B, T), 1, Lc + 1, dtype=jnp.int32)
    char_lens = jnp.where(valid, char_lens, 0)                       # no chars for pad words

    max_len = int(jnp.max(words_num))                                # torch.max(...).item()

    fwd = jax.jit(seq2seq_forward,
                  static_argnames=('He', 'num_classes', 'max_len'))
    out = fwd(pp, words, words_num, chars_pad, char_lens, valid,
              He=enc_hidden, num_classes=num_classes, max_len=max_len)
    jax.block_until_ready(out)

    assert out.shape == (B, max_len, num_classes)
    assert bool(jnp.all(jnp.isfinite(out)))
    print("KERNEL_OK")
</pallas_src>

<mosaic_0001>
module attributes {stable_mosaic.version = 11 : i64} {
  func.func @kernel(%arg0: i32, %arg1: memref<6x16x512xbf16, #tpu.memory_space<vmem>>, %arg2: memref<6x16x1xf32, #tpu.memory_space<vmem>>, %arg3: memref<128x512xbf16, #tpu.memory_space<vmem>>, %arg4: memref<16x128xbf16, #tpu.memory_space<vmem>>, %arg5: memref<16x128xf32, #tpu.memory_space<vmem>>, %arg6: memref<16x128xf32, #tpu.memory_space<vmem>>) attributes {dimension_semantics = [#tpu.dimension_semantics<arbitrary>], iteration_bounds = array<i64: 1>, scalar_prefetch = 0 : i64, scratch_operands = 2 : i64, tpu.core_type = #tpu.core_type<tc>, window_params = [{transform_indices = @transform_0, window_bounds = array<i64: 6, 16, 512>}, {transform_indices = @transform_1, window_bounds = array<i64: 6, 16, 1>}, {pipeline_mode = #tpu.pipeline_mode<synchronous>, transform_indices = @transform_2, window_bounds = array<i64: 128, 512>}, {pipeline_mode = #tpu.pipeline_mode<synchronous>, transform_indices = @transform_3, window_bounds = array<i64: 16, 128>}]} {
    %c0_i32 = arith.constant 0 : i32
    %0 = arith.cmpi eq, %arg0, %c0_i32 : i32
    %1 = arith.extui %0 : i1 to i32
    %c0_i32_0 = arith.constant 0 : i32
    %2 = arith.cmpi ne, %1, %c0_i32_0 : i32
    scf.if %2 {
      %cst_82 = arith.constant 0.000000e+00 : f32
      %309 = vector.broadcast %cst_82 : f32 to vector<16x128xf32>
      %c0_83 = arith.constant 0 : index
      %c0_84 = arith.constant 0 : index
      %310 = vector.load %arg5[%c0_83, %c0_84] : memref<16x128xf32, #tpu.memory_space<vmem>>, vector<16x128xf32>
      tpu.vector_store %arg5[%c0_83, %c0_84], %309 {strides = array<i32>} : memref<16x128xf32, #tpu.memory_space<vmem>>, vector<16x128xf32>,
      %cst_85 = arith.constant 0.000000e+00 : f32
      %311 = vector.broadcast %cst_85 : f32 to vector<16x128xf32>
      %c0_86 = arith.constant 0 : index
      %c0_87 = arith.constant 0 : index
      %312 = vector.load %arg6[%c0_86, %c0_87] : memref<16x128xf32, #tpu.memory_space<vmem>>, vector<16x128xf32>
      tpu.vector_store %arg6[%c0_86, %c0_87], %311 {strides = array<i32>} : memref<16x128xf32, #tpu.memory_space<vmem>>, vector<16x128xf32>,
    } else {
    }
    %c0 = arith.constant 0 : index
    %c0_1 = arith.constant 0 : index
    %3 = vector.load %arg5[%c0, %c0_1] : memref<16x128xf32, #tpu.memory_space<vmem>>, vector<16x128xf32>
    %c0_2 = arith.constant 0 : index
    %c0_3 = arith.constant 0 : index
    %4 = vector.load %arg6[%c0_2, %c0_3] : memref<16x128xf32, #tpu.memory_space<vmem>>, vector<16x128xf32>
    %c0_i32_4 = arith.constant 0 : i32
    %5 = arith.index_cast %c0_i32_4 : i32 to index
    %c0_5 = arith.constant 0 : index
    %c0_6 = arith.constant 0 : index
    %6 = vector.load %arg1[%5, %c0_5, %c0_6] : memref<6x16x512xbf16, #tpu.memory_space<vmem>>, vector<1x16x512xbf16>
    %7 = vector.shape_cast %6 : vector<1x16x512xbf16> to vector<16x512xbf16>
    %8 = arith.truncf %3 : vector<16x128xf32> to vector<16x128xbf16>
    %c0_7 = arith.constant 0 : index
    %c0_8 = arith.constant 0 : index
    %9 = vector.load %arg3[%c0_7, %c0_8] : memref<128x512xbf16, #tpu.memory_space<vmem>>, vector<128x512xbf16>
    %cst = arith.constant dense<0.000000e+00> : vector<16x512xf32>
    %10 = tpu.matmul %8, %9, %cst {dimension_numbers = #tpu.dot_dimension_numbers<[1], [0], [0], [1], [0, 0, 1, 1], [], []>} : vector<16x128xbf16>, vector<128x512xbf16>, vector<16x512xf32> -> vector<16x512xf32>
    %11 = arith.extf %7 : vector<16x512xbf16> to vector<16x512xf32>
    %12 = arith.addf %11, %10 : vector<16x512xf32>
    %13 = arith.index_cast %c0_i32_4 : i32 to index
    %c0_9 = arith.constant 0 : index
    %c0_10 = arith.constant 0 : index
    %14 = vector.load %arg2[%13, %c0_9, %c0_10] : memref<6x16x1xf32, #tpu.memory_space<vmem>>, vector<1x16x1xf32>
    %15 = vector.shape_cast %14 : vector<1x16x1xf32> to vector<16x1xf32>
    %16 = vector.extract_strided_slice %12 {offsets = [0, 0], sizes = [16, 128], strides = [1, 1]} : vector<16x512xf32> to vector<16x128xf32>
    %17 = arith.negf %16 : vector<16x128xf32>
    %18 = math.exp %17 : vector<16x128xf32>
    %cst_11 = arith.constant 1.000000e+00 : f32
    %19 = vector.broadcast %cst_11 : f32 to vector<16x128xf32>
    %20 = arith.addf %19, %18 : vector<16x128xf32>
    %21 = arith.divf %19, %20 : vector<16x128xf32>
    %22 = vector.extract_strided_slice %12 {offsets = [0, 128], sizes = [16, 128], strides = [1, 1]} : vector<16x512xf32> to vector<16x128xf32>
    %23 = arith.negf %22 : vector<16x128xf32>
    %24 = math.exp %23 : vector<16x128xf32>
    %cst_12 = arith.constant 1.000000e+00 : f32
    %25 = vector.broadcast %cst_12 : f32 to vector<16x128xf32>
    %26 = arith.addf %25, %24 : vector<16x128xf32>
    %27 = arith.divf %25, %26 : vector<16x128xf32>
    %28 = vector.extract_strided_slice %12 {offsets = [0, 256], sizes = [16, 128], strides = [1, 1]} : vector<16x512xf32> to vector<16x128xf32>
    %29 = math.tanh %28 : vector<16x128xf32>
    %30 = vector.extract_strided_slice %12 {offsets = [0, 384], sizes = [16, 128], strides = [1, 1]} : vector<16x512xf32> to vector<16x128xf32>
    %31 = arith.negf %30 : vector<16x128xf32>
    %32 = math.exp %31 : vector<16x128xf32>
    %cst_13 = arith.constant 1.000000e+00 : f32
    %33 = vector.broadcast %cst_13 : f32 to vector<16x128xf32>
    %34 = arith.addf %33, %32 : vector<16x128xf32>
    %35 = arith.divf %33, %34 : vector<16x128xf32>
    %36 = arith.mulf %27, %4 : vector<16x128xf32>
    %37 = arith.mulf %21, %29 : vector<16x128xf32>
    %38 = arith.addf %36, %37 : vector<16x128xf32>
    %39 = math.tanh %38 : vector<16x128xf32>
    %40 = arith.mulf %35, %39 : vector<16x128xf32>
    %41 = vector.broadcast %15 : vector<16x1xf32> to vector<16x128xf32>
    %42 = arith.mulf %41, %40 : vector<16x128xf32>
    %cst_14 = arith.constant 1.000000e+00 : f32
    %43 = vector.broadcast %cst_14 : f32 to vector<16x1xf32>
    %44 = arith.subf %43, %15 : vector<16x1xf32>
    %45 = vector.broadcast %44 : vector<16x1xf32> to vector<16x128xf32>
    %46 = arith.mulf %45, %3 : vector<16x128xf32>
    %47 = arith.addf %42, %46 : vector<16x128xf32>
    %48 = vector.broadcast %15 : vector<16x1xf32> to vector<16x128xf32>
    %49 = arith.mulf %48, %38 : vector<16x128xf32>
    %cst_15 = arith.constant 1.000000e+00 : f32
    %50 = vector.broadcast %cst_15 : f32 to vector<16x1xf32>
    %51 = arith.subf %50, %15 : vector<16x1xf32>
    %52 = vector.broadcast %51 : vector<16x1xf32> to vector<16x128xf32>
    %53 = arith.mulf %52, %4 : vector<16x128xf32>
    %54 = arith.addf %49, %53 : vector<16x128xf32>
    %c1_i32 = arith.constant 1 : i32
    %55 = arith.index_cast %c1_i32 : i32 to index
    %c0_16 = arith.constant 0 : index
    %c0_17 = arith.constant 0 : index
    %56 = vector.load %arg1[%55, %c0_16, %c0_17] : memref<6x16x512xbf16, #tpu.memory_space<vmem>>, vector<1x16x512xbf16>
    %57 = vector.shape_cast %56 : vector<1x16x512xbf16> to vector<16x512xbf16>
    %58 = arith.truncf %47 : vector<16x128xf32> to vector<16x128xbf16>
    %c0_18 = arith.constant 0 : index
    %c0_19 = arith.constant 0 : index
    %59 = vector.load %arg3[%c0_18, %c0_19] : memref<128x512xbf16, #tpu.memory_space<vmem>>, vector<128x512xbf16>
    %cst_20 = arith.constant dense<0.000000e+00> : vector<16x512xf32>
    %60 = tpu.matmul %58, %59, %cst_20 {dimension_numbers = #tpu.dot_dimension_numbers<[1], [0], [0], [1], [0, 0, 1, 1], [], []>} : vector<16x128xbf16>, vector<128x512xbf16>, vector<16x512xf32> -> vector<16x512xf32>
    %61 = arith.extf %57 : vector<16x512xbf16> to vector<16x512xf32>
    %62 = arith.addf %61, %60 : vector<16x512xf32>
    %63 = arith.index_cast %c1_i32 : i32 to index
    %c0_21 = arith.constant 0 : index
    %c0_22 = arith.constant 0 : index
    %64 = vector.load %arg2[%63, %c0_21, %c0_22] : memref<6x16x1xf32, #tpu.memory_space<vmem>>, vector<1x16x1xf32>
    %65 = vector.shape_cast %64 : vector<1x16x1xf32> to vector<16x1xf32>
    %66 = vector.extract_strided_slice %62 {offsets = [0, 0], sizes = [16, 128], strides = [1, 1]} : vector<16x512xf32> to vector<16x128xf32>
    %67 = arith.negf %66 : vector<16x128xf32>
    %68 = math.exp %67 : vector<16x128xf32>
    %cst_23 = arith.constant 1.000000e+00 : f32
    %69 = vector.broadcast %cst_23 : f32 to vector<16x128xf32>
    %70 = arith.addf %69, %68 : vector<16x128xf32>
    %71 = arith.divf %69, %70 : vector<16x128xf32>
    %72 = vector.extract_strided_slice %62 {offsets = [0, 128], sizes = [16, 128], strides = [1, 1]} : vector<16x512xf32> to vector<16x128xf32>
    %73 = arith.negf %72 : vector<16x128xf32>
    %74 = math.exp %73 : vector<16x128xf32>
    %cst_24 = arith.constant 1.000000e+00 : f32
    %75 = vector.broadcast %cst_24 : f32 to vector<16x128xf32>
    %76 = arith.addf %75, %74 : vector<16x128xf32>
    %77 = arith.divf %75, %76 : vector<16x128xf32>
    %78 = vector.extract_strided_slice %62 {offsets = [0, 256], sizes = [16, 128], strides = [1, 1]} : vector<16x512xf32> to vector<16x128xf32>
    %79 = math.tanh %78 : vector<16x128xf32>
    %80 = vector.extract_strided_slice %62 {offsets = [0, 384], sizes = [16, 128], strides = [1, 1]} : vector<16x512xf32> to vector<16x128xf32>
    %81 = arith.negf %80 : vector<16x128xf32>
    %82 = math.exp %81 : vector<16x128xf32>
    %cst_25 = arith.constant 1.000000e+00 : f32
    %83 = vector.broadcast %cst_25 : f32 to vector<16x128xf32>
    %84 = arith.addf %83, %82 : vector<16x128xf32>
    %85 = arith.divf %83, %84 : vector<16x128xf32>
    %86 = arith.mulf %77, %54 : vector<16x128xf32>
    %87 = arith.mulf %71, %79 : vector<16x128xf32>
    %88 = arith.addf %86, %87 : vector<16x128xf32>
    %89 = math.tanh %88 : vector<16x128xf32>
    %90 = arith.mulf %85, %89 : vector<16x128xf32>
    %91 = vector.broadcast %65 : vector<16x1xf32> to vector<16x128xf32>
    %92 = arith.mulf %91, %90 : vector<16x128xf32>
    %cst_26 = arith.constant 1.000000e+00 : f32
    %93 = vector.broadcast %cst_26 : f32 to vector<16x1xf32>
    %94 = arith.subf %93, %65 : vector<16x1xf32>
    %95 = vector.broadcast %94 : vector<16x1xf32> to vector<16x128xf32>
    %96 = arith.mulf %95, %47 : vector<16x128xf32>
    %97 = arith.addf %92, %96 : vector<16x128xf32>
    %98 = vector.broadcast %65 : vector<16x1xf32> to vector<16x128xf32>
    %99 = arith.mulf %98, %88 : vector<16x128xf32>
    %cst_27 = arith.constant 1.000000e+00 : f32
    %100 = vector.broadcast %cst_27 : f32 to vector<16x1xf32>
    %101 = arith.subf %100, %65 : vector<16x1xf32>
    %102 = vector.broadcast %101 : vector<16x1xf32> to vector<16x128xf32>
    %103 = arith.mulf %102, %54 : vector<16x128xf32>
    %104 = arith.addf %99, %103 : vector<16x128xf32>
    %c2_i32 = arith.constant 2 : i32
    %105 = arith.index_cast %c2_i32 : i32 to index
    %c0_28 = arith.constant 0 : index
    %c0_29 = arith.constant 0 : index
    %106 = vector.load %arg1[%105, %c0_28, %c0_29] : memref<6x16x512xbf16, #tpu.memory_space<vmem>>, vector<1x16x512xbf16>
    %107 = vector.shape_cast %106 : vector<1x16x512xbf16> to vector<16x512xbf16>
    %108 = arith.truncf %97 : vector<16x128xf32> to vector<16x128xbf16>
    %c0_30 = arith.constant 0 : index
    %c0_31 = arith.constant 0 : index
    %109 = vector.load %arg3[%c0_30, %c0_31] : memref<128x512xbf16, #tpu.memory_space<vmem>>, vector<128x512xbf16>
    %cst_32 = arith.constant dense<0.000000e+00> : vector<16x512xf32>
    %110 = tpu.matmul %108, %109, %cst_32 {dimension_numbers = #tpu.dot_dimension_numbers<[1], [0], [0], [1], [0, 0, 1, 1], [], []>} : vector<16x128xbf16>, vector<128x512xbf16>, vector<16x512xf32> -> vector<16x512xf32>
    %111 = arith.extf %107 : vector<16x512xbf16> to vector<16x512xf32>
    %112 = arith.addf %111, %110 : vector<16x512xf32>
    %113 = arith.index_cast %c2_i32 : i32 to index
    %c0_33 = arith.constant 0 : index
    %c0_34 = arith.constant 0 : index
    %114 = vector.load %arg2[%113, %c0_33, %c0_34] : memref<6x16x1xf32, #tpu.memory_space<vmem>>, vector<1x16x1xf32>
    %115 = vector.shape_cast %114 : vector<1x16x1xf32> to vector<16x1xf32>
    %116 = vector.extract_strided_slice %112 {offsets = [0, 0], sizes = [16, 128], strides = [1, 1]} : vector<16x512xf32> to vector<16x128xf32>
    %117 = arith.negf %116 : vector<16x128xf32>
    %118 = math.exp %117 : vector<16x128xf32>
    %cst_35 = arith.constant 1.000000e+00 : f32
    %119 = vector.broadcast %cst_35 : f32 to vector<16x128xf32>
    %120 = arith.addf %119, %118 : vector<16x128xf32>
    %121 = arith.divf %119, %120 : vector<16x128xf32>
    %122 = vector.extract_strided_slice %112 {offsets = [0, 128], sizes = [16, 128], strides = [1, 1]} : vector<16x512xf32> to vector<16x128xf32>
    %123 = arith.negf %122 : vector<16x128xf32>
    %124 = math.exp %123 : vector<16x128xf32>
    %cst_36 = arith.constant 1.000000e+00 : f32
    %125 = vector.broadcast %cst_36 : f32 to vector<16x128xf32>
    %126 = arith.addf %125, %124 : vector<16x128xf32>
    %127 = arith.divf %125, %126 : vector<16x128xf32>
    %128 = vector.extract_strided_slice %112 {offsets = [0, 256], sizes = [16, 128], strides = [1, 1]} : vector<16x512xf32> to vector<16x128xf32>
    %129 = math.tanh %128 : vector<16x128xf32>
    %130 = vector.extract_strided_slice %112 {offsets = [0, 384], sizes = [16, 128], strides = [1, 1]} : vector<16x512xf32> to vector<16x128xf32>
    %131 = arith.negf %130 : vector<16x128xf32>
    %132 = math.exp %131 : vector<16x128xf32>
    %cst_37 = arith.constant 1.000000e+00 : f32
    %133 = vector.broadcast %cst_37 : f32 to vector<16x128xf32>
    %134 = arith.addf %133, %132 : vector<16x128xf32>
    %135 = arith.divf %133, %134 : vector<16x128xf32>
    %136 = arith.mulf %127, %104 : vector<16x128xf32>
    %137 = arith.mulf %121, %129 : vector<16x128xf32>
    %138 = arith.addf %136, %137 : vector<16x128xf32>
    %139 = math.tanh %138 : vector<16x128xf32>
    %140 = arith.mulf %135, %139 : vector<16x128xf32>
    %141 = vector.broadcast %115 : vector<16x1xf32> to vector<16x128xf32>
    %142 = arith.mulf %141, %140 : vector<16x128xf32>
    %cst_38 = arith.constant 1.000000e+00 : f32
    %143 = vector.broadcast %cst_38 : f32 to vector<16x1xf32>
    %144 = arith.subf %143, %115 : vector<16x1xf32>
    %145 = vector.broadcast %144 : vector<16x1xf32> to vector<16x128xf32>
    %146 = arith.mulf %145, %97 : vector<16x128xf32>
    %147 = arith.addf %142, %146 : vector<16x128xf32>
    %148 = vector.broadcast %115 : vector<16x1xf32> to vector<16x128xf32>
    %149 = arith.mulf %148, %138 : vector<16x128xf32>
    %cst_39 = arith.constant 1.000000e+00 : f32
    %150 = vector.broadcast %cst_39 : f32 to vector<16x1xf32>
    %151 = arith.subf %150, %115 : vector<16x1xf32>
    %152 = vector.broadcast %151 : vector<16x1xf32> to vector<16x128xf32>
    %153 = arith.mulf %152, %104 : vector<16x128xf32>
    %154 = arith.addf %149, %153 : vector<16x128xf32>
    %c3_i32 = arith.constant 3 : i32
    %155 = arith.index_cast %c3_i32 : i32 to index
    %c0_40 = arith.constant 0 : index
    %c0_41 = arith.constant 0 : index
    %156 = vector.load %arg1[%155, %c0_40, %c0_41] : memref<6x16x512xbf16, #tpu.memory_space<vmem>>, vector<1x16x512xbf16>
    %157 = vector.shape_cast %156 : vector<1x16x512xbf16> to vector<16x512xbf16>
    %158 = arith.truncf %147 : vector<16x128xf32> to vector<16x128xbf16>
    %c0_42 = arith.constant 0 : index
    %c0_43 = arith.constant 0 : index
    %159 = vector.load %arg3[%c0_42, %c0_43] : memref<128x512xbf16, #tpu.memory_space<vmem>>, vector<128x512xbf16>
    %cst_44 = arith.constant dense<0.000000e+00> : vector<16x512xf32>
    %160 = tpu.matmul %158, %159, %cst_44 {dimension_numbers = #tpu.dot_dimension_numbers<[1], [0], [0], [1], [0, 0, 1, 1], [], []>} : vector<16x128xbf16>, vector<128x512xbf16>, vector<16x512xf32> -> vector<16x512xf32>
    %161 = arith.extf %157 : vector<16x512xbf16> to vector<16x512xf32>
    %162 = arith.addf %161, %160 : vector<16x512xf32>
    %163 = arith.index_cast %c3_i32 : i32 to index
    %c0_45 = arith.constant 0 : index
    %c0_46 = arith.constant 0 : index
    %164 = vector.load %arg2[%163, %c0_45, %c0_46] : memref<6x16x1xf32, #tpu.memory_space<vmem>>, vector<1x16x1xf32>
    %165 = vector.shape_cast %164 : vector<1x16x1xf32> to vector<16x1xf32>
    %166 = vector.extract_strided_slice %162 {offsets = [0, 0], sizes = [16, 128], strides = [1, 1]} : vector<16x512xf32> to vector<16x128xf32>
    %167 = arith.negf %166 : vector<16x128xf32>
    %168 = math.exp %167 : vector<16x128xf32>
    %cst_47 = arith.constant 1.000000e+00 : f32
    %169 = vector.broadcast %cst_47 : f32 to vector<16x128xf32>
    %170 = arith.addf %169, %168 : vector<16x128xf32>
    %171 = arith.divf %169, %170 : vector<16x128xf32>
    %172 = vector.extract_strided_slice %162 {offsets = [0, 128], sizes = [16, 128], strides = [1, 1]} : vector<16x512xf32> to vector<16x128xf32>
    %173 = arith.negf %172 : vector<16x128xf32>
    %174 = math.exp %173 : vector<16x128xf32>
    %cst_48 = arith.constant 1.000000e+00 : f32
    %175 = vector.broadcast %cst_48 : f32 to vector<16x128xf32>
    %176 = arith.addf %175, %174 : vector<16x128xf32>
    %177 = arith.divf %175, %176 : vector<16x128xf32>
    %178 = vector.extract_strided_slice %162 {offsets = [0, 256], sizes = [16, 128], strides = [1, 1]} : vector<16x512xf32> to vector<16x128xf32>
    %179 = math.tanh %178 : vector<16x128xf32>
    %180 = vector.extract_strided_slice %162 {offsets = [0, 384], sizes = [16, 128], strides = [1, 1]} : vector<16x512xf32> to vector<16x128xf32>
    %181 = arith.negf %180 : vector<16x128xf32>
    %182 = math.exp %181 : vector<16x128xf32>
    %cst_49 = arith.constant 1.000000e+00 : f32
    %183 = vector.broadcast %cst_49 : f32 to vector<16x128xf32>
    %184 = arith.addf %183, %182 : vector<16x128xf32>
    %185 = arith.divf %183, %184 : vector<16x128xf32>
    %186 = arith.mulf %177, %154 : vector<16x128xf32>
    %187 = arith.mulf %171, %179 : vector<16x128xf32>
    %188 = arith.addf %186, %187 : vector<16x128xf32>
    %189 = math.tanh %188 : vector<16x128xf32>
    %190 = arith.mulf %185, %189 : vector<16x128xf32>
    %191 = vector.broadcast %165 : vector<16x1xf32> to vector<16x128xf32>
    %192 = arith.mulf %191, %190 : vector<16x128xf32>
    %cst_50 = arith.constant 1.000000e+00 : f32
    %193 = vector.broadcast %cst_50 : f32 to vector<16x1xf32>
    %194 = arith.subf %193, %165 : vector<16x1xf32>
    %195 = vector.broadcast %194 : vector<16x1xf32> to vector<16x128xf32>
    %196 = arith.mulf %195, %147 : vector<16x128xf32>
    %197 = arith.addf %192, %196 : vector<16x128xf32>
    %198 = vector.broadcast %165 : vector<16x1xf32> to vector<16x128xf32>
    %199 = arith.mulf %198, %188 : vector<16x128xf32>
    %cst_51 = arith.constant 1.000000e+00 : f32
    %200 = vector.broadcast %cst_51 : f32 to vector<16x1xf32>
    %201 = arith.subf %200, %165 : vector<16x1xf32>
    %202 = vector.broadcast %201 : vector<16x1xf32> to vector<16x128xf32>
    %203 = arith.mulf %202, %154 : vector<16x128xf32>
    %204 = arith.addf %199, %203 : vector<16x128xf32>
    %c4_i32 = arith.constant 4 : i32
    %205 = arith.index_cast %c4_i32 : i32 to index
    %c0_52 = arith.constant 0 : index
    %c0_53 = arith.constant 0 : index
    %206 = vector.load %arg1[%205, %c0_52, %c0_53] : memref<6x16x512xbf16, #tpu.memory_space<vmem>>, vector<1x16x512xbf16>
    %207 = vector.shape_cast %206 : vector<1x16x512xbf16> to vector<16x512xbf16>
    %208 = arith.truncf %197 : vector<16x128xf32> to vector<16x128xbf16>
    %c0_54 = arith.constant 0 : index
    %c0_55 = arith.constant 0 : index
    %209 = vector.load %arg3[%c0_54, %c0_55] : memref<128x512xbf16, #tpu.memory_space<vmem>>, vector<128x512xbf16>
    %cst_56 = arith.constant dense<0.000000e+00> : vector<16x512xf32>
    %210 = tpu.matmul %208, %209, %cst_56 {dimension_numbers = #tpu.dot_dimension_numbers<[1], [0], [0], [1], [0, 0, 1, 1], [], []>} : vector<16x128xbf16>, vector<128x512xbf16>, vector<16x512xf32> -> vector<16x512xf32>
    %211 = arith.extf %207 : vector<16x512xbf16> to vector<16x512xf32>
    %212 = arith.addf %211, %210 : vector<16x512xf32>
    %213 = arith.index_cast %c4_i32 : i32 to index
    %c0_57 = arith.constant 0 : index
    %c0_58 = arith.constant 0 : index
    %214 = vector.load %arg2[%213, %c0_57, %c0_58] : memref<6x16x1xf32, #tpu.memory_space<vmem>>, vector<1x16x1xf32>
    %215 = vector.shape_cast %214 : vector<1x16x1xf32> to vector<16x1xf32>
    %216 = vector.extract_strided_slice %212 {offsets = [0, 0], sizes = [16, 128], strides = [1, 1]} : vector<16x512xf32> to vector<16x128xf32>
    %217 = arith.negf %216 : vector<16x128xf32>
    %218 = math.exp %217 : vector<16x128xf32>
    %cst_59 = arith.constant 1.000000e+00 : f32
    %219 = vector.broadcast %cst_59 : f32 to vector<16x128xf32>
    %220 = arith.addf %219, %218 : vector<16x128xf32>
    %221 = arith.divf %219, %220 : vector<16x128xf32>
    %222 = vector.extract_strided_slice %212 {offsets = [0, 128], sizes = [16, 128], strides = [1, 1]} : vector<16x512xf32> to vector<16x128xf32>
    %223 = arith.negf %222 : vector<16x128xf32>
    %224 = math.exp %223 : vector<16x128xf32>
    %cst_60 = arith.constant 1.000000e+00 : f32
    %225 = vector.broadcast %cst_60 : f32 to vector<16x128xf32>
    %226 = arith.addf %225, %224 : vector<16x128xf32>
    %227 = arith.divf %225, %226 : vector<16x128xf32>
    %228 = vector.extract_strided_slice %212 {offsets = [0, 256], sizes = [16, 128], strides = [1, 1]} : vector<16x512xf32> to vector<16x128xf32>
    %229 = math.tanh %228 : vector<16x128xf32>
    %230 = vector.extract_strided_slice %212 {offsets = [0, 384], sizes = [16, 128], strides = [1, 1]} : vector<16x512xf32> to vector<16x128xf32>
    %231 = arith.negf %230 : vector<16x128xf32>
    %232 = math.exp %231 : vector<16x128xf32>
    %cst_61 = arith.constant 1.000000e+00 : f32
    %233 = vector.broadcast %cst_61 : f32 to vector<16x128xf32>
    %234 = arith.addf %233, %232 : vector<16x128xf32>
    %235 = arith.divf %233, %234 : vector<16x128xf32>
    %236 = arith.mulf %227, %204 : vector<16x128xf32>
    %237 = arith.mulf %221, %229 : vector<16x128xf32>
    %238 = arith.addf %236, %237 : vector<16x128xf32>
    %239 = math.tanh %238 : vector<16x128xf32>
    %240 = arith.mulf %235, %239 : vector<16x128xf32>
    %241 = vector.broadcast %215 : vector<16x1xf32> to vector<16x128xf32>
    %242 = arith.mulf %241, %240 : vector<16x128xf32>
    %cst_62 = arith.constant 1.000000e+00 : f32
    %243 = vector.broadcast %cst_62 : f32 to vector<16x1xf32>
    %244 = arith.subf %243, %215 : vector<16x1xf32>
    %245 = vector.broadcast %244 : vector<16x1xf32> to vector<16x128xf32>
    %246 = arith.mulf %245, %197 : vector<16x128xf32>
    %247 = arith.addf %242, %246 : vector<16x128xf32>
    %248 = vector.broadcast %215 : vector<16x1xf32> to vector<16x128xf32>
    %249 = arith.mulf %248, %238 : vector<16x128xf32>
    %cst_63 = arith.constant 1.000000e+00 : f32
    %250 = vector.broadcast %cst_63 : f32 to vector<16x1xf32>
    %251 = arith.subf %250, %215 : vector<16x1xf32>
    %252 = vector.broadcast %251 : vector<16x1xf32> to vector<16x128xf32>
    %253 = arith.mulf %252, %204 : vector<16x128xf32>
    %254 = arith.addf %249, %253 : vector<16x128xf32>
    %c5_i32 = arith.constant 5 : i32
    %255 = arith.index_cast %c5_i32 : i32 to index
    %c0_64 = arith.constant 0 : index
    %c0_65 = arith.constant 0 : index
    %256 = vector.load %arg1[%255, %c0_64, %c0_65] : memref<6x16x512xbf16, #tpu.memory_space<vmem>>, vector<1x16x512xbf16>
    %257 = vector.shape_cast %256 : vector<1x16x512xbf16> to vector<16x512xbf16>
    %258 = arith.truncf %247 : vector<16x128xf32> to vector<16x128xbf16>
    %c0_66 = arith.constant 0 : index
    %c0_67 = arith.constant 0 : index
    %259 = vector.load %arg3[%c0_66, %c0_67] : memref<128x512xbf16, #tpu.memory_space<vmem>>, vector<128x512xbf16>
    %cst_68 = arith.constant dense<0.000000e+00> : vector<16x512xf32>
    %260 = tpu.matmul %258, %259, %cst_68 {dimension_numbers = #tpu.dot_dimension_numbers<[1], [0], [0], [1], [0, 0, 1, 1], [], []>} : vector<16x128xbf16>, vector<128x512xbf16>, vector<16x512xf32> -> vector<16x512xf32>
    %261 = arith.extf %257 : vector<16x512xbf16> to vector<16x512xf32>
    %262 = arith.addf %261, %260 : vector<16x512xf32>
    %263 = arith.index_cast %c5_i32 : i32 to index
    %c0_69 = arith.constant 0 : index
    %c0_70 = arith.constant 0 : index
    %264 = vector.load %arg2[%263, %c0_69, %c0_70] : memref<6x16x1xf32, #tpu.memory_space<vmem>>, vector<1x16x1xf32>
    %265 = vector.shape_cast %264 : vector<1x16x1xf32> to vector<16x1xf32>
    %266 = vector.extract_strided_slice %262 {offsets = [0, 0], sizes = [16, 128], strides = [1, 1]} : vector<16x512xf32> to vector<16x128xf32>
    %267 = arith.negf %266 : vector<16x128xf32>
    %268 = math.exp %267 : vector<16x128xf32>
    %cst_71 = arith.constant 1.000000e+00 : f32
    %269 = vector.broadcast %cst_71 : f32 to vector<16x128xf32>
    %270 = arith.addf %269, %268 : vector<16x128xf32>
    %271 = arith.divf %269, %270 : vector<16x128xf32>
    %272 = vector.extract_strided_slice %262 {offsets = [0, 128], sizes = [16, 128], strides = [1, 1]} : vector<16x512xf32> to vector<16x128xf32>
    %273 = arith.negf %272 : vector<16x128xf32>
    %274 = math.exp %273 : vector<16x128xf32>
    %cst_72 = arith.constant 1.000000e+00 : f32
    %275 = vector.broadcast %cst_72 : f32 to vector<16x128xf32>
    %276 = arith.addf %275, %274 : vector<16x128xf32>
    %277 = arith.divf %275, %276 : vector<16x128xf32>
    %278 = vector.extract_strided_slice %262 {offsets = [0, 256], sizes = [16, 128], strides = [1, 1]} : vector<16x512xf32> to vector<16x128xf32>
    %279 = math.tanh %278 : vector<16x128xf32>
    %280 = vector.extract_strided_slice %262 {offsets = [0, 384], sizes = [16, 128], strides = [1, 1]} : vector<16x512xf32> to vector<16x128xf32>
    %281 = arith.negf %280 : vector<16x128xf32>
    %282 = math.exp %281 : vector<16x128xf32>
    %cst_73 = arith.constant 1.000000e+00 : f32
    %283 = vector.broadcast %cst_73 : f32 to vector<16x128xf32>
    %284 = arith.addf %283, %282 : vector<16x128xf32>
    %285 = arith.divf %283, %284 : vector<16x128xf32>
    %286 = arith.mulf %277, %254 : vector<16x128xf32>
    %287 = arith.mulf %271, %279 : vector<16x128xf32>
    %288 = arith.addf %286, %287 : vector<16x128xf32>
    %289 = math.tanh %288 : vector<16x128xf32>
    %290 = arith.mulf %285, %289 : vector<16x128xf32>
    %291 = vector.broadcast %265 : vector<16x1xf32> to vector<16x128xf32>
    %292 = arith.mulf %291, %290 : vector<16x128xf32>
    %cst_74 = arith.constant 1.000000e+00 : f32
    %293 = vector.broadcast %cst_74 : f32 to vector<16x1xf32>
    %294 = arith.subf %293, %265 : vector<16x1xf32>
    %295 = vector.broadcast %294 : vector<16x1xf32> to vector<16x128xf32>
    %296 = arith.mulf %295, %247 : vector<16x128xf32>
    %297 = arith.addf %292, %296 : vector<16x128xf32>
    %298 = vector.broadcast %265 : vector<16x1xf32> to vector<16x128xf32>
    %299 = arith.mulf %298, %288 : vector<16x128xf32>
    %cst_75 = arith.constant 1.000000e+00 : f32
    %300 = vector.broadcast %cst_75 : f32 to vector<16x1xf32>
    %301 = arith.subf %300, %265 : vector<16x1xf32>
    %302 = vector.broadcast %301 : vector<16x1xf32> to vector<16x128xf32>
    %303 = arith.mulf %302, %254 : vector<16x128xf32>
    %304 = arith.addf %299, %303 : vector<16x128xf32>
    %c6_i32 = arith.constant 6 : i32
    %c0_76 = arith.constant 0 : index
    %c0_77 = arith.constant 0 : index
    %305 = vector.load %arg5[%c0_76, %c0_77] : memref<16x128xf32, #tpu.memory_space<vmem>>, vector<16x128xf32>
    tpu.vector_store %arg5[%c0_76, %c0_77], %297 {strides = array<i32>} : memref<16x128xf32, #tpu.memory_space<vmem>>, vector<16x128xf32>,
    %c0_78 = arith.constant 0 : index
    %c0_79 = arith.constant 0 : index
    %306 = vector.load %arg6[%c0_78, %c0_79] : memref<16x128xf32, #tpu.memory_space<vmem>>, vector<16x128xf32>
    tpu.vector_store %arg6[%c0_78, %c0_79], %304 {strides = array<i32>} : memref<16x128xf32, #tpu.memory_space<vmem>>, vector<16x128xf32>,
    %307 = arith.truncf %297 : vector<16x128xf32> to vector<16x128xbf16>
    %c0_80 = arith.constant 0 : index
    %c0_81 = arith.constant 0 : index
    %308 = vector.load %arg4[%c0_80, %c0_81] : memref<16x128xbf16, #tpu.memory_space<vmem>>, vector<16x128xbf16>
    tpu.vector_store %arg4[%c0_80, %c0_81], %307 {strides = array<i32>} : memref<16x128xbf16, #tpu.memory_space<vmem>>, vector<16x128xbf16>,
    return
  }
  func.func @transform_0(%arg0: i32) -> (i32, i32, i32) {
    %c0_i32 = arith.constant 0 : i32
    %c0_i32_0 = arith.constant 0 : i32
    %c0_i32_1 = arith.constant 0 : i32
    return %arg0, %c0_i32, %c0_i32_0 : i32, i32, i32
  }
  func.func @transform_1(%arg0: i32) -> (i32, i32, i32) {
    %c0_i32 = arith.constant 0 : i32
    %c0_i32_0 = arith.constant 0 : i32
    %c0_i32_1 = arith.constant 0 : i32
    return %arg0, %c0_i32, %c0_i32_0 : i32, i32, i32
  }
  func.func @transform_2(%arg0: i32) -> (i32, i32) {
    %c0_i32 = arith.constant 0 : i32
    %c0_i32_0 = arith.constant 0 : i32
    %c0_i32_1 = arith.constant 0 : i32
    return %c0_i32, %c0_i32_0 : i32, i32
  }
  func.func @transform_3(%arg0: i32) -> (i32, i32) {
    %c0_i32 = arith.constant 0 : i32
    %c0_i32_0 = arith.constant 0 : i32
    %c0_i32_1 = arith.constant 0 : i32
    return %c0_i32, %c0_i32_0 : i32, i32
  }
}

module attributes {stable_mosaic.version = 11 : i64} {
  func.func @kernel(%arg0: i32, %arg1: memref<8x2x512xbf16, #tpu.memory_space<vmem>>, %arg2: memref<8x2x1xf32, #tpu.memory_space<vmem>>, %arg3: memref<128x512xbf16, #tpu.memory_space<vmem>>, %arg4: memref<8x2x512xbf16, #tpu.memory_space<vmem>>, %arg5: memref<8x2x1xf32, #tpu.memory_space<vmem>>, %arg6: memref<128x512xbf16, #tpu.memory_space<vmem>>, %arg7: memref<8x2x128xbf16, #tpu.memory_space<vmem>>, %arg8: memref<8x2x128xbf16, #tpu.memory_space<vmem>>, %arg9: memref<2x128xf32, #tpu.memory_space<vmem>>, %arg10: memref<2x128xf32, #tpu.memory_space<vmem>>, %arg11: memref<2x128xf32, #tpu.memory_space<vmem>>, %arg12: memref<2x128xf32, #tpu.memory_space<vmem>>) attributes {dimension_semantics = [#tpu.dimension_semantics<arbitrary>], iteration_bounds = array<i64: 1>, scalar_prefetch = 0 : i64, scratch_operands = 4 : i64, tpu.core_type = #tpu.core_type<tc>, window_params = [{transform_indices = @transform_0, window_bounds = array<i64: 8, 2, 512>}, {transform_indices = @transform_1, window_bounds = array<i64: 8, 2, 1>}, {pipeline_mode = #tpu.pipeline_mode<synchronous>, transform_indices = @transform_2, window_bounds = array<i64: 128, 512>}, {transform_indices = @transform_3, window_bounds = array<i64: 8, 2, 512>}, {transform_indices = @transform_4, window_bounds = array<i64: 8, 2, 1>}, {pipeline_mode = #tpu.pipeline_mode<synchronous>, transform_indices = @transform_5, window_bounds = array<i64: 128, 512>}, {transform_indices = @transform_6, window_bounds = array<i64: 8, 2, 128>}, {transform_indices = @transform_7, window_bounds = array<i64: 8, 2, 128>}]} {
    %c0_i32 = arith.constant 0 : i32
    %0 = arith.cmpi eq, %arg0, %c0_i32 : i32
    %1 = arith.extui %0 : i1 to i32
    %c0_i32_0 = arith.constant 0 : i32
    %2 = arith.cmpi ne, %1, %c0_i32_0 : i32
    scf.if %2 {
      %cst_248 = arith.constant 0.000000e+00 : f32
      %931 = vector.broadcast %cst_248 : f32 to vector<2x128xf32>
      %c0_249 = arith.constant 0 : index
      %c0_250 = arith.constant 0 : index
      %932 = vector.load %arg9[%c0_249, %c0_250] : memref<2x128xf32, #tpu.memory_space<vmem>>, vector<2x128xf32>
      tpu.vector_store %arg9[%c0_249, %c0_250], %931 {strides = array<i32>} : memref<2x128xf32, #tpu.memory_space<vmem>>, vector<2x128xf32>,
      %cst_251 = arith.constant 0.000000e+00 : f32
      %933 = vector.broadcast %cst_251 : f32 to vector<2x128xf32>
      %c0_252 = arith.constant 0 : index
      %c0_253 = arith.constant 0 : index
      %934 = vector.load %arg10[%c0_252, %c0_253] : memref<2x128xf32, #tpu.memory_space<vmem>>, vector<2x128xf32>
      tpu.vector_store %arg10[%c0_252, %c0_253], %933 {strides = array<i32>} : memref<2x128xf32, #tpu.memory_space<vmem>>, vector<2x128xf32>,
      %cst_254 = arith.constant 0.000000e+00 : f32
      %935 = vector.broadcast %cst_254 : f32 to vector<2x128xf32>
      %c0_255 = arith.constant 0 : index
      %c0_256 = arith.constant 0 : index
      %936 = vector.load %arg11[%c0_255, %c0_256] : memref<2x128xf32, #tpu.memory_space<vmem>>, vector<2x128xf32>
      tpu.vector_store %arg11[%c0_255, %c0_256], %935 {strides = array<i32>} : memref<2x128xf32, #tpu.memory_space<vmem>>, vector<2x128xf32>,
      %cst_257 = arith.constant 0.000000e+00 : f32
      %937 = vector.broadcast %cst_257 : f32 to vector<2x128xf32>
      %c0_258 = arith.constant 0 : index
      %c0_259 = arith.constant 0 : index
      %938 = vector.load %arg12[%c0_258, %c0_259] : memref<2x128xf32, #tpu.memory_space<vmem>>, vector<2x128xf32>
      tpu.vector_store %arg12[%c0_258, %c0_259], %937 {strides = array<i32>} : memref<2x128xf32, #tpu.memory_space<vmem>>, vector<2x128xf32>,
    } else {
    }
    %c0 = arith.constant 0 : index
    %c0_1 = arith.constant 0 : index
    %3 = vector.load %arg9[%c0, %c0_1] : memref<2x128xf32, #tpu.memory_space<vmem>>, vector<2x128xf32>
    %c0_2 = arith.constant 0 : index
    %c0_3 = arith.constant 0 : index
    %4 = vector.load %arg10[%c0_2, %c0_3] : memref<2x128xf32, #tpu.memory_space<vmem>>, vector<2x128xf32>
    %c0_4 = arith.constant 0 : index
    %c0_5 = arith.constant 0 : index
    %5 = vector.load %arg11[%c0_4, %c0_5] : memref<2x128xf32, #tpu.memory_space<vmem>>, vector<2x128xf32>
    %c0_6 = arith.constant 0 : index
    %c0_7 = arith.constant 0 : index
    %6 = vector.load %arg12[%c0_6, %c0_7] : memref<2x128xf32, #tpu.memory_space<vmem>>, vector<2x128xf32>
    %c0_i32_8 = arith.constant 0 : i32
    %c7_i32 = arith.constant 7 : i32
    %7 = arith.subi %c7_i32, %c0_i32_8 : i32
    %8 = arith.index_cast %c0_i32_8 : i32 to index
    %c0_9 = arith.constant 0 : index
    %c0_10 = arith.constant 0 : index
    %9 = vector.load %arg1[%8, %c0_9, %c0_10] : memref<8x2x512xbf16, #tpu.memory_space<vmem>>, vector<1x2x512xbf16>
    %10 = vector.shape_cast %9 : vector<1x2x512xbf16> to vector<2x512xbf16>
    %11 = arith.truncf %3 : vector<2x128xf32> to vector<2x128xbf16>
    %c0_11 = arith.constant 0 : index
    %c0_12 = arith.constant 0 : index
    %12 = vector.load %arg3[%c0_11, %c0_12] : memref<128x512xbf16, #tpu.memory_space<vmem>>, vector<128x512xbf16>
    %cst = arith.constant dense<0.000000e+00> : vector<2x512xf32>
    %13 = tpu.matmul %11, %12, %cst {dimension_numbers = #tpu.dot_dimension_numbers<[1], [0], [0], [1], [0, 0, 1, 1], [], []>} : vector<2x128xbf16>, vector<128x512xbf16>, vector<2x512xf32> -> vector<2x512xf32>
    %14 = arith.extf %10 : vector<2x512xbf16> to vector<2x512xf32>
    %15 = arith.addf %14, %13 : vector<2x512xf32>
    %16 = arith.index_cast %7 : i32 to index
    %c0_13 = arith.constant 0 : index
    %c0_14 = arith.constant 0 : index
    %17 = vector.load %arg4[%16, %c0_13, %c0_14] : memref<8x2x512xbf16, #tpu.memory_space<vmem>>, vector<1x2x512xbf16>
    %18 = vector.shape_cast %17 : vector<1x2x512xbf16> to vector<2x512xbf16>
    %19 = arith.truncf %5 : vector<2x128xf32> to vector<2x128xbf16>
    %c0_15 = arith.constant 0 : index
    %c0_16 = arith.constant 0 : index
    %20 = vector.load %arg6[%c0_15, %c0_16] : memref<128x512xbf16, #tpu.memory_space<vmem>>, vector<128x512xbf16>
    %cst_17 = arith.constant dense<0.000000e+00> : vector<2x512xf32>
    %21 = tpu.matmul %19, %20, %cst_17 {dimension_numbers = #tpu.dot_dimension_numbers<[1], [0], [0], [1], [0, 0, 1, 1], [], []>} : vector<2x128xbf16>, vector<128x512xbf16>, vector<2x512xf32> -> vector<2x512xf32>
    %22 = arith.extf %18 : vector<2x512xbf16> to vector<2x512xf32>
    %23 = arith.addf %22, %21 : vector<2x512xf32>
    %24 = arith.index_cast %c0_i32_8 : i32 to index
    %c0_18 = arith.constant 0 : index
    %c0_19 = arith.constant 0 : index
    %25 = vector.load %arg2[%24, %c0_18, %c0_19] : memref<8x2x1xf32, #tpu.memory_space<vmem>>, vector<1x2x1xf32>
    %26 = vector.shape_cast %25 : vector<1x2x1xf32> to vector<2x1xf32>
    %27 = vector.extract_strided_slice %15 {offsets = [0, 0], sizes = [2, 128], strides = [1, 1]} : vector<2x512xf32> to vector<2x128xf32>
    %28 = arith.negf %27 : vector<2x128xf32>
    %29 = math.exp %28 : vector<2x128xf32>
    %cst_20 = arith.constant 1.000000e+00 : f32
    %30 = vector.broadcast %cst_20 : f32 to vector<2x128xf32>
    %31 = arith.addf %30, %29 : vector<2x128xf32>
    %32 = arith.divf %30, %31 : vector<2x128xf32>
    %33 = vector.extract_strided_slice %15 {offsets = [0, 128], sizes = [2, 128], strides = [1, 1]} : vector<2x512xf32> to vector<2x128xf32>
    %34 = arith.negf %33 : vector<2x128xf32>
    %35 = math.exp %34 : vector<2x128xf32>
    %cst_21 = arith.constant 1.000000e+00 : f32
    %36 = vector.broadcast %cst_21 : f32 to vector<2x128xf32>
    %37 = arith.addf %36, %35 : vector<2x128xf32>
    %38 = arith.divf %36, %37 : vector<2x128xf32>
    %39 = vector.extract_strided_slice %15 {offsets = [0, 256], sizes = [2, 128], strides = [1, 1]} : vector<2x512xf32> to vector<2x128xf32>
    %40 = math.tanh %39 : vector<2x128xf32>
    %41 = vector.extract_strided_slice %15 {offsets = [0, 384], sizes = [2, 128], strides = [1, 1]} : vector<2x512xf32> to vector<2x128xf32>
    %42 = arith.negf %41 : vector<2x128xf32>
    %43 = math.exp %42 : vector<2x128xf32>
    %cst_22 = arith.constant 1.000000e+00 : f32
    %44 = vector.broadcast %cst_22 : f32 to vector<2x128xf32>
    %45 = arith.addf %44, %43 : vector<2x128xf32>
    %46 = arith.divf %44, %45 : vector<2x128xf32>
    %47 = arith.mulf %38, %4 : vector<2x128xf32>
    %48 = arith.mulf %32, %40 : vector<2x128xf32>
    %49 = arith.addf %47, %48 : vector<2x128xf32>
    %50 = math.tanh %49 : vector<2x128xf32>
    %51 = arith.mulf %46, %50 : vector<2x128xf32>
    %52 = vector.broadcast %26 : vector<2x1xf32> to vector<2x128xf32>
    %53 = arith.mulf %52, %51 : vector<2x128xf32>
    %cst_23 = arith.constant 1.000000e+00 : f32
    %54 = vector.broadcast %cst_23 : f32 to vector<2x1xf32>
    %55 = arith.subf %54, %26 : vector<2x1xf32>
    %56 = vector.broadcast %55 : vector<2x1xf32> to vector<2x128xf32>
    %57 = arith.mulf %56, %3 : vector<2x128xf32>
    %58 = arith.addf %53, %57 : vector<2x128xf32>
    %59 = vector.broadcast %26 : vector<2x1xf32> to vector<2x128xf32>
    %60 = arith.mulf %59, %49 : vector<2x128xf32>
    %cst_24 = arith.constant 1.000000e+00 : f32
    %61 = vector.broadcast %cst_24 : f32 to vector<2x1xf32>
    %62 = arith.subf %61, %26 : vector<2x1xf32>
    %63 = vector.broadcast %62 : vector<2x1xf32> to vector<2x128xf32>
    %64 = arith.mulf %63, %4 : vector<2x128xf32>
    %65 = arith.addf %60, %64 : vector<2x128xf32>
    %66 = vector.broadcast %26 : vector<2x1xf32> to vector<2x128xf32>
    %67 = arith.mulf %66, %51 : vector<2x128xf32>
    %68 = arith.index_cast %7 : i32 to index
    %c0_25 = arith.constant 0 : index
    %c0_26 = arith.constant 0 : index
    %69 = vector.load %arg5[%68, %c0_25, %c0_26] : memref<8x2x1xf32, #tpu.memory_space<vmem>>, vector<1x2x1xf32>
    %70 = vector.shape_cast %69 : vector<1x2x1xf32> to vector<2x1xf32>
    %71 = vector.extract_strided_slice %23 {offsets = [0, 0], sizes = [2, 128], strides = [1, 1]} : vector<2x512xf32> to vector<2x128xf32>
    %72 = arith.negf %71 : vector<2x128xf32>
    %73 = math.exp %72 : vector<2x128xf32>
    %cst_27 = arith.constant 1.000000e+00 : f32
    %74 = vector.broadcast %cst_27 : f32 to vector<2x128xf32>
    %75 = arith.addf %74, %73 : vector<2x128xf32>
    %76 = arith.divf %74, %75 : vector<2x128xf32>
    %77 = vector.extract_strided_slice %23 {offsets = [0, 128], sizes = [2, 128], strides = [1, 1]} : vector<2x512xf32> to vector<2x128xf32>
    %78 = arith.negf %77 : vector<2x128xf32>
    %79 = math.exp %78 : vector<2x128xf32>
    %cst_28 = arith.constant 1.000000e+00 : f32
    %80 = vector.broadcast %cst_28 : f32 to vector<2x128xf32>
    %81 = arith.addf %80, %79 : vector<2x128xf32>
    %82 = arith.divf %80, %81 : vector<2x128xf32>
    %83 = vector.extract_strided_slice %23 {offsets = [0, 256], sizes = [2, 128], strides = [1, 1]} : vector<2x512xf32> to vector<2x128xf32>
    %84 = math.tanh %83 : vector<2x128xf32>
    %85 = vector.extract_strided_slice %23 {offsets = [0, 384], sizes = [2, 128], strides = [1, 1]} : vector<2x512xf32> to vector<2x128xf32>
    %86 = arith.negf %85 : vector<2x128xf32>
    %87 = math.exp %86 : vector<2x128xf32>
    %cst_29 = arith.constant 1.000000e+00 : f32
    %88 = vector.broadcast %cst_29 : f32 to vector<2x128xf32>
    %89 = arith.addf %88, %87 : vector<2x128xf32>
    %90 = arith.divf %88, %89 : vector<2x128xf32>
    %91 = arith.mulf %82, %6 : vector<2x128xf32>
    %92 = arith.mulf %76, %84 : vector<2x128xf32>
    %93 = arith.addf %91, %92 : vector<2x128xf32>
    %94 = math.tanh %93 : vector<2x128xf32>
    %95 = arith.mulf %90, %94 : vector<2x128xf32>
    %96 = vector.broadcast %70 : vector<2x1xf32> to vector<2x128xf32>
    %97 = arith.mulf %96, %95 : vector<2x128xf32>
    %cst_30 = arith.constant 1.000000e+00 : f32
    %98 = vector.broadcast %cst_30 : f32 to vector<2x1xf32>
    %99 = arith.subf %98, %70 : vector<2x1xf32>
    %100 = vector.broadcast %99 : vector<2x1xf32> to vector<2x128xf32>
    %101 = arith.mulf %100, %5 : vector<2x128xf32>
    %102 = arith.addf %97, %101 : vector<2x128xf32>
    %103 = vector.broadcast %70 : vector<2x1xf32> to vector<2x128xf32>
    %104 = arith.mulf %103, %93 : vector<2x128xf32>
    %cst_31 = arith.constant 1.000000e+00 : f32
    %105 = vector.broadcast %cst_31 : f32 to vector<2x1xf32>
    %106 = arith.subf %105, %70 : vector<2x1xf32>
    %107 = vector.broadcast %106 : vector<2x1xf32> to vector<2x128xf32>
    %108 = arith.mulf %107, %6 : vector<2x128xf32>
    %109 = arith.addf %104, %108 : vector<2x128xf32>
    %110 = vector.broadcast %70 : vector<2x1xf32> to vector<2x128xf32>
    %111 = arith.mulf %110, %95 : vector<2x128xf32>
    %112 = arith.truncf %67 : vector<2x128xf32> to vector<2x128xbf16>
    %113 = arith.index_cast %c0_i32_8 : i32 to index
    %c0_32 = arith.constant 0 : index
    %c0_33 = arith.constant 0 : index
    %114 = vector.load %arg7[%113, %c0_32, %c0_33] : memref<8x2x128xbf16, #tpu.memory_space<vmem>>, vector<1x2x128xbf16>
    %115 = vector.shape_cast %114 : vector<1x2x128xbf16> to vector<2x128xbf16>
    %116 = vector.shape_cast %112 : vector<2x128xbf16> to vector<1x2x128xbf16>
    tpu.vector_store %arg7[%113, %c0_32, %c0_33], %116 {strides = array<i32>} : memref<8x2x128xbf16, #tpu.memory_space<vmem>>, vector<1x2x128xbf16>,
    %117 = arith.truncf %111 : vector<2x128xf32> to vector<2x128xbf16>
    %118 = arith.index_cast %7 : i32 to index
    %c0_34 = arith.constant 0 : index
    %c0_35 = arith.constant 0 : index
    %119 = vector.load %arg8[%118, %c0_34, %c0_35] : memref<8x2x128xbf16, #tpu.memory_space<vmem>>, vector<1x2x128xbf16>
    %120 = vector.shape_cast %119 : vector<1x2x128xbf16> to vector<2x128xbf16>
    %121 = vector.shape_cast %117 : vector<2x128xbf16> to vector<1x2x128xbf16>
    tpu.vector_store %arg8[%118, %c0_34, %c0_35], %121 {strides = array<i32>} : memref<8x2x128xbf16, #tpu.memory_space<vmem>>, vector<1x2x128xbf16>,
    %c1_i32 = arith.constant 1 : i32
    %c7_i32_36 = arith.constant 7 : i32
    %122 = arith.subi %c7_i32_36, %c1_i32 : i32
    %123 = arith.index_cast %c1_i32 : i32 to index
    %c0_37 = arith.constant 0 : index
    %c0_38 = arith.constant 0 : index
    %124 = vector.load %arg1[%123, %c0_37, %c0_38] : memref<8x2x512xbf16, #tpu.memory_space<vmem>>, vector<1x2x512xbf16>
    %125 = vector.shape_cast %124 : vector<1x2x512xbf16> to vector<2x512xbf16>
    %126 = arith.truncf %58 : vector<2x128xf32> to vector<2x128xbf16>
    %c0_39 = arith.constant 0 : index
    %c0_40 = arith.constant 0 : index
    %127 = vector.load %arg3[%c0_39, %c0_40] : memref<128x512xbf16, #tpu.memory_space<vmem>>, vector<128x512xbf16>
    %cst_41 = arith.constant dense<0.000000e+00> : vector<2x512xf32>
    %128 = tpu.matmul %126, %127, %cst_41 {dimension_numbers = #tpu.dot_dimension_numbers<[1], [0], [0], [1], [0, 0, 1, 1], [], []>} : vector<2x128xbf16>, vector<128x512xbf16>, vector<2x512xf32> -> vector<2x512xf32>
    %129 = arith.extf %125 : vector<2x512xbf16> to vector<2x512xf32>
    %130 = arith.addf %129, %128 : vector<2x512xf32>
    %131 = arith.index_cast %122 : i32 to index
    %c0_42 = arith.constant 0 : index
    %c0_43 = arith.constant 0 : index
    %132 = vector.load %arg4[%131, %c0_42, %c0_43] : memref<8x2x512xbf16, #tpu.memory_space<vmem>>, vector<1x2x512xbf16>
    %133 = vector.shape_cast %132 : vector<1x2x512xbf16> to vector<2x512xbf16>
    %134 = arith.truncf %102 : vector<2x128xf32> to vector<2x128xbf16>
    %c0_44 = arith.constant 0 : index
    %c0_45 = arith.constant 0 : index
    %135 = vector.load %arg6[%c0_44, %c0_45] : memref<128x512xbf16, #tpu.memory_space<vmem>>, vector<128x512xbf16>
    %cst_46 = arith.constant dense<0.000000e+00> : vector<2x512xf32>
    %136 = tpu.matmul %134, %135, %cst_46 {dimension_numbers = #tpu.dot_dimension_numbers<[1], [0], [0], [1], [0, 0, 1, 1], [], []>} : vector<2x128xbf16>, vector<128x512xbf16>, vector<2x512xf32> -> vector<2x512xf32>
    %137 = arith.extf %133 : vector<2x512xbf16> to vector<2x512xf32>
    %138 = arith.addf %137, %136 : vector<2x512xf32>
    %139 = arith.index_cast %c1_i32 : i32 to index
    %c0_47 = arith.constant 0 : index
    %c0_48 = arith.constant 0 : index
    %140 = vector.load %arg2[%139, %c0_47, %c0_48] : memref<8x2x1xf32, #tpu.memory_space<vmem>>, vector<1x2x1xf32>
    %141 = vector.shape_cast %140 : vector<1x2x1xf32> to vector<2x1xf32>
    %142 = vector.extract_strided_slice %130 {offsets = [0, 0], sizes = [2, 128], strides = [1, 1]} : vector<2x512xf32> to vector<2x128xf32>
    %143 = arith.negf %142 : vector<2x128xf32>
    %144 = math.exp %143 : vector<2x128xf32>
    %cst_49 = arith.constant 1.000000e+00 : f32
    %145 = vector.broadcast %cst_49 : f32 to vector<2x128xf32>
    %146 = arith.addf %145, %144 : vector<2x128xf32>
    %147 = arith.divf %145, %146 : vector<2x128xf32>
    %148 = vector.extract_strided_slice %130 {offsets = [0, 128], sizes = [2, 128], strides = [1, 1]} : vector<2x512xf32> to vector<2x128xf32>
    %149 = arith.negf %148 : vector<2x128xf32>
    %150 = math.exp %149 : vector<2x128xf32>
    %cst_50 = arith.constant 1.000000e+00 : f32
    %151 = vector.broadcast %cst_50 : f32 to vector<2x128xf32>
    %152 = arith.addf %151, %150 : vector<2x128xf32>
    %153 = arith.divf %151, %152 : vector<2x128xf32>
    %154 = vector.extract_strided_slice %130 {offsets = [0, 256], sizes = [2, 128], strides = [1, 1]} : vector<2x512xf32> to vector<2x128xf32>
    %155 = math.tanh %154 : vector<2x128xf32>
    %156 = vector.extract_strided_slice %130 {offsets = [0, 384], sizes = [2, 128], strides = [1, 1]} : vector<2x512xf32> to vector<2x128xf32>
    %157 = arith.negf %156 : vector<2x128xf32>
    %158 = math.exp %157 : vector<2x128xf32>
    %cst_51 = arith.constant 1.000000e+00 : f32
    %159 = vector.broadcast %cst_51 : f32 to vector<2x128xf32>
    %160 = arith.addf %159, %158 : vector<2x128xf32>
    %161 = arith.divf %159, %160 : vector<2x128xf32>
    %162 = arith.mulf %153, %65 : vector<2x128xf32>
    %163 = arith.mulf %147, %155 : vector<2x128xf32>
    %164 = arith.addf %162, %163 : vector<2x128xf32>
    %165 = math.tanh %164 : vector<2x128xf32>
    %166 = arith.mulf %161, %165 : vector<2x128xf32>
    %167 = vector.broadcast %141 : vector<2x1xf32> to vector<2x128xf32>
    %168 = arith.mulf %167, %166 : vector<2x128xf32>
    %cst_52 = arith.constant 1.000000e+00 : f32
    %169 = vector.broadcast %cst_52 : f32 to vector<2x1xf32>
    %170 = arith.subf %169, %141 : vector<2x1xf32>
    %171 = vector.broadcast %170 : vector<2x1xf32> to vector<2x128xf32>
    %172 = arith.mulf %171, %58 : vector<2x128xf32>
    %173 = arith.addf %168, %172 : vector<2x128xf32>
    %174 = vector.broadcast %141 : vector<2x1xf32> to vector<2x128xf32>
    %175 = arith.mulf %174, %164 : vector<2x128xf32>
    %cst_53 = arith.constant 1.000000e+00 : f32
    %176 = vector.broadcast %cst_53 : f32 to vector<2x1xf32>
    %177 = arith.subf %176, %141 : vector<2x1xf32>
    %178 = vector.broadcast %177 : vector<2x1xf32> to vector<2x128xf32>
    %179 = arith.mulf %178, %65 : vector<2x128xf32>
    %180 = arith.addf %175, %179 : vector<2x128xf32>
    %181 = vector.broadcast %141 : vector<2x1xf32> to vector<2x128xf32>
    %182 = arith.mulf %181, %166 : vector<2x128xf32>
    %183 = arith.index_cast %122 : i32 to index
    %c0_54 = arith.constant 0 : index
    %c0_55 = arith.constant 0 : index
    %184 = vector.load %arg5[%183, %c0_54, %c0_55] : memref<8x2x1xf32, #tpu.memory_space<vmem>>, vector<1x2x1xf32>
    %185 = vector.shape_cast %184 : vector<1x2x1xf32> to vector<2x1xf32>
    %186 = vector.extract_strided_slice %138 {offsets = [0, 0], sizes = [2, 128], strides = [1, 1]} : vector<2x512xf32> to vector<2x128xf32>
    %187 = arith.negf %186 : vector<2x128xf32>
    %188 = math.exp %187 : vector<2x128xf32>
    %cst_56 = arith.constant 1.000000e+00 : f32
    %189 = vector.broadcast %cst_56 : f32 to vector<2x128xf32>
    %190 = arith.addf %189, %188 : vector<2x128xf32>
    %191 = arith.divf %189, %190 : vector<2x128xf32>
    %192 = vector.extract_strided_slice %138 {offsets = [0, 128], sizes = [2, 128], strides = [1, 1]} : vector<2x512xf32> to vector<2x128xf32>
    %193 = arith.negf %192 : vector<2x128xf32>
    %194 = math.exp %193 : vector<2x128xf32>
    %cst_57 = arith.constant 1.000000e+00 : f32
    %195 = vector.broadcast %cst_57 : f32 to vector<2x128xf32>
    %196 = arith.addf %195, %194 : vector<2x128xf32>
    %197 = arith.divf %195, %196 : vector<2x128xf32>
    %198 = vector.extract_strided_slice %138 {offsets = [0, 256], sizes = [2, 128], strides = [1, 1]} : vector<2x512xf32> to vector<2x128xf32>
    %199 = math.tanh %198 : vector<2x128xf32>
    %200 = vector.extract_strided_slice %138 {offsets = [0, 384], sizes = [2, 128], strides = [1, 1]} : vector<2x512xf32> to vector<2x128xf32>
    %201 = arith.negf %200 : vector<2x128xf32>
    %202 = math.exp %201 : vector<2x128xf32>
    %cst_58 = arith.constant 1.000000e+00 : f32
    %203 = vector.broadcast %cst_58 : f32 to vector<2x128xf32>
    %204 = arith.addf %203, %202 : vector<2x128xf32>
    %205 = arith.divf %203, %204 : vector<2x128xf32>
    %206 = arith.mulf %197, %109 : vector<2x128xf32>
    %207 = arith.mulf %191, %199 : vector<2x128xf32>
    %208 = arith.addf %206, %207 : vector<2x128xf32>
    %209 = math.tanh %208 : vector<2x128xf32>
    %210 = arith.mulf %205, %209 : vector<2x128xf32>
    %211 = vector.broadcast %185 : vector<2x1xf32> to vector<2x128xf32>
    %212 = arith.mulf %211, %210 : vector<2x128xf32>
    %cst_59 = arith.constant 1.000000e+00 : f32
    %213 = vector.broadcast %cst_59 : f32 to vector<2x1xf32>
    %214 = arith.subf %213, %185 : vector<2x1xf32>
    %215 = vector.broadcast %214 : vector<2x1xf32> to vector<2x128xf32>
    %216 = arith.mulf %215, %102 : vector<2x128xf32>
    %217 = arith.addf %212, %216 : vector<2x128xf32>
    %218 = vector.broadcast %185 : vector<2x1xf32> to vector<2x128xf32>
    %219 = arith.mulf %218, %208 : vector<2x128xf32>
    %cst_60 = arith.constant 1.000000e+00 : f32
    %220 = vector.broadcast %cst_60 : f32 to vector<2x1xf32>
    %221 = arith.subf %220, %185 : vector<2x1xf32>
    %222 = vector.broadcast %221 : vector<2x1xf32> to vector<2x128xf32>
    %223 = arith.mulf %222, %109 : vector<2x128xf32>
    %224 = arith.addf %219, %223 : vector<2x128xf32>
    %225 = vector.broadcast %185 : vector<2x1xf32> to vector<2x128xf32>
    %226 = arith.mulf %225, %210 : vector<2x128xf32>
    %227 = arith.truncf %182 : vector<2x128xf32> to vector<2x128xbf16>
    %228 = arith.index_cast %c1_i32 : i32 to index
    %c0_61 = arith.constant 0 : index
    %c0_62 = arith.constant 0 : index
    %229 = vector.load %arg7[%228, %c0_61, %c0_62] : memref<8x2x128xbf16, #tpu.memory_space<vmem>>, vector<1x2x128xbf16>
    %230 = vector.shape_cast %229 : vector<1x2x128xbf16> to vector<2x128xbf16>
    %231 = vector.shape_cast %227 : vector<2x128xbf16> to vector<1x2x128xbf16>
    tpu.vector_store %arg7[%228, %c0_61, %c0_62], %231 {strides = array<i32>} : memref<8x2x128xbf16, #tpu.memory_space<vmem>>, vector<1x2x128xbf16>,
    %232 = arith.truncf %226 : vector<2x128xf32> to vector<2x128xbf16>
    %233 = arith.index_cast %122 : i32 to index
    %c0_63 = arith.constant 0 : index
    %c0_64 = arith.constant 0 : index
    %234 = vector.load %arg8[%233, %c0_63, %c0_64] : memref<8x2x128xbf16, #tpu.memory_space<vmem>>, vector<1x2x128xbf16>
    %235 = vector.shape_cast %234 : vector<1x2x128xbf16> to vector<2x128xbf16>
    %236 = vector.shape_cast %232 : vector<2x128xbf16> to vector<1x2x128xbf16>
    tpu.vector_store %arg8[%233, %c0_63, %c0_64], %236 {strides = array<i32>} : memref<8x2x128xbf16, #tpu.memory_space<vmem>>, vector<1x2x128xbf16>,
    %c2_i32 = arith.constant 2 : i32
    %c7_i32_65 = arith.constant 7 : i32
    %237 = arith.subi %c7_i32_65, %c2_i32 : i32
    %238 = arith.index_cast %c2_i32 : i32 to index
    %c0_66 = arith.constant 0 : index
    %c0_67 = arith.constant 0 : index
    %239 = vector.load %arg1[%238, %c0_66, %c0_67] : memref<8x2x512xbf16, #tpu.memory_space<vmem>>, vector<1x2x512xbf16>
    %240 = vector.shape_cast %239 : vector<1x2x512xbf16> to vector<2x512xbf16>
    %241 = arith.truncf %173 : vector<2x128xf32> to vector<2x128xbf16>
    %c0_68 = arith.constant 0 : index
    %c0_69 = arith.constant 0 : index
    %242 = vector.load %arg3[%c0_68, %c0_69] : memref<128x512xbf16, #tpu.memory_space<vmem>>, vector<128x512xbf16>
    %cst_70 = arith.constant dense<0.000000e+00> : vector<2x512xf32>
    %243 = tpu.matmul %241, %242, %cst_70 {dimension_numbers = #tpu.dot_dimension_numbers<[1], [0], [0], [1], [0, 0, 1, 1], [], []>} : vector<2x128xbf16>, vector<128x512xbf16>, vector<2x512xf32> -> vector<2x512xf32>
    %244 = arith.extf %240 : vector<2x512xbf16> to vector<2x512xf32>
    %245 = arith.addf %244, %243 : vector<2x512xf32>
    %246 = arith.index_cast %237 : i32 to index
    %c0_71 = arith.constant 0 : index
    %c0_72 = arith.constant 0 : index
    %247 = vector.load %arg4[%246, %c0_71, %c0_72] : memref<8x2x512xbf16, #tpu.memory_space<vmem>>, vector<1x2x512xbf16>
    %248 = vector.shape_cast %247 : vector<1x2x512xbf16> to vector<2x512xbf16>
    %249 = arith.truncf %217 : vector<2x128xf32> to vector<2x128xbf16>
    %c0_73 = arith.constant 0 : index
    %c0_74 = arith.constant 0 : index
    %250 = vector.load %arg6[%c0_73, %c0_74] : memref<128x512xbf16, #tpu.memory_space<vmem>>, vector<128x512xbf16>
    %cst_75 = arith.constant dense<0.000000e+00> : vector<2x512xf32>
    %251 = tpu.matmul %249, %250, %cst_75 {dimension_numbers = #tpu.dot_dimension_numbers<[1], [0], [0], [1], [0, 0, 1, 1], [], []>} : vector<2x128xbf16>, vector<128x512xbf16>, vector<2x512xf32> -> vector<2x512xf32>
    %252 = arith.extf %248 : vector<2x512xbf16> to vector<2x512xf32>
    %253 = arith.addf %252, %251 : vector<2x512xf32>
    %254 = arith.index_cast %c2_i32 : i32 to index
    %c0_76 = arith.constant 0 : index
    %c0_77 = arith.constant 0 : index
    %255 = vector.load %arg2[%254, %c0_76, %c0_77] : memref<8x2x1xf32, #tpu.memory_space<vmem>>, vector<1x2x1xf32>
    %256 = vector.shape_cast %255 : vector<1x2x1xf32> to vector<2x1xf32>
    %257 = vector.extract_strided_slice %245 {offsets = [0, 0], sizes = [2, 128], strides = [1, 1]} : vector<2x512xf32> to vector<2x128xf32>
    %258 = arith.negf %257 : vector<2x128xf32>
    %259 = math.exp %258 : vector<2x128xf32>
    %cst_78 = arith.constant 1.000000e+00 : f32
    %260 = vector.broadcast %cst_78 : f32 to vector<2x128xf32>
    %261 = arith.addf %260, %259 : vector<2x128xf32>
    %262 = arith.divf %260, %261 : vector<2x128xf32>
    %263 = vector.extract_strided_slice %245 {offsets = [0, 128], sizes = [2, 128], strides = [1, 1]} : vector<2x512xf32> to vector<2x128xf32>
    %264 = arith.negf %263 : vector<2x128xf32>
    %265 = math.exp %264 : vector<2x128xf32>
    %cst_79 = arith.constant 1.000000e+00 : f32
    %266 = vector.broadcast %cst_79 : f32 to vector<2x128xf32>
    %267 = arith.addf %266, %265 : vector<2x128xf32>
    %268 = arith.divf %266, %267 : vector<2x128xf32>
    %269 = vector.extract_strided_slice %245 {offsets = [0, 256], sizes = [2, 128], strides = [1, 1]} : vector<2x512xf32> to vector<2x128xf32>
    %270 = math.tanh %269 : vector<2x128xf32>
    %271 = vector.extract_strided_slice %245 {offsets = [0, 384], sizes = [2, 128], strides = [1, 1]} : vector<2x512xf32> to vector<2x128xf32>
    %272 = arith.negf %271 : vector<2x128xf32>
    %273 = math.exp %272 : vector<2x128xf32>
    %cst_80 = arith.constant 1.000000e+00 : f32
    %274 = vector.broadcast %cst_80 : f32 to vector<2x128xf32>
    %275 = arith.addf %274, %273 : vector<2x128xf32>
    %276 = arith.divf %274, %275 : vector<2x128xf32>
    %277 = arith.mulf %268, %180 : vector<2x128xf32>
    %278 = arith.mulf %262, %270 : vector<2x128xf32>
    %279 = arith.addf %277, %278 : vector<2x128xf32>
    %280 = math.tanh %279 : vector<2x128xf32>
    %281 = arith.mulf %276, %280 : vector<2x128xf32>
    %282 = vector.broadcast %256 : vector<2x1xf32> to vector<2x128xf32>
    %283 = arith.mulf %282, %281 : vector<2x128xf32>
    %cst_81 = arith.constant 1.000000e+00 : f32
    %284 = vector.broadcast %cst_81 : f32 to vector<2x1xf32>
    %285 = arith.subf %284, %256 : vector<2x1xf32>
    %286 = vector.broadcast %285 : vector<2x1xf32> to vector<2x128xf32>
    %287 = arith.mulf %286, %173 : vector<2x128xf32>
    %288 = arith.addf %283, %287 : vector<2x128xf32>
    %289 = vector.broadcast %256 : vector<2x1xf32> to vector<2x128xf32>
    %290 = arith.mulf %289, %279 : vector<2x128xf32>
    %cst_82 = arith.constant 1.000000e+00 : f32
    %291 = vector.broadcast %cst_82 : f32 to vector<2x1xf32>
    %292 = arith.subf %291, %256 : vector<2x1xf32>
    %293 = vector.broadcast %292 : vector<2x1xf32> to vector<2x128xf32>
    %294 = arith.mulf %293, %180 : vector<2x128xf32>
    %295 = arith.addf %290, %294 : vector<2x128xf32>
    %296 = vector.broadcast %256 : vector<2x1xf32> to vector<2x128xf32>
    %297 = arith.mulf %296, %281 : vector<2x128xf32>
    %298 = arith.index_cast %237 : i32 to index
    %c0_83 = arith.constant 0 : index
    %c0_84 = arith.constant 0 : index
    %299 = vector.load %arg5[%298, %c0_83, %c0_84] : memref<8x2x1xf32, #tpu.memory_space<vmem>>, vector<1x2x1xf32>
    %300 = vector.shape_cast %299 : vector<1x2x1xf32> to vector<2x1xf32>
    %301 = vector.extract_strided_slice %253 {offsets = [0, 0], sizes = [2, 128], strides = [1, 1]} : vector<2x512xf32> to vector<2x128xf32>
    %302 = arith.negf %301 : vector<2x128xf32>
    %303 = math.exp %302 : vector<2x128xf32>
    %cst_85 = arith.constant 1.000000e+00 : f32
    %304 = vector.broadcast %cst_85 : f32 to vector<2x128xf32>
    %305 = arith.addf %304, %303 : vector<2x128xf32>
    %306 = arith.divf %304, %305 : vector<2x128xf32>
    %307 = vector.extract_strided_slice %253 {offsets = [0, 128], sizes = [2, 128], strides = [1, 1]} : vector<2x512xf32> to vector<2x128xf32>
    %308 = arith.negf %307 : vector<2x128xf32>
    %309 = math.exp %308 : vector<2x128xf32>
    %cst_86 = arith.constant 1.000000e+00 : f32
    %310 = vector.broadcast %cst_86 : f32 to vector<2x128xf32>
    %311 = arith.addf %310, %309 : vector<2x128xf32>
    %312 = arith.divf %310, %311 : vector<2x128xf32>
    %313 = vector.extract_strided_slice %253 {offsets = [0, 256], sizes = [2, 128], strides = [1, 1]} : vector<2x512xf32> to vector<2x128xf32>
    %314 = math.tanh %313 : vector<2x128xf32>
    %315 = vector.extract_strided_slice %253 {offsets = [0, 384], sizes = [2, 128], strides = [1, 1]} : vector<2x512xf32> to vector<2x128xf32>
    %316 = arith.negf %315 : vector<2x128xf32>
    %317 = math.exp %316 : vector<2x128xf32>
    %cst_87 = arith.constant 1.000000e+00 : f32
    %318 = vector.broadcast %cst_87 : f32 to vector<2x128xf32>
    %319 = arith.addf %318, %317 : vector<2x128xf32>
    %320 = arith.divf %318, %319 : vector<2x128xf32>
    %321 = arith.mulf %312, %224 : vector<2x128xf32>
    %322 = arith.mulf %306, %314 : vector<2x128xf32>
    %323 = arith.addf %321, %322 : vector<2x128xf32>
    %324 = math.tanh %323 : vector<2x128xf32>
    %325 = arith.mulf %320, %324 : vector<2x128xf32>
    %326 = vector.broadcast %300 : vector<2x1xf32> to vector<2x128xf32>
    %327 = arith.mulf %326, %325 : vector<2x128xf32>
    %cst_88 = arith.constant 1.000000e+00 : f32
    %328 = vector.broadcast %cst_88 : f32 to vector<2x1xf32>
    %329 = arith.subf %328, %300 : vector<2x1xf32>
    %330 = vector.broadcast %329 : vector<2x1xf32> to vector<2x128xf32>
    %331 = arith.mulf %330, %217 : vector<2x128xf32>
    %332 = arith.addf %327, %331 : vector<2x128xf32>
    %333 = vector.broadcast %300 : vector<2x1xf32> to vector<2x128xf32>
    %334 = arith.mulf %333, %323 : vector<2x128xf32>
    %cst_89 = arith.constant 1.000000e+00 : f32
    %335 = vector.broadcast %cst_89 : f32 to vector<2x1xf32>
    %336 = arith.subf %335, %300 : vector<2x1xf32>
    %337 = vector.broadcast %336 : vector<2x1xf32> to vector<2x128xf32>
    %338 = arith.mulf %337, %224 : vector<2x128xf32>
    %339 = arith.addf %334, %338 : vector<2x128xf32>
    %340 = vector.broadcast %300 : vector<2x1xf32> to vector<2x128xf32>
    %341 = arith.mulf %340, %325 : vector<2x128xf32>
    %342 = arith.truncf %297 : vector<2x128xf32> to vector<2x128xbf16>
    %343 = arith.index_cast %c2_i32 : i32 to index
    %c0_90 = arith.constant 0 : index
    %c0_91 = arith.constant 0 : index
    %344 = vector.load %arg7[%343, %c0_90, %c0_91] : memref<8x2x128xbf16, #tpu.memory_space<vmem>>, vector<1x2x128xbf16>
    %345 = vector.shape_cast %344 : vector<1x2x128xbf16> to vector<2x128xbf16>
    %346 = vector.shape_cast %342 : vector<2x128xbf16> to vector<1x2x128xbf16>
    tpu.vector_store %arg7[%343, %c0_90, %c0_91], %346 {strides = array<i32>} : memref<8x2x128xbf16, #tpu.memory_space<vmem>>, vector<1x2x128xbf16>,
    %347 = arith.truncf %341 : vector<2x128xf32> to vector<2x128xbf16>
    %348 = arith.index_cast %237 : i32 to index
    %c0_92 = arith.constant 0 : index
    %c0_93 = arith.constant 0 : index
    %349 = vector.load %arg8[%348, %c0_92, %c0_93] : memref<8x2x128xbf16, #tpu.memory_space<vmem>>, vector<1x2x128xbf16>
    %350 = vector.shape_cast %349 : vector<1x2x128xbf16> to vector<2x128xbf16>
    %351 = vector.shape_cast %347 : vector<2x128xbf16> to vector<1x2x128xbf16>
    tpu.vector_store %arg8[%348, %c0_92, %c0_93], %351 {strides = array<i32>} : memref<8x2x128xbf16, #tpu.memory_space<vmem>>, vector<1x2x128xbf16>,
    %c3_i32 = arith.constant 3 : i32
    %c7_i32_94 = arith.constant 7 : i32
    %352 = arith.subi %c7_i32_94, %c3_i32 : i32
    %353 = arith.index_cast %c3_i32 : i32 to index
    %c0_95 = arith.constant 0 : index
    %c0_96 = arith.constant 0 : index
    %354 = vector.load %arg1[%353, %c0_95, %c0_96] : memref<8x2x512xbf16, #tpu.memory_space<vmem>>, vector<1x2x512xbf16>
    %355 = vector.shape_cast %354 : vector<1x2x512xbf16> to vector<2x512xbf16>
    %356 = arith.truncf %288 : vector<2x128xf32> to vector<2x128xbf16>
    %c0_97 = arith.constant 0 : index
    %c0_98 = arith.constant 0 : index
    %357 = vector.load %arg3[%c0_97, %c0_98] : memref<128x512xbf16, #tpu.memory_space<vmem>>, vector<128x512xbf16>
    %cst_99 = arith.constant dense<0.000000e+00> : vector<2x512xf32>
    %358 = tpu.matmul %356, %357, %cst_99 {dimension_numbers = #tpu.dot_dimension_numbers<[1], [0], [0], [1], [0, 0, 1, 1], [], []>} : vector<2x128xbf16>, vector<128x512xbf16>, vector<2x512xf32> -> vector<2x512xf32>
    %359 = arith.extf %355 : vector<2x512xbf16> to vector<2x512xf32>
    %360 = arith.addf %359, %358 : vector<2x512xf32>
    %361 = arith.index_cast %352 : i32 to index
    %c0_100 = arith.constant 0 : index
    %c0_101 = arith.constant 0 : index
    %362 = vector.load %arg4[%361, %c0_100, %c0_101] : memref<8x2x512xbf16, #tpu.memory_space<vmem>>, vector<1x2x512xbf16>
    %363 = vector.shape_cast %362 : vector<1x2x512xbf16> to vector<2x512xbf16>
    %364 = arith.truncf %332 : vector<2x128xf32> to vector<2x128xbf16>
    %c0_102 = arith.constant 0 : index
    %c0_103 = arith.constant 0 : index
    %365 = vector.load %arg6[%c0_102, %c0_103] : memref<128x512xbf16, #tpu.memory_space<vmem>>, vector<128x512xbf16>
    %cst_104 = arith.constant dense<0.000000e+00> : vector<2x512xf32>
    %366 = tpu.matmul %364, %365, %cst_104 {dimension_numbers = #tpu.dot_dimension_numbers<[1], [0], [0], [1], [0, 0, 1, 1], [], []>} : vector<2x128xbf16>, vector<128x512xbf16>, vector<2x512xf32> -> vector<2x512xf32>
    %367 = arith.extf %363 : vector<2x512xbf16> to vector<2x512xf32>
    %368 = arith.addf %367, %366 : vector<2x512xf32>
    %369 = arith.index_cast %c3_i32 : i32 to index
    %c0_105 = arith.constant 0 : index
    %c0_106 = arith.constant 0 : index
    %370 = vector.load %arg2[%369, %c0_105, %c0_106] : memref<8x2x1xf32, #tpu.memory_space<vmem>>, vector<1x2x1xf32>
    %371 = vector.shape_cast %370 : vector<1x2x1xf32> to vector<2x1xf32>
    %372 = vector.extract_strided_slice %360 {offsets = [0, 0], sizes = [2, 128], strides = [1, 1]} : vector<2x512xf32> to vector<2x128xf32>
    %373 = arith.negf %372 : vector<2x128xf32>
    %374 = math.exp %373 : vector<2x128xf32>
    %cst_107 = arith.constant 1.000000e+00 : f32
    %375 = vector.broadcast %cst_107 : f32 to vector<2x128xf32>
    %376 = arith.addf %375, %374 : vector<2x128xf32>
    %377 = arith.divf %375, %376 : vector<2x128xf32>
    %378 = vector.extract_strided_slice %360 {offsets = [0, 128], sizes = [2, 128], strides = [1, 1]} : vector<2x512xf32> to vector<2x128xf32>
    %379 = arith.negf %378 : vector<2x128xf32>
    %380 = math.exp %379 : vector<2x128xf32>
    %cst_108 = arith.constant 1.000000e+00 : f32
    %381 = vector.broadcast %cst_108 : f32 to vector<2x128xf32>
    %382 = arith.addf %381, %380 : vector<2x128xf32>
    %383 = arith.divf %381, %382 : vector<2x128xf32>
    %384 = vector.extract_strided_slice %360 {offsets = [0, 256], sizes = [2, 128], strides = [1, 1]} : vector<2x512xf32> to vector<2x128xf32>
    %385 = math.tanh %384 : vector<2x128xf32>
    %386 = vector.extract_strided_slice %360 {offsets = [0, 384], sizes = [2, 128], strides = [1, 1]} : vector<2x512xf32> to vector<2x128xf32>
    %387 = arith.negf %386 : vector<2x128xf32>
    %388 = math.exp %387 : vector<2x128xf32>
    %cst_109 = arith.constant 1.000000e+00 : f32
    %389 = vector.broadcast %cst_109 : f32 to vector<2x128xf32>
    %390 = arith.addf %389, %388 : vector<2x128xf32>
    %391 = arith.divf %389, %390 : vector<2x128xf32>
    %392 = arith.mulf %383, %295 : vector<2x128xf32>
    %393 = arith.mulf %377, %385 : vector<2x128xf32>
    %394 = arith.addf %392, %393 : vector<2x128xf32>
    %395 = math.tanh %394 : vector<2x128xf32>
    %396 = arith.mulf %391, %395 : vector<2x128xf32>
    %397 = vector.broadcast %371 : vector<2x1xf32> to vector<2x128xf32>
    %398 = arith.mulf %397, %396 : vector<2x128xf32>
    %cst_110 = arith.constant 1.000000e+00 : f32
    %399 = vector.broadcast %cst_110 : f32 to vector<2x1xf32>
    %400 = arith.subf %399, %371 : vector<2x1xf32>
    %401 = vector.broadcast %400 : vector<2x1xf32> to vector<2x128xf32>
    %402 = arith.mulf %401, %288 : vector<2x128xf32>
    %403 = arith.addf %398, %402 : vector<2x128xf32>
    %404 = vector.broadcast %371 : vector<2x1xf32> to vector<2x128xf32>
    %405 = arith.mulf %404, %394 : vector<2x128xf32>
    %cst_111 = arith.constant 1.000000e+00 : f32
    %406 = vector.broadcast %cst_111 : f32 to vector<2x1xf32>
    %407 = arith.subf %406, %371 : vector<2x1xf32>
    %408 = vector.broadcast %407 : vector<2x1xf32> to vector<2x128xf32>
    %409 = arith.mulf %408, %295 : vector<2x128xf32>
    %410 = arith.addf %405, %409 : vector<2x128xf32>
    %411 = vector.broadcast %371 : vector<2x1xf32> to vector<2x128xf32>
    %412 = arith.mulf %411, %396 : vector<2x128xf32>
    %413 = arith.index_cast %352 : i32 to index
    %c0_112 = arith.constant 0 : index
    %c0_113 = arith.constant 0 : index
    %414 = vector.load %arg5[%413, %c0_112, %c0_113] : memref<8x2x1xf32, #tpu.memory_space<vmem>>, vector<1x2x1xf32>
    %415 = vector.shape_cast %414 : vector<1x2x1xf32> to vector<2x1xf32>
    %416 = vector.extract_strided_slice %368 {offsets = [0, 0], sizes = [2, 128], strides = [1, 1]} : vector<2x512xf32> to vector<2x128xf32>
    %417 = arith.negf %416 : vector<2x128xf32>
    %418 = math.exp %417 : vector<2x128xf32>
    %cst_114 = arith.constant 1.000000e+00 : f32
    %419 = vector.broadcast %cst_114 : f32 to vector<2x128xf32>
    %420 = arith.addf %419, %418 : vector<2x128xf32>
    %421 = arith.divf %419, %420 : vector<2x128xf32>
    %422 = vector.extract_strided_slice %368 {offsets = [0, 128], sizes = [2, 128], strides = [1, 1]} : vector<2x512xf32> to vector<2x128xf32>
    %423 = arith.negf %422 : vector<2x128xf32>
    %424 = math.exp %423 : vector<2x128xf32>
    %cst_115 = arith.constant 1.000000e+00 : f32
    %425 = vector.broadcast %cst_115 : f32 to vector<2x128xf32>
    %426 = arith.addf %425, %424 : vector<2x128xf32>
    %427 = arith.divf %425, %426 : vector<2x128xf32>
    %428 = vector.extract_strided_slice %368 {offsets = [0, 256], sizes = [2, 128], strides = [1, 1]} : vector<2x512xf32> to vector<2x128xf32>
    %429 = math.tanh %428 : vector<2x128xf32>
    %430 = vector.extract_strided_slice %368 {offsets = [0, 384], sizes = [2, 128], strides = [1, 1]} : vector<2x512xf32> to vector<2x128xf32>
    %431 = arith.negf %430 : vector<2x128xf32>
    %432 = math.exp %431 : vector<2x128xf32>
    %cst_116 = arith.constant 1.000000e+00 : f32
    %433 = vector.broadcast %cst_116 : f32 to vector<2x128xf32>
    %434 = arith.addf %433, %432 : vector<2x128xf32>
    %435 = arith.divf %433, %434 : vector<2x128xf32>
    %436 = arith.mulf %427, %339 : vector<2x128xf32>
    %437 = arith.mulf %421, %429 : vector<2x128xf32>
    %438 = arith.addf %436, %437 : vector<2x128xf32>
    %439 = math.tanh %438 : vector<2x128xf32>
    %440 = arith.mulf %435, %439 : vector<2x128xf32>
    %441 = vector.broadcast %415 : vector<2x1xf32> to vector<2x128xf32>
    %442 = arith.mulf %441, %440 : vector<2x128xf32>
    %cst_117 = arith.constant 1.000000e+00 : f32
    %443 = vector.broadcast %cst_117 : f32 to vector<2x1xf32>
    %444 = arith.subf %443, %415 : vector<2x1xf32>
    %445 = vector.broadcast %444 : vector<2x1xf32> to vector<2x128xf32>
    %446 = arith.mulf %445, %332 : vector<2x128xf32>
    %447 = arith.addf %442, %446 : vector<2x128xf32>
    %448 = vector.broadcast %415 : vector<2x1xf32> to vector<2x128xf32>
    %449 = arith.mulf %448, %438 : vector<2x128xf32>
    %cst_118 = arith.constant 1.000000e+00 : f32
    %450 = vector.broadcast %cst_118 : f32 to vector<2x1xf32>
    %451 = arith.subf %450, %415 : vector<2x1xf32>
    %452 = vector.broadcast %451 : vector<2x1xf32> to vector<2x128xf32>
    %453 = arith.mulf %452, %339 : vector<2x128xf32>
    %454 = arith.addf %449, %453 : vector<2x128xf32>
    %455 = vector.broadcast %415 : vector<2x1xf32> to vector<2x128xf32>
    %456 = arith.mulf %455, %440 : vector<2x128xf32>
    %457 = arith.truncf %412 : vector<2x128xf32> to vector<2x128xbf16>
    %458 = arith.index_cast %c3_i32 : i32 to index
    %c0_119 = arith.constant 0 : index
    %c0_120 = arith.constant 0 : index
    %459 = vector.load %arg7[%458, %c0_119, %c0_120] : memref<8x2x128xbf16, #tpu.memory_space<vmem>>, vector<1x2x128xbf16>
    %460 = vector.shape_cast %459 : vector<1x2x128xbf16> to vector<2x128xbf16>
    %461 = vector.shape_cast %457 : vector<2x128xbf16> to vector<1x2x128xbf16>
    tpu.vector_store %arg7[%458, %c0_119, %c0_120], %461 {strides = array<i32>} : memref<8x2x128xbf16, #tpu.memory_space<vmem>>, vector<1x2x128xbf16>,
    %462 = arith.truncf %456 : vector<2x128xf32> to vector<2x128xbf16>
    %463 = arith.index_cast %352 : i32 to index
    %c0_121 = arith.constant 0 : index
    %c0_122 = arith.constant 0 : index
    %464 = vector.load %arg8[%463, %c0_121, %c0_122] : memref<8x2x128xbf16, #tpu.memory_space<vmem>>, vector<1x2x128xbf16>
    %465 = vector.shape_cast %464 : vector<1x2x128xbf16> to vector<2x128xbf16>
    %466 = vector.shape_cast %462 : vector<2x128xbf16> to vector<1x2x128xbf16>
    tpu.vector_store %arg8[%463, %c0_121, %c0_122], %466 {strides = array<i32>} : memref<8x2x128xbf16, #tpu.memory_space<vmem>>, vector<1x2x128xbf16>,
    %c4_i32 = arith.constant 4 : i32
    %c7_i32_123 = arith.constant 7 : i32
    %467 = arith.subi %c7_i32_123, %c4_i32 : i32
    %468 = arith.index_cast %c4_i32 : i32 to index
    %c0_124 = arith.constant 0 : index
    %c0_125 = arith.constant 0 : index
    %469 = vector.load %arg1[%468, %c0_124, %c0_125] : memref<8x2x512xbf16, #tpu.memory_space<vmem>>, vector<1x2x512xbf16>
    %470 = vector.shape_cast %469 : vector<1x2x512xbf16> to vector<2x512xbf16>
    %471 = arith.truncf %403 : vector<2x128xf32> to vector<2x128xbf16>
    %c0_126 = arith.constant 0 : index
    %c0_127 = arith.constant 0 : index
    %472 = vector.load %arg3[%c0_126, %c0_127] : memref<128x512xbf16, #tpu.memory_space<vmem>>, vector<128x512xbf16>
    %cst_128 = arith.constant dense<0.000000e+00> : vector<2x512xf32>
    %473 = tpu.matmul %471, %472, %cst_128 {dimension_numbers = #tpu.dot_dimension_numbers<[1], [0], [0], [1], [0, 0, 1, 1], [], []>} : vector<2x128xbf16>, vector<128x512xbf16>, vector<2x512xf32> -> vector<2x512xf32>
    %474 = arith.extf %470 : vector<2x512xbf16> to vector<2x512xf32>
    %475 = arith.addf %474, %473 : vector<2x512xf32>
    %476 = arith.index_cast %467 : i32 to index
    %c0_129 = arith.constant 0 : index
    %c0_130 = arith.constant 0 : index
    %477 = vector.load %arg4[%476, %c0_129, %c0_130] : memref<8x2x512xbf16, #tpu.memory_space<vmem>>, vector<1x2x512xbf16>
    %478 = vector.shape_cast %477 : vector<1x2x512xbf16> to vector<2x512xbf16>
    %479 = arith.truncf %447 : vector<2x128xf32> to vector<2x128xbf16>
    %c0_131 = arith.constant 0 : index
    %c0_132 = arith.constant 0 : index
    %480 = vector.load %arg6[%c0_131, %c0_132] : memref<128x512xbf16, #tpu.memory_space<vmem>>, vector<128x512xbf16>
    %cst_133 = arith.constant dense<0.000000e+00> : vector<2x512xf32>
    %481 = tpu.matmul %479, %480, %cst_133 {dimension_numbers = #tpu.dot_dimension_numbers<[1], [0], [0], [1], [0, 0, 1, 1], [], []>} : vector<2x128xbf16>, vector<128x512xbf16>, vector<2x512xf32> -> vector<2x512xf32>
    %482 = arith.extf %478 : vector<2x512xbf16> to vector<2x512xf32>
    %483 = arith.addf %482, %481 : vector<2x512xf32>
    %484 = arith.index_cast %c4_i32 : i32 to index
    %c0_134 = arith.constant 0 : index
    %c0_135 = arith.constant 0 : index
    %485 = vector.load %arg2[%484, %c0_134, %c0_135] : memref<8x2x1xf32, #tpu.memory_space<vmem>>, vector<1x2x1xf32>
    %486 = vector.shape_cast %485 : vector<1x2x1xf32> to vector<2x1xf32>
    %487 = vector.extract_strided_slice %475 {offsets = [0, 0], sizes = [2, 128], strides = [1, 1]} : vector<2x512xf32> to vector<2x128xf32>
    %488 = arith.negf %487 : vector<2x128xf32>
    %489 = math.exp %488 : vector<2x128xf32>
    %cst_136 = arith.constant 1.000000e+00 : f32
    %490 = vector.broadcast %cst_136 : f32 to vector<2x128xf32>
    %491 = arith.addf %490, %489 : vector<2x128xf32>
    %492 = arith.divf %490, %491 : vector<2x128xf32>
    %493 = vector.extract_strided_slice %475 {offsets = [0, 128], sizes = [2, 128], strides = [1, 1]} : vector<2x512xf32> to vector<2x128xf32>
    %494 = arith.negf %493 : vector<2x128xf32>
    %495 = math.exp %494 : vector<2x128xf32>
    %cst_137 = arith.constant 1.000000e+00 : f32
    %496 = vector.broadcast %cst_137 : f32 to vector<2x128xf32>
    %497 = arith.addf %496, %495 : vector<2x128xf32>
    %498 = arith.divf %496, %497 : vector<2x128xf32>
    %499 = vector.extract_strided_slice %475 {offsets = [0, 256], sizes = [2, 128], strides = [1, 1]} : vector<2x512xf32> to vector<2x128xf32>
    %500 = math.tanh %499 : vector<2x128xf32>
    %501 = vector.extract_strided_slice %475 {offsets = [0, 384], sizes = [2, 128], strides = [1, 1]} : vector<2x512xf32> to vector<2x128xf32>
    %502 = arith.negf %501 : vector<2x128xf32>
    %503 = math.exp %502 : vector<2x128xf32>
    %cst_138 = arith.constant 1.000000e+00 : f32
    %504 = vector.broadcast %cst_138 : f32 to vector<2x128xf32>
    %505 = arith.addf %504, %503 : vector<2x128xf32>
    %506 = arith.divf %504, %505 : vector<2x128xf32>
    %507 = arith.mulf %498, %410 : vector<2x128xf32>
    %508 = arith.mulf %492, %500 : vector<2x128xf32>
    %509 = arith.addf %507, %508 : vector<2x128xf32>
    %510 = math.tanh %509 : vector<2x128xf32>
    %511 = arith.mulf %506, %510 : vector<2x128xf32>
    %512 = vector.broadcast %486 : vector<2x1xf32> to vector<2x128xf32>
    %513 = arith.mulf %512, %511 : vector<2x128xf32>
    %cst_139 = arith.constant 1.000000e+00 : f32
    %514 = vector.broadcast %cst_139 : f32 to vector<2x1xf32>
    %515 = arith.subf %514, %486 : vector<2x1xf32>
    %516 = vector.broadcast %515 : vector<2x1xf32> to vector<2x128xf32>
    %517 = arith.mulf %516, %403 : vector<2x128xf32>
    %518 = arith.addf %513, %517 : vector<2x128xf32>
    %519 = vector.broadcast %486 : vector<2x1xf32> to vector<2x128xf32>
    %520 = arith.mulf %519, %509 : vector<2x128xf32>
    %cst_140 = arith.constant 1.000000e+00 : f32
    %521 = vector.broadcast %cst_140 : f32 to vector<2x1xf32>
    %522 = arith.subf %521, %486 : vector<2x1xf32>
    %523 = vector.broadcast %522 : vector<2x1xf32> to vector<2x128xf32>
    %524 = arith.mulf %523, %410 : vector<2x128xf32>
    %525 = arith.addf %520, %524 : vector<2x128xf32>
    %526 = vector.broadcast %486 : vector<2x1xf32> to vector<2x128xf32>
    %527 = arith.mulf %526, %511 : vector<2x128xf32>
    %528 = arith.index_cast %467 : i32 to index
    %c0_141 = arith.constant 0 : index
    %c0_142 = arith.constant 0 : index
    %529 = vector.load %arg5[%528, %c0_141, %c0_142] : memref<8x2x1xf32, #tpu.memory_space<vmem>>, vector<1x2x1xf32>
    %530 = vector.shape_cast %529 : vector<1x2x1xf32> to vector<2x1xf32>
    %531 = vector.extract_strided_slice %483 {offsets = [0, 0], sizes = [2, 128], strides = [1, 1]} : vector<2x512xf32> to vector<2x128xf32>
    %532 = arith.negf %531 : vector<2x128xf32>
    %533 = math.exp %532 : vector<2x128xf32>
    %cst_143 = arith.constant 1.000000e+00 : f32
    %534 = vector.broadcast %cst_143 : f32 to vector<2x128xf32>
    %535 = arith.addf %534, %533 : vector<2x128xf32>
    %536 = arith.divf %534, %535 : vector<2x128xf32>
    %537 = vector.extract_strided_slice %483 {offsets = [0, 128], sizes = [2, 128], strides = [1, 1]} : vector<2x512xf32> to vector<2x128xf32>
    %538 = arith.negf %537 : vector<2x128xf32>
    %539 = math.exp %538 : vector<2x128xf32>
    %cst_144 = arith.constant 1.000000e+00 : f32
    %540 = vector.broadcast %cst_144 : f32 to vector<2x128xf32>
    %541 = arith.addf %540, %539 : vector<2x128xf32>
    %542 = arith.divf %540, %541 : vector<2x128xf32>
    %543 = vector.extract_strided_slice %483 {offsets = [0, 256], sizes = [2, 128], strides = [1, 1]} : vector<2x512xf32> to vector<2x128xf32>
    %544 = math.tanh %543 : vector<2x128xf32>
    %545 = vector.extract_strided_slice %483 {offsets = [0, 384], sizes = [2, 128], strides = [1, 1]} : vector<2x512xf32> to vector<2x128xf32>
    %546 = arith.negf %545 : vector<2x128xf32>
    %547 = math.exp %546 : vector<2x128xf32>
    %cst_145 = arith.constant 1.000000e+00 : f32
    %548 = vector.broadcast %cst_145 : f32 to vector<2x128xf32>
    %549 = arith.addf %548, %547 : vector<2x128xf32>
    %550 = arith.divf %548, %549 : vector<2x128xf32>
    %551 = arith.mulf %542, %454 : vector<2x128xf32>
    %552 = arith.mulf %536, %544 : vector<2x128xf32>
    %553 = arith.addf %551, %552 : vector<2x128xf32>
    %554 = math.tanh %553 : vector<2x128xf32>
    %555 = arith.mulf %550, %554 : vector<2x128xf32>
    %556 = vector.broadcast %530 : vector<2x1xf32> to vector<2x128xf32>
    %557 = arith.mulf %556, %555 : vector<2x128xf32>
    %cst_146 = arith.constant 1.000000e+00 : f32
    %558 = vector.broadcast %cst_146 : f32 to vector<2x1xf32>
    %559 = arith.subf %558, %530 : vector<2x1xf32>
    %560 = vector.broadcast %559 : vector<2x1xf32> to vector<2x128xf32>
    %561 = arith.mulf %560, %447 : vector<2x128xf32>
    %562 = arith.addf %557, %561 : vector<2x128xf32>
    %563 = vector.broadcast %530 : vector<2x1xf32> to vector<2x128xf32>
    %564 = arith.mulf %563, %553 : vector<2x128xf32>
    %cst_147 = arith.constant 1.000000e+00 : f32
    %565 = vector.broadcast %cst_147 : f32 to vector<2x1xf32>
    %566 = arith.subf %565, %530 : vector<2x1xf32>
    %567 = vector.broadcast %566 : vector<2x1xf32> to vector<2x128xf32>
    %568 = arith.mulf %567, %454 : vector<2x128xf32>
    %569 = arith.addf %564, %568 : vector<2x128xf32>
    %570 = vector.broadcast %530 : vector<2x1xf32> to vector<2x128xf32>
    %571 = arith.mulf %570, %555 : vector<2x128xf32>
    %572 = arith.truncf %527 : vector<2x128xf32> to vector<2x128xbf16>
    %573 = arith.index_cast %c4_i32 : i32 to index
    %c0_148 = arith.constant 0 : index
    %c0_149 = arith.constant 0 : index
    %574 = vector.load %arg7[%573, %c0_148, %c0_149] : memref<8x2x128xbf16, #tpu.memory_space<vmem>>, vector<1x2x128xbf16>
    %575 = vector.shape_cast %574 : vector<1x2x128xbf16> to vector<2x128xbf16>
    %576 = vector.shape_cast %572 : vector<2x128xbf16> to vector<1x2x128xbf16>
    tpu.vector_store %arg7[%573, %c0_148, %c0_149], %576 {strides = array<i32>} : memref<8x2x128xbf16, #tpu.memory_space<vmem>>, vector<1x2x128xbf16>,
    %577 = arith.truncf %571 : vector<2x128xf32> to vector<2x128xbf16>
    %578 = arith.index_cast %467 : i32 to index
    %c0_150 = arith.constant 0 : index
    %c0_151 = arith.constant 0 : index
    %579 = vector.load %arg8[%578, %c0_150, %c0_151] : memref<8x2x128xbf16, #tpu.memory_space<vmem>>, vector<1x2x128xbf16>
    %580 = vector.shape_cast %579 : vector<1x2x128xbf16> to vector<2x128xbf16>
    %581 = vector.shape_cast %577 : vector<2x128xbf16> to vector<1x2x128xbf16>
    tpu.vector_store %arg8[%578, %c0_150, %c0_151], %581 {strides = array<i32>} : memref<8x2x128xbf16, #tpu.memory_space<vmem>>, vector<1x2x128xbf16>,
    %c5_i32 = arith.constant 5 : i32
    %c7_i32_152 = arith.constant 7 : i32
    %582 = arith.subi %c7_i32_152, %c5_i32 : i32
    %583 = arith.index_cast %c5_i32 : i32 to index
    %c0_153 = arith.constant 0 : index
    %c0_154 = arith.constant 0 : index
    %584 = vector.load %arg1[%583, %c0_153, %c0_154] : memref<8x2x512xbf16, #tpu.memory_space<vmem>>, vector<1x2x512xbf16>
    %585 = vector.shape_cast %584 : vector<1x2x512xbf16> to vector<2x512xbf16>
    %586 = arith.truncf %518 : vector<2x128xf32> to vector<2x128xbf16>
    %c0_155 = arith.constant 0 : index
    %c0_156 = arith.constant 0 : index
    %587 = vector.load %arg3[%c0_155, %c0_156] : memref<128x512xbf16, #tpu.memory_space<vmem>>, vector<128x512xbf16>
    %cst_157 = arith.constant dense<0.000000e+00> : vector<2x512xf32>
    %588 = tpu.matmul %586, %587, %cst_157 {dimension_numbers = #tpu.dot_dimension_numbers<[1], [0], [0], [1], [0, 0, 1, 1], [], []>} : vector<2x128xbf16>, vector<128x512xbf16>, vector<2x512xf32> -> vector<2x512xf32>
    %589 = arith.extf %585 : vector<2x512xbf16> to vector<2x512xf32>
    %590 = arith.addf %589, %588 : vector<2x512xf32>
    %591 = arith.index_cast %582 : i32 to index
    %c0_158 = arith.constant 0 : index
    %c0_159 = arith.constant 0 : index
    %592 = vector.load %arg4[%591, %c0_158, %c0_159] : memref<8x2x512xbf16, #tpu.memory_space<vmem>>, vector<1x2x512xbf16>
    %593 = vector.shape_cast %592 : vector<1x2x512xbf16> to vector<2x512xbf16>
    %594 = arith.truncf %562 : vector<2x128xf32> to vector<2x128xbf16>
    %c0_160 = arith.constant 0 : index
    %c0_161 = arith.constant 0 : index
    %595 = vector.load %arg6[%c0_160, %c0_161] : memref<128x512xbf16, #tpu.memory_space<vmem>>, vector<128x512xbf16>
    %cst_162 = arith.constant dense<0.000000e+00> : vector<2x512xf32>
    %596 = tpu.matmul %594, %595, %cst_162 {dimension_numbers = #tpu.dot_dimension_numbers<[1], [0], [0], [1], [0, 0, 1, 1], [], []>} : vector<2x128xbf16>, vector<128x512xbf16>, vector<2x512xf32> -> vector<2x512xf32>
    %597 = arith.extf %593 : vector<2x512xbf16> to vector<2x512xf32>
    %598 = arith.addf %597, %596 : vector<2x512xf32>
    %599 = arith.index_cast %c5_i32 : i32 to index
    %c0_163 = arith.constant 0 : index
    %c0_164 = arith.constant 0 : index
    %600 = vector.load %arg2[%599, %c0_163, %c0_164] : memref<8x2x1xf32, #tpu.memory_space<vmem>>, vector<1x2x1xf32>
    %601 = vector.shape_cast %600 : vector<1x2x1xf32> to vector<2x1xf32>
    %602 = vector.extract_strided_slice %590 {offsets = [0, 0], sizes = [2, 128], strides = [1, 1]} : vector<2x512xf32> to vector<2x128xf32>
    %603 = arith.negf %602 : vector<2x128xf32>
    %604 = math.exp %603 : vector<2x128xf32>
    %cst_165 = arith.constant 1.000000e+00 : f32
    %605 = vector.broadcast %cst_165 : f32 to vector<2x128xf32>
    %606 = arith.addf %605, %604 : vector<2x128xf32>
    %607 = arith.divf %605, %606 : vector<2x128xf32>
    %608 = vector.extract_strided_slice %590 {offsets = [0, 128], sizes = [2, 128], strides = [1, 1]} : vector<2x512xf32> to vector<2x128xf32>
    %609 = arith.negf %608 : vector<2x128xf32>
    %610 = math.exp %609 : vector<2x128xf32>
    %cst_166 = arith.constant 1.000000e+00 : f32
    %611 = vector.broadcast %cst_166 : f32 to vector<2x128xf32>
    %612 = arith.addf %611, %610 : vector<2x128xf32>
    %613 = arith.divf %611, %612 : vector<2x128xf32>
    %614 = vector.extract_strided_slice %590 {offsets = [0, 256], sizes = [2, 128], strides = [1, 1]} : vector<2x512xf32> to vector<2x128xf32>
    %615 = math.tanh %614 : vector<2x128xf32>
    %616 = vector.extract_strided_slice %590 {offsets = [0, 384], sizes = [2, 128], strides = [1, 1]} : vector<2x512xf32> to vector<2x128xf32>
    %617 = arith.negf %616 : vector<2x128xf32>
    %618 = math.exp %617 : vector<2x128xf32>
    %cst_167 = arith.constant 1.000000e+00 : f32
    %619 = vector.broadcast %cst_167 : f32 to vector<2x128xf32>
    %620 = arith.addf %619, %618 : vector<2x128xf32>
    %621 = arith.divf %619, %620 : vector<2x128xf32>
    %622 = arith.mulf %613, %525 : vector<2x128xf32>
    %623 = arith.mulf %607, %615 : vector<2x128xf32>
    %624 = arith.addf %622, %623 : vector<2x128xf32>
    %625 = math.tanh %624 : vector<2x128xf32>
    %626 = arith.mulf %621, %625 : vector<2x128xf32>
    %627 = vector.broadcast %601 : vector<2x1xf32> to vector<2x128xf32>
    %628 = arith.mulf %627, %626 : vector<2x128xf32>
    %cst_168 = arith.constant 1.000000e+00 : f32
    %629 = vector.broadcast %cst_168 : f32 to vector<2x1xf32>
    %630 = arith.subf %629, %601 : vector<2x1xf32>
    %631 = vector.broadcast %630 : vector<2x1xf32> to vector<2x128xf32>
    %632 = arith.mulf %631, %518 : vector<2x128xf32>
    %633 = arith.addf %628, %632 : vector<2x128xf32>
    %634 = vector.broadcast %601 : vector<2x1xf32> to vector<2x128xf32>
    %635 = arith.mulf %634, %624 : vector<2x128xf32>
    %cst_169 = arith.constant 1.000000e+00 : f32
    %636 = vector.broadcast %cst_169 : f32 to vector<2x1xf32>
    %637 = arith.subf %636, %601 : vector<2x1xf32>
    %638 = vector.broadcast %637 : vector<2x1xf32> to vector<2x128xf32>
    %639 = arith.mulf %638, %525 : vector<2x128xf32>
    %640 = arith.addf %635, %639 : vector<2x128xf32>
    %641 = vector.broadcast %601 : vector<2x1xf32> to vector<2x128xf32>
    %642 = arith.mulf %641, %626 : vector<2x128xf32>
    %643 = arith.index_cast %582 : i32 to index
    %c0_170 = arith.constant 0 : index
    %c0_171 = arith.constant 0 : index
    %644 = vector.load %arg5[%643, %c0_170, %c0_171] : memref<8x2x1xf32, #tpu.memory_space<vmem>>, vector<1x2x1xf32>
    %645 = vector.shape_cast %644 : vector<1x2x1xf32> to vector<2x1xf32>
    %646 = vector.extract_strided_slice %598 {offsets = [0, 0], sizes = [2, 128], strides = [1, 1]} : vector<2x512xf32> to vector<2x128xf32>
    %647 = arith.negf %646 : vector<2x128xf32>
    %648 = math.exp %647 : vector<2x128xf32>
    %cst_172 = arith.constant 1.000000e+00 : f32
    %649 = vector.broadcast %cst_172 : f32 to vector<2x128xf32>
    %650 = arith.addf %649, %648 : vector<2x128xf32>
    %651 = arith.divf %649, %650 : vector<2x128xf32>
    %652 = vector.extract_strided_slice %598 {offsets = [0, 128], sizes = [2, 128], strides = [1, 1]} : vector<2x512xf32> to vector<2x128xf32>
    %653 = arith.negf %652 : vector<2x128xf32>
    %654 = math.exp %653 : vector<2x128xf32>
    %cst_173 = arith.constant 1.000000e+00 : f32
    %655 = vector.broadcast %cst_173 : f32 to vector<2x128xf32>
    %656 = arith.addf %655, %654 : vector<2x128xf32>
    %657 = arith.divf %655, %656 : vector<2x128xf32>
    %658 = vector.extract_strided_slice %598 {offsets = [0, 256], sizes = [2, 128], strides = [1, 1]} : vector<2x512xf32> to vector<2x128xf32>
    %659 = math.tanh %658 : vector<2x128xf32>
    %660 = vector.extract_strided_slice %598 {offsets = [0, 384], sizes = [2, 128], strides = [1, 1]} : vector<2x512xf32> to vector<2x128xf32>
    %661 = arith.negf %660 : vector<2x128xf32>
    %662 = math.exp %661 : vector<2x128xf32>
    %cst_174 = arith.constant 1.000000e+00 : f32
    %663 = vector.broadcast %cst_174 : f32 to vector<2x128xf32>
    %664 = arith.addf %663, %662 : vector<2x128xf32>
    %665 = arith.divf %663, %664 : vector<2x128xf32>
    %666 = arith.mulf %657, %569 : vector<2x128xf32>
    %667 = arith.mulf %651, %659 : vector<2x128xf32>
    %668 = arith.addf %666, %667 : vector<2x128xf32>
    %669 = math.tanh %668 : vector<2x128xf32>
    %670 = arith.mulf %665, %669 : vector<2x128xf32>
    %671 = vector.broadcast %645 : vector<2x1xf32> to vector<2x128xf32>
    %672 = arith.mulf %671, %670 : vector<2x128xf32>
    %cst_175 = arith.constant 1.000000e+00 : f32
    %673 = vector.broadcast %cst_175 : f32 to vector<2x1xf32>
    %674 = arith.subf %673, %645 : vector<2x1xf32>
    %675 = vector.broadcast %674 : vector<2x1xf32> to vector<2x128xf32>
    %676 = arith.mulf %675, %562 : vector<2x128xf32>
    %677 = arith.addf %672, %676 : vector<2x128xf32>
    %678 = vector.broadcast %645 : vector<2x1xf32> to vector<2x128xf32>
    %679 = arith.mulf %678, %668 : vector<2x128xf32>
    %cst_176 = arith.constant 1.000000e+00 : f32
    %680 = vector.broadcast %cst_176 : f32 to vector<2x1xf32>
    %681 = arith.subf %680, %645 : vector<2x1xf32>
    %682 = vector.broadcast %681 : vector<2x1xf32> to vector<2x128xf32>
    %683 = arith.mulf %682, %569 : vector<2x128xf32>
    %684 = arith.addf %679, %683 : vector<2x128xf32>
    %685 = vector.broadcast %645 : vector<2x1xf32> to vector<2x128xf32>
    %686 = arith.mulf %685, %670 : vector<2x128xf32>
    %687 = arith.truncf %642 : vector<2x128xf32> to vector<2x128xbf16>
    %688 = arith.index_cast %c5_i32 : i32 to index
    %c0_177 = arith.constant 0 : index
    %c0_178 = arith.constant 0 : index
    %689 = vector.load %arg7[%688, %c0_177, %c0_178] : memref<8x2x128xbf16, #tpu.memory_space<vmem>>, vector<1x2x128xbf16>
    %690 = vector.shape_cast %689 : vector<1x2x128xbf16> to vector<2x128xbf16>
    %691 = vector.shape_cast %687 : vector<2x128xbf16> to vector<1x2x128xbf16>
    tpu.vector_store %arg7[%688, %c0_177, %c0_178], %691 {strides = array<i32>} : memref<8x2x128xbf16, #tpu.memory_space<vmem>>, vector<1x2x128xbf16>,
    %692 = arith.truncf %686 : vector<2x128xf32> to vector<2x128xbf16>
    %693 = arith.index_cast %582 : i32 to index
    %c0_179 = arith.constant 0 : index
    %c0_180 = arith.constant 0 : index
    %694 = vector.load %arg8[%693, %c0_179, %c0_180] : memref<8x2x128xbf16, #tpu.memory_space<vmem>>, vector<1x2x128xbf16>
    %695 = vector.shape_cast %694 : vector<1x2x128xbf16> to vector<2x128xbf16>
    %696 = vector.shape_cast %692 : vector<2x128xbf16> to vector<1x2x128xbf16>
    tpu.vector_store %arg8[%693, %c0_179, %c0_180], %696 {strides = array<i32>} : memref<8x2x128xbf16, #tpu.memory_space<vmem>>, vector<1x2x128xbf16>,
    %c6_i32 = arith.constant 6 : i32
    %c7_i32_181 = arith.constant 7 : i32
    %697 = arith.subi %c7_i32_181, %c6_i32 : i32
    %698 = arith.index_cast %c6_i32 : i32 to index
    %c0_182 = arith.constant 0 : index
    %c0_183 = arith.constant 0 : index
    %699 = vector.load %arg1[%698, %c0_182, %c0_183] : memref<8x2x512xbf16, #tpu.memory_space<vmem>>, vector<1x2x512xbf16>
    %700 = vector.shape_cast %699 : vector<1x2x512xbf16> to vector<2x512xbf16>
    %701 = arith.truncf %633 : vector<2x128xf32> to vector<2x128xbf16>
    %c0_184 = arith.constant 0 : index
    %c0_185 = arith.constant 0 : index
    %702 = vector.load %arg3[%c0_184, %c0_185] : memref<128x512xbf16, #tpu.memory_space<vmem>>, vector<128x512xbf16>
    %cst_186 = arith.constant dense<0.000000e+00> : vector<2x512xf32>
    %703 = tpu.matmul %701, %702, %cst_186 {dimension_numbers = #tpu.dot_dimension_numbers<[1], [0], [0], [1], [0, 0, 1, 1], [], []>} : vector<2x128xbf16>, vector<128x512xbf16>, vector<2x512xf32> -> vector<2x512xf32>
    %704 = arith.extf %700 : vector<2x512xbf16> to vector<2x512xf32>
    %705 = arith.addf %704, %703 : vector<2x512xf32>
    %706 = arith.index_cast %697 : i32 to index
    %c0_187 = arith.constant 0 : index
    %c0_188 = arith.constant 0 : index
    %707 = vector.load %arg4[%706, %c0_187, %c0_188] : memref<8x2x512xbf16, #tpu.memory_space<vmem>>, vector<1x2x512xbf16>
    %708 = vector.shape_cast %707 : vector<1x2x512xbf16> to vector<2x512xbf16>
    %709 = arith.truncf %677 : vector<2x128xf32> to vector<2x128xbf16>
    %c0_189 = arith.constant 0 : index
    %c0_190 = arith.constant 0 : index
    %710 = vector.load %arg6[%c0_189, %c0_190] : memref<128x512xbf16, #tpu.memory_space<vmem>>, vector<128x512xbf16>
    %cst_191 = arith.constant dense<0.000000e+00> : vector<2x512xf32>
    %711 = tpu.matmul %709, %710, %cst_191 {dimension_numbers = #tpu.dot_dimension_numbers<[1], [0], [0], [1], [0, 0, 1, 1], [], []>} : vector<2x128xbf16>, vector<128x512xbf16>, vector<2x512xf32> -> vector<2x512xf32>
    %712 = arith.extf %708 : vector<2x512xbf16> to vector<2x512xf32>
    %713 = arith.addf %712, %711 : vector<2x512xf32>
    %714 = arith.index_cast %c6_i32 : i32 to index
    %c0_192 = arith.constant 0 : index
    %c0_193 = arith.constant 0 : index
    %715 = vector.load %arg2[%714, %c0_192, %c0_193] : memref<8x2x1xf32, #tpu.memory_space<vmem>>, vector<1x2x1xf32>
    %716 = vector.shape_cast %715 : vector<1x2x1xf32> to vector<2x1xf32>
    %717 = vector.extract_strided_slice %705 {offsets = [0, 0], sizes = [2, 128], strides = [1, 1]} : vector<2x512xf32> to vector<2x128xf32>
    %718 = arith.negf %717 : vector<2x128xf32>
    %719 = math.exp %718 : vector<2x128xf32>
    %cst_194 = arith.constant 1.000000e+00 : f32
    %720 = vector.broadcast %cst_194 : f32 to vector<2x128xf32>
    %721 = arith.addf %720, %719 : vector<2x128xf32>
    %722 = arith.divf %720, %721 : vector<2x128xf32>
    %723 = vector.extract_strided_slice %705 {offsets = [0, 128], sizes = [2, 128], strides = [1, 1]} : vector<2x512xf32> to vector<2x128xf32>
    %724 = arith.negf %723 : vector<2x128xf32>
    %725 = math.exp %724 : vector<2x128xf32>
    %cst_195 = arith.constant 1.000000e+00 : f32
    %726 = vector.broadcast %cst_195 : f32 to vector<2x128xf32>
    %727 = arith.addf %726, %725 : vector<2x128xf32>
    %728 = arith.divf %726, %727 : vector<2x128xf32>
    %729 = vector.extract_strided_slice %705 {offsets = [0, 256], sizes = [2, 128], strides = [1, 1]} : vector<2x512xf32> to vector<2x128xf32>
    %730 = math.tanh %729 : vector<2x128xf32>
    %731 = vector.extract_strided_slice %705 {offsets = [0, 384], sizes = [2, 128], strides = [1, 1]} : vector<2x512xf32> to vector<2x128xf32>
    %732 = arith.negf %731 : vector<2x128xf32>
    %733 = math.exp %732 : vector<2x128xf32>
    %cst_196 = arith.constant 1.000000e+00 : f32
    %734 = vector.broadcast %cst_196 : f32 to vector<2x128xf32>
    %735 = arith.addf %734, %733 : vector<2x128xf32>
    %736 = arith.divf %734, %735 : vector<2x128xf32>
    %737 = arith.mulf %728, %640 : vector<2x128xf32>
    %738 = arith.mulf %722, %730 : vector<2x128xf32>
    %739 = arith.addf %737, %738 : vector<2x128xf32>
    %740 = math.tanh %739 : vector<2x128xf32>
    %741 = arith.mulf %736, %740 : vector<2x128xf32>
    %742 = vector.broadcast %716 : vector<2x1xf32> to vector<2x128xf32>
    %743 = arith.mulf %742, %741 : vector<2x128xf32>
    %cst_197 = arith.constant 1.000000e+00 : f32
    %744 = vector.broadcast %cst_197 : f32 to vector<2x1xf32>
    %745 = arith.subf %744, %716 : vector<2x1xf32>
    %746 = vector.broadcast %745 : vector<2x1xf32> to vector<2x128xf32>
    %747 = arith.mulf %746, %633 : vector<2x128xf32>
    %748 = arith.addf %743, %747 : vector<2x128xf32>
    %749 = vector.broadcast %716 : vector<2x1xf32> to vector<2x128xf32>
    %750 = arith.mulf %749, %739 : vector<2x128xf32>
    %cst_198 = arith.constant 1.000000e+00 : f32
    %751 = vector.broadcast %cst_198 : f32 to vector<2x1xf32>
    %752 = arith.subf %751, %716 : vector<2x1xf32>
    %753 = vector.broadcast %752 : vector<2x1xf32> to vector<2x128xf32>
    %754 = arith.mulf %753, %640 : vector<2x128xf32>
    %755 = arith.addf %750, %754 : vector<2x128xf32>
    %756 = vector.broadcast %716 : vector<2x1xf32> to vector<2x128xf32>
    %757 = arith.mulf %756, %741 : vector<2x128xf32>
    %758 = arith.index_cast %697 : i32 to index
    %c0_199 = arith.constant 0 : index
    %c0_200 = arith.constant 0 : index
    %759 = vector.load %arg5[%758, %c0_199, %c0_200] : memref<8x2x1xf32, #tpu.memory_space<vmem>>, vector<1x2x1xf32>
    %760 = vector.shape_cast %759 : vector<1x2x1xf32> to vector<2x1xf32>
    %761 = vector.extract_strided_slice %713 {offsets = [0, 0], sizes = [2, 128], strides = [1, 1]} : vector<2x512xf32> to vector<2x128xf32>
    %762 = arith.negf %761 : vector<2x128xf32>
    %763 = math.exp %762 : vector<2x128xf32>
    %cst_201 = arith.constant 1.000000e+00 : f32
    %764 = vector.broadcast %cst_201 : f32 to vector<2x128xf32>
    %765 = arith.addf %764, %763 : vector<2x128xf32>
    %766 = arith.divf %764, %765 : vector<2x128xf32>
    %767 = vector.extract_strided_slice %713 {offsets = [0, 128], sizes = [2, 128], strides = [1, 1]} : vector<2x512xf32> to vector<2x128xf32>
    %768 = arith.negf %767 : vector<2x128xf32>
    %769 = math.exp %768 : vector<2x128xf32>
    %cst_202 = arith.constant 1.000000e+00 : f32
    %770 = vector.broadcast %cst_202 : f32 to vector<2x128xf32>
    %771 = arith.addf %770, %769 : vector<2x128xf32>
    %772 = arith.divf %770, %771 : vector<2x128xf32>
    %773 = vector.extract_strided_slice %713 {offsets = [0, 256], sizes = [2, 128], strides = [1, 1]} : vector<2x512xf32> to vector<2x128xf32>
    %774 = math.tanh %773 : vector<2x128xf32>
    %775 = vector.extract_strided_slice %713 {offsets = [0, 384], sizes = [2, 128], strides = [1, 1]} : vector<2x512xf32> to vector<2x128xf32>
    %776 = arith.negf %775 : vector<2x128xf32>
    %777 = math.exp %776 : vector<2x128xf32>
    %cst_203 = arith.constant 1.000000e+00 : f32
    %778 = vector.broadcast %cst_203 : f32 to vector<2x128xf32>
    %779 = arith.addf %778, %777 : vector<2x128xf32>
    %780 = arith.divf %778, %779 : vector<2x128xf32>
    %781 = arith.mulf %772, %684 : vector<2x128xf32>
    %782 = arith.mulf %766, %774 : vector<2x128xf32>
    %783 = arith.addf %781, %782 : vector<2x128xf32>
    %784 = math.tanh %783 : vector<2x128xf32>
    %785 = arith.mulf %780, %784 : vector<2x128xf32>
    %786 = vector.broadcast %760 : vector<2x1xf32> to vector<2x128xf32>
    %787 = arith.mulf %786, %785 : vector<2x128xf32>
    %cst_204 = arith.constant 1.000000e+00 : f32
    %788 = vector.broadcast %cst_204 : f32 to vector<2x1xf32>
    %789 = arith.subf %788, %760 : vector<2x1xf32>
    %790 = vector.broadcast %789 : vector<2x1xf32> to vector<2x128xf32>
    %791 = arith.mulf %790, %677 : vector<2x128xf32>
    %792 = arith.addf %787, %791 : vector<2x128xf32>
    %793 = vector.broadcast %760 : vector<2x1xf32> to vector<2x128xf32>
    %794 = arith.mulf %793, %783 : vector<2x128xf32>
    %cst_205 = arith.constant 1.000000e+00 : f32
    %795 = vector.broadcast %cst_205 : f32 to vector<2x1xf32>
    %796 = arith.subf %795, %760 : vector<2x1xf32>
    %797 = vector.broadcast %796 : vector<2x1xf32> to vector<2x128xf32>
    %798 = arith.mulf %797, %684 : vector<2x128xf32>
    %799 = arith.addf %794, %798 : vector<2x128xf32>
    %800 = vector.broadcast %760 : vector<2x1xf32> to vector<2x128xf32>
    %801 = arith.mulf %800, %785 : vector<2x128xf32>
    %802 = arith.truncf %757 : vector<2x128xf32> to vector<2x128xbf16>
    %803 = arith.index_cast %c6_i32 : i32 to index
    %c0_206 = arith.constant 0 : index
    %c0_207 = arith.constant 0 : index
    %804 = vector.load %arg7[%803, %c0_206, %c0_207] : memref<8x2x128xbf16, #tpu.memory_space<vmem>>, vector<1x2x128xbf16>
    %805 = vector.shape_cast %804 : vector<1x2x128xbf16> to vector<2x128xbf16>
    %806 = vector.shape_cast %802 : vector<2x128xbf16> to vector<1x2x128xbf16>
    tpu.vector_store %arg7[%803, %c0_206, %c0_207], %806 {strides = array<i32>} : memref<8x2x128xbf16, #tpu.memory_space<vmem>>, vector<1x2x128xbf16>,
    %807 = arith.truncf %801 : vector<2x128xf32> to vector<2x128xbf16>
    %808 = arith.index_cast %697 : i32 to index
    %c0_208 = arith.constant 0 : index
    %c0_209 = arith.constant 0 : index
    %809 = vector.load %arg8[%808, %c0_208, %c0_209] : memref<8x2x128xbf16, #tpu.memory_space<vmem>>, vector<1x2x128xbf16>
    %810 = vector.shape_cast %809 : vector<1x2x128xbf16> to vector<2x128xbf16>
    %811 = vector.shape_cast %807 : vector<2x128xbf16> to vector<1x2x128xbf16>
    tpu.vector_store %arg8[%808, %c0_208, %c0_209], %811 {strides = array<i32>} : memref<8x2x128xbf16, #tpu.memory_space<vmem>>, vector<1x2x128xbf16>,
    %c7_i32_210 = arith.constant 7 : i32
    %c7_i32_211 = arith.constant 7 : i32
    %812 = arith.subi %c7_i32_211, %c7_i32_210 : i32
    %813 = arith.index_cast %c7_i32_210 : i32 to index
    %c0_212 = arith.constant 0 : index
    %c0_213 = arith.constant 0 : index
    %814 = vector.load %arg1[%813, %c0_212, %c0_213] : memref<8x2x512xbf16, #tpu.memory_space<vmem>>, vector<1x2x512xbf16>
    %815 = vector.shape_cast %814 : vector<1x2x512xbf16> to vector<2x512xbf16>
    %816 = arith.truncf %748 : vector<2x128xf32> to vector<2x128xbf16>
    %c0_214 = arith.constant 0 : index
    %c0_215 = arith.constant 0 : index
    %817 = vector.load %arg3[%c0_214, %c0_215] : memref<128x512xbf16, #tpu.memory_space<vmem>>, vector<128x512xbf16>
    %cst_216 = arith.constant dense<0.000000e+00> : vector<2x512xf32>
    %818 = tpu.matmul %816, %817, %cst_216 {dimension_numbers = #tpu.dot_dimension_numbers<[1], [0], [0], [1], [0, 0, 1, 1], [], []>} : vector<2x128xbf16>, vector<128x512xbf16>, vector<2x512xf32> -> vector<2x512xf32>
    %819 = arith.extf %815 : vector<2x512xbf16> to vector<2x512xf32>
    %820 = arith.addf %819, %818 : vector<2x512xf32>
    %821 = arith.index_cast %812 : i32 to index
    %c0_217 = arith.constant 0 : index
    %c0_218 = arith.constant 0 : index
    %822 = vector.load %arg4[%821, %c0_217, %c0_218] : memref<8x2x512xbf16, #tpu.memory_space<vmem>>, vector<1x2x512xbf16>
    %823 = vector.shape_cast %822 : vector<1x2x512xbf16> to vector<2x512xbf16>
    %824 = arith.truncf %792 : vector<2x128xf32> to vector<2x128xbf16>
    %c0_219 = arith.constant 0 : index
    %c0_220 = arith.constant 0 : index
    %825 = vector.load %arg6[%c0_219, %c0_220] : memref<128x512xbf16, #tpu.memory_space<vmem>>, vector<128x512xbf16>
    %cst_221 = arith.constant dense<0.000000e+00> : vector<2x512xf32>
    %826 = tpu.matmul %824, %825, %cst_221 {dimension_numbers = #tpu.dot_dimension_numbers<[1], [0], [0], [1], [0, 0, 1, 1], [], []>} : vector<2x128xbf16>, vector<128x512xbf16>, vector<2x512xf32> -> vector<2x512xf32>
    %827 = arith.extf %823 : vector<2x512xbf16> to vector<2x512xf32>
    %828 = arith.addf %827, %826 : vector<2x512xf32>
    %829 = arith.index_cast %c7_i32_210 : i32 to index
    %c0_222 = arith.constant 0 : index
    %c0_223 = arith.constant 0 : index
    %830 = vector.load %arg2[%829, %c0_222, %c0_223] : memref<8x2x1xf32, #tpu.memory_space<vmem>>, vector<1x2x1xf32>
    %831 = vector.shape_cast %830 : vector<1x2x1xf32> to vector<2x1xf32>
    %832 = vector.extract_strided_slice %820 {offsets = [0, 0], sizes = [2, 128], strides = [1, 1]} : vector<2x512xf32> to vector<2x128xf32>
    %833 = arith.negf %832 : vector<2x128xf32>
    %834 = math.exp %833 : vector<2x128xf32>
    %cst_224 = arith.constant 1.000000e+00 : f32
    %835 = vector.broadcast %cst_224 : f32 to vector<2x128xf32>
    %836 = arith.addf %835, %834 : vector<2x128xf32>
    %837 = arith.divf %835, %836 : vector<2x128xf32>
    %838 = vector.extract_strided_slice %820 {offsets = [0, 128], sizes = [2, 128], strides = [1, 1]} : vector<2x512xf32> to vector<2x128xf32>
    %839 = arith.negf %838 : vector<2x128xf32>
    %840 = math.exp %839 : vector<2x128xf32>
    %cst_225 = arith.constant 1.000000e+00 : f32
    %841 = vector.broadcast %cst_225 : f32 to vector<2x128xf32>
    %842 = arith.addf %841, %840 : vector<2x128xf32>
    %843 = arith.divf %841, %842 : vector<2x128xf32>
    %844 = vector.extract_strided_slice %820 {offsets = [0, 256], sizes = [2, 128], strides = [1, 1]} : vector<2x512xf32> to vector<2x128xf32>
    %845 = math.tanh %844 : vector<2x128xf32>
    %846 = vector.extract_strided_slice %820 {offsets = [0, 384], sizes = [2, 128], strides = [1, 1]} : vector<2x512xf32> to vector<2x128xf32>
    %847 = arith.negf %846 : vector<2x128xf32>
    %848 = math.exp %847 : vector<2x128xf32>
    %cst_226 = arith.constant 1.000000e+00 : f32
    %849 = vector.broadcast %cst_226 : f32 to vector<2x128xf32>
    %850 = arith.addf %849, %848 : vector<2x128xf32>
    %851 = arith.divf %849, %850 : vector<2x128xf32>
    %852 = arith.mulf %843, %755 : vector<2x128xf32>
    %853 = arith.mulf %837, %845 : vector<2x128xf32>
    %854 = arith.addf %852, %853 : vector<2x128xf32>
    %855 = math.tanh %854 : vector<2x128xf32>
    %856 = arith.mulf %851, %855 : vector<2x128xf32>
    %857 = vector.broadcast %831 : vector<2x1xf32> to vector<2x128xf32>
    %858 = arith.mulf %857, %856 : vector<2x128xf32>
    %cst_227 = arith.constant 1.000000e+00 : f32
    %859 = vector.broadcast %cst_227 : f32 to vector<2x1xf32>
    %860 = arith.subf %859, %831 : vector<2x1xf32>
    %861 = vector.broadcast %860 : vector<2x1xf32> to vector<2x128xf32>
    %862 = arith.mulf %861, %748 : vector<2x128xf32>
    %863 = arith.addf %858, %862 : vector<2x128xf32>
    %864 = vector.broadcast %831 : vector<2x1xf32> to vector<2x128xf32>
    %865 = arith.mulf %864, %854 : vector<2x128xf32>
    %cst_228 = arith.constant 1.000000e+00 : f32
    %866 = vector.broadcast %cst_228 : f32 to vector<2x1xf32>
    %867 = arith.subf %866, %831 : vector<2x1xf32>
    %868 = vector.broadcast %867 : vector<2x1xf32> to vector<2x128xf32>
    %869 = arith.mulf %868, %755 : vector<2x128xf32>
    %870 = arith.addf %865, %869 : vector<2x128xf32>
    %871 = vector.broadcast %831 : vector<2x1xf32> to vector<2x128xf32>
    %872 = arith.mulf %871, %856 : vector<2x128xf32>
    %873 = arith.index_cast %812 : i32 to index
    %c0_229 = arith.constant 0 : index
    %c0_230 = arith.constant 0 : index
    %874 = vector.load %arg5[%873, %c0_229, %c0_230] : memref<8x2x1xf32, #tpu.memory_space<vmem>>, vector<1x2x1xf32>
    %875 = vector.shape_cast %874 : vector<1x2x1xf32> to vector<2x1xf32>
    %876 = vector.extract_strided_slice %828 {offsets = [0, 0], sizes = [2, 128], strides = [1, 1]} : vector<2x512xf32> to vector<2x128xf32>
    %877 = arith.negf %876 : vector<2x128xf32>
    %878 = math.exp %877 : vector<2x128xf32>
    %cst_231 = arith.constant 1.000000e+00 : f32
    %879 = vector.broadcast %cst_231 : f32 to vector<2x128xf32>
    %880 = arith.addf %879, %878 : vector<2x128xf32>
    %881 = arith.divf %879, %880 : vector<2x128xf32>
    %882 = vector.extract_strided_slice %828 {offsets = [0, 128], sizes = [2, 128], strides = [1, 1]} : vector<2x512xf32> to vector<2x128xf32>
    %883 = arith.negf %882 : vector<2x128xf32>
    %884 = math.exp %883 : vector<2x128xf32>
    %cst_232 = arith.constant 1.000000e+00 : f32
    %885 = vector.broadcast %cst_232 : f32 to vector<2x128xf32>
    %886 = arith.addf %885, %884 : vector<2x128xf32>
    %887 = arith.divf %885, %886 : vector<2x128xf32>
    %888 = vector.extract_strided_slice %828 {offsets = [0, 256], sizes = [2, 128], strides = [1, 1]} : vector<2x512xf32> to vector<2x128xf32>
    %889 = math.tanh %888 : vector<2x128xf32>
    %890 = vector.extract_strided_slice %828 {offsets = [0, 384], sizes = [2, 128], strides = [1, 1]} : vector<2x512xf32> to vector<2x128xf32>
    %891 = arith.negf %890 : vector<2x128xf32>
    %892 = math.exp %891 : vector<2x128xf32>
    %cst_233 = arith.constant 1.000000e+00 : f32
    %893 = vector.broadcast %cst_233 : f32 to vector<2x128xf32>
    %894 = arith.addf %893, %892 : vector<2x128xf32>
    %895 = arith.divf %893, %894 : vector<2x128xf32>
    %896 = arith.mulf %887, %799 : vector<2x128xf32>
    %897 = arith.mulf %881, %889 : vector<2x128xf32>
    %898 = arith.addf %896, %897 : vector<2x128xf32>
    %899 = math.tanh %898 : vector<2x128xf32>
    %900 = arith.mulf %895, %899 : vector<2x128xf32>
    %901 = vector.broadcast %875 : vector<2x1xf32> to vector<2x128xf32>
    %902 = arith.mulf %901, %900 : vector<2x128xf32>
    %cst_234 = arith.constant 1.000000e+00 : f32
    %903 = vector.broadcast %cst_234 : f32 to vector<2x1xf32>
    %904 = arith.subf %903, %875 : vector<2x1xf32>
    %905 = vector.broadcast %904 : vector<2x1xf32> to vector<2x128xf32>
    %906 = arith.mulf %905, %792 : vector<2x128xf32>
    %907 = arith.addf %902, %906 : vector<2x128xf32>
    %908 = vector.broadcast %875 : vector<2x1xf32> to vector<2x128xf32>
    %909 = arith.mulf %908, %898 : vector<2x128xf32>
    %cst_235 = arith.constant 1.000000e+00 : f32
    %910 = vector.broadcast %cst_235 : f32 to vector<2x1xf32>
    %911 = arith.subf %910, %875 : vector<2x1xf32>
    %912 = vector.broadcast %911 : vector<2x1xf32> to vector<2x128xf32>
    %913 = arith.mulf %912, %799 : vector<2x128xf32>
    %914 = arith.addf %909, %913 : vector<2x128xf32>
    %915 = vector.broadcast %875 : vector<2x1xf32> to vector<2x128xf32>
    %916 = arith.mulf %915, %900 : vector<2x128xf32>
    %917 = arith.truncf %872 : vector<2x128xf32> to vector<2x128xbf16>
    %918 = arith.index_cast %c7_i32_210 : i32 to index
    %c0_236 = arith.constant 0 : index
    %c0_237 = arith.constant 0 : index
    %919 = vector.load %arg7[%918, %c0_236, %c0_237] : memref<8x2x128xbf16, #tpu.memory_space<vmem>>, vector<1x2x128xbf16>
    %920 = vector.shape_cast %919 : vector<1x2x128xbf16> to vector<2x128xbf16>
    %921 = vector.shape_cast %917 : vector<2x128xbf16> to vector<1x2x128xbf16>
    tpu.vector_store %arg7[%918, %c0_236, %c0_237], %921 {strides = array<i32>} : memref<8x2x128xbf16, #tpu.memory_space<vmem>>, vector<1x2x128xbf16>,
    %922 = arith.truncf %916 : vector<2x128xf32> to vector<2x128xbf16>
    %923 = arith.index_cast %812 : i32 to index
    %c0_238 = arith.constant 0 : index
    %c0_239 = arith.constant 0 : index
    %924 = vector.load %arg8[%923, %c0_238, %c0_239] : memref<8x2x128xbf16, #tpu.memory_space<vmem>>, vector<1x2x128xbf16>
    %925 = vector.shape_cast %924 : vector<1x2x128xbf16> to vector<2x128xbf16>
    %926 = vector.shape_cast %922 : vector<2x128xbf16> to vector<1x2x128xbf16>
    tpu.vector_store %arg8[%923, %c0_238, %c0_239], %926 {strides = array<i32>} : memref<8x2x128xbf16, #tpu.memory_space<vmem>>, vector<1x2x128xbf16>,
    %c8_i32 = arith.constant 8 : i32
    %c0_240 = arith.constant 0 : index
    %c0_241 = arith.constant 0 : index
    %927 = vector.load %arg9[%c0_240, %c0_241] : memref<2x128xf32, #tpu.memory_space<vmem>>, vector<2x128xf32>
    tpu.vector_store %arg9[%c0_240, %c0_241], %863 {strides = array<i32>} : memref<2x128xf32, #tpu.memory_space<vmem>>, vector<2x128xf32>,
    %c0_242 = arith.constant 0 : index
    %c0_243 = arith.constant 0 : index
    %928 = vector.load %arg10[%c0_242, %c0_243] : memref<2x128xf32, #tpu.memory_space<vmem>>, vector<2x128xf32>
    tpu.vector_store %arg10[%c0_242, %c0_243], %870 {strides = array<i32>} : memref<2x128xf32, #tpu.memory_space<vmem>>, vector<2x128xf32>,
    %c0_244 = arith.constant 0 : index
    %c0_245 = arith.constant 0 : index
    %929 = vector.load %arg11[%c0_244, %c0_245] : memref<2x128xf32, #tpu.memory_space<vmem>>, vector<2x128xf32>
    tpu.vector_store %arg11[%c0_244, %c0_245], %907 {strides = array<i32>} : memref<2x128xf32, #tpu.memory_space<vmem>>, vector<2x128xf32>,
    %c0_246 = arith.constant 0 : index
    %c0_247 = arith.constant 0 : index
    %930 = vector.load %arg12[%c0_246, %c0_247] : memref<2x128xf32, #tpu.memory_space<vmem>>, vector<2x128xf32>
    tpu.vector_store %arg12[%c0_246, %c0_247], %914 {strides = array<i32>} : memref<2x128xf32, #tpu.memory_space<vmem>>, vector<2x128xf32>,
    return
  }
  func.func @transform_0(%arg0: i32) -> (i32, i32, i32) {
    %c0_i32 = arith.constant 0 : i32
    %c0_i32_0 = arith.constant 0 : i32
    %c0_i32_1 = arith.constant 0 : i32
    return %arg0, %c0_i32, %c0_i32_0 : i32, i32, i32
  }
  func.func @transform_1(%arg0: i32) -> (i32, i32, i32) {
    %c0_i32 = arith.constant 0 : i32
    %c0_i32_0 = arith.constant 0 : i32
    %c0_i32_1 = arith.constant 0 : i32
    return %arg0, %c0_i32, %c0_i32_0 : i32, i32, i32
  }
  func.func @transform_2(%arg0: i32) -> (i32, i32) {
    %c0_i32 = arith.constant 0 : i32
    %c0_i32_0 = arith.constant 0 : i32
    %c0_i32_1 = arith.constant 0 : i32
    return %c0_i32, %c0_i32_0 : i32, i32
  }
  func.func @transform_3(%arg0: i32) -> (i32, i32, i32) {
    %c0_i32 = arith.constant 0 : i32
    %0 = arith.subi %c0_i32, %arg0 : i32
    %c0_i32_0 = arith.constant 0 : i32
    %c0_i32_1 = arith.constant 0 : i32
    %c0_i32_2 = arith.constant 0 : i32
    return %0, %c0_i32_0, %c0_i32_1 : i32, i32, i32
  }
  func.func @transform_4(%arg0: i32) -> (i32, i32, i32) {
    %c0_i32 = arith.constant 0 : i32
    %0 = arith.subi %c0_i32, %arg0 : i32
    %c0_i32_0 = arith.constant 0 : i32
    %c0_i32_1 = arith.constant 0 : i32
    %c0_i32_2 = arith.constant 0 : i32
    return %0, %c0_i32_0, %c0_i32_1 : i32, i32, i32
  }
  func.func @transform_5(%arg0: i32) -> (i32, i32) {
    %c0_i32 = arith.constant 0 : i32
    %c0_i32_0 = arith.constant 0 : i32
    %c0_i32_1 = arith.constant 0 : i32
    return %c0_i32, %c0_i32_0 : i32, i32
  }
  func.func @transform_6(%arg0: i32) -> (i32, i32, i32) {
    %c0_i32 = arith.constant 0 : i32
    %c0_i32_0 = arith.constant 0 : i32
    %c0_i32_1 = arith.constant 0 : i32
    return %arg0, %c0_i32, %c0_i32_0 : i32, i32, i32
  }
  func.func @transform_7(%arg0: i32) -> (i32, i32, i32) {
    %c0_i32 = arith.constant 0 : i32
    %0 = arith.subi %c0_i32, %arg0 : i32
    %c0_i32_0 = arith.constant 0 : i32
    %c0_i32_1 = arith.constant 0 : i32
    %c0_i32_2 = arith.constant 0 : i32
    return %0, %c0_i32_0, %c0_i32_1 : i32, i32, i32
  }
}

module attributes {stable_mosaic.version = 11 : i64} {
  func.func @_decoder_kernel(%arg0: i32, %arg1: i32, %arg2: memref<2x128xbf16, #tpu.memory_space<vmem>>, %arg3: memref<2x8x128xbf16, #tpu.memory_space<vmem>>, %arg4: memref<2x8xf32, #tpu.memory_space<vmem>>, %arg5: memref<128x384xbf16, #tpu.memory_space<vmem>>, %arg6: memref<1x384xf32, #tpu.memory_space<vmem>>, %arg7: memref<128x128xbf16, #tpu.memory_space<vmem>>, %arg8: memref<128x384xbf16, #tpu.memory_space<vmem>>, %arg9: memref<1x384xf32, #tpu.memory_space<vmem>>, %arg10: memref<128x128xbf16, #tpu.memory_space<vmem>>, %arg11: memref<128x128xbf16, #tpu.memory_space<vmem>>, %arg12: memref<1x128xf32, #tpu.memory_space<vmem>>, %arg13: memref<1x2x128xf32, #tpu.memory_space<vmem>>, %arg14: memref<2x128xf32, #tpu.memory_space<vmem>>, %arg15: memref<2x128xf32, #tpu.memory_space<vmem>>) attributes {dimension_semantics = [#tpu.dimension_semantics<parallel>, #tpu.dimension_semantics<arbitrary>], iteration_bounds = array<i64: 1, 8>, scalar_prefetch = 0 : i64, scratch_operands = 2 : i64, tpu.core_type = #tpu.core_type<tc>, window_params = [{transform_indices = @transform_0, window_bounds = array<i64: 2, 128>}, {transform_indices = @transform_1, window_bounds = array<i64: 2, 8, 128>}, {transform_indices = @transform_2, window_bounds = array<i64: 2, 8>}, {pipeline_mode = #tpu.pipeline_mode<synchronous>, transform_indices = @transform_3, window_bounds = array<i64: 128, 384>}, {pipeline_mode = #tpu.pipeline_mode<synchronous>, transform_indices = @transform_4, window_bounds = array<i64: 1, 384>}, {pipeline_mode = #tpu.pipeline_mode<synchronous>, transform_indices = @transform_5, window_bounds = array<i64: 128, 128>}, {pipeline_mode = #tpu.pipeline_mode<synchronous>, transform_indices = @transform_6, window_bounds = array<i64: 128, 384>}, {pipeline_mode = #tpu.pipeline_mode<synchronous>, transform_indices = @transform_7, window_bounds = array<i64: 1, 384>}, {pipeline_mode = #tpu.pipeline_mode<synchronous>, transform_indices = @transform_8, window_bounds = array<i64: 128, 128>}, {pipeline_mode = #tpu.pipeline_mode<synchronous>, transform_indices = @transform_9, window_bounds = array<i64: 128, 128>}, {pipeline_mode = #tpu.pipeline_mode<synchronous>, transform_indices = @transform_10, window_bounds = array<i64: 1, 128>}, {transform_indices = @transform_11, window_bounds = array<i64: 1, 2, 128>}]} {
    %c0_i32 = arith.constant 0 : i32
    %0 = arith.cmpi eq, %arg1, %c0_i32 : i32
    %1 = arith.extui %0 : i1 to i32
    %c0_i32_0 = arith.constant 0 : i32
    %2 = arith.cmpi ne, %1, %c0_i32_0 : i32
    scf.if %2 {
      %c0_47 = arith.constant 0 : index
      %c0_48 = arith.constant 0 : index
      %99 = vector.load %arg2[%c0_47, %c0_48] : memref<2x128xbf16, #tpu.memory_space<vmem>>, vector<2x128xbf16>
      %100 = arith.extf %99 : vector<2x128xbf16> to vector<2x128xf32>
      %c0_49 = arith.constant 0 : index
      %c0_50 = arith.constant 0 : index
      %101 = vector.load %arg14[%c0_49, %c0_50] : memref<2x128xf32, #tpu.memory_space<vmem>>, vector<2x128xf32>
      tpu.vector_store %arg14[%c0_49, %c0_50], %100 {strides = array<i32>} : memref<2x128xf32, #tpu.memory_space<vmem>>, vector<2x128xf32>,
      %102 = tpu.iota {dimensions = array<i32: 1>} : vector<2x128xi32>
      %c0_i32_51 = arith.constant 0 : i32
      %103 = vector.broadcast %c0_i32_51 : i32 to vector<2x128xi32>
      %104 = arith.cmpi eq, %102, %103 : vector<2x128xi32>
      %105 = arith.extui %104 : vector<2x128xi1> to vector<2x128xi32>
      %106 = arith.sitofp %105 : vector<2x128xi32> to vector<2x128xf32>
      %c0_52 = arith.constant 0 : index
      %c0_53 = arith.constant 0 : index
      %107 = vector.load %arg15[%c0_52, %c0_53] : memref<2x128xf32, #tpu.memory_space<vmem>>, vector<2x128xf32>
      tpu.vector_store %arg15[%c0_52, %c0_53], %106 {strides = array<i32>} : memref<2x128xf32, #tpu.memory_space<vmem>>, vector<2x128xf32>,
    } else {
    }
    %c0 = arith.constant 0 : index
    %c0_1 = arith.constant 0 : index
    %3 = vector.load %arg14[%c0, %c0_1] : memref<2x128xf32, #tpu.memory_space<vmem>>, vector<2x128xf32>
    %c0_2 = arith.constant 0 : index
    %c0_3 = arith.constant 0 : index
    %4 = vector.load %arg15[%c0_2, %c0_3] : memref<2x128xf32, #tpu.memory_space<vmem>>, vector<2x128xf32>
    %5 = arith.truncf %4 : vector<2x128xf32> to vector<2x128xbf16>
    %c0_4 = arith.constant 0 : index
    %c0_5 = arith.constant 0 : index
    %6 = vector.load %arg7[%c0_4, %c0_5] : memref<128x128xbf16, #tpu.memory_space<vmem>>, vector<128x128xbf16>
    %cst = arith.constant dense<0.000000e+00> : vector<2x128xf32>
    %7 = tpu.matmul %5, %6, %cst {dimension_numbers = #tpu.dot_dimension_numbers<[1], [0], [0], [1], [0, 0, 1, 1], [], []>} : vector<2x128xbf16>, vector<128x128xbf16>, vector<2x128xf32> -> vector<2x128xf32>
    %8 = arith.truncf %7 : vector<2x128xf32> to vector<2x128xbf16>
    %c0_6 = arith.constant 0 : index
    %c0_7 = arith.constant 0 : index
    %9 = vector.load %arg8[%c0_6, %c0_7] : memref<128x384xbf16, #tpu.memory_space<vmem>>, vector<128x384xbf16>
    %cst_8 = arith.constant dense<0.000000e+00> : vector<2x384xf32>
    %10 = tpu.matmul %8, %9, %cst_8 {dimension_numbers = #tpu.dot_dimension_numbers<[1], [0], [0], [1], [0, 0, 1, 1], [], []>} : vector<2x128xbf16>, vector<128x384xbf16>, vector<2x384xf32> -> vector<2x384xf32>
    %c0_9 = arith.constant 0 : index
    %c0_10 = arith.constant 0 : index
    %11 = vector.load %arg9[%c0_9, %c0_10] : memref<1x384xf32, #tpu.memory_space<vmem>>, vector<1x384xf32>
    %12 = vector.broadcast %11 : vector<1x384xf32> to vector<2x384xf32>
    %13 = arith.addf %10, %12 : vector<2x384xf32>
    %14 = arith.truncf %3 : vector<2x128xf32> to vector<2x128xbf16>
    %c0_11 = arith.constant 0 : index
    %c0_12 = arith.constant 0 : index
    %15 = vector.load %arg5[%c0_11, %c0_12] : memref<128x384xbf16, #tpu.memory_space<vmem>>, vector<128x384xbf16>
    %cst_13 = arith.constant dense<0.000000e+00> : vector<2x384xf32>
    %16 = tpu.matmul %14, %15, %cst_13 {dimension_numbers = #tpu.dot_dimension_numbers<[1], [0], [0], [1], [0, 0, 1, 1], [], []>} : vector<2x128xbf16>, vector<128x384xbf16>, vector<2x384xf32> -> vector<2x384xf32>
    %c0_14 = arith.constant 0 : index
    %c0_15 = arith.constant 0 : index
    %17 = vector.load %arg6[%c0_14, %c0_15] : memref<1x384xf32, #tpu.memory_space<vmem>>, vector<1x384xf32>
    %18 = vector.broadcast %17 : vector<1x384xf32> to vector<2x384xf32>
    %19 = arith.addf %16, %18 : vector<2x384xf32>
    %20 = vector.extract_strided_slice %13 {offsets = [0, 0], sizes = [2, 128], strides = [1, 1]} : vector<2x384xf32> to vector<2x128xf32>
    %21 = vector.extract_strided_slice %19 {offsets = [0, 0], sizes = [2, 128], strides = [1, 1]} : vector<2x384xf32> to vector<2x128xf32>
    %22 = arith.addf %20, %21 : vector<2x128xf32>
    %23 = arith.negf %22 : vector<2x128xf32>
    %24 = math.exp %23 : vector<2x128xf32>
    %cst_16 = arith.constant 1.000000e+00 : f32
    %25 = vector.broadcast %cst_16 : f32 to vector<2x128xf32>
    %26 = arith.addf %25, %24 : vector<2x128xf32>
    %27 = arith.divf %25, %26 : vector<2x128xf32>
    %28 = vector.extract_strided_slice %13 {offsets = [0, 128], sizes = [2, 128], strides = [1, 1]} : vector<2x384xf32> to vector<2x128xf32>
    %29 = vector.extract_strided_slice %19 {offsets = [0, 128], sizes = [2, 128], strides = [1, 1]} : vector<2x384xf32> to vector<2x128xf32>
    %30 = arith.addf %28, %29 : vector<2x128xf32>
    %31 = arith.negf %30 : vector<2x128xf32>
    %32 = math.exp %31 : vector<2x128xf32>
    %cst_17 = arith.constant 1.000000e+00 : f32
    %33 = vector.broadcast %cst_17 : f32 to vector<2x128xf32>
    %34 = arith.addf %33, %32 : vector<2x128xf32>
    %35 = arith.divf %33, %34 : vector<2x128xf32>
    %36 = vector.extract_strided_slice %13 {offsets = [0, 256], sizes = [2, 128], strides = [1, 1]} : vector<2x384xf32> to vector<2x128xf32>
    %37 = vector.extract_strided_slice %19 {offsets = [0, 256], sizes = [2, 128], strides = [1, 1]} : vector<2x384xf32> to vector<2x128xf32>
    %38 = arith.mulf %27, %37 : vector<2x128xf32>
    %39 = arith.addf %36, %38 : vector<2x128xf32>
    %40 = math.tanh %39 : vector<2x128xf32>
    %cst_18 = arith.constant 1.000000e+00 : f32
    %41 = vector.broadcast %cst_18 : f32 to vector<2x128xf32>
    %42 = arith.subf %41, %35 : vector<2x128xf32>
    %43 = arith.mulf %42, %40 : vector<2x128xf32>
    %44 = arith.mulf %35, %3 : vector<2x128xf32>
    %45 = arith.addf %43, %44 : vector<2x128xf32>
    %c0_19 = arith.constant 0 : index
    %c0_20 = arith.constant 0 : index
    %c0_21 = arith.constant 0 : index
    %46 = vector.load %arg3[%c0_19, %c0_20, %c0_21] : memref<2x8x128xbf16, #tpu.memory_space<vmem>>, vector<2x8x128xbf16>
    %47 = arith.extf %46 : vector<2x8x128xbf16> to vector<2x8x128xf32>
    %48 = vector.shape_cast %45 : vector<2x128xf32> to vector<2x1x128xf32>
    %49 = vector.broadcast %48 : vector<2x1x128xf32> to vector<2x8x128xf32>
    %50 = arith.mulf %49, %47 : vector<2x8x128xf32>
    %cst_22 = arith.constant dense<0.000000e+00> : vector<2x8xf32>
    %51 = vector.multi_reduction <add>, %50, %cst_22 [2] : vector<2x8x128xf32> to vector<2x8xf32>
    %c0_23 = arith.constant 0 : index
    %c0_24 = arith.constant 0 : index
    %52 = vector.load %arg4[%c0_23, %c0_24] : memref<2x8xf32, #tpu.memory_space<vmem>>, vector<2x8xf32>
    %cst_25 = arith.constant 5.000000e-01 : f32
    %53 = vector.broadcast %cst_25 : f32 to vector<2x8xf32>
    %54 = arith.cmpf ogt, %52, %53 : vector<2x8xf32>
    %cst_26 = arith.constant -1.000000e+30 : f32
    %55 = vector.broadcast %cst_26 : f32 to vector<2x8xf32>
    %56 = arith.select %54, %51, %55 : vector<2x8xi1>, vector<2x8xf32>
    %cst_27 = arith.constant dense<0xFF800000> : vector<2xf32>
    %57 = vector.multi_reduction <maximumf>, %56, %cst_27 [1] : vector<2x8xf32> to vector<2xf32>
    %58 = vector.shape_cast %57 : vector<2xf32> to vector<2x1xf32>
    %59 = vector.broadcast %58 : vector<2x1xf32> to vector<2x8xf32>
    %60 = arith.subf %56, %59 : vector<2x8xf32>
    %61 = math.exp %60 : vector<2x8xf32>
    %cst_28 = arith.constant dense<0.000000e+00> : vector<2xf32>
    %62 = vector.multi_reduction <add>, %61, %cst_28 [1] : vector<2x8xf32> to vector<2xf32>
    %63 = vector.shape_cast %62 : vector<2xf32> to vector<2x1xf32>
    %64 = tpu.reciprocal %63 {approx = true} : vector<2x1xf32> -> vector<2x1xf32>
    %65 = vector.broadcast %64 : vector<2x1xf32> to vector<2x8xf32>
    %66 = arith.mulf %61, %65 : vector<2x8xf32>
    %67 = vector.shape_cast %66 : vector<2x8xf32> to vector<2x8x1xf32>
    %68 = vector.broadcast %67 : vector<2x8x1xf32> to vector<2x8x128xf32>
    %69 = arith.mulf %68, %47 : vector<2x8x128xf32>
    %cst_29 = arith.constant dense<0.000000e+00> : vector<2x128xf32>
    %70 = vector.multi_reduction <add>, %69, %cst_29 [1] : vector<2x8x128xf32> to vector<2x128xf32>
    %71 = arith.truncf %45 : vector<2x128xf32> to vector<2x128xbf16>
    %c0_30 = arith.constant 0 : index
    %c0_31 = arith.constant 0 : index
    %72 = vector.load %arg10[%c0_30, %c0_31] : memref<128x128xbf16, #tpu.memory_space<vmem>>, vector<128x128xbf16>
    %cst_32 = arith.constant dense<0.000000e+00> : vector<2x128xf32>
    %73 = tpu.matmul %71, %72, %cst_32 {dimension_numbers = #tpu.dot_dimension_numbers<[1], [0], [0], [1], [0, 0, 1, 1], [], []>} : vector<2x128xbf16>, vector<128x128xbf16>, vector<2x128xf32> -> vector<2x128xf32>
    %74 = arith.truncf %70 : vector<2x128xf32> to vector<2x128xbf16>
    %c0_33 = arith.constant 0 : index
    %c0_34 = arith.constant 0 : index
    %75 = vector.load %arg11[%c0_33, %c0_34] : memref<128x128xbf16, #tpu.memory_space<vmem>>, vector<128x128xbf16>
    %cst_35 = arith.constant dense<0.000000e+00> : vector<2x128xf32>
    %76 = tpu.matmul %74, %75, %cst_35 {dimension_numbers = #tpu.dot_dimension_numbers<[1], [0], [0], [1], [0, 0, 1, 1], [], []>} : vector<2x128xbf16>, vector<128x128xbf16>, vector<2x128xf32> -> vector<2x128xf32>
    %77 = arith.addf %73, %76 : vector<2x128xf32>
    %c0_36 = arith.constant 0 : index
    %c0_37 = arith.constant 0 : index
    %78 = vector.load %arg12[%c0_36, %c0_37] : memref<1x128xf32, #tpu.memory_space<vmem>>, vector<1x128xf32>
    %79 = vector.broadcast %78 : vector<1x128xf32> to vector<2x128xf32>
    %80 = arith.addf %77, %79 : vector<2x128xf32>
    %c0_38 = arith.constant 0 : index
    %c0_39 = arith.constant 0 : index
    %c0_40 = arith.constant 0 : index
    %81 = vector.load %arg13[%c0_38, %c0_39, %c0_40] : memref<1x2x128xf32, #tpu.memory_space<vmem>>, vector<1x2x128xf32>
    %82 = vector.shape_cast %81 : vector<1x2x128xf32> to vector<2x128xf32>
    %83 = vector.shape_cast %80 : vector<2x128xf32> to vector<1x2x128xf32>
    tpu.vector_store %arg13[%c0_38, %c0_39, %c0_40], %83 {strides = array<i32>} : memref<1x2x128xf32, #tpu.memory_space<vmem>>, vector<1x2x128xf32>,
    %84 = tpu.iota {dimensions = array<i32: 1>} : vector<2x128xi32>
    %cst_41 = arith.constant dense<0xFF800000> : vector<2xf32>
    %85 = vector.multi_reduction <maximumf>, %80, %cst_41 [1] : vector<2x128xf32> to vector<2xf32>
    %86 = vector.shape_cast %85 : vector<2xf32> to vector<2x1xf32>
    %87 = vector.broadcast %86 : vector<2x1xf32> to vector<2x128xf32>
    %88 = arith.cmpf oge, %80, %87 : vector<2x128xf32>
    %c128_i32 = arith.constant 128 : i32
    %89 = vector.broadcast %c128_i32 : i32 to vector<2x128xi32>
    %90 = arith.select %88, %84, %89 : vector<2x128xi1>, vector<2x128xi32>
    %cst_42 = arith.constant dense<2147483647> : vector<2xi32>
    %91 = vector.multi_reduction <minsi>, %90, %cst_42 [1] : vector<2x128xi32> to vector<2xi32>
    %92 = vector.shape_cast %91 : vector<2xi32> to vector<2x1xi32>
    %93 = vector.broadcast %92 : vector<2x1xi32> to vector<2x128xi32>
    %94 = arith.cmpi eq, %84, %93 : vector<2x128xi32>
    %95 = arith.extui %94 : vector<2x128xi1> to vector<2x128xi32>
    %96 = arith.sitofp %95 : vector<2x128xi32> to vector<2x128xf32>
    %c0_43 = arith.constant 0 : index
    %c0_44 = arith.constant 0 : index
    %97 = vector.load %arg15[%c0_43, %c0_44] : memref<2x128xf32, #tpu.memory_space<vmem>>, vector<2x128xf32>
    tpu.vector_store %arg15[%c0_43, %c0_44], %96 {strides = array<i32>} : memref<2x128xf32, #tpu.memory_space<vmem>>, vector<2x128xf32>,
    %c0_45 = arith.constant 0 : index
    %c0_46 = arith.constant 0 : index
    %98 = vector.load %arg14[%c0_45, %c0_46] : memref<2x128xf32, #tpu.memory_space<vmem>>, vector<2x128xf32>
    tpu.vector_store %arg14[%c0_45, %c0_46], %45 {strides = array<i32>} : memref<2x128xf32, #tpu.memory_space<vmem>>, vector<2x128xf32>,
    return
  }
  func.func @transform_0(%arg0: i32, %arg1: i32) -> (i32, i32) {
    %c0_i32 = arith.constant 0 : i32
    %c0_i32_0 = arith.constant 0 : i32
    return %arg0, %c0_i32 : i32, i32
  }
  func.func @transform_1(%arg0: i32, %arg1: i32) -> (i32, i32, i32) {
    %c0_i32 = arith.constant 0 : i32
    %c0_i32_0 = arith.constant 0 : i32
    %c0_i32_1 = arith.constant 0 : i32
    return %arg0, %c0_i32, %c0_i32_0 : i32, i32, i32
  }
  func.func @transform_2(%arg0: i32, %arg1: i32) -> (i32, i32) {
    %c0_i32 = arith.constant 0 : i32
    %c0_i32_0 = arith.constant 0 : i32
    return %arg0, %c0_i32 : i32, i32
  }
  func.func @transform_3(%arg0: i32, %arg1: i32) -> (i32, i32) {
    %c0_i32 = arith.constant 0 : i32
    %c0_i32_0 = arith.constant 0 : i32
    %c0_i32_1 = arith.constant 0 : i32
    return %c0_i32, %c0_i32_0 : i32, i32
  }
  func.func @transform_4(%arg0: i32, %arg1: i32) -> (i32, i32) {
    %c0_i32 = arith.constant 0 : i32
    %c0_i32_0 = arith.constant 0 : i32
    %c0_i32_1 = arith.constant 0 : i32
    return %c0_i32, %c0_i32_0 : i32, i32
  }
  func.func @transform_5(%arg0: i32, %arg1: i32) -> (i32, i32) {
    %c0_i32 = arith.constant 0 : i32
    %c0_i32_0 = arith.constant 0 : i32
    %c0_i32_1 = arith.constant 0 : i32
    return %c0_i32, %c0_i32_0 : i32, i32
  }
  func.func @transform_6(%arg0: i32, %arg1: i32) -> (i32, i32) {
    %c0_i32 = arith.constant 0 : i32
    %c0_i32_0 = arith.constant 0 : i32
    %c0_i32_1 = arith.constant 0 : i32
    return %c0_i32, %c0_i32_0 : i32, i32
  }
  func.func @transform_7(%arg0: i32, %arg1: i32) -> (i32, i32) {
    %c0_i32 = arith.constant 0 : i32
    %c0_i32_0 = arith.constant 0 : i32
    %c0_i32_1 = arith.constant 0 : i32
    return %c0_i32, %c0_i32_0 : i32, i32
  }
  func.func @transform_8(%arg0: i32, %arg1: i32) -> (i32, i32) {
    %c0_i32 = arith.constant 0 : i32
    %c0_i32_0 = arith.constant 0 : i32
    %c0_i32_1 = arith.constant 0 : i32
    return %c0_i32, %c0_i32_0 : i32, i32
  }
  func.func @transform_9(%arg0: i32, %arg1: i32) -> (i32, i32) {
    %c0_i32 = arith.constant 0 : i32
    %c0_i32_0 = arith.constant 0 : i32
    %c0_i32_1 = arith.constant 0 : i32
    return %c0_i32, %c0_i32_0 : i32, i32
  }
  func.func @transform_10(%arg0: i32, %arg1: i32) -> (i32, i32) {
    %c0_i32 = arith.constant 0 : i32
    %c0_i32_0 = arith.constant 0 : i32
    %c0_i32_1 = arith.constant 0 : i32
    return %c0_i32, %c0_i32_0 : i32, i32
  }
  func.func @transform_11(%arg0: i32, %arg1: i32) -> (i32, i32, i32) {
    %c0_i32 = arith.constant 0 : i32
    %c0_i32_0 = arith.constant 0 : i32
    return %arg1, %arg0, %c0_i32 : i32, i32, i32
  }
}

</mosaic_0001>

<llo_original>
// kernel: seq2seq_forward.4
$region0: #{seq2seq_forward.4}
  #allocation0 [shape = 'u32[]', space=smem, size = 0x4, offset = 0x4, fixed_abs, tag = 'smem constant byte address 0x4 - core index']
  #allocation1 [shape = 'u32[144,128]{1,0:T(1,128)}', space=vmem, size = 0x12000, scoped, tag = 'internal scratch']
  #allocation2 [shape = 'f32[16,128]{1,0:T(8,128)}', space=vmem, size = 0x2000, scoped, tag = 'scratch operand']
  #allocation3 [shape = 'f32[16,128]{1,0:T(8,128)}', space=vmem, size = 0x2000, scoped, tag = 'scratch operand']
  %s0 = inlined_call_operand.vmem [shape: bf16[6,16,512], index: 0, kind: input, shape index: {}]
  %s1 = inlined_call_operand.vmem [shape: f32[6,16,1], index: 1, kind: input, shape index: {}]
  %s2 = inlined_call_operand.vmem [shape: bf16[128,512], index: 2, kind: input, shape index: {}]
  %s3 = inlined_call_operand.vmem [shape: bf16[16,128], index: 3, kind: output, shape index: {}]
  %s4 = sld [smem:[#allocation0]]
  $region26: #{seq2seq_forward.4} parent=0
    _
  %s6 = ssub.s32 1, %s4
  %s7 = scalar_select 0, %s6, %s4
  // Predicated region
  $region2: #{seq2seq_forward.4} parent=0 // pred_check
    _
  $region3: #{seq2seq_forward.4} parent=0 // pred_check_branch
    %9 = sbr.rel (0) target = $region5
  $region4: #{seq2seq_forward.4} parent=0 // pred_region
    _
  $region5: #{seq2seq_forward.4} parent=0 // pred_fallthru
    _
  // Predicated region
  $region6: #{seq2seq_forward.4} parent=0 // pred_check
    _
  $region7: #{seq2seq_forward.4} parent=0 // pred_check_branch
    %11 = sbr.rel (0) target = $region9
  $region8: #{seq2seq_forward.4} parent=0 // pred_region
    _
  $region9: #{seq2seq_forward.4} parent=0 // pred_fallthru
    _
  // Predicated region
  $region10: #{seq2seq_forward.4} parent=0 // pred_check
    _
  $region11: #{seq2seq_forward.4} parent=0 // pred_check_branch
    %13 = sbr.rel (0) target = $region13
  $region12: #{seq2seq_forward.4} parent=0 // pred_region
    _
  $region13: #{seq2seq_forward.4} parent=0 // pred_fallthru
    _
  %p15 = scmp.eq.s32.totalorder 0, 0
  // Predicated region
  $region14: #{seq2seq_forward.4} parent=0 // pred_check
    %p16 = pneg %p15
  $region15: #{seq2seq_forward.4} parent=0 // pred_check_branch
    %18 = sbr.rel (%p16) target = $region17
  $region16: #{seq2seq_forward.4} parent=0 // pred_region
    %19 = vst [vmem:[#allocation2] sm:$0xff] 0.0
    %20 = vst [vmem:[#allocation2 + $0x8] sm:$0xff] 0.0
    %21 = vst [vmem:[#allocation3] sm:$0xff] 0.0
    %22 = vst [vmem:[#allocation3 + $0x8] sm:$0xff] 0.0
  $region17: #{seq2seq_forward.4} parent=0 // pred_fallthru
    _
  %v23 = vld [vmem:[#allocation2] sm:$0xff]
  %v24 = vld [vmem:[#allocation2 + $0x8] sm:$0xff]
  %v25 = vld [vmem:[#allocation3] sm:$0xff]
  %v26 = vld [vmem:[#allocation3 + $0x8] sm:$0xff]
  %v27 = vld [vmem:[%s0] sm:$0xff]
  %v28 = vld [vmem:[%s0 + $0x8] sm:$0xff]
  %v29 = vld [vmem:[%s0 + $0x10] sm:$0xff]
  %v30 = vld [vmem:[%s0 + $0x18] sm:$0xff]
  %v31 = vpack.c.bf16 %v24, %v23
  %v32 = vld [vmem:[%s2] sm:$0xff]
  %v33 = vld [vmem:[%s2 + $0x8] sm:$0xff]
  %v34 = vld [vmem:[%s2 + $0x10] sm:$0xff]
  %v35 = vld [vmem:[%s2 + $0x18] sm:$0xff]
  %v36 = vld [vmem:[%s2 + $0x20] sm:$0xff]
  %v37 = vld [vmem:[%s2 + $0x28] sm:$0xff]
  %v38 = vld [vmem:[%s2 + $0x30] sm:$0xff]
  %v39 = vld [vmem:[%s2 + $0x38] sm:$0xff]
  %v40 = vld [vmem:[%s2 + $0x40] sm:$0xff]
  %v41 = vld [vmem:[%s2 + $0x48] sm:$0xff]
  %v42 = vld [vmem:[%s2 + $0x50] sm:$0xff]
  %v43 = vld [vmem:[%s2 + $0x58] sm:$0xff]
  %v44 = vld [vmem:[%s2 + $0x60] sm:$0xff]
  %v45 = vld [vmem:[%s2 + $0x68] sm:$0xff]
  %v46 = vld [vmem:[%s2 + $0x70] sm:$0xff]
  %v47 = vld [vmem:[%s2 + $0x78] sm:$0xff]
  %v48 = vld [vmem:[%s2 + $0x80] sm:$0xff]
  %v49 = vld [vmem:[%s2 + $0x88] sm:$0xff]
  %v50 = vld [vmem:[%s2 + $0x90] sm:$0xff]
  %v51 = vld [vmem:[%s2 + $0x98] sm:$0xff]
  %v52 = vld [vmem:[%s2 + $0xa0] sm:$0xff]
  %v53 = vld [vmem:[%s2 + $0xa8] sm:$0xff]
  %v54 = vld [vmem:[%s2 + $0xb0] sm:$0xff]
  %v55 = vld [vmem:[%s2 + $0xb8] sm:$0xff]
  %v56 = vld [vmem:[%s2 + $0xc0] sm:$0xff]
  %v57 = vld [vmem:[%s2 + $0xc8] sm:$0xff]
  %v58 = vld [vmem:[%s2 + $0xd0] sm:$0xff]
  %v59 = vld [vmem:[%s2 + $0xd8] sm:$0xff]
  %v60 = vld [vmem:[%s2 + $0xe0] sm:$0xff]
  %v61 = vld [vmem:[%s2 + $0xe8] sm:$0xff]
  %v62 = vld [vmem:[%s2 + $0xf0] sm:$0xff]
  %v63 = vld [vmem:[%s2 + $0xf8] sm:$0xff]
  %v96 = vunpack.c.l.b16 %v32
  %v97 = vunpack.c.h.b16 %v32
  %v98 = vunpack.c.l.b16 %v33
  %v99 = vunpack.c.h.b16 %v33
  %v100 = vunpack.c.l.b16 %v34
  %v101 = vunpack.c.h.b16 %v34
  %v102 = vunpack.c.l.b16 %v35
  %v103 = vunpack.c.h.b16 %v35
  %v104 = vunpack.c.l.b16 %v36
  %v105 = vunpack.c.h.b16 %v36
  %v106 = vunpack.c.l.b16 %v37
  %v107 = vunpack.c.h.b16 %v37
  %v108 = vunpack.c.l.b16 %v38
  %v109 = vunpack.c.h.b16 %v38
  %v110 = vunpack.c.l.b16 %v39
  %v111 = vunpack.c.h.b16 %v39
  %v112 = vunpack.c.l.b16 %v40
  %v113 = vunpack.c.h.b16 %v40
  %v114 = vunpack.c.l.b16 %v41
  %v115 = vunpack.c.h.b16 %v41
  %v116 = vunpack.c.l.b16 %v42
  %v117 = vunpack.c.h.b16 %v42
  %v118 = vunpack.c.l.b16 %v43
  %v119 = vunpack.c.h.b16 %v43
  %v120 = vunpack.c.l.b16 %v44
  %v121 = vunpack.c.h.b16 %v44
  %v122 = vunpack.c.l.b16 %v45
  %v123 = vunpack.c.h.b16 %v45
  %v124 = vunpack.c.l.b16 %v46
  %v125 = vunpack.c.h.b16 %v46
  %v126 = vunpack.c.l.b16 %v47
  %v127 = vunpack.c.h.b16 %v47
  %v128 = vunpack.c.l.b16 %v48
  %v129 = vunpack.c.h.b16 %v48
  %v130 = vunpack.c.l.b16 %v49
  %v131 = vunpack.c.h.b16 %v49
  %v132 = vunpack.c.l.b16 %v50
  %v133 = vunpack.c.h.b16 %v50
  %v134 = vunpack.c.l.b16 %v51
  %v135 = vunpack.c.h.b16 %v51
  %v136 = vunpack.c.l.b16 %v52
  %v137 = vunpack.c.h.b16 %v52
  %v138 = vunpack.c.l.b16 %v53
  %v139 = vunpack.c.h.b16 %v53
  %v140 = vunpack.c.l.b16 %v54
  %v141 = vunpack.c.h.b16 %v54
  %v142 = vunpack.c.l.b16 %v55
  %v143 = vunpack.c.h.b16 %v55
  %v144 = vunpack.c.l.b16 %v56
  %v145 = vunpack.c.h.b16 %v56
  %v146 = vunpack.c.l.b16 %v57
  %v147 = vunpack.c.h.b16 %v57
  %v148 = vunpack.c.l.b16 %v58
  %v149 = vunpack.c.h.b16 %v58
  %v150 = vunpack.c.l.b16 %v59
  %v151 = vunpack.c.h.b16 %v59
  %v152 = vunpack.c.l.b16 %v60
  %v153 = vunpack.c.h.b16 %v60
  %v154 = vunpack.c.l.b16 %v61
  %v155 = vunpack.c.h.b16 %v61
  %v156 = vunpack.c.l.b16 %v62
  %v157 = vunpack.c.h.b16 %v62
  %v158 = vunpack.c.l.b16 %v63
  %v159 = vunpack.c.h.b16 %v63
  %v160 = vpack.c.b16 %v100, %v96
  %v161 = vpack.c.b16 %v101, %v97
  %v162 = vpack.c.b16 %v102, %v98
  %v163 = vpack.c.b16 %v103, %v99
  %v164 = vpack.c.b16 %v108, %v104
  %v165 = vpack.c.b16 %v109, %v105
  %v166 = vpack.c.b16 %v110, %v106
  %v167 = vpack.c.b16 %v111, %v107
  %v168 = vpack.c.b16 %v116, %v112
  %v169 = vpack.c.b16 %v117, %v113
  %v170 = vpack.c.b16 %v118, %v114
  %v171 = vpack.c.b16 %v119, %v115
  %v172 = vpack.c.b16 %v124, %v120
  %v173 = vpack.c.b16 %v125, %v121
  %v174 = vpack.c.b16 %v126, %v122
  %v175 = vpack.c.b16 %v127, %v123
  %v176 = vpack.c.b16 %v132, %v128
  %v177 = vpack.c.b16 %v133, %v129
  %v178 = vpack.c.b16 %v134, %v130
  %v179 = vpack.c.b16 %v135, %v131
  %v180 = vpack.c.b16 %v140, %v136
  %v181 = vpack.c.b16 %v141, %v137
  %v182 = vpack.c.b16 %v142, %v138
  %v183 = vpack.c.b16 %v143, %v139
  %v184 = vpack.c.b16 %v148, %v144
  %v185 = vpack.c.b16 %v149, %v145
  %v186 = vpack.c.b16 %v150, %v146
  %v187 = vpack.c.b16 %v151, %v147
  %v188 = vpack.c.b16 %v156, %v152
  %v189 = vpack.c.b16 %v157, %v153
  %v190 = vpack.c.b16 %v158, %v154
  %v191 = vpack.c.b16 %v159, %v155
  %224 = vmatprep.subr.bf16.mxu0 %v161
  %225 = vmatpush1.bf16.msra.mxu0 %v160
  %226 = vmatprep.subr.bf16.mxu0 %v165
  %227 = vmatpush1.bf16.msra.mxu0 %v164
  %228 = vmatprep.subr.bf16.mxu0 %v169
  %229 = vmatpush1.bf16.msra.mxu0 %v168
  %230 = vmatprep.subr.bf16.mxu0 %v173
  %231 = vmatpush1.bf16.msra.mxu0 %v172
  %232 = vmatprep.subr.bf16.mxu0 %v177
  %233 = vmatpush1.bf16.msra.mxu0 %v176
  %234 = vmatprep.subr.bf16.mxu0 %v181
  %235 = vmatpush1.bf16.msra.mxu0 %v180
  %236 = vmatprep.subr.bf16.mxu0 %v185
  %237 = vmatpush1.bf16.msra.mxu0 %v184
  %238 = vmatprep.subr.bf16.mxu0 %v189
  %239 = vmatpush1.bf16.msra.mxu0 %v188
  %240 = vmatprep.subr.bf16.mxu0 0
  %241 = vmatpush1.bf16.msra.mxu0 0
  %242 = vmatprep.subr.bf16.mxu0 0
  %243 = vmatpush1.bf16.msra.mxu0 0
  %244 = vmatprep.subr.bf16.mxu0 0
  %245 = vmatpush1.bf16.msra.mxu0 0
  %246 = vmatprep.subr.bf16.mxu0 0
  %247 = vmatpush1.bf16.msra.mxu0 0
  %248 = vmatprep.subr.bf16.mxu0 0
  %249 = vmatpush1.bf16.msra.mxu0 0
  %250 = vmatprep.subr.bf16.mxu0 0
  %251 = vmatpush1.bf16.msra.mxu0 0
  %252 = vmatprep.subr.bf16.mxu0 0
  %253 = vmatpush1.bf16.msra.mxu0 0
  %254 = vmatprep.subr.bf16.mxu0 0
  %255 = vmatpush1.bf16.msra.mxu0 0
  %256 = vmatprep.mubr.bf16.mxu0 0
  %257 = vmatmul.mubr.bf16.gmra.mrb[0].mxu0 %v31
  %v258 = vpop.f32.mrb[0].mxu0
  %v259 = vadd.f32 0.0, %v258
  %v260 = vpop.f32.mrb[0].mxu0
  %v261 = vadd.f32 0.0, %v260
  %v262 = vpop.f32.mrb[0].mxu0
  %v263 = vadd.f32 0.0, %v262
  %v264 = vpop.f32.mrb[0].mxu0
  %v265 = vadd.f32 0.0, %v264
  %266 = vdwg.mxu0
  %267 = vmatprep.subr.bf16.mxu0 %v163
  %268 = vmatpush1.bf16.msra.mxu0 %v162
  %269 = vmatprep.subr.bf16.mxu0 %v167
  %270 = vmatpush1.bf16.msra.mxu0 %v166
  %271 = vmatprep.subr.bf16.mxu0 %v171
  %272 = vmatpush1.bf16.msra.mxu0 %v170
  %273 = vmatprep.subr.bf16.mxu0 %v175
  %274 = vmatpush1.bf16.msra.mxu0 %v174
  %275 = vmatprep.subr.bf16.mxu0 %v179
  %276 = vmatpush1.bf16.msra.mxu0 %v178
  %277 = vmatprep.subr.bf16.mxu0 %v183
  %278 = vmatpush1.bf16.msra.mxu0 %v182
  %279 = vmatprep.subr.bf16.mxu0 %v187
  %280 = vmatpush1.bf16.msra.mxu0 %v186
  %281 = vmatprep.subr.bf16.mxu0 %v191
  %282 = vmatpush1.bf16.msra.mxu0 %v190
  %283 = vmatprep.subr.bf16.mxu0 0
  %284 = vmatpush1.bf16.msra.mxu0 0
  %285 = vmatprep.subr.bf16.mxu0 0
  %286 = vmatpush1.bf16.msra.mxu0 0
  %287 = vmatprep.subr.bf16.mxu0 0
  %288 = vmatpush1.bf16.msra.mxu0 0
  %289 = vmatprep.subr.bf16.mxu0 0
  %290 = vmatpush1.bf16.msra.mxu0 0
  %291 = vmatprep.subr.bf16.mxu0 0
  %292 = vmatpush1.bf16.msra.mxu0 0
  %293 = vmatprep.subr.bf16.mxu0 0
  %294 = vmatpush1.bf16.msra.mxu0 0
  %295 = vmatprep.subr.bf16.mxu0 0
  %296 = vmatpush1.bf16.msra.mxu0 0
  %297 = vmatprep.subr.bf16.mxu0 0
  %298 = vmatpush1.bf16.msra.mxu0 0
  %299 = vmatprep.mubr.bf16.mxu0 0
  %300 = vmatmul.mubr.bf16.gmra.mrb[0].mxu0 %v31
  %v301 = vpop.f32.mrb[0].mxu0
  %v302 = vadd.f32 0.0, %v301
  %v303 = vpop.f32.mrb[0].mxu0
  %v304 = vadd.f32 0.0, %v303
  %v305 = vpop.f32.mrb[0].mxu0
  %v306 = vadd.f32 0.0, %v305
  %v307 = vpop.f32.mrb[0].mxu0
  %v308 = vadd.f32 0.0, %v307
  %309 = vdwg.mxu0
  %v310 = vunpack.c.l.bf16 %v27
  %v311 = vunpack.c.h.bf16 %v27
  %v312 = vunpack.c.l.bf16 %v28
  %v313 = vunpack.c.h.bf16 %v28
  %v314 = vunpack.c.l.bf16 %v29
  %v315 = vunpack.c.h.bf16 %v29
  %v316 = vunpack.c.l.bf16 %v30
  %v317 = vunpack.c.h.bf16 %v30
  %v318 = vadd.f32 %v310, %v259
  %v319 = vadd.f32 %v311, %v261
  %v320 = vadd.f32 %v312, %v302
  %v321 = vadd.f32 %v313, %v304
  %v322 = vadd.f32 %v314, %v263
  %v323 = vadd.f32 %v315, %v265
  %v324 = vadd.f32 %v316, %v306
  %v325 = vadd.f32 %v317, %v308
  %v326 = vld [vmem:[%s1] sm:$0xff]
  %v327 = vld [vmem:[%s1 + $0x8] sm:$0xff]
  %v328 = vxor.u32 %v318, 2147483648
  %v329 = vxor.u32 %v322, 2147483648
  %v330 = vmul.f32 %v328, 1.442695
  %v331 = vpow.pop %v330
  %v332 = vmul.f32 %v329, 1.442695
  %v333 = vpow.pop %v332
  %v334 = vadd.f32 %v331, 1.0
  %v335 = vadd.f32 %v333, 1.0
  %v336 = vrcp.pop %v334
  %v337 = vmul.f32 1.0, %v336
  %v338 = vrcp.pop %v335
  %v339 = vmul.f32 1.0, %v338
  %v340 = vxor.u32 %v319, 2147483648
  %v341 = vxor.u32 %v323, 2147483648
  %v342 = vmul.f32 %v340, 1.442695
  %v343 = vpow.pop %v342
  %v344 = vmul.f32 %v341, 1.442695
  %v345 = vpow.pop %v344
  %v346 = vadd.f32 %v343, 1.0
  %v347 = vadd.f32 %v345, 1.0
  %v348 = vrcp.pop %v346
  %v349 = vmul.f32 1.0, %v348
  %v350 = vrcp.pop %v347
  %v351 = vmul.f32 1.0, %v350
  %v352 = vtanh.pop %v320
  %v353 = vtanh.pop %v324
  %v354 = vxor.u32 %v321, 2147483648
  %v355 = vxor.u32 %v325, 2147483648
  %v356 = vmul.f32 %v354, 1.442695
  %v357 = vpow.pop %v356
  %v358 = vmul.f32 %v355, 1.442695
  %v359 = vpow.pop %v358
  %v360 = vadd.f32 %v357, 1.0
  %v361 = vadd.f32 %v359, 1.0
  %v362 = vrcp.pop %v360
  %v363 = vmul.f32 1.0, %v362
  %v364 = vrcp.pop %v361
  %v365 = vmul.f32 1.0, %v364
  %v366 = vmul.f32 %v349, %v25
  %v367 = vmul.f32 %v351, %v26
  %v368 = vmul.f32 %v337, %v352
  %v369 = vmul.f32 %v339, %v353
  %v370 = vadd.f32 %v366, %v368
  %v371 = vadd.f32 %v367, %v369
  %v372 = vtanh.pop %v370
  %v373 = vtanh.pop %v371
  %v374 = vmul.f32 %v363, %v372
  %v375 = vmul.f32 %v365, %v373
  %377 = vset.pattern.permute.xlu0 0
  %378 = vperm.xlu0 %377, %v326
  %v379 = vpop.permute.xlu0 %378
  %382 = vset.pattern.permute.xlu0 0
  %383 = vperm.xlu0 %382, %v327
  %v384 = vpop.permute.xlu0 %383
  %v386 = vmul.f32 %v379, %v374
  %v387 = vmul.f32 %v384, %v375
  %v388 = vsub.f32 1.0, %v326
  %v389 = vsub.f32 1.0, %v327
  %391 = vset.pattern.permute.xlu0 0
  %392 = vperm.xlu0 %391, %v388
  %v393 = vpop.permute.xlu0 %392
  %396 = vset.pattern.permute.xlu0 0
  %397 = vperm.xlu0 %396, %v389
  %v398 = vpop.permute.xlu0 %397
  %v400 = vmul.f32 %v393, %v23
  %v401 = vmul.f32 %v398, %v24
  %v402 = vadd.f32 %v386, %v400
  %v403 = vadd.f32 %v387, %v401
  %v404 = vmul.f32 %v379, %v370
  %v405 = vmul.f32 %v384, %v371
  %v406 = vmul.f32 %v393, %v25
  %v407 = vmul.f32 %v398, %v26
  %v408 = vadd.f32 %v404, %v406
  %v409 = vadd.f32 %v405, %v407
  %s410 = scalar_lea.vmem %s0, 32
  %v411 = vld [vmem:[%s410] sm:$0xff]
  %v412 = vld [vmem:[%s410 + $0x8] sm:$0xff]
  %v413 = vld [vmem:[%s410 + $0x10] sm:$0xff]
  %v414 = vld [vmem:[%s410 + $0x18] sm:$0xff]
  %v415 = vpack.c.bf16 %v403, %v402
  %416 = vmatprep.subr.bf16.mxu0 %v161
  %417 = vmatpush1.bf16.msra.mxu0 %v160
  %418 = vmatprep.subr.bf16.mxu0 %v165
  %419 = vmatpush1.bf16.msra.mxu0 %v164
  %420 = vmatprep.subr.bf16.mxu0 %v169
  %421 = vmatpush1.bf16.msra.mxu0 %v168
  %422 = vmatprep.subr.bf16.mxu0 %v173
  %423 = vmatpush1.bf16.msra.mxu0 %v172
  %424 = vmatprep.subr.bf16.mxu0 %v177
  %425 = vmatpush1.bf16.msra.mxu0 %v176
  %426 = vmatprep.subr.bf16.mxu0 %v181
  %427 = vmatpush1.bf16.msra.mxu0 %v180
  %428 = vmatprep.subr.bf16.mxu0 %v185
  %429 = vmatpush1.bf16.msra.mxu0 %v184
  %430 = vmatprep.subr.bf16.mxu0 %v189
  %431 = vmatpush1.bf16.msra.mxu0 %v188
  %432 = vmatprep.subr.bf16.mxu0 0
  %433 = vmatpush1.bf16.msra.mxu0 0
  %434 = vmatprep.subr.bf16.mxu0 0
  %435 = vmatpush1.bf16.msra.mxu0 0
  %436 = vmatprep.subr.bf16.mxu0 0
  %437 = vmatpush1.bf16.msra.mxu0 0
  %438 = vmatprep.subr.bf16.mxu0 0
  %439 = vmatpush1.bf16.msra.mxu0 0
  %440 = vmatprep.subr.bf16.mxu0 0
  %441 = vmatpush1.bf16.msra.mxu0 0
  %442 = vmatprep.subr.bf16.mxu0 0
  %443 = vmatpush1.bf16.msra.mxu0 0
  %444 = vmatprep.subr.bf16.mxu0 0
  %445 = vmatpush1.bf16.msra.mxu0 0
  %446 = vmatprep.subr.bf16.mxu0 0
  %447 = vmatpush1.bf16.msra.mxu0 0
  %448 = vmatprep.mubr.bf16.mxu0 0
  %449 = vmatmul.mubr.bf16.gmra.mrb[0].mxu0 %v415
  %v450 = vpop.f32.mrb[0].mxu0
  %v451 = vadd.f32 0.0, %v450
  %v452 = vpop.f32.mrb[0].mxu0
  %v453 = vadd.f32 0.0, %v452
  %v454 = vpop.f32.mrb[0].mxu0
  %v455 = vadd.f32 0.0, %v454
  %v456 = vpop.f32.mrb[0].mxu0
  %v457 = vadd.f32 0.0, %v456
  %458 = vdwg.mxu0
  %459 = vmatprep.subr.bf16.mxu0 %v163
  %460 = vmatpush1.bf16.msra.mxu0 %v162
  %461 = vmatprep.subr.bf16.mxu0 %v167
  %462 = vmatpush1.bf16.msra.mxu0 %v166
  %463 = vmatprep.subr.bf16.mxu0 %v171
  %464 = vmatpush1.bf16.msra.mxu0 %v170
  %465 = vmatprep.subr.bf16.mxu0 %v175
  %466 = vmatpush1.bf16.msra.mxu0 %v174
  %467 = vmatprep.subr.bf16.mxu0 %v179
  %468 = vmatpush1.bf16.msra.mxu0 %v178
  %469 = vmatprep.subr.bf16.mxu0 %v183
  %470 = vmatpush1.bf16.msra.mxu0 %v182
  %471 = vmatprep.subr.bf16.mxu0 %v187
  %472 = vmatpush1.bf16.msra.mxu0 %v186
  %473 = vmatprep.subr.bf16.mxu0 %v191
  %474 = vmatpush1.bf16.msra.mxu0 %v190
  %475 = vmatprep.subr.bf16.mxu0 0
  %476 = vmatpush1.bf16.msra.mxu0 0
  %477 = vmatprep.subr.bf16.mxu0 0
  %478 = vmatpush1.bf16.msra.mxu0 0
  %479 = vmatprep.subr.bf16.mxu0 0
  %480 = vmatpush1.bf16.msra.mxu0 0
  %481 = vmatprep.subr.bf16.mxu0 0
  %482 = vmatpush1.bf16.msra.mxu0 0
  %483 = vmatprep.subr.bf16.mxu0 0
  %484 = vmatpush1.bf16.msra.mxu0 0
  %485 = vmatprep.subr.bf16.mxu0 0
  %486 = vmatpush1.bf16.msra.mxu0 0
  %487 = vmatprep.subr.bf16.mxu0 0
  %488 = vmatpush1.bf16.msra.mxu0 0
  %489 = vmatprep.subr.bf16.mxu0 0
  %490 = vmatpush1.bf16.msra.mxu0 0
  %491 = vmatprep.mubr.bf16.mxu0 0
  %492 = vmatmul.mubr.bf16.gmra.mrb[0].mxu0 %v415
  %v493 = vpop.f32.mrb[0].mxu0
  %v494 = vadd.f32 0.0, %v493
  %v495 = vpop.f32.mrb[0].mxu0
  %v496 = vadd.f32 0.0, %v495
  %v497 = vpop.f32.mrb[0].mxu0
  %v498 = vadd.f32 0.0, %v497
  %v499 = vpop.f32.mrb[0].mxu0
  %v500 = vadd.f32 0.0, %v499
  %501 = vdwg.mxu0
  %v502 = vunpack.c.l.bf16 %v411
  %v503 = vunpack.c.h.bf16 %v411
  %v504 = vunpack.c.l.bf16 %v412
  %v505 = vunpack.c.h.bf16 %v412
  %v506 = vunpack.c.l.bf16 %v413
  %v507 = vunpack.c.h.bf16 %v413
  %v508 = vunpack.c.l.bf16 %v414
  %v509 = vunpack.c.h.bf16 %v414
  %v510 = vadd.f32 %v502, %v451
  %v511 = vadd.f32 %v503, %v453
  %v512 = vadd.f32 %v504, %v494
  %v513 = vadd.f32 %v505, %v496
  %v514 = vadd.f32 %v506, %v455
  %v515 = vadd.f32 %v507, %v457
  %v516 = vadd.f32 %v508, %v498
  %v517 = vadd.f32 %v509, %v500
  %s518 = scalar_lea.vmem %s1, 16
  %v519 = vld [vmem:[%s518] sm:$0xff]
  %v520 = vld [vmem:[%s518 + $0x8] sm:$0xff]
  %v521 = vxor.u32 %v510, 2147483648
  %v522 = vxor.u32 %v514, 2147483648
  %v523 = vmul.f32 %v521, 1.442695
  %v524 = vpow.pop %v523
  %v525 = vmul.f32 %v522, 1.442695
  %v526 = vpow.pop %v525
  %v527 = vadd.f32 %v524, 1.0
  %v528 = vadd.f32 %v526, 1.0
  %v529 = vrcp.pop %v527
  %v530 = vmul.f32 1.0, %v529
  %v531 = vrcp.pop %v528
  %v532 = vmul.f32 1.0, %v531
  %v533 = vxor.u32 %v511, 2147483648
  %v534 = vxor.u32 %v515, 2147483648
  %v535 = vmul.f32 %v533, 1.442695
  %v536 = vpow.pop %v535
  %v537 = vmul.f32 %v534, 1.442695
  %v538 = vpow.pop %v537
  %v539 = vadd.f32 %v536, 1.0
  %v540 = vadd.f32 %v538, 1.0
  %v541 = vrcp.pop %v539
  %v542 = vmul.f32 1.0, %v541
  %v543 = vrcp.pop %v540
  %v544 = vmul.f32 1.0, %v543
  %v545 = vtanh.pop %v512
  %v546 = vtanh.pop %v516
  %v547 = vxor.u32 %v513, 2147483648
  %v548 = vxor.u32 %v517, 2147483648
  %v549 = vmul.f32 %v547, 1.442695
  %v550 = vpow.pop %v549
  %v551 = vmul.f32 %v548, 1.442695
  %v552 = vpow.pop %v551
  %v553 = vadd.f32 %v550, 1.0
  %v554 = vadd.f32 %v552, 1.0
  %v555 = vrcp.pop %v553
  %v556 = vmul.f32 1.0, %v555
  %v557 = vrcp.pop %v554
  %v558 = vmul.f32 1.0, %v557
  %v559 = vmul.f32 %v542, %v408
  %v560 = vmul.f32 %v544, %v409
  %v561 = vmul.f32 %v530, %v545
  %v562 = vmul.f32 %v532, %v546
  %v563 = vadd.f32 %v559, %v561
  %v564 = vadd.f32 %v560, %v562
  %v565 = vtanh.pop %v563
  %v566 = vtanh.pop %v564
  %v567 = vmul.f32 %v556, %v565
  %v568 = vmul.f32 %v558, %v566
  %570 = vset.pattern.permute.xlu0 0
  %571 = vperm.xlu0 %570, %v519
  %v572 = vpop.permute.xlu0 %571
  %575 = vset.pattern.permute.xlu0 0
  %576 = vperm.xlu0 %575, %v520
  %v577 = vpop.permute.xlu0 %576
  %v579 = vmul.f32 %v572, %v567
  %v580 = vmul.f32 %v577, %v568
  %v581 = vsub.f32 1.0, %v519
  %v582 = vsub.f32 1.0, %v520
  %584 = vset.pattern.permute.xlu0 0
  %585 = vperm.xlu0 %584, %v581
  %v586 = vpop.permute.xlu0 %585
  %589 = vset.pattern.permute.xlu0 0
  %590 = vperm.xlu0 %589, %v582
  %v591 = vpop.permute.xlu0 %590
  %v593 = vmul.f32 %v586, %v402
  %v594 = vmul.f32 %v591, %v403
  %v595 = vadd.f32 %v579, %v593
  %v596 = vadd.f32 %v580, %v594
  %v597 = vmul.f32 %v572, %v563
  %v598 = vmul.f32 %v577, %v564
  %v599 = vmul.f32 %v586, %v408
  %v600 = vmul.f32 %v591, %v409
  %v601 = vadd.f32 %v597, %v599
  %v602 = vadd.f32 %v598, %v600
  %s603 = scalar_lea.vmem %s0, 64
  %v604 = vld [vmem:[%s603] sm:$0xff]
  %v605 = vld [vmem:[%s603 + $0x8] sm:$0xff]
  %v606 = vld [vmem:[%s603 + $0x10] sm:$0xff]
  %v607 = vld [vmem:[%s603 + $0x18] sm:$0xff]
  %v608 = vpack.c.bf16 %v596, %v595
  %609 = vmatprep.subr.bf16.mxu0 %v161
  %610 = vmatpush1.bf16.msra.mxu0 %v160
  %611 = vmatprep.subr.bf16.mxu0 %v165
  %612 = vmatpush1.bf16.msra.mxu0 %v164
  %613 = vmatprep.subr.bf16.mxu0 %v169
  %614 = vmatpush1.bf16.msra.mxu0 %v168
  %615 = vmatprep.subr.bf16.mxu0 %v173
  %616 = vmatpush1.bf16.msra.mxu0 %v172
  %617 = vmatprep.subr.bf16.mxu0 %v177
  %618 = vmatpush1.bf16.msra.mxu0 %v176
  %619 = vmatprep.subr.bf16.mxu0 %v181
  %620 = vmatpush1.bf16.msra.mxu0 %v180
  %621 = vmatprep.subr.bf16.mxu0 %v185
  %622 = vmatpush1.bf16.msra.mxu0 %v184
  %623 = vmatprep.subr.bf16.mxu0 %v189
  %624 = vmatpush1.bf16.msra.mxu0 %v188
  %625 = vmatprep.subr.bf16.mxu0 0
  %626 = vmatpush1.bf16.msra.mxu0 0
  %627 = vmatprep.subr.bf16.mxu0 0
  %628 = vmatpush1.bf16.msra.mxu0 0
  %629 = vmatprep.subr.bf16.mxu0 0
  %630 = vmatpush1.bf16.msra.mxu0 0
  %631 = vmatprep.subr.bf16.mxu0 0
  %632 = vmatpush1.bf16.msra.mxu0 0
  %633 = vmatprep.subr.bf16.mxu0 0
  %634 = vmatpush1.bf16.msra.mxu0 0
  %635 = vmatprep.subr.bf16.mxu0 0
  %636 = vmatpush1.bf16.msra.mxu0 0
  %637 = vmatprep.subr.bf16.mxu0 0
  %638 = vmatpush1.bf16.msra.mxu0 0
  %639 = vmatprep.subr.bf16.mxu0 0
  %640 = vmatpush1.bf16.msra.mxu0 0
  %641 = vmatprep.mubr.bf16.mxu0 0
  %642 = vmatmul.mubr.bf16.gmra.mrb[0].mxu0 %v608
  %v643 = vpop.f32.mrb[0].mxu0
  %v644 = vadd.f32 0.0, %v643
  %v645 = vpop.f32.mrb[0].mxu0
  %v646 = vadd.f32 0.0, %v645
  %v647 = vpop.f32.mrb[0].mxu0
  %v648 = vadd.f32 0.0, %v647
  %v649 = vpop.f32.mrb[0].mxu0
  %v650 = vadd.f32 0.0, %v649
  %651 = vdwg.mxu0
  %652 = vmatprep.subr.bf16.mxu0 %v163
  %653 = vmatpush1.bf16.msra.mxu0 %v162
  %654 = vmatprep.subr.bf16.mxu0 %v167
  %655 = vmatpush1.bf16.msra.mxu0 %v166
  %656 = vmatprep.subr.bf16.mxu0 %v171
  %657 = vmatpush1.bf16.msra.mxu0 %v170
  %658 = vmatprep.subr.bf16.mxu0 %v175
  %659 = vmatpush1.bf16.msra.mxu0 %v174
  %660 = vmatprep.subr.bf16.mxu0 %v179
  %661 = vmatpush1.bf16.msra.mxu0 %v178
  %662 = vmatprep.subr.bf16.mxu0 %v183
  %663 = vmatpush1.bf16.msra.mxu0 %v182
  %664 = vmatprep.subr.bf16.mxu0 %v187
  %665 = vmatpush1.bf16.msra.mxu0 %v186
  %666 = vmatprep.subr.bf16.mxu0 %v191
  %667 = vmatpush1.bf16.msra.mxu0 %v190
  %668 = vmatprep.subr.bf16.mxu0 0
  %669 = vmatpush1.bf16.msra.mxu0 0
  %670 = vmatprep.subr.bf16.mxu0 0
  %671 = vmatpush1.bf16.msra.mxu0 0
  %672 = vmatprep.subr.bf16.mxu0 0
  %673 = vmatpush1.bf16.msra.mxu0 0
  %674 = vmatprep.subr.bf16.mxu0 0
  %675 = vmatpush1.bf16.msra.mxu0 0
  %676 = vmatprep.subr.bf16.mxu0 0
  %677 = vmatpush1.bf16.msra.mxu0 0
  %678 = vmatprep.subr.bf16.mxu0 0
  %679 = vmatpush1.bf16.msra.mxu0 0
  %680 = vmatprep.subr.bf16.mxu0 0
  %681 = vmatpush1.bf16.msra.mxu0 0
  %682 = vmatprep.subr.bf16.mxu0 0
  %683 = vmatpush1.bf16.msra.mxu0 0
  %684 = vmatprep.mubr.bf16.mxu0 0
  %685 = vmatmul.mubr.bf16.gmra.mrb[0].mxu0 %v608
  %v686 = vpop.f32.mrb[0].mxu0
  %v687 = vadd.f32 0.0, %v686
  %v688 = vpop.f32.mrb[0].mxu0
  %v689 = vadd.f32 0.0, %v688
  %v690 = vpop.f32.mrb[0].mxu0
  %v691 = vadd.f32 0.0, %v690
  %v692 = vpop.f32.mrb[0].mxu0
  %v693 = vadd.f32 0.0, %v692
  %694 = vdwg.mxu0
  %v695 = vunpack.c.l.bf16 %v604
  %v696 = vunpack.c.h.bf16 %v604
  %v697 = vunpack.c.l.bf16 %v605
  %v698 = vunpack.c.h.bf16 %v605
  %v699 = vunpack.c.l.bf16 %v606
  %v700 = vunpack.c.h.bf16 %v606
  %v701 = vunpack.c.l.bf16 %v607
  %v702 = vunpack.c.h.bf16 %v607
  %v703 = vadd.f32 %v695, %v644
  %v704 = vadd.f32 %v696, %v646
  %v705 = vadd.f32 %v697, %v687
  %v706 = vadd.f32 %v698, %v689
  %v707 = vadd.f32 %v699, %v648
  %v708 = vadd.f32 %v700, %v650
  %v709 = vadd.f32 %v701, %v691
  %v710 = vadd.f32 %v702, %v693
  %s711 = scalar_lea.vmem %s1, 32
  %v712 = vld [vmem:[%s711] sm:$0xff]
  %v713 = vld [vmem:[%s711 + $0x8] sm:$0xff]
  %v714 = vxor.u32 %v703, 2147483648
  %v715 = vxor.u32 %v707, 2147483648
  %v716 = vmul.f32 %v714, 1.442695
  %v717 = vpow.pop %v716
  %v718 = vmul.f32 %v715, 1.442695
  %v719 = vpow.pop %v718
  %v720 = vadd.f32 %v717, 1.0
  %v721 = vadd.f32 %v719, 1.0
  %v722 = vrcp.pop %v720
  %v723 = vmul.f32 1.0, %v722
  %v724 = vrcp.pop %v721
  %v725 = vmul.f32 1.0, %v724
  %v726 = vxor.u32 %v704, 2147483648
  %v727 = vxor.u32 %v708, 2147483648
  %v728 = vmul.f32 %v726, 1.442695
  %v729 = vpow.pop %v728
  %v730 = vmul.f32 %v727, 1.442695
  %v731 = vpow.pop %v730
  %v732 = vadd.f32 %v729, 1.0
  %v733 = vadd.f32 %v731, 1.0
  %v734 = vrcp.pop %v732
  %v735 = vmul.f32 1.0, %v734
  %v736 = vrcp.pop %v733
  %v737 = vmul.f32 1.0, %v736
  %v738 = vtanh.pop %v705
  %v739 = vtanh.pop %v709
  %v740 = vxor.u32 %v706, 2147483648
  %v741 = vxor.u32 %v710, 2147483648
  %v742 = vmul.f32 %v740, 1.442695
  %v743 = vpow.pop %v742
  %v744 = vmul.f32 %v741, 1.442695
  %v745 = vpow.pop %v744
  %v746 = vadd.f32 %v743, 1.0
  %v747 = vadd.f32 %v745, 1.0
  %v748 = vrcp.pop %v746
  %v749 = vmul.f32 1.0, %v748
  %v750 = vrcp.pop %v747
  %v751 = vmul.f32 1.0, %v750
  %v752 = vmul.f32 %v735, %v601
  %v753 = vmul.f32 %v737, %v602
  %v754 = vmul.f32 %v723, %v738
  %v755 = vmul.f32 %v725, %v739
  %v756 = vadd.f32 %v752, %v754
  %v757 = vadd.f32 %v753, %v755
  %v758 = vtanh.pop %v756
  %v759 = vtanh.pop %v757
  %v760 = vmul.f32 %v749, %v758
  %v761 = vmul.f32 %v751, %v759
  %763 = vset.pattern.permute.xlu0 0
  %764 = vperm.xlu0 %763, %v712
  %v765 = vpop.permute.xlu0 %764
  %768 = vset.pattern.permute.xlu0 0
  %769 = vperm.xlu0 %768, %v713
  %v770 = vpop.permute.xlu0 %769
  %v772 = vmul.f32 %v765, %v760
  %v773 = vmul.f32 %v770, %v761
  %v774 = vsub.f32 1.0, %v712
  %v775 = vsub.f32 1.0, %v713
  %777 = vset.pattern.permute.xlu0 0
  %778 = vperm.xlu0 %777, %v774
  %v779 = vpop.permute.xlu0 %778
  %782 = vset.pattern.permute.xlu0 0
  %783 = vperm.xlu0 %782, %v775
  %v784 = vpop.permute.xlu0 %783
  %v786 = vmul.f32 %v779, %v595
  %v787 = vmul.f32 %v784, %v596
  %v788 = vadd.f32 %v772, %v786
  %v789 = vadd.f32 %v773, %v787
  %v790 = vmul.f32 %v765, %v756
  %v791 = vmul.f32 %v770, %v757
  %v792 = vmul.f32 %v779, %v601
  %v793 = vmul.f32 %v784, %v602
  %v794 = vadd.f32 %v790, %v792
  %v795 = vadd.f32 %v791, %v793
  %s796 = scalar_lea.vmem %s0, 96
  %v797 = vld [vmem:[%s796] sm:$0xff]
  %v798 = vld [vmem:[%s796 + $0x8] sm:$0xff]
  %v799 = vld [vmem:[%s796 + $0x10] sm:$0xff]
  %v800 = vld [vmem:[%s796 + $0x18] sm:$0xff]
  %v801 = vpack.c.bf16 %v789, %v788
  %802 = vmatprep.subr.bf16.mxu0 %v161
  %803 = vmatpush1.bf16.msra.mxu0 %v160
  %804 = vmatprep.subr.bf16.mxu0 %v165
  %805 = vmatpush1.bf16.msra.mxu0 %v164
  %806 = vmatprep.subr.bf16.mxu0 %v169
  %807 = vmatpush1.bf16.msra.mxu0 %v168
  %808 = vmatprep.subr.bf16.mxu0 %v173
  %809 = vmatpush1.bf16.msra.mxu0 %v172
  %810 = vmatprep.subr.bf16.mxu0 %v177
  %811 = vmatpush1.bf16.msra.mxu0 %v176
  %812 = vmatprep.subr.bf16.mxu0 %v181
  %813 = vmatpush1.bf16.msra.mxu0 %v180
  %814 = vmatprep.subr.bf16.mxu0 %v185
  %815 = vmatpush1.bf16.msra.mxu0 %v184
  %816 = vmatprep.subr.bf16.mxu0 %v189
  %817 = vmatpush1.bf16.msra.mxu0 %v188
  %818 = vmatprep.subr.bf16.mxu0 0
  %819 = vmatpush1.bf16.msra.mxu0 0
  %820 = vmatprep.subr.bf16.mxu0 0
  %821 = vmatpush1.bf16.msra.mxu0 0
  %822 = vmatprep.subr.bf16.mxu0 0
  %823 = vmatpush1.bf16.msra.mxu0 0
  %824 = vmatprep.subr.bf16.mxu0 0
  %825 = vmatpush1.bf16.msra.mxu0 0
  %826 = vmatprep.subr.bf16.mxu0 0
  %827 = vmatpush1.bf16.msra.mxu0 0
  %828 = vmatprep.subr.bf16.mxu0 0
  %829 = vmatpush1.bf16.msra.mxu0 0
  %830 = vmatprep.subr.bf16.mxu0 0
  %831 = vmatpush1.bf16.msra.mxu0 0
  %832 = vmatprep.subr.bf16.mxu0 0
  %833 = vmatpush1.bf16.msra.mxu0 0
  %834 = vmatprep.mubr.bf16.mxu0 0
  %835 = vmatmul.mubr.bf16.gmra.mrb[0].mxu0 %v801
  %v836 = vpop.f32.mrb[0].mxu0
  %v837 = vadd.f32 0.0, %v836
  %v838 = vpop.f32.mrb[0].mxu0
  %v839 = vadd.f32 0.0, %v838
  %v840 = vpop.f32.mrb[0].mxu0
  %v841 = vadd.f32 0.0, %v840
  %v842 = vpop.f32.mrb[0].mxu0
  %v843 = vadd.f32 0.0, %v842
  %844 = vdwg.mxu0
  %845 = vmatprep.subr.bf16.mxu0 %v163
  %846 = vmatpush1.bf16.msra.mxu0 %v162
  %847 = vmatprep.subr.bf16.mxu0 %v167
  %848 = vmatpush1.bf16.msra.mxu0 %v166
  %849 = vmatprep.subr.bf16.mxu0 %v171
  %850 = vmatpush1.bf16.msra.mxu0 %v170
  %851 = vmatprep.subr.bf16.mxu0 %v175
  %852 = vmatpush1.bf16.msra.mxu0 %v174
  %853 = vmatprep.subr.bf16.mxu0 %v179
  %854 = vmatpush1.bf16.msra.mxu0 %v178
  %855 = vmatprep.subr.bf16.mxu0 %v183
  %856 = vmatpush1.bf16.msra.mxu0 %v182
  %857 = vmatprep.subr.bf16.mxu0 %v187
  %858 = vmatpush1.bf16.msra.mxu0 %v186
  %859 = vmatprep.subr.bf16.mxu0 %v191
  %860 = vmatpush1.bf16.msra.mxu0 %v190
  %861 = vmatprep.subr.bf16.mxu0 0
  %862 = vmatpush1.bf16.msra.mxu0 0
  %863 = vmatprep.subr.bf16.mxu0 0
  %864 = vmatpush1.bf16.msra.mxu0 0
  %865 = vmatprep.subr.bf16.mxu0 0
  %866 = vmatpush1.bf16.msra.mxu0 0
  %867 = vmatprep.subr.bf16.mxu0 0
  %868 = vmatpush1.bf16.msra.mxu0 0
  %869 = vmatprep.subr.bf16.mxu0 0
  %870 = vmatpush1.bf16.msra.mxu0 0
  %871 = vmatprep.subr.bf16.mxu0 0
  %872 = vmatpush1.bf16.msra.mxu0 0
  %873 = vmatprep.subr.bf16.mxu0 0
  %874 = vmatpush1.bf16.msra.mxu0 0
  %875 = vmatprep.subr.bf16.mxu0 0
  %876 = vmatpush1.bf16.msra.mxu0 0
  %877 = vmatprep.mubr.bf16.mxu0 0
  %878 = vmatmul.mubr.bf16.gmra.mrb[0].mxu0 %v801
  %v879 = vpop.f32.mrb[0].mxu0
  %v880 = vadd.f32 0.0, %v879
  %v881 = vpop.f32.mrb[0].mxu0
  %v882 = vadd.f32 0.0, %v881
  %v883 = vpop.f32.mrb[0].mxu0
  %v884 = vadd.f32 0.0, %v883
  %v885 = vpop.f32.mrb[0].mxu0
  %v886 = vadd.f32 0.0, %v885
  %887 = vdwg.mxu0
  %v888 = vunpack.c.l.bf16 %v797
  %v889 = vunpack.c.h.bf16 %v797
  %v890 = vunpack.c.l.bf16 %v798
  %v891 = vunpack.c.h.bf16 %v798
  %v892 = vunpack.c.l.bf16 %v799
  %v893 = vunpack.c.h.bf16 %v799
  %v894 = vunpack.c.l.bf16 %v800
  %v895 = vunpack.c.h.bf16 %v800
  %v896 = vadd.f32 %v888, %v837
  %v897 = vadd.f32 %v889, %v839
  %v898 = vadd.f32 %v890, %v880
  %v899 = vadd.f32 %v891, %v882
  %v900 = vadd.f32 %v892, %v841
  %v901 = vadd.f32 %v893, %v843
  %v902 = vadd.f32 %v894, %v884
  %v903 = vadd.f32 %v895, %v886
  %s904 = scalar_lea.vmem %s1, 48
  %v905 = vld [vmem:[%s904] sm:$0xff]
  %v906 = vld [vmem:[%s904 + $0x8] sm:$0xff]
  %v907 = vxor.u32 %v896, 2147483648
  %v908 = vxor.u32 %v900, 2147483648
  %v909 = vmul.f32 %v907, 1.442695
  %v910 = vpow.pop %v909
  %v911 = vmul.f32 %v908, 1.442695
  %v912 = vpow.pop %v911
  %v913 = vadd.f32 %v910, 1.0
  %v914 = vadd.f32 %v912, 1.0
  %v915 = vrcp.pop %v913
  %v916 = vmul.f32 1.0, %v915
  %v917 = vrcp.pop %v914
  %v918 = vmul.f32 1.0, %v917
  %v919 = vxor.u32 %v897, 2147483648
  %v920 = vxor.u32 %v901, 2147483648
  %v921 = vmul.f32 %v919, 1.442695
  %v922 = vpow.pop %v921
  %v923 = vmul.f32 %v920, 1.442695
  %v924 = vpow.pop %v923
  %v925 = vadd.f32 %v922, 1.0
  %v926 = vadd.f32 %v924, 1.0
  %v927 = vrcp.pop %v925
  %v928 = vmul.f32 1.0, %v927
  %v929 = vrcp.pop %v926
  %v930 = vmul.f32 1.0, %v929
  %v931 = vtanh.pop %v898
  %v932 = vtanh.pop %v902
  %v933 = vxor.u32 %v899, 2147483648
  %v934 = vxor.u32 %v903, 2147483648
  %v935 = vmul.f32 %v933, 1.442695
  %v936 = vpow.pop %v935
  %v937 = vmul.f32 %v934, 1.442695
  %v938 = vpow.pop %v937
  %v939 = vadd.f32 %v936, 1.0
  %v940 = vadd.f32 %v938, 1.0
  %v941 = vrcp.pop %v939
  %v942 = vmul.f32 1.0, %v941
  %v943 = vrcp.pop %v940
  %v944 = vmul.f32 1.0, %v943
  %v945 = vmul.f32 %v928, %v794
  %v946 = vmul.f32 %v930, %v795
  %v947 = vmul.f32 %v916, %v931
  %v948 = vmul.f32 %v918, %v932
  %v949 = vadd.f32 %v945, %v947
  %v950 = vadd.f32 %v946, %v948
  %v951 = vtanh.pop %v949
  %v952 = vtanh.pop %v950
  %v953 = vmul.f32 %v942, %v951
  %v954 = vmul.f32 %v944, %v952
  %956 = vset.pattern.permute.xlu0 0
  %957 = vperm.xlu0 %956, %v905
  %v958 = vpop.permute.xlu0 %957
  %961 = vset.pattern.permute.xlu0 0
  %962 = vperm.xlu0 %961, %v906
  %v963 = vpop.permute.xlu0 %962
  %v965 = vmul.f32 %v958, %v953
  %v966 = vmul.f32 %v963, %v954
  %v967 = vsub.f32 1.0, %v905
  %v968 = vsub.f32 1.0, %v906
  %970 = vset.pattern.permute.xlu0 0
  %971 = vperm.xlu0 %970, %v967
  %v972 = vpop.permute.xlu0 %971
  %975 = vset.pattern.permute.xlu0 0
  %976 = vperm.xlu0 %975, %v968
  %v977 = vpop.permute.xlu0 %976
  %v979 = vmul.f32 %v972, %v788
  %v980 = vmul.f32 %v977, %v789
  %v981 = vadd.f32 %v965, %v979
  %v982 = vadd.f32 %v966, %v980
  %v983 = vmul.f32 %v958, %v949
  %v984 = vmul.f32 %v963, %v950
  %v985 = vmul.f32 %v972, %v794
  %v986 = vmul.f32 %v977, %v795
  %v987 = vadd.f32 %v983, %v985
  %v988 = vadd.f32 %v984, %v986
  %s989 = scalar_lea.vmem %s0, 128
  %v990 = vld [vmem:[%s989] sm:$0xff]
  %v991 = vld [vmem:[%s989 + $0x8] sm:$0xff]
  %v992 = vld [vmem:[%s989 + $0x10] sm:$0xff]
  %v993 = vld [vmem:[%s989 + $0x18] sm:$0xff]
  %v994 = vpack.c.bf16 %v982, %v981
  %995 = vmatprep.subr.bf16.mxu0 %v161
  %996 = vmatpush1.bf16.msra.mxu0 %v160
  %997 = vmatprep.subr.bf16.mxu0 %v165
  %998 = vmatpush1.bf16.msra.mxu0 %v164
  %999 = vmatprep.subr.bf16.mxu0 %v169
  %1000 = vmatpush1.bf16.msra.mxu0 %v168
  %1001 = vmatprep.subr.bf16.mxu0 %v173
  %1002 = vmatpush1.bf16.msra.mxu0 %v172
  %1003 = vmatprep.subr.bf16.mxu0 %v177
  %1004 = vmatpush1.bf16.msra.mxu0 %v176
  %1005 = vmatprep.subr.bf16.mxu0 %v181
  %1006 = vmatpush1.bf16.msra.mxu0 %v180
  %1007 = vmatprep.subr.bf16.mxu0 %v185
  %1008 = vmatpush1.bf16.msra.mxu0 %v184
  %1009 = vmatprep.subr.bf16.mxu0 %v189
  %1010 = vmatpush1.bf16.msra.mxu0 %v188
  %1011 = vmatprep.subr.bf16.mxu0 0
  %1012 = vmatpush1.bf16.msra.mxu0 0
  %1013 = vmatprep.subr.bf16.mxu0 0
  %1014 = vmatpush1.bf16.msra.mxu0 0
  %1015 = vmatprep.subr.bf16.mxu0 0
  %1016 = vmatpush1.bf16.msra.mxu0 0
  %1017 = vmatprep.subr.bf16.mxu0 0
  %1018 = vmatpush1.bf16.msra.mxu0 0
  %1019 = vmatprep.subr.bf16.mxu0 0
  %1020 = vmatpush1.bf16.msra.mxu0 0
  %1021 = vmatprep.subr.bf16.mxu0 0
  %1022 = vmatpush1.bf16.msra.mxu0 0
  %1023 = vmatprep.subr.bf16.mxu0 0
  %1024 = vmatpush1.bf16.msra.mxu0 0
  %1025 = vmatprep.subr.bf16.mxu0 0
  %1026 = vmatpush1.bf16.msra.mxu0 0
  %1027 = vmatprep.mubr.bf16.mxu0 0
  %1028 = vmatmul.mubr.bf16.gmra.mrb[0].mxu0 %v994
  %v1029 = vpop.f32.mrb[0].mxu0
  %v1030 = vadd.f32 0.0, %v1029
  %v1031 = vpop.f32.mrb[0].mxu0
  %v1032 = vadd.f32 0.0, %v1031
  %v1033 = vpop.f32.mrb[0].mxu0
  %v1034 = vadd.f32 0.0, %v1033
  %v1035 = vpop.f32.mrb[0].mxu0
  %v1036 = vadd.f32 0.0, %v1035
  %1037 = vdwg.mxu0
  %1038 = vmatprep.subr.bf16.mxu0 %v163
  %1039 = vmatpush1.bf16.msra.mxu0 %v162
  %1040 = vmatprep.subr.bf16.mxu0 %v167
  %1041 = vmatpush1.bf16.msra.mxu0 %v166
  %1042 = vmatprep.subr.bf16.mxu0 %v171
  %1043 = vmatpush1.bf16.msra.mxu0 %v170
  %1044 = vmatprep.subr.bf16.mxu0 %v175
  %1045 = vmatpush1.bf16.msra.mxu0 %v174
  %1046 = vmatprep.subr.bf16.mxu0 %v179
  %1047 = vmatpush1.bf16.msra.mxu0 %v178
  %1048 = vmatprep.subr.bf16.mxu0 %v183
  %1049 = vmatpush1.bf16.msra.mxu0 %v182
  %1050 = vmatprep.subr.bf16.mxu0 %v187
  %1051 = vmatpush1.bf16.msra.mxu0 %v186
  %1052 = vmatprep.subr.bf16.mxu0 %v191
  %1053 = vmatpush1.bf16.msra.mxu0 %v190
  %1054 = vmatprep.subr.bf16.mxu0 0
  %1055 = vmatpush1.bf16.msra.mxu0 0
  %1056 = vmatprep.subr.bf16.mxu0 0
  %1057 = vmatpush1.bf16.msra.mxu0 0
  %1058 = vmatprep.subr.bf16.mxu0 0
  %1059 = vmatpush1.bf16.msra.mxu0 0
  %1060 = vmatprep.subr.bf16.mxu0 0
  %1061 = vmatpush1.bf16.msra.mxu0 0
  %1062 = vmatprep.subr.bf16.mxu0 0
  %1063 = vmatpush1.bf16.msra.mxu0 0
  %1064 = vmatprep.subr.bf16.mxu0 0
  %1065 = vmatpush1.bf16.msra.mxu0 0
  %1066 = vmatprep.subr.bf16.mxu0 0
  %1067 = vmatpush1.bf16.msra.mxu0 0
  %1068 = vmatprep.subr.bf16.mxu0 0
  %1069 = vmatpush1.bf16.msra.mxu0 0
  %1070 = vmatprep.mubr.bf16.mxu0 0
  %1071 = vmatmul.mubr.bf16.gmra.mrb[0].mxu0 %v994
  %v1072 = vpop.f32.mrb[0].mxu0
  %v1073 = vadd.f32 0.0, %v1072
  %v1074 = vpop.f32.mrb[0].mxu0
  %v1075 = vadd.f32 0.0, %v1074
  %v1076 = vpop.f32.mrb[0].mxu0
  %v1077 = vadd.f32 0.0, %v1076
  %v1078 = vpop.f32.mrb[0].mxu0
  %v1079 = vadd.f32 0.0, %v1078
  %1080 = vdwg.mxu0
  %v1081 = vunpack.c.l.bf16 %v990
  %v1082 = vunpack.c.h.bf16 %v990
  %v1083 = vunpack.c.l.bf16 %v991
  %v1084 = vunpack.c.h.bf16 %v991
  %v1085 = vunpack.c.l.bf16 %v992
  %v1086 = vunpack.c.h.bf16 %v992
  %v1087 = vunpack.c.l.bf16 %v993
  %v1088 = vunpack.c.h.bf16 %v993
  %v1089 = vadd.f32 %v1081, %v1030
  %v1090 = vadd.f32 %v1082, %v1032
  %v1091 = vadd.f32 %v1083, %v1073
  %v1092 = vadd.f32 %v1084, %v1075
  %v1093 = vadd.f32 %v1085, %v1034
  %v1094 = vadd.f32 %v1086, %v1036
  %v1095 = vadd.f32 %v1087, %v1077
  %v1096 = vadd.f32 %v1088, %v1079
  %s1097 = scalar_lea.vmem %s1, 64
  %v1098 = vld [vmem:[%s1097] sm:$0xff]
  %v1099 = vld [vmem:[%s1097 + $0x8] sm:$0xff]
  %v1100 = vxor.u32 %v1089, 2147483648
  %v1101 = vxor.u32 %v1093, 2147483648
  %v1102 = vmul.f32 %v1100, 1.442695
  %v1103 = vpow.pop %v1102
  %v1104 = vmul.f32 %v1101, 1.442695
  %v1105 = vpow.pop %v1104
  %v1106 = vadd.f32 %v1103, 1.0
  %v1107 = vadd.f32 %v1105, 1.0
  %v1108 = vrcp.pop %v1106
  %v1109 = vmul.f32 1.0, %v1108
  %v1110 = vrcp.pop %v1107
  %v1111 = vmul.f32 1.0, %v1110
  %v1112 = vxor.u32 %v1090, 2147483648
  %v1113 = vxor.u32 %v1094, 2147483648
  %v1114 = vmul.f32 %v1112, 1.442695
  %v1115 = vpow.pop %v1114
  %v1116 = vmul.f32 %v1113, 1.442695
  %v1117 = vpow.pop %v1116
  %v1118 = vadd.f32 %v1115, 1.0
  %v1119 = vadd.f32 %v1117, 1.0
  %v1120 = vrcp.pop %v1118
  %v1121 = vmul.f32 1.0, %v1120
  %v1122 = vrcp.pop %v1119
  %v1123 = vmul.f32 1.0, %v1122
  %v1124 = vtanh.pop %v1091
  %v1125 = vtanh.pop %v1095
  %v1126 = vxor.u32 %v1092, 2147483648
  %v1127 = vxor.u32 %v1096, 2147483648
  %v1128 = vmul.f32 %v1126, 1.442695
  %v1129 = vpow.pop %v1128
  %v1130 = vmul.f32 %v1127, 1.442695
  %v1131 = vpow.pop %v1130
  %v1132 = vadd.f32 %v1129, 1.0
  %v1133 = vadd.f32 %v1131, 1.0
  %v1134 = vrcp.pop %v1132
  %v1135 = vmul.f32 1.0, %v1134
  %v1136 = vrcp.pop %v1133
  %v1137 = vmul.f32 1.0, %v1136
  %v1138 = vmul.f32 %v1121, %v987
  %v1139 = vmul.f32 %v1123, %v988
  %v1140 = vmul.f32 %v1109, %v1124
  %v1141 = vmul.f32 %v1111, %v1125
  %v1142 = vadd.f32 %v1138, %v1140
  %v1143 = vadd.f32 %v1139, %v1141
  %v1144 = vtanh.pop %v1142
  %v1145 = vtanh.pop %v1143
  %v1146 = vmul.f32 %v1135, %v1144
  %v1147 = vmul.f32 %v1137, %v1145
  %1149 = vset.pattern.permute.xlu0 0
  %1150 = vperm.xlu0 %1149, %v1098
  %v1151 = vpop.permute.xlu0 %1150
  %1154 = vset.pattern.permute.xlu0 0
  %1155 = vperm.xlu0 %1154, %v1099
  %v1156 = vpop.permute.xlu0 %1155
  %v1158 = vmul.f32 %v1151, %v1146
  %v1159 = vmul.f32 %v1156, %v1147
  %v1160 = vsub.f32 1.0, %v1098
  %v1161 = vsub.f32 1.0, %v1099
  %1163 = vset.pattern.permute.xlu0 0
  %1164 = vperm.xlu0 %1163, %v1160
  %v1165 = vpop.permute.xlu0 %1164
  %1168 = vset.pattern.permute.xlu0 0
  %1169 = vperm.xlu0 %1168, %v1161
  %v1170 = vpop.permute.xlu0 %1169
  %v1172 = vmul.f32 %v1165, %v981
  %v1173 = vmul.f32 %v1170, %v982
  %v1174 = vadd.f32 %v1158, %v1172
  %v1175 = vadd.f32 %v1159, %v1173
  %v1176 = vmul.f32 %v1151, %v1142
  %v1177 = vmul.f32 %v1156, %v1143
  %v1178 = vmul.f32 %v1165, %v987
  %v1179 = vmul.f32 %v1170, %v988
  %v1180 = vadd.f32 %v1176, %v1178
  %v1181 = vadd.f32 %v1177, %v1179
  %s1182 = scalar_lea.vmem %s0, 160
  %v1183 = vld [vmem:[%s1182] sm:$0xff]
  %v1184 = vld [vmem:[%s1182 + $0x8] sm:$0xff]
  %v1185 = vld [vmem:[%s1182 + $0x10] sm:$0xff]
  %v1186 = vld [vmem:[%s1182 + $0x18] sm:$0xff]
  %v1187 = vpack.c.bf16 %v1175, %v1174
  %1188 = vmatprep.subr.bf16.mxu0 %v161
  %1189 = vmatpush1.bf16.msra.mxu0 %v160
  %1190 = vmatprep.subr.bf16.mxu0 %v165
  %1191 = vmatpush1.bf16.msra.mxu0 %v164
  %1192 = vmatprep.subr.bf16.mxu0 %v169
  %1193 = vmatpush1.bf16.msra.mxu0 %v168
  %1194 = vmatprep.subr.bf16.mxu0 %v173
  %1195 = vmatpush1.bf16.msra.mxu0 %v172
  %1196 = vmatprep.subr.bf16.mxu0 %v177
  %1197 = vmatpush1.bf16.msra.mxu0 %v176
  %1198 = vmatprep.subr.bf16.mxu0 %v181
  %1199 = vmatpush1.bf16.msra.mxu0 %v180
  %1200 = vmatprep.subr.bf16.mxu0 %v185
  %1201 = vmatpush1.bf16.msra.mxu0 %v184
  %1202 = vmatprep.subr.bf16.mxu0 %v189
  %1203 = vmatpush1.bf16.msra.mxu0 %v188
  %1204 = vmatprep.subr.bf16.mxu0 0
  %1205 = vmatpush1.bf16.msra.mxu0 0
  %1206 = vmatprep.subr.bf16.mxu0 0
  %1207 = vmatpush1.bf16.msra.mxu0 0
  %1208 = vmatprep.subr.bf16.mxu0 0
  %1209 = vmatpush1.bf16.msra.mxu0 0
  %1210 = vmatprep.subr.bf16.mxu0 0
  %1211 = vmatpush1.bf16.msra.mxu0 0
  %1212 = vmatprep.subr.bf16.mxu0 0
  %1213 = vmatpush1.bf16.msra.mxu0 0
  %1214 = vmatprep.subr.bf16.mxu0 0
  %1215 = vmatpush1.bf16.msra.mxu0 0
  %1216 = vmatprep.subr.bf16.mxu0 0
  %1217 = vmatpush1.bf16.msra.mxu0 0
  %1218 = vmatprep.subr.bf16.mxu0 0
  %1219 = vmatpush1.bf16.msra.mxu0 0
  %1220 = vmatprep.mubr.bf16.mxu0 0
  %1221 = vmatmul.mubr.bf16.gmra.mrb[0].mxu0 %v1187
  %v1222 = vpop.f32.mrb[0].mxu0
  %v1223 = vadd.f32 0.0, %v1222
  %v1224 = vpop.f32.mrb[0].mxu0
  %v1225 = vadd.f32 0.0, %v1224
  %v1226 = vpop.f32.mrb[0].mxu0
  %v1227 = vadd.f32 0.0, %v1226
  %v1228 = vpop.f32.mrb[0].mxu0
  %v1229 = vadd.f32 0.0, %v1228
  %1230 = vdwg.mxu0
  %1231 = vmatprep.subr.bf16.mxu0 %v163
  %1232 = vmatpush1.bf16.msra.mxu0 %v162
  %1233 = vmatprep.subr.bf16.mxu0 %v167
  %1234 = vmatpush1.bf16.msra.mxu0 %v166
  %1235 = vmatprep.subr.bf16.mxu0 %v171
  %1236 = vmatpush1.bf16.msra.mxu0 %v170
  %1237 = vmatprep.subr.bf16.mxu0 %v175
  %1238 = vmatpush1.bf16.msra.mxu0 %v174
  %1239 = vmatprep.subr.bf16.mxu0 %v179
  %1240 = vmatpush1.bf16.msra.mxu0 %v178
  %1241 = vmatprep.subr.bf16.mxu0 %v183
  %1242 = vmatpush1.bf16.msra.mxu0 %v182
  %1243 = vmatprep.subr.bf16.mxu0 %v187
  %1244 = vmatpush1.bf16.msra.mxu0 %v186
  %1245 = vmatprep.subr.bf16.mxu0 %v191
  %1246 = vmatpush1.bf16.msra.mxu0 %v190
  %1247 = vmatprep.subr.bf16.mxu0 0
  %1248 = vmatpush1.bf16.msra.mxu0 0
  %1249 = vmatprep.subr.bf16.mxu0 0
  %1250 = vmatpush1.bf16.msra.mxu0 0
  %1251 = vmatprep.subr.bf16.mxu0 0
  %1252 = vmatpush1.bf16.msra.mxu0 0
  %1253 = vmatprep.subr.bf16.mxu0 0
  %1254 = vmatpush1.bf16.msra.mxu0 0
  %1255 = vmatprep.subr.bf16.mxu0 0
  %1256 = vmatpush1.bf16.msra.mxu0 0
  %1257 = vmatprep.subr.bf16.mxu0 0
  %1258 = vmatpush1.bf16.msra.mxu0 0
  %1259 = vmatprep.subr.bf16.mxu0 0
  %1260 = vmatpush1.bf16.msra.mxu0 0
  %1261 = vmatprep.subr.bf16.mxu0 0
  %1262 = vmatpush1.bf16.msra.mxu0 0
  %1263 = vmatprep.mubr.bf16.mxu0 0
  %1264 = vmatmul.mubr.bf16.gmra.mrb[0].mxu0 %v1187
  %v1265 = vpop.f32.mrb[0].mxu0
  %v1266 = vadd.f32 0.0, %v1265
  %v1267 = vpop.f32.mrb[0].mxu0
  %v1268 = vadd.f32 0.0, %v1267
  %v1269 = vpop.f32.mrb[0].mxu0
  %v1270 = vadd.f32 0.0, %v1269
  %v1271 = vpop.f32.mrb[0].mxu0
  %v1272 = vadd.f32 0.0, %v1271
  %1273 = vdwg.mxu0
  %v1274 = vunpack.c.l.bf16 %v1183
  %v1275 = vunpack.c.h.bf16 %v1183
  %v1276 = vunpack.c.l.bf16 %v1184
  %v1277 = vunpack.c.h.bf16 %v1184
  %v1278 = vunpack.c.l.bf16 %v1185
  %v1279 = vunpack.c.h.bf16 %v1185
  %v1280 = vunpack.c.l.bf16 %v1186
  %v1281 = vunpack.c.h.bf16 %v1186
  %v1282 = vadd.f32 %v1274, %v1223
  %v1283 = vadd.f32 %v1275, %v1225
  %v1284 = vadd.f32 %v1276, %v1266
  %v1285 = vadd.f32 %v1277, %v1268
  %v1286 = vadd.f32 %v1278, %v1227
  %v1287 = vadd.f32 %v1279, %v1229
  %v1288 = vadd.f32 %v1280, %v1270
  %v1289 = vadd.f32 %v1281, %v1272
  %s1290 = scalar_lea.vmem %s1, 80
  %v1291 = vld [vmem:[%s1290] sm:$0xff]
  %v1292 = vld [vmem:[%s1290 + $0x8] sm:$0xff]
  %v1293 = vxor.u32 %v1282, 2147483648
  %v1294 = vxor.u32 %v1286, 2147483648
  %v1295 = vmul.f32 %v1293, 1.442695
  %v1296 = vpow.pop %v1295
  %v1297 = vmul.f32 %v1294, 1.442695
  %v1298 = vpow.pop %v1297
  %v1299 = vadd.f32 %v1296, 1.0
  %v1300 = vadd.f32 %v1298, 1.0
  %v1301 = vrcp.pop %v1299
  %v1302 = vmul.f32 1.0, %v1301
  %v1303 = vrcp.pop %v1300
  %v1304 = vmul.f32 1.0, %v1303
  %v1305 = vxor.u32 %v1283, 2147483648
  %v1306 = vxor.u32 %v1287, 2147483648
  %v1307 = vmul.f32 %v1305, 1.442695
  %v1308 = vpow.pop %v1307
  %v1309 = vmul.f32 %v1306, 1.442695
  %v1310 = vpow.pop %v1309
  %v1311 = vadd.f32 %v1308, 1.0
  %v1312 = vadd.f32 %v1310, 1.0
  %v1313 = vrcp.pop %v1311
  %v1314 = vmul.f32 1.0, %v1313
  %v1315 = vrcp.pop %v1312
  %v1316 = vmul.f32 1.0, %v1315
  %v1317 = vtanh.pop %v1284
  %v1318 = vtanh.pop %v1288
  %v1319 = vxor.u32 %v1285, 2147483648
  %v1320 = vxor.u32 %v1289, 2147483648
  %v1321 = vmul.f32 %v1319, 1.442695
  %v1322 = vpow.pop %v1321
  %v1323 = vmul.f32 %v1320, 1.442695
  %v1324 = vpow.pop %v1323
  %v1325 = vadd.f32 %v1322, 1.0
  %v1326 = vadd.f32 %v1324, 1.0
  %v1327 = vrcp.pop %v1325
  %v1328 = vmul.f32 1.0, %v1327
  %v1329 = vrcp.pop %v1326
  %v1330 = vmul.f32 1.0, %v1329
  %v1331 = vmul.f32 %v1314, %v1180
  %v1332 = vmul.f32 %v1316, %v1181
  %v1333 = vmul.f32 %v1302, %v1317
  %v1334 = vmul.f32 %v1304, %v1318
  %v1335 = vadd.f32 %v1331, %v1333
  %v1336 = vadd.f32 %v1332, %v1334
  %v1337 = vtanh.pop %v1335
  %v1338 = vtanh.pop %v1336
  %v1339 = vmul.f32 %v1328, %v1337
  %v1340 = vmul.f32 %v1330, %v1338
  %1342 = vset.pattern.permute.xlu0 0
  %1343 = vperm.xlu0 %1342, %v1291
  %v1344 = vpop.permute.xlu0 %1343
  %1347 = vset.pattern.permute.xlu0 0
  %1348 = vperm.xlu0 %1347, %v1292
  %v1349 = vpop.permute.xlu0 %1348
  %v1351 = vmul.f32 %v1344, %v1339
  %v1352 = vmul.f32 %v1349, %v1340
  %v1353 = vsub.f32 1.0, %v1291
  %v1354 = vsub.f32 1.0, %v1292
  %1356 = vset.pattern.permute.xlu0 0
  %1357 = vperm.xlu0 %1356, %v1353
  %v1358 = vpop.permute.xlu0 %1357
  %1361 = vset.pattern.permute.xlu0 0
  %1362 = vperm.xlu0 %1361, %v1354
  %v1363 = vpop.permute.xlu0 %1362
  %v1365 = vmul.f32 %v1358, %v1174
  %v1366 = vmul.f32 %v1363, %v1175
  %v1367 = vadd.f32 %v1351, %v1365
  %v1368 = vadd.f32 %v1352, %v1366
  %v1369 = vmul.f32 %v1344, %v1335
  %v1370 = vmul.f32 %v1349, %v1336
  %v1371 = vmul.f32 %v1358, %v1180
  %v1372 = vmul.f32 %v1363, %v1181
  %v1373 = vadd.f32 %v1369, %v1371
  %v1374 = vadd.f32 %v1370, %v1372
  %1375 = vst [vmem:[#allocation2] sm:$0xff] %v1367
  %1376 = vst [vmem:[#allocation2 + $0x8] sm:$0xff] %v1368
  %1377 = vst [vmem:[#allocation3] sm:$0xff] %v1373
  %1378 = vst [vmem:[#allocation3 + $0x8] sm:$0xff] %v1374
  %v1379 = vpack.c.bf16 %v1368, %v1367
  %v1381 = vunpack.c.l.b16 %v1379
  %v1382 = vunpack.c.h.b16 %v1379
  %v1383 = vpack.c.b16 %v1381, %v1381
  %v1384 = vpack.c.b16 %v1382, %v1382
  %1387 = vst [vmem:[%s3] sm:$0xf] %v1383
  %1388 = vst [vmem:[%s3 + $0x4] sm:$0xf] %v1384
  // Predicated region
  $region18: #{seq2seq_forward.4} parent=0 // pred_check
    _
  $region19: #{seq2seq_forward.4} parent=0 // pred_check_branch
    %1390 = sbr.rel (0) target = $region21
  $region20: #{seq2seq_forward.4} parent=0 // pred_region
    _
  $region21: #{seq2seq_forward.4} parent=0 // pred_fallthru
    _
  // Predicated region
  $region22: #{seq2seq_forward.4} parent=0 // pred_check
    _
  $region23: #{seq2seq_forward.4} parent=0 // pred_check_branch
    %1392 = sbr.rel (0) target = $region25
  $region24: #{seq2seq_forward.4} parent=0 // pred_region
    _
  $region25: #{seq2seq_forward.4} parent=0 // pred_fallthru
    _

// kernel: seq2seq_forward.5
$region0: #{seq2seq_forward.5}
  #allocation0 [shape = 'u32[]', space=smem, size = 0x4, offset = 0x4, fixed_abs, tag = 'smem constant byte address 0x4 - core index']
  #allocation1 [shape = 'u32[144,128]{1,0:T(1,128)}', space=vmem, size = 0x12000, scoped, tag = 'internal scratch']
  #allocation2 [shape = 'f32[2,128]{1,0:T(2,128)}', space=vmem, size = 0x400, scoped, tag = 'scratch operand']
  #allocation3 [shape = 'f32[2,128]{1,0:T(2,128)}', space=vmem, size = 0x400, scoped, tag = 'scratch operand']
  %s0 = inlined_call_operand.vmem [shape: bf16[2,128], index: 0, kind: input, shape index: {}]
  %s1 = inlined_call_operand.vmem [shape: bf16[2,8,128], index: 1, kind: input, shape index: {}]
  %s2 = inlined_call_operand.vmem [shape: f32[2,8], index: 2, kind: input, shape index: {}]
  %s3 = inlined_call_operand.vmem [shape: bf16[128,384], index: 3, kind: input, shape index: {}]
  %s4 = inlined_call_operand.vmem [shape: f32[1,384], index: 4, kind: input, shape index: {}]
  %s5 = inlined_call_operand.vmem [shape: bf16[128,128], index: 5, kind: input, shape index: {}]
  %s6 = inlined_call_operand.vmem [shape: bf16[128,384], index: 6, kind: input, shape index: {}]
  %s7 = inlined_call_operand.vmem [shape: f32[1,384], index: 7, kind: input, shape index: {}]
  %s8 = inlined_call_operand.vmem [shape: bf16[128,128], index: 8, kind: input, shape index: {}]
  %s9 = inlined_call_operand.vmem [shape: bf16[128,128], index: 9, kind: input, shape index: {}]
  %s10 = inlined_call_operand.vmem [shape: f32[1,128], index: 10, kind: input, shape index: {}]
  %s11 = inlined_call_operand.vmem [shape: f32[8,2,128], index: 11, kind: output, shape index: {}]
  %s12 = sld [smem:[#allocation0]]
  $region81: #{seq2seq_forward.5} parent=0
    _
  %s14 = ssub.s32 1, %s12
  %s15 = scalar_select 0, %s14, %s12
  loop: start=0, step=1, limit=10
  $region2: #{seq2seq_forward.5} parent=0 // loop_pre_header
    _
  $region3: #{seq2seq_forward.5} parent=0 // loop_header
    %s17 = sphi 0, %s21
    %p18 = scmp.ge.s32.totalorder %s17, 10
    %s24 = sphi 0, %s36
    %s25 = sphi 0, %s32
    %s26 = sphi 0, %s24
    %s27 = sphi 0, %s25
    %s28 = sphi 0, %s26
    %s29 = sphi 0, %s27
    %s39 = sphi 0, %s41
    %s42 = sphi 0, %s39
    %s43 = sphi 0, %s42
    %s59 = sphi 0, %s43
    %s65 = sphi 0, %s67
    %s68 = sphi 0, %s65
    %s69 = sphi 0, %s68
    %s85 = sphi 0, %s69
    %s91 = sphi 0, %s93
    %s94 = sphi 0, %s91
    %s95 = sphi 0, %s94
    %s111 = sphi 0, %s95
    %s115 = sphi 0, %s115
    %s117 = sphi 0, %s115
    %s118 = sphi 0, %s117
    %s132 = sphi 0, %s118
    %s136 = sphi 0, %s136
    %s138 = sphi 0, %s136
    %s139 = sphi 0, %s138
    %s153 = sphi 0, %s139
    %s157 = sphi 0, %s157
    %s159 = sphi 0, %s157
    %s160 = sphi 0, %s159
    %s174 = sphi 0, %s160
    %s178 = sphi 0, %s178
    %s180 = sphi 0, %s178
    %s181 = sphi 0, %s180
    %s195 = sphi 0, %s181
    %s199 = sphi 0, %s199
    %s201 = sphi 0, %s199
    %s202 = sphi 0, %s201
    %s216 = sphi 0, %s202
    %s220 = sphi 0, %s220
    %s222 = sphi 0, %s220
    %s223 = sphi 0, %s222
    %s237 = sphi 0, %s223
    %s241 = sphi 0, %s241
    %s243 = sphi 0, %s241
    %s244 = sphi 0, %s243
    %s258 = sphi 0, %s244
    %s262 = sphi 0, %s262
    %s264 = sphi 0, %s262
    %s265 = sphi 0, %s264
    %s279 = sphi 0, %s265
    %s287 = sphi 0, %s289
    %s290 = sphi 0, %s287
    %s291 = sphi 0, %s290
    %s307 = sphi 0, %s291
  $region4: #{seq2seq_forward.5} parent=0 // loop_header_branch
    %20 = sbr.rel (%p18) target = $region8
  $region5: #{seq2seq_forward.5} parent=0 // loop_body
    %s22 = ssub.s32 %s17, 1
    %s23 = ssub.s32 %s17, 2
    %s30 = sadd.s32 1, %s25
    %p31 = scmp.ge.s32.totalorder %s30, 8
    %s32 = scalar_select %p31, 0, %s30
    %s33 = sadd.s32 1, %s24
    %s34 = scalar_select %p31, %s33, %s24
    %p35 = scmp.ge.s32.totalorder %s34, 1
    %s36 = scalar_select %p35, 0, %s34
    %s37 = ssub.s32 %s24, %s36
    %p38 = scmp.eq.s32.totalorder %s37, 0
    %s40 = sadd.s32 %s39, 1
    %s41 = scalar_select %p38, %s39, %s40
    %p44 = pneg %p38
    %p45 = scmp.eq.s32.totalorder %s17, 7
    %p46 = por %p44, %p45
    %p47 = scmp.ne.s32.totalorder %s39, %s42
    %p48 = scmp.eq.s32.totalorder %s17, 0
    %p49 = por %p47, %p48
    %p50 = scmp.ne.s32.totalorder %s39, %s42
    %p51 = scmp.eq.s32.totalorder %s22, 7
    %p52 = por %p50, %p51
    %p53 = scmp.ne.s32.totalorder %s42, %s43
    %p54 = scmp.eq.s32.totalorder %s22, 0
    %p55 = por %p53, %p54
    %p56 = scmp.ne.s32.totalorder %s42, %s43
    %p57 = scmp.eq.s32.totalorder %s23, 7
    %p58 = por %p56, %p57
    %p60 = scmp.ne.s32.totalorder %s43, %s59
    %p61 = scmp.eq.s32.totalorder %s23, 0
    %p62 = por %p60, %p61
    %s63 = ssub.s32 %s24, %s36
    %p64 = scmp.eq.s32.totalorder %s63, 0
    %s66 = sadd.s32 %s65, 1
    %s67 = scalar_select %p64, %s65, %s66
    %p70 = pneg %p64
    %p71 = scmp.eq.s32.totalorder %s17, 7
    %p72 = por %p70, %p71
    %p73 = scmp.ne.s32.totalorder %s65, %s68
    %p74 = scmp.eq.s32.totalorder %s17, 0
    %p75 = por %p73, %p74
    %p76 = scmp.ne.s32.totalorder %s65, %s68
    %p77 = scmp.eq.s32.totalorder %s22, 7
    %p78 = por %p76, %p77
    %p79 = scmp.ne.s32.totalorder %s68, %s69
    %p80 = scmp.eq.s32.totalorder %s22, 0
    %p81 = por %p79, %p80
    %p82 = scmp.ne.s32.totalorder %s68, %s69
    %p83 = scmp.eq.s32.totalorder %s23, 7
    %p84 = por %p82, %p83
    %p86 = scmp.ne.s32.totalorder %s69, %s85
    %p87 = scmp.eq.s32.totalorder %s23, 0
    %p88 = por %p86, %p87
    %s89 = ssub.s32 %s24, %s36
    %p90 = scmp.eq.s32.totalorder %s89, 0
    %s92 = sadd.s32 %s91, 1
    %s93 = scalar_select %p90, %s91, %s92
    %p96 = pneg %p90
    %p97 = scmp.eq.s32.totalorder %s17, 7
    %p98 = por %p96, %p97
    %p99 = scmp.ne.s32.totalorder %s91, %s94
    %p100 = scmp.eq.s32.totalorder %s17, 0
    %p101 = por %p99, %p100
    %p102 = scmp.ne.s32.totalorder %s91, %s94
    %p103 = scmp.eq.s32.totalorder %s22, 7
    %p104 = por %p102, %p103
    %p105 = scmp.ne.s32.totalorder %s94, %s95
    %p106 = scmp.eq.s32.totalorder %s22, 0
    %p107 = por %p105, %p106
    %p108 = scmp.ne.s32.totalorder %s94, %s95
    %p109 = scmp.eq.s32.totalorder %s23, 7
    %p110 = por %p108, %p109
    %p112 = scmp.ne.s32.totalorder %s95, %s111
    %p113 = scmp.eq.s32.totalorder %s23, 0
    %p114 = por %p112, %p113
    %s116 = sadd.s32 %s115, 1
    %p119 = scmp.eq.s32.totalorder %s17, 7
    %p120 = scmp.ne.s32.totalorder %s115, %s117
    %p121 = scmp.eq.s32.totalorder %s17, 0
    %p122 = por %p120, %p121
    %p123 = scmp.ne.s32.totalorder %s115, %s117
    %p124 = scmp.eq.s32.totalorder %s22, 7
    %p125 = por %p123, %p124
    %p126 = scmp.ne.s32.totalorder %s117, %s118
    %p127 = scmp.eq.s32.totalorder %s22, 0
    %p128 = por %p126, %p127
    %p129 = scmp.ne.s32.totalorder %s117, %s118
    %p130 = scmp.eq.s32.totalorder %s23, 7
    %p131 = por %p129, %p130
    %p133 = scmp.ne.s32.totalorder %s118, %s132
    %p134 = scmp.eq.s32.totalorder %s23, 0
    %p135 = por %p133, %p134
    %s137 = sadd.s32 %s136, 1
    %p140 = scmp.eq.s32.totalorder %s17, 7
    %p141 = scmp.ne.s32.totalorder %s136, %s138
    %p142 = scmp.eq.s32.totalorder %s17, 0
    %p143 = por %p141, %p142
    %p144 = scmp.ne.s32.totalorder %s136, %s138
    %p145 = scmp.eq.s32.totalorder %s22, 7
    %p146 = por %p144, %p145
    %p147 = scmp.ne.s32.totalorder %s138, %s139
    %p148 = scmp.eq.s32.totalorder %s22, 0
    %p149 = por %p147, %p148
    %p150 = scmp.ne.s32.totalorder %s138, %s139
    %p151 = scmp.eq.s32.totalorder %s23, 7
    %p152 = por %p150, %p151
    %p154 = scmp.ne.s32.totalorder %s139, %s153
    %p155 = scmp.eq.s32.totalorder %s23, 0
    %p156 = por %p154, %p155
    %s158 = sadd.s32 %s157, 1
    %p161 = scmp.eq.s32.totalorder %s17, 7
    %p162 = scmp.ne.s32.totalorder %s157, %s159
    %p163 = scmp.eq.s32.totalorder %s17, 0
    %p164 = por %p162, %p163
    %p165 = scmp.ne.s32.totalorder %s157, %s159
    %p166 = scmp.eq.s32.totalorder %s22, 7
    %p167 = por %p165, %p166
    %p168 = scmp.ne.s32.totalorder %s159, %s160
    %p169 = scmp.eq.s32.totalorder %s22, 0
    %p170 = por %p168, %p169
    %p171 = scmp.ne.s32.totalorder %s159, %s160
    %p172 = scmp.eq.s32.totalorder %s23, 7
    %p173 = por %p171, %p172
    %p175 = scmp.ne.s32.totalorder %s160, %s174
    %p176 = scmp.eq.s32.totalorder %s23, 0
    %p177 = por %p175, %p176
    %s179 = sadd.s32 %s178, 1
    %p182 = scmp.eq.s32.totalorder %s17, 7
    %p183 = scmp.ne.s32.totalorder %s178, %s180
    %p184 = scmp.eq.s32.totalorder %s17, 0
    %p185 = por %p183, %p184
    %p186 = scmp.ne.s32.totalorder %s178, %s180
    %p187 = scmp.eq.s32.totalorder %s22, 7
    %p188 = por %p186, %p187
    %p189 = scmp.ne.s32.totalorder %s180, %s181
    %p190 = scmp.eq.s32.totalorder %s22, 0
    %p191 = por %p189, %p190
    %p192 = scmp.ne.s32.totalorder %s180, %s181
    %p193 = scmp.eq.s32.totalorder %s23, 7
    %p194 = por %p192, %p193
    %p196 = scmp.ne.s32.totalorder %s181, %s195
    %p197 = scmp.eq.s32.totalorder %s23, 0
    %p198 = por %p196, %p197
    %s200 = sadd.s32 %s199, 1
    %p203 = scmp.eq.s32.totalorder %s17, 7
    %p204 = scmp.ne.s32.totalorder %s199, %s201
    %p205 = scmp.eq.s32.totalorder %s17, 0
    %p206 = por %p204, %p205
    %p207 = scmp.ne.s32.totalorder %s199, %s201
    %p208 = scmp.eq.s32.totalorder %s22, 7
    %p209 = por %p207, %p208
    %p210 = scmp.ne.s32.totalorder %s201, %s202
    %p211 = scmp.eq.s32.totalorder %s22, 0
    %p212 = por %p210, %p211
    %p213 = scmp.ne.s32.totalorder %s201, %s202
    %p214 = scmp.eq.s32.totalorder %s23, 7
    %p215 = por %p213, %p214
    %p217 = scmp.ne.s32.totalorder %s202, %s216
    %p218 = scmp.eq.s32.totalorder %s23, 0
    %p219 = por %p217, %p218
    %s221 = sadd.s32 %s220, 1
    %p224 = scmp.eq.s32.totalorder %s17, 7
    %p225 = scmp.ne.s32.totalorder %s220, %s222
    %p226 = scmp.eq.s32.totalorder %s17, 0
    %p227 = por %p225, %p226
    %p228 = scmp.ne.s32.totalorder %s220, %s222
    %p229 = scmp.eq.s32.totalorder %s22, 7
    %p230 = por %p228, %p229
    %p231 = scmp.ne.s32.totalorder %s222, %s223
    %p232 = scmp.eq.s32.totalorder %s22, 0
    %p233 = por %p231, %p232
    %p234 = scmp.ne.s32.totalorder %s222, %s223
    %p235 = scmp.eq.s32.totalorder %s23, 7
    %p236 = por %p234, %p235
    %p238 = scmp.ne.s32.totalorder %s223, %s237
    %p239 = scmp.eq.s32.totalorder %s23, 0
    %p240 = por %p238, %p239
    %s242 = sadd.s32 %s241, 1
    %p245 = scmp.eq.s32.totalorder %s17, 7
    %p246 = scmp.ne.s32.totalorder %s241, %s243
    %p247 = scmp.eq.s32.totalorder %s17, 0
    %p248 = por %p246, %p247
    %p249 = scmp.ne.s32.totalorder %s241, %s243
    %p250 = scmp.eq.s32.totalorder %s22, 7
    %p251 = por %p249, %p250
    %p252 = scmp.ne.s32.totalorder %s243, %s244
    %p253 = scmp.eq.s32.totalorder %s22, 0
    %p254 = por %p252, %p253
    %p255 = scmp.ne.s32.totalorder %s243, %s244
    %p256 = scmp.eq.s32.totalorder %s23, 7
    %p257 = por %p255, %p256
    %p259 = scmp.ne.s32.totalorder %s244, %s258
    %p260 = scmp.eq.s32.totalorder %s23, 0
    %p261 = por %p259, %p260
    %s263 = sadd.s32 %s262, 1
    %p266 = scmp.eq.s32.totalorder %s17, 7
    %p267 = scmp.ne.s32.totalorder %s262, %s264
    %p268 = scmp.eq.s32.totalorder %s17, 0
    %p269 = por %p267, %p268
    %p270 = scmp.ne.s32.totalorder %s262, %s264
    %p271 = scmp.eq.s32.totalorder %s22, 7
    %p272 = por %p270, %p271
    %p273 = scmp.ne.s32.totalorder %s264, %s265
    %p274 = scmp.eq.s32.totalorder %s22, 0
    %p275 = por %p273, %p274
    %p276 = scmp.ne.s32.totalorder %s264, %s265
    %p277 = scmp.eq.s32.totalorder %s23, 7
    %p278 = por %p276, %p277
    %p280 = scmp.ne.s32.totalorder %s265, %s279
    %p281 = scmp.eq.s32.totalorder %s23, 0
    %p282 = por %p280, %p281
    %s283 = ssub.s32 %s25, %s32
    %s284 = ssub.s32 %s24, %s36
    %s285 = sor.u32 %s283, %s284
    %p286 = scmp.eq.s32.totalorder %s285, 0
    %s288 = sadd.s32 %s287, 1
    %s289 = scalar_select %p286, %s287, %s288
    %p292 = pneg %p286
    %p293 = scmp.eq.s32.totalorder %s17, 7
    %p294 = por %p292, %p293
    %p295 = scmp.ne.s32.totalorder %s287, %s290
    %p296 = scmp.eq.s32.totalorder %s17, 0
    %p297 = por %p295, %p296
    %p298 = scmp.ne.s32.totalorder %s287, %s290
    %p299 = scmp.eq.s32.totalorder %s22, 7
    %p300 = por %p298, %p299
    %p301 = scmp.ne.s32.totalorder %s290, %s291
    %p302 = scmp.eq.s32.totalorder %s22, 0
    %p303 = por %p301, %p302
    %p304 = scmp.ne.s32.totalorder %s290, %s291
    %p305 = scmp.eq.s32.totalorder %s23, 7
    %p306 = por %p304, %p305
    %p308 = scmp.ne.s32.totalorder %s291, %s307
    %p309 = scmp.eq.s32.totalorder %s23, 0
    %p310 = por %p308, %p309
    %p311 = scmp.le.s32.totalorder 1, %s17
    %p312 = scmp.lt.s32.totalorder %s17, 9
    %p313 = pnand %p311, %p312
    %p314 = pneg %p313
    // Predicated region
    $region9: #{seq2seq_forward.5} parent=5 // pred_check
      _
    $region10: #{seq2seq_forward.5} parent=5 // pred_check_branch
      %316 = sbr.rel (%p313) target = $region12
    $region11: #{seq2seq_forward.5} parent=5 // pred_region
      %s317 = ssub.s32 %s17, 1
      // Predicated region
      $region13: #{seq2seq_forward.5} parent=11 // pred_check
        %p318 = pneg %p55
      $region14: #{seq2seq_forward.5} parent=11 // pred_check_branch
        %320 = sbr.rel (%p318) target = $region16
      $region15: #{seq2seq_forward.5} parent=11 // pred_region
        %p321 = scmp.lt.s32.totalorder %s26, 0
        %s322 = scalar_select %p321, %s26, 0
        %s323 = scalar_lea.vmem %s0, %s322
      $region16: #{seq2seq_forward.5} parent=11 // pred_fallthru
        _
      // Predicated region
      $region17: #{seq2seq_forward.5} parent=11 // pred_check
        %p324 = pneg %p81
      $region18: #{seq2seq_forward.5} parent=11 // pred_check_branch
        %326 = sbr.rel (%p324) target = $region20
      $region19: #{seq2seq_forward.5} parent=11 // pred_region
        %s327 = smul.u32 2, %s26
        %p328 = scmp.lt.s32.totalorder %s327, 1
        %s329 = scalar_select %p328, %s327, 1
        %s330 = smul.addr %s329, 4
        %s331 = scalar_lea.vmem %s1, %s330
        %s332 = smul.u32 2, %s26
      $region20: #{seq2seq_forward.5} parent=11 // pred_fallthru
        _
      // Predicated region
      $region21: #{seq2seq_forward.5} parent=11 // pred_check
        %p333 = pneg %p107
      $region22: #{seq2seq_forward.5} parent=11 // pred_check_branch
        %335 = sbr.rel (%p333) target = $region24
      $region23: #{seq2seq_forward.5} parent=11 // pred_region
        %p336 = scmp.lt.s32.totalorder %s26, 0
        %s337 = scalar_select %p336, %s26, 0
        %s338 = smul.addr %s337, 2
        %s339 = scalar_lea.vmem %s2, %s338
      $region24: #{seq2seq_forward.5} parent=11 // pred_fallthru
        _
      // Predicated region
      $region25: #{seq2seq_forward.5} parent=11 // pred_check
        %p340 = pneg %p128
      $region26: #{seq2seq_forward.5} parent=11 // pred_check_branch
        %342 = sbr.rel (%p340) target = $region28
      $region27: #{seq2seq_forward.5} parent=11 // pred_region
        _
      $region28: #{seq2seq_forward.5} parent=11 // pred_fallthru
        _
      // Predicated region
      $region29: #{seq2seq_forward.5} parent=11 // pred_check
        %p343 = pneg %p149
      $region30: #{seq2seq_forward.5} parent=11 // pred_check_branch
        %345 = sbr.rel (%p343) target = $region32
      $region31: #{seq2seq_forward.5} parent=11 // pred_region
        _
      $region32: #{seq2seq_forward.5} parent=11 // pred_fallthru
        _
      // Predicated region
      $region33: #{seq2seq_forward.5} parent=11 // pred_check
        %p346 = pneg %p170
      $region34: #{seq2seq_forward.5} parent=11 // pred_check_branch
        %348 = sbr.rel (%p346) target = $region36
      $region35: #{seq2seq_forward.5} parent=11 // pred_region
        _
      $region36: #{seq2seq_forward.5} parent=11 // pred_fallthru
        _
      // Predicated region
      $region37: #{seq2seq_forward.5} parent=11 // pred_check
        %p349 = pneg %p191
      $region38: #{seq2seq_forward.5} parent=11 // pred_check_branch
        %351 = sbr.rel (%p349) target = $region40
      $region39: #{seq2seq_forward.5} parent=11 // pred_region
        _
      $region40: #{seq2seq_forward.5} parent=11 // pred_fallthru
        _
      // Predicated region
      $region41: #{seq2seq_forward.5} parent=11 // pred_check
        %p352 = pneg %p212
      $region42: #{seq2seq_forward.5} parent=11 // pred_check_branch
        %354 = sbr.rel (%p352) target = $region44
      $region43: #{seq2seq_forward.5} parent=11 // pred_region
        _
      $region44: #{seq2seq_forward.5} parent=11 // pred_fallthru
        _
      // Predicated region
      $region45: #{seq2seq_forward.5} parent=11 // pred_check
        %p355 = pneg %p233
      $region46: #{seq2seq_forward.5} parent=11 // pred_check_branch
        %357 = sbr.rel (%p355) target = $region48
      $region47: #{seq2seq_forward.5} parent=11 // pred_region
        _
      $region48: #{seq2seq_forward.5} parent=11 // pred_fallthru
        _
      // Predicated region
      $region49: #{seq2seq_forward.5} parent=11 // pred_check
        %p358 = pneg %p254
      $region50: #{seq2seq_forward.5} parent=11 // pred_check_branch
        %360 = sbr.rel (%p358) target = $region52
      $region51: #{seq2seq_forward.5} parent=11 // pred_region
        _
      $region52: #{seq2seq_forward.5} parent=11 // pred_fallthru
        _
      // Predicated region
      $region53: #{seq2seq_forward.5} parent=11 // pred_check
        %p361 = pneg %p275
      $region54: #{seq2seq_forward.5} parent=11 // pred_check_branch
        %363 = sbr.rel (%p361) target = $region56
      $region55: #{seq2seq_forward.5} parent=11 // pred_region
        _
      $region56: #{seq2seq_forward.5} parent=11 // pred_fallthru
        _
    $region12: #{seq2seq_forward.5} parent=5 // pred_fallthru
      _
    %p364 = scmp.lt.s32.totalorder %s17, 8
    // Predicated region
    $region57: #{seq2seq_forward.5} parent=5 // pred_check
      %p365 = pneg %p364
    $region58: #{seq2seq_forward.5} parent=5 // pred_check_branch
      %367 = sbr.rel (%p365) target = $region60
    $region59: #{seq2seq_forward.5} parent=5 // pred_region
      _
    $region60: #{seq2seq_forward.5} parent=5 // pred_fallthru
      _
    %p368 = scmp.le.s32.totalorder 1, %s17
    %p369 = scmp.lt.s32.totalorder %s17, 9
    %p370 = pnand %p368, %p369
    %p371 = pneg %p370
    // Predicated region
    $region61: #{seq2seq_forward.5} parent=5 // pred_check
      _
    $region62: #{seq2seq_forward.5} parent=5 // pred_check_branch
      %373 = sbr.rel (%p370) target = $region64
    $region63: #{seq2seq_forward.5} parent=5 // pred_region
      %s374 = ssub.s32 %s17, 1
      %p375 = scmp.lt.s32.totalorder %s26, 0
      %s376 = scalar_select %p375, %s26, 0
      %s377 = scalar_lea.vmem %s0, %s376
      %p378 = pneg %p55
      %p379 = pneg %p52
      %s380 = smul.u32 2, %s26
      %p381 = scmp.lt.s32.totalorder %s380, 1
      %s382 = scalar_select %p381, %s380, 1
      %s383 = smul.addr %s382, 4
      %s384 = scalar_lea.vmem %s1, %s383
      %p385 = pneg %p81
      %p386 = pneg %p78
      %p387 = scmp.lt.s32.totalorder %s26, 0
      %s388 = scalar_select %p387, %s26, 0
      %s389 = smul.addr %s388, 2
      %s390 = scalar_lea.vmem %s2, %s389
      %p391 = pneg %p107
      %p392 = pneg %p104
      %p393 = pneg %p128
      %p394 = pneg %p125
      %p395 = pneg %p149
      %p396 = pneg %p146
      %p397 = pneg %p170
      %p398 = pneg %p167
      %p399 = pneg %p191
      %p400 = pneg %p188
      %p401 = pneg %p212
      %p402 = pneg %p209
      %p403 = pneg %p233
      %p404 = pneg %p230
      %p405 = pneg %p254
      %p406 = pneg %p251
      %p407 = pneg %p275
      %p408 = pneg %p272
      %p409 = pneg %p303
      %p410 = pneg %p300
      %p411 = scmp.lt.s32.totalorder %s27, 7
      %s412 = scalar_select %p411, %s27, 7
      %p413 = scmp.lt.s32.totalorder %s26, 0
      %s414 = scalar_select %p413, %s26, 0
      %s415 = sadd.s32 %s414, %s412
      %s416 = smul.addr %s415, 2
      %s417 = scalar_lea.vmem %s11, %s416
      %p418 = scmp.lt.s32.totalorder %s26, 0
      %s419 = scalar_select %p418, %s26, 0
      %s420 = scalar_lea.vmem %s0, %s419
      %s421 = smul.u32 2, %s26
      %p422 = scmp.lt.s32.totalorder %s421, 1
      %s423 = scalar_select %p422, %s421, 1
      %s424 = smul.addr %s423, 4
      %s425 = scalar_lea.vmem %s1, %s424
      %s426 = smul.u32 2, %s26
      %p427 = scmp.lt.s32.totalorder %s26, 0
      %s428 = scalar_select %p427, %s26, 0
      %s429 = smul.addr %s428, 2
      %s430 = scalar_lea.vmem %s2, %s429
      %p431 = scmp.lt.s32.totalorder %s27, 7
      %s432 = scalar_select %p431, %s27, 7
      %p433 = scmp.lt.s32.totalorder %s26, 0
      %s434 = scalar_select %p433, %s26, 0
      %s435 = sadd.s32 %s434, %s432
      %s436 = smul.addr %s435, 2
      %s437 = scalar_lea.vmem %s11, %s436
      %p439 = scmp.eq.s32.totalorder %s27, 0
      // Predicated region
      $region65: #{seq2seq_forward.5} parent=63 // pred_check
        %p440 = pneg %p439
      $region66: #{seq2seq_forward.5} parent=63 // pred_check_branch
        %442 = sbr.rel (%p440) target = $region68
      $region67: #{seq2seq_forward.5} parent=63 // pred_region
        %v443 = vld [vmem:[%s420] sm:$0x1]
        %v444 = vunpack.c.l.bf16 %v443
        %445 = vst [vmem:[#allocation2] sm:$0x3] %v444
        %v446 = vlaneseq
        %v447 = vand.u32 %v446, 127
        %vm448 = vcmp.eq.s32.totalorder %v447, 0
        %v449 = vsel %vm448, 1, 0
        %v450 = vcvt.s32.f32 %v449
        %451 = vst [vmem:[#allocation3] sm:$0x3] %v450
      $region68: #{seq2seq_forward.5} parent=63 // pred_fallthru
        _
      %v452 = vld [vmem:[#allocation2] sm:$0x3]
      %v453 = vld [vmem:[#allocation3] sm:$0x3]
      %v454 = vpack.c.bf16 %v453, %v453
      %v455 = vld [vmem:[%s5] sm:$0xf]
      %v456 = vld [vmem:[%s5 + $0x4] sm:$0xf]
      %v457 = vld [vmem:[%s5 + $0x8] sm:$0xf]
      %v458 = vld [vmem:[%s5 + $0xc] sm:$0xf]
      %v459 = vld [vmem:[%s5 + $0x10] sm:$0xf]
      %v460 = vld [vmem:[%s5 + $0x14] sm:$0xf]
      %v461 = vld [vmem:[%s5 + $0x18] sm:$0xf]
      %v462 = vld [vmem:[%s5 + $0x1c] sm:$0xf]
      %v463 = vld [vmem:[%s5 + $0x20] sm:$0xf]
      %v464 = vld [vmem:[%s5 + $0x24] sm:$0xf]
      %v465 = vld [vmem:[%s5 + $0x28] sm:$0xf]
      %v466 = vld [vmem:[%s5 + $0x2c] sm:$0xf]
      %v467 = vld [vmem:[%s5 + $0x30] sm:$0xf]
      %v468 = vld [vmem:[%s5 + $0x34] sm:$0xf]
      %v469 = vld [vmem:[%s5 + $0x38] sm:$0xf]
      %v470 = vld [vmem:[%s5 + $0x3c] sm:$0xf]
      %v487 = vunpack.c.l.b16 %v455
      %v488 = vunpack.c.l.b16 %v456
      %v489 = vunpack.c.l.b16 %v457
      %v490 = vunpack.c.l.b16 %v458
      %v491 = vunpack.c.l.b16 %v459
      %v492 = vunpack.c.l.b16 %v460
      %v493 = vunpack.c.l.b16 %v461
      %v494 = vunpack.c.l.b16 %v462
      %v495 = vunpack.c.l.b16 %v463
      %v496 = vunpack.c.l.b16 %v464
      %v497 = vunpack.c.l.b16 %v465
      %v498 = vunpack.c.l.b16 %v466
      %v499 = vunpack.c.l.b16 %v467
      %v500 = vunpack.c.l.b16 %v468
      %v501 = vunpack.c.l.b16 %v469
      %v502 = vunpack.c.l.b16 %v470
      %v503 = vpack.c.b16 %v488, %v487
      %v504 = vpack.c.b16 %v490, %v489
      %v505 = vpack.c.b16 %v492, %v491
      %v506 = vpack.c.b16 %v494, %v493
      %v507 = vpack.c.b16 %v496, %v495
      %v508 = vpack.c.b16 %v498, %v497
      %v509 = vpack.c.b16 %v500, %v499
      %v510 = vpack.c.b16 %v502, %v501
      %519 = vmatprep.subr.bf16.mxu0 0
      %520 = vmatpush1.bf16.msra.mxu0 %v503
      %521 = vmatprep.subr.bf16.mxu0 0
      %522 = vmatpush1.bf16.msra.mxu0 %v504
      %523 = vmatprep.subr.bf16.mxu0 0
      %524 = vmatpush1.bf16.msra.mxu0 %v505
      %525 = vmatprep.subr.bf16.mxu0 0
      %526 = vmatpush1.bf16.msra.mxu0 %v506
      %527 = vmatprep.subr.bf16.mxu0 0
      %528 = vmatpush1.bf16.msra.mxu0 %v507
      %529 = vmatprep.subr.bf16.mxu0 0
      %530 = vmatpush1.bf16.msra.mxu0 %v508
      %531 = vmatprep.subr.bf16.mxu0 0
      %532 = vmatpush1.bf16.msra.mxu0 %v509
      %533 = vmatprep.subr.bf16.mxu0 0
      %534 = vmatpush1.bf16.msra.mxu0 %v510
      %535 = vmatprep.subr.bf16.mxu0 0
      %536 = vmatpush1.bf16.msra.mxu0 0
      %537 = vmatprep.subr.bf16.mxu0 0
      %538 = vmatpush1.bf16.msra.mxu0 0
      %539 = vmatprep.subr.bf16.mxu0 0
      %540 = vmatpush1.bf16.msra.mxu0 0
      %541 = vmatprep.subr.bf16.mxu0 0
      %542 = vmatpush1.bf16.msra.mxu0 0
      %543 = vmatprep.subr.bf16.mxu0 0
      %544 = vmatpush1.bf16.msra.mxu0 0
      %545 = vmatprep.subr.bf16.mxu0 0
      %546 = vmatpush1.bf16.msra.mxu0 0
      %547 = vmatprep.subr.bf16.mxu0 0
      %548 = vmatpush1.bf16.msra.mxu0 0
      %549 = vmatprep.subr.bf16.mxu0 0
      %550 = vmatpush1.bf16.msra.mxu0 0
      %551 = vmatprep.mubr.bf16.mxu0 0
      %552 = vmatmul.mubr.bf16.gmra.mrb[0].mxu0 %v454
      %v553 = vpop.f32.mrb[0].mxu0
      %v554 = vadd.f32 0.0, %v553
      %v555 = vpop.f32.mrb[0].mxu0
      %v556 = vpop.f32.mrb[0].mxu0
      %v557 = vpop.f32.mrb[0].mxu0
      %558 = vdwg.mxu0
      %v559 = vpack.c.bf16 %v554, %v554
      %v560 = vld [vmem:[%s6] sm:$0xff]
      %v561 = vld [vmem:[%s6 + $0x8] sm:$0xf]
      %v562 = vld [vmem:[%s6 + $0xc] sm:$0xff]
      %v563 = vld [vmem:[%s6 + $0x14] sm:$0xf]
      %v564 = vld [vmem:[%s6 + $0x18] sm:$0xff]
      %v565 = vld [vmem:[%s6 + $0x20] sm:$0xf]
      %v566 = vld [vmem:[%s6 + $0x24] sm:$0xff]
      %v567 = vld [vmem:[%s6 + $0x2c] sm:$0xf]
      %v568 = vld [vmem:[%s6 + $0x30] sm:$0xff]
      %v569 = vld [vmem:[%s6 + $0x38] sm:$0xf]
      %v570 = vld [vmem:[%s6 + $0x3c] sm:$0xff]
      %v571 = vld [vmem:[%s6 + $0x44] sm:$0xf]
      %v572 = vld [vmem:[%s6 + $0x48] sm:$0xff]
      %v573 = vld [vmem:[%s6 + $0x50] sm:$0xf]
      %v574 = vld [vmem:[%s6 + $0x54] sm:$0xff]
      %v575 = vld [vmem:[%s6 + $0x5c] sm:$0xf]
      %v576 = vld [vmem:[%s6 + $0x60] sm:$0xff]
      %v577 = vld [vmem:[%s6 + $0x68] sm:$0xf]
      %v578 = vld [vmem:[%s6 + $0x6c] sm:$0xff]
      %v579 = vld [vmem:[%s6 + $0x74] sm:$0xf]
      %v580 = vld [vmem:[%s6 + $0x78] sm:$0xff]
      %v581 = vld [vmem:[%s6 + $0x80] sm:$0xf]
      %v582 = vld [vmem:[%s6 + $0x84] sm:$0xff]
      %v583 = vld [vmem:[%s6 + $0x8c] sm:$0xf]
      %v584 = vld [vmem:[%s6 + $0x90] sm:$0xff]
      %v585 = vld [vmem:[%s6 + $0x98] sm:$0xf]
      %v586 = vld [vmem:[%s6 + $0x9c] sm:$0xff]
      %v587 = vld [vmem:[%s6 + $0xa4] sm:$0xf]
      %v588 = vld [vmem:[%s6 + $0xa8] sm:$0xff]
      %v589 = vld [vmem:[%s6 + $0xb0] sm:$0xf]
      %v590 = vld [vmem:[%s6 + $0xb4] sm:$0xff]
      %v591 = vld [vmem:[%s6 + $0xbc] sm:$0xf]
      %v592 = vld [vmem:[%s7] sm:$0x7]
      %v594 = vlaneseq
      %v595 = vshrl.u32 %v594, 7
      %v596 = vsub.s32 0, %v595
      %v597 = vrot.slane %v592, %v596
      %v598 = vlaneseq
      %v599 = vshrl.u32 %v598, 7
      %v600 = vsub.s32 1, %v599
      %v601 = vrot.slane %v592, %v600
      %v602 = vlaneseq
      %v603 = vshrl.u32 %v602, 7
      %v604 = vsub.s32 2, %v603
      %v605 = vrot.slane %v592, %v604
      %v641 = vunpack.c.l.b16 %v560
      %v642 = vunpack.c.h.b16 %v560
      %v643 = vunpack.c.l.b16 %v561
      %v644 = vunpack.c.l.b16 %v562
      %v645 = vunpack.c.h.b16 %v562
      %v646 = vunpack.c.l.b16 %v563
      %v647 = vunpack.c.l.b16 %v564
      %v648 = vunpack.c.h.b16 %v564
      %v649 = vunpack.c.l.b16 %v565
      %v650 = vunpack.c.l.b16 %v566
      %v651 = vunpack.c.h.b16 %v566
      %v652 = vunpack.c.l.b16 %v567
      %v653 = vunpack.c.l.b16 %v568
      %v654 = vunpack.c.h.b16 %v568
      %v655 = vunpack.c.l.b16 %v569
      %v656 = vunpack.c.l.b16 %v570
      %v657 = vunpack.c.h.b16 %v570
      %v658 = vunpack.c.l.b16 %v571
      %v659 = vunpack.c.l.b16 %v572
      %v660 = vunpack.c.h.b16 %v572
      %v661 = vunpack.c.l.b16 %v573
      %v662 = vunpack.c.l.b16 %v574
      %v663 = vunpack.c.h.b16 %v574
      %v664 = vunpack.c.l.b16 %v575
      %v665 = vunpack.c.l.b16 %v576
      %v666 = vunpack.c.h.b16 %v576
      %v667 = vunpack.c.l.b16 %v577
      %v668 = vunpack.c.l.b16 %v578
      %v669 = vunpack.c.h.b16 %v578
      %v670 = vunpack.c.l.b16 %v579
      %v671 = vunpack.c.l.b16 %v580
      %v672 = vunpack.c.h.b16 %v580
      %v673 = vunpack.c.l.b16 %v581
      %v674 = vunpack.c.l.b16 %v582
      %v675 = vunpack.c.h.b16 %v582
      %v676 = vunpack.c.l.b16 %v583
      %v677 = vunpack.c.l.b16 %v584
      %v678 = vunpack.c.h.b16 %v584
      %v679 = vunpack.c.l.b16 %v585
      %v680 = vunpack.c.l.b16 %v586
      %v681 = vunpack.c.h.b16 %v586
      %v682 = vunpack.c.l.b16 %v587
      %v683 = vunpack.c.l.b16 %v588
      %v684 = vunpack.c.h.b16 %v588
      %v685 = vunpack.c.l.b16 %v589
      %v686 = vunpack.c.l.b16 %v590
      %v687 = vunpack.c.h.b16 %v590
      %v688 = vunpack.c.l.b16 %v591
      %v689 = vpack.c.b16 %v644, %v641
      %v690 = vpack.c.b16 %v645, %v642
      %v691 = vpack.c.b16 %v646, %v643
      %v692 = vpack.c.b16 %v650, %v647
      %v693 = vpack.c.b16 %v651, %v648
      %v694 = vpack.c.b16 %v652, %v649
      %v695 = vpack.c.b16 %v656, %v653
      %v696 = vpack.c.b16 %v657, %v654
      %v697 = vpack.c.b16 %v658, %v655
      %v698 = vpack.c.b16 %v662, %v659
      %v699 = vpack.c.b16 %v663, %v660
      %v700 = vpack.c.b16 %v664, %v661
      %v701 = vpack.c.b16 %v668, %v665
      %v702 = vpack.c.b16 %v669, %v666
      %v703 = vpack.c.b16 %v670, %v667
      %v704 = vpack.c.b16 %v674, %v671
      %v705 = vpack.c.b16 %v675, %v672
      %v706 = vpack.c.b16 %v676, %v673
      %v707 = vpack.c.b16 %v680, %v677
      %v708 = vpack.c.b16 %v681, %v678
      %v709 = vpack.c.b16 %v682, %v679
      %v710 = vpack.c.b16 %v686, %v683
      %v711 = vpack.c.b16 %v687, %v684
      %v712 = vpack.c.b16 %v688, %v685
      %737 = vmatprep.subr.bf16.mxu0 %v690
      %738 = vmatpush1.bf16.msra.mxu0 %v689
      %739 = vmatprep.subr.bf16.mxu0 %v693
      %740 = vmatpush1.bf16.msra.mxu0 %v692
      %741 = vmatprep.subr.bf16.mxu0 %v696
      %742 = vmatpush1.bf16.msra.mxu0 %v695
      %743 = vmatprep.subr.bf16.mxu0 %v699
      %744 = vmatpush1.bf16.msra.mxu0 %v698
      %745 = vmatprep.subr.bf16.mxu0 %v702
      %746 = vmatpush1.bf16.msra.mxu0 %v701
      %747 = vmatprep.subr.bf16.mxu0 %v705
      %748 = vmatpush1.bf16.msra.mxu0 %v704
      %749 = vmatprep.subr.bf16.mxu0 %v708
      %750 = vmatpush1.bf16.msra.mxu0 %v707
      %751 = vmatprep.subr.bf16.mxu0 %v711
      %752 = vmatpush1.bf16.msra.mxu0 %v710
      %753 = vmatprep.subr.bf16.mxu0 0
      %754 = vmatpush1.bf16.msra.mxu0 0
      %755 = vmatprep.subr.bf16.mxu0 0
      %756 = vmatpush1.bf16.msra.mxu0 0
      %757 = vmatprep.subr.bf16.mxu0 0
      %758 = vmatpush1.bf16.msra.mxu0 0
      %759 = vmatprep.subr.bf16.mxu0 0
      %760 = vmatpush1.bf16.msra.mxu0 0
      %761 = vmatprep.subr.bf16.mxu0 0
      %762 = vmatpush1.bf16.msra.mxu0 0
      %763 = vmatprep.subr.bf16.mxu0 0
      %764 = vmatpush1.bf16.msra.mxu0 0
      %765 = vmatprep.subr.bf16.mxu0 0
      %766 = vmatpush1.bf16.msra.mxu0 0
      %767 = vmatprep.subr.bf16.mxu0 0
      %768 = vmatpush1.bf16.msra.mxu0 0
      %769 = vmatprep.mubr.bf16.mxu0 0
      %770 = vmatmul.mubr.bf16.gmra.mrb[0].mxu0 %v559
      %v771 = vpop.f32.mrb[0].mxu0
      %v772 = vadd.f32 %v597, %v771
      %v773 = vpop.f32.mrb[0].mxu0
      %v774 = vadd.f32 %v601, %v773
      %v775 = vpop.f32.mrb[0].mxu0
      %v776 = vpop.f32.mrb[0].mxu0
      %777 = vdwg.mxu0
      %778 = vmatprep.subr.bf16.mxu0 0
      %779 = vmatpush1.bf16.msra.mxu0 %v691
      %780 = vmatprep.subr.bf16.mxu0 0
      %781 = vmatpush1.bf16.msra.mxu0 %v694
      %782 = vmatprep.subr.bf16.mxu0 0
      %783 = vmatpush1.bf16.msra.mxu0 %v697
      %784 = vmatprep.subr.bf16.mxu0 0
      %785 = vmatpush1.bf16.msra.mxu0 %v700
      %786 = vmatprep.subr.bf16.mxu0 0
      %787 = vmatpush1.bf16.msra.mxu0 %v703
      %788 = vmatprep.subr.bf16.mxu0 0
      %789 = vmatpush1.bf16.msra.mxu0 %v706
      %790 = vmatprep.subr.bf16.mxu0 0
      %791 = vmatpush1.bf16.msra.mxu0 %v709
      %792 = vmatprep.subr.bf16.mxu0 0
      %793 = vmatpush1.bf16.msra.mxu0 %v712
      %794 = vmatprep.subr.bf16.mxu0 0
      %795 = vmatpush1.bf16.msra.mxu0 0
      %796 = vmatprep.subr.bf16.mxu0 0
      %797 = vmatpush1.bf16.msra.mxu0 0
      %798 = vmatprep.subr.bf16.mxu0 0
      %799 = vmatpush1.bf16.msra.mxu0 0
      %800 = vmatprep.subr.bf16.mxu0 0
      %801 = vmatpush1.bf16.msra.mxu0 0
      %802 = vmatprep.subr.bf16.mxu0 0
      %803 = vmatpush1.bf16.msra.mxu0 0
      %804 = vmatprep.subr.bf16.mxu0 0
      %805 = vmatpush1.bf16.msra.mxu0 0
      %806 = vmatprep.subr.bf16.mxu0 0
      %807 = vmatpush1.bf16.msra.mxu0 0
      %808 = vmatprep.subr.bf16.mxu0 0
      %809 = vmatpush1.bf16.msra.mxu0 0
      %810 = vmatprep.mubr.bf16.mxu0 0
      %811 = vmatmul.mubr.bf16.gmra.mrb[0].mxu0 %v559
      %v812 = vpop.f32.mrb[0].mxu0
      %v813 = vadd.f32 %v605, %v812
      %v814 = vpop.f32.mrb[0].mxu0
      %v815 = vpop.f32.mrb[0].mxu0
      %v816 = vpop.f32.mrb[0].mxu0
      %817 = vdwg.mxu0
      %v818 = vpack.c.bf16 %v452, %v452
      %v819 = vld [vmem:[%s3] sm:$0xff]
      %v820 = vld [vmem:[%s3 + $0x8] sm:$0xf]
      %v821 = vld [vmem:[%s3 + $0xc] sm:$0xff]
      %v822 = vld [vmem:[%s3 + $0x14] sm:$0xf]
      %v823 = vld [vmem:[%s3 + $0x18] sm:$0xff]
      %v824 = vld [vmem:[%s3 + $0x20] sm:$0xf]
      %v825 = vld [vmem:[%s3 + $0x24] sm:$0xff]
      %v826 = vld [vmem:[%s3 + $0x2c] sm:$0xf]
      %v827 = vld [vmem:[%s3 + $0x30] sm:$0xff]
      %v828 = vld [vmem:[%s3 + $0x38] sm:$0xf]
      %v829 = vld [vmem:[%s3 + $0x3c] sm:$0xff]
      %v830 = vld [vmem:[%s3 + $0x44] sm:$0xf]
      %v831 = vld [vmem:[%s3 + $0x48] sm:$0xff]
      %v832 = vld [vmem:[%s3 + $0x50] sm:$0xf]
      %v833 = vld [vmem:[%s3 + $0x54] sm:$0xff]
      %v834 = vld [vmem:[%s3 + $0x5c] sm:$0xf]
      %v835 = vld [vmem:[%s3 + $0x60] sm:$0xff]
      %v836 = vld [vmem:[%s3 + $0x68] sm:$0xf]
      %v837 = vld [vmem:[%s3 + $0x6c] sm:$0xff]
      %v838 = vld [vmem:[%s3 + $0x74] sm:$0xf]
      %v839 = vld [vmem:[%s3 + $0x78] sm:$0xff]
      %v840 = vld [vmem:[%s3 + $0x80] sm:$0xf]
      %v841 = vld [vmem:[%s3 + $0x84] sm:$0xff]
      %v842 = vld [vmem:[%s3 + $0x8c] sm:$0xf]
      %v843 = vld [vmem:[%s3 + $0x90] sm:$0xff]
      %v844 = vld [vmem:[%s3 + $0x98] sm:$0xf]
      %v845 = vld [vmem:[%s3 + $0x9c] sm:$0xff]
      %v846 = vld [vmem:[%s3 + $0xa4] sm:$0xf]
      %v847 = vld [vmem:[%s3 + $0xa8] sm:$0xff]
      %v848 = vld [vmem:[%s3 + $0xb0] sm:$0xf]
      %v849 = vld [vmem:[%s3 + $0xb4] sm:$0xff]
      %v850 = vld [vmem:[%s3 + $0xbc] sm:$0xf]
      %v851 = vld [vmem:[%s4] sm:$0x7]
      %v853 = vlaneseq
      %v854 = vshrl.u32 %v853, 7
      %v855 = vsub.s32 0, %v854
      %v856 = vrot.slane %v851, %v855
      %v857 = vlaneseq
      %v858 = vshrl.u32 %v857, 7
      %v859 = vsub.s32 1, %v858
      %v860 = vrot.slane %v851, %v859
      %v861 = vlaneseq
      %v862 = vshrl.u32 %v861, 7
      %v863 = vsub.s32 2, %v862
      %v864 = vrot.slane %v851, %v863
      %v900 = vunpack.c.l.b16 %v819
      %v901 = vunpack.c.h.b16 %v819
      %v902 = vunpack.c.l.b16 %v820
      %v903 = vunpack.c.l.b16 %v821
      %v904 = vunpack.c.h.b16 %v821
      %v905 = vunpack.c.l.b16 %v822
      %v906 = vunpack.c.l.b16 %v823
      %v907 = vunpack.c.h.b16 %v823
      %v908 = vunpack.c.l.b16 %v824
      %v909 = vunpack.c.l.b16 %v825
      %v910 = vunpack.c.h.b16 %v825
      %v911 = vunpack.c.l.b16 %v826
      %v912 = vunpack.c.l.b16 %v827
      %v913 = vunpack.c.h.b16 %v827
      %v914 = vunpack.c.l.b16 %v828
      %v915 = vunpack.c.l.b16 %v829
      %v916 = vunpack.c.h.b16 %v829
      %v917 = vunpack.c.l.b16 %v830
      %v918 = vunpack.c.l.b16 %v831
      %v919 = vunpack.c.h.b16 %v831
      %v920 = vunpack.c.l.b16 %v832
      %v921 = vunpack.c.l.b16 %v833
      %v922 = vunpack.c.h.b16 %v833
      %v923 = vunpack.c.l.b16 %v834
      %v924 = vunpack.c.l.b16 %v835
      %v925 = vunpack.c.h.b16 %v835
      %v926 = vunpack.c.l.b16 %v836
      %v927 = vunpack.c.l.b16 %v837
      %v928 = vunpack.c.h.b16 %v837
      %v929 = vunpack.c.l.b16 %v838
      %v930 = vunpack.c.l.b16 %v839
      %v931 = vunpack.c.h.b16 %v839
      %v932 = vunpack.c.l.b16 %v840
      %v933 = vunpack.c.l.b16 %v841
      %v934 = vunpack.c.h.b16 %v841
      %v935 = vunpack.c.l.b16 %v842
      %v936 = vunpack.c.l.b16 %v843
      %v937 = vunpack.c.h.b16 %v843
      %v938 = vunpack.c.l.b16 %v844
      %v939 = vunpack.c.l.b16 %v845
      %v940 = vunpack.c.h.b16 %v845
      %v941 = vunpack.c.l.b16 %v846
      %v942 = vunpack.c.l.b16 %v847
      %v943 = vunpack.c.h.b16 %v847
      %v944 = vunpack.c.l.b16 %v848
      %v945 = vunpack.c.l.b16 %v849
      %v946 = vunpack.c.h.b16 %v849
      %v947 = vunpack.c.l.b16 %v850
      %v948 = vpack.c.b16 %v903, %v900
      %v949 = vpack.c.b16 %v904, %v901
      %v950 = vpack.c.b16 %v905, %v902
      %v951 = vpack.c.b16 %v909, %v906
      %v952 = vpack.c.b16 %v910, %v907
      %v953 = vpack.c.b16 %v911, %v908
      %v954 = vpack.c.b16 %v915, %v912
      %v955 = vpack.c.b16 %v916, %v913
      %v956 = vpack.c.b16 %v917, %v914
      %v957 = vpack.c.b16 %v921, %v918
      %v958 = vpack.c.b16 %v922, %v919
      %v959 = vpack.c.b16 %v923, %v920
      %v960 = vpack.c.b16 %v927, %v924
      %v961 = vpack.c.b16 %v928, %v925
      %v962 = vpack.c.b16 %v929, %v926
      %v963 = vpack.c.b16 %v933, %v930
      %v964 = vpack.c.b16 %v934, %v931
      %v965 = vpack.c.b16 %v935, %v932
      %v966 = vpack.c.b16 %v939, %v936
      %v967 = vpack.c.b16 %v940, %v937
      %v968 = vpack.c.b16 %v941, %v938
      %v969 = vpack.c.b16 %v945, %v942
      %v970 = vpack.c.b16 %v946, %v943
      %v971 = vpack.c.b16 %v947, %v944
      %996 = vmatprep.subr.bf16.mxu0 %v949
      %997 = vmatpush1.bf16.msra.mxu0 %v948
      %998 = vmatprep.subr.bf16.mxu0 %v952
      %999 = vmatpush1.bf16.msra.mxu0 %v951
      %1000 = vmatprep.subr.bf16.mxu0 %v955
      %1001 = vmatpush1.bf16.msra.mxu0 %v954
      %1002 = vmatprep.subr.bf16.mxu0 %v958
      %1003 = vmatpush1.bf16.msra.mxu0 %v957
      %1004 = vmatprep.subr.bf16.mxu0 %v961
      %1005 = vmatpush1.bf16.msra.mxu0 %v960
      %1006 = vmatprep.subr.bf16.mxu0 %v964
      %1007 = vmatpush1.bf16.msra.mxu0 %v963
      %1008 = vmatprep.subr.bf16.mxu0 %v967
      %1009 = vmatpush1.bf16.msra.mxu0 %v966
      %1010 = vmatprep.subr.bf16.mxu0 %v970
      %1011 = vmatpush1.bf16.msra.mxu0 %v969
      %1012 = vmatprep.subr.bf16.mxu0 0
      %1013 = vmatpush1.bf16.msra.mxu0 0
      %1014 = vmatprep.subr.bf16.mxu0 0
      %1015 = vmatpush1.bf16.msra.mxu0 0
      %1016 = vmatprep.subr.bf16.mxu0 0
      %1017 = vmatpush1.bf16.msra.mxu0 0
      %1018 = vmatprep.subr.bf16.mxu0 0
      %1019 = vmatpush1.bf16.msra.mxu0 0
      %1020 = vmatprep.subr.bf16.mxu0 0
      %1021 = vmatpush1.bf16.msra.mxu0 0
      %1022 = vmatprep.subr.bf16.mxu0 0
      %1023 = vmatpush1.bf16.msra.mxu0 0
      %1024 = vmatprep.subr.bf16.mxu0 0
      %1025 = vmatpush1.bf16.msra.mxu0 0
      %1026 = vmatprep.subr.bf16.mxu0 0
      %1027 = vmatpush1.bf16.msra.mxu0 0
      %1028 = vmatprep.mubr.bf16.mxu0 0
      %1029 = vmatmul.mubr.bf16.gmra.mrb[0].mxu0 %v818
      %v1030 = vpop.f32.mrb[0].mxu0
      %v1031 = vadd.f32 %v856, %v1030
      %v1032 = vpop.f32.mrb[0].mxu0
      %v1033 = vadd.f32 %v860, %v1032
      %v1034 = vpop.f32.mrb[0].mxu0
      %v1035 = vpop.f32.mrb[0].mxu0
      %1036 = vdwg.mxu0
      %1037 = vmatprep.subr.bf16.mxu0 0
      %1038 = vmatpush1.bf16.msra.mxu0 %v950
      %1039 = vmatprep.subr.bf16.mxu0 0
      %1040 = vmatpush1.bf16.msra.mxu0 %v953
      %1041 = vmatprep.subr.bf16.mxu0 0
      %1042 = vmatpush1.bf16.msra.mxu0 %v956
      %1043 = vmatprep.subr.bf16.mxu0 0
      %1044 = vmatpush1.bf16.msra.mxu0 %v959
      %1045 = vmatprep.subr.bf16.mxu0 0
      %1046 = vmatpush1.bf16.msra.mxu0 %v962
      %1047 = vmatprep.subr.bf16.mxu0 0
      %1048 = vmatpush1.bf16.msra.mxu0 %v965
      %1049 = vmatprep.subr.bf16.mxu0 0
      %1050 = vmatpush1.bf16.msra.mxu0 %v968
      %1051 = vmatprep.subr.bf16.mxu0 0
      %1052 = vmatpush1.bf16.msra.mxu0 %v971
      %1053 = vmatprep.subr.bf16.mxu0 0
      %1054 = vmatpush1.bf16.msra.mxu0 0
      %1055 = vmatprep.subr.bf16.mxu0 0
      %1056 = vmatpush1.bf16.msra.mxu0 0
      %1057 = vmatprep.subr.bf16.mxu0 0
      %1058 = vmatpush1.bf16.msra.mxu0 0
      %1059 = vmatprep.subr.bf16.mxu0 0
      %1060 = vmatpush1.bf16.msra.mxu0 0
      %1061 = vmatprep.subr.bf16.mxu0 0
      %1062 = vmatpush1.bf16.msra.mxu0 0
      %1063 = vmatprep.subr.bf16.mxu0 0
      %1064 = vmatpush1.bf16.msra.mxu0 0
      %1065 = vmatprep.subr.bf16.mxu0 0
      %1066 = vmatpush1.bf16.msra.mxu0 0
      %1067 = vmatprep.subr.bf16.mxu0 0
      %1068 = vmatpush1.bf16.msra.mxu0 0
      %1069 = vmatprep.mubr.bf16.mxu0 0
      %1070 = vmatmul.mubr.bf16.gmra.mrb[0].mxu0 %v818
      %v1071 = vpop.f32.mrb[0].mxu0
      %v1072 = vadd.f32 %v864, %v1071
      %v1073 = vpop.f32.mrb[0].mxu0
      %v1074 = vpop.f32.mrb[0].mxu0
      %v1075 = vpop.f32.mrb[0].mxu0
      %1076 = vdwg.mxu0
      %v1077 = vadd.f32 %v772, %v1031
      %v1078 = vxor.u32 %v1077, 2147483648
      %v1079 = vmul.f32 %v1078, 1.442695
      %v1080 = vpow.pop %v1079
      %v1081 = vadd.f32 %v1080, 1.0
      %v1082 = vrcp.pop %v1081
      %v1083 = vmul.f32 1.0, %v1082
      %v1084 = vadd.f32 %v774, %v1033
      %v1085 = vxor.u32 %v1084, 2147483648
      %v1086 = vmul.f32 %v1085, 1.442695
      %v1087 = vpow.pop %v1086
      %v1088 = vadd.f32 %v1087, 1.0
      %v1089 = vrcp.pop %v1088
      %v1090 = vmul.f32 1.0, %v1089
      %v1091 = vmul.f32 %v1083, %v1072
      %v1092 = vadd.f32 %v813, %v1091
      %v1093 = vtanh.pop %v1092
      %v1094 = vsub.f32 1.0, %v1090
      %v1095 = vmul.f32 %v1094, %v1093
      %v1096 = vmul.f32 %v1090, %v452
      %v1097 = vadd.f32 %v1095, %v1096
      %v1098 = vld [vmem:[%s425] sm:$0xf]
      %v1099 = vld [vmem:[%s425 + $0x4] sm:$0xf]
      %v1100 = vunpack.c.l.bf16 %v1098
      %v1101 = vunpack.c.l.bf16 %v1099
      %v1104 = vunpack.c.l.s4 1966171168
      %v1105 = vunpack.c.0.s8 %v1104
      %v1106 = vlaneseq
      %v1107 = vshrl.u32 %v1106, 7
      %v1108 = vsub.s32 %v1105, %v1107
      %v1109 = vrot.slane %v1097, %v1108
      %v1110 = vcombine.high %v1109, %v1109
      %v1112 = vunpack.c.l.s4 1966171168
      %v1113 = vunpack.c.0.s8 %v1112
      %v1114 = vlaneseq
      %v1115 = vshrl.u32 %v1114, 7
      %v1116 = vsub.s32 %v1113, %v1115
      %v1117 = vrot.slane %v1109, %v1116
      %v1119 = vunpack.c.l.s4 1966171168
      %v1120 = vunpack.c.0.s8 %v1119
      %v1121 = vlaneseq
      %v1122 = vshrl.u32 %v1121, 7
      %v1123 = vsub.s32 %v1120, %v1122
      %v1124 = vrot.slane %v1110, %v1123
      %v1125 = vlaneseq
      %v1126 = vshrl.u32 %v1125, 7
      %v1127 = vsub.s32 0, %v1126
      %v1128 = vrot.slane %v1117, %v1127
      %v1129 = vlaneseq
      %v1130 = vshrl.u32 %v1129, 7
      %v1131 = vsub.s32 0, %v1130
      %v1132 = vrot.slane %v1124, %v1131
      %v1135 = vmul.f32 %v1128, %v1100
      %v1136 = vmul.f32 %v1132, %v1101
      %1137 = vadd.xlane.f32.xlu0 %v1135
      %v1138 = vpop.xlane.xlu0 %1137
      %1139 = vadd.xlane.f32.xlu0 %v1136
      %v1140 = vpop.xlane.xlu0 %1139
      %v1141 = vld [vmem:[%s430] sm:$0x3]
      %vm1142 = vcmp.gt.f32.partialorder %v1141, 0.5
      %v1145 = vlaneseq
      %v1146 = vand.u32 %v1145, 127
      %v1147 = vlaneseq
      %v1148 = vshrl.u32 %v1147, 7
      %v1149 = vsub.s32 %v1146, %v1148
      %v1150 = vrot.slane %v1138, %v1149
      %v1151 = vlaneseq
      %v1152 = vshrl.u32 %v1151, 7
      %v1153 = vsub.s32 %v1146, %v1152
      %v1154 = vrot.slane %v1140, %v1153
      %vm1155 = vcmask 1041409
      %v1156 = vsel %vm1155, %v1154, %v1150
      %v1158 = vsel %vm1142, %v1156, -1e+30
      %vm1159 = vcmask 58368
      %v1160 = vsel %vm1159, %v1158, -inf
      %1161 = vmax.xlane.f32.xlu0 %v1160
      %v1162 = vpop.xlane.xlu0 %1161
      %v1163 = vsub.f32 %v1158, %v1162
      %v1164 = vmul.f32 %v1163, 1.442695
      %v1165 = vpow.pop %v1164
      %v1166 = vsel %vm1159, %v1165, 0.0
      %1167 = vadd.xlane.f32.xlu0 %v1166
      %v1168 = vpop.xlane.xlu0 %1167
      %v1169 = vrcp.pop %v1168
      %v1170 = vmul.f32 %v1165, %v1169
      %v1171 = vlaneseq
      %v1172 = vshrl.u32 %v1171, 7
      %v1173 = vsub.s32 0, %v1172
      %v1174 = vrot.slane %v1170, %v1173
      %1176 = vbcast.lane.b32.xlu0 %v1174, 256
      %v1177 = vpop.permute.xlu0 %1176
      %v1178 = vlaneseq
      %v1179 = vshrl.u32 %v1178, 7
      %v1180 = vsub.s32 1, %v1179
      %v1181 = vrot.slane %v1170, %v1180
      %1183 = vbcast.lane.b32.xlu0 %v1181, 256
      %v1184 = vpop.permute.xlu0 %1183
      %v1185 = vmul.f32 %v1177, %v1100
      %v1186 = vmul.f32 %v1184, %v1101
      %v1187 = vrot.slane %v1185, 4
      %v1188 = vadd.f32 %v1185, %v1187
      %v1189 = vrot.slane %v1188, 2
      %v1190 = vadd.f32 %v1188, %v1189
      %v1191 = vrot.slane %v1190, 1
      %v1192 = vadd.f32 %v1190, %v1191
      %v1193 = vrot.slane %v1186, 4
      %v1194 = vadd.f32 %v1186, %v1193
      %v1195 = vrot.slane %v1194, 2
      %v1196 = vadd.f32 %v1194, %v1195
      %v1197 = vrot.slane %v1196, 1
      %v1198 = vadd.f32 %v1196, %v1197
      %v1199 = vpack.c.bf16 %v1097, %v1097
      %v1200 = vld [vmem:[%s8] sm:$0xf]
      %v1201 = vld [vmem:[%s8 + $0x4] sm:$0xf]
      %v1202 = vld [vmem:[%s8 + $0x8] sm:$0xf]
      %v1203 = vld [vmem:[%s8 + $0xc] sm:$0xf]
      %v1204 = vld [vmem:[%s8 + $0x10] sm:$0xf]
      %v1205 = vld [vmem:[%s8 + $0x14] sm:$0xf]
      %v1206 = vld [vmem:[%s8 + $0x18] sm:$0xf]
      %v1207 = vld [vmem:[%s8 + $0x1c] sm:$0xf]
      %v1208 = vld [vmem:[%s8 + $0x20] sm:$0xf]
      %v1209 = vld [vmem:[%s8 + $0x24] sm:$0xf]
      %v1210 = vld [vmem:[%s8 + $0x28] sm:$0xf]
      %v1211 = vld [vmem:[%s8 + $0x2c] sm:$0xf]
      %v1212 = vld [vmem:[%s8 + $0x30] sm:$0xf]
      %v1213 = vld [vmem:[%s8 + $0x34] sm:$0xf]
      %v1214 = vld [vmem:[%s8 + $0x38] sm:$0xf]
      %v1215 = vld [vmem:[%s8 + $0x3c] sm:$0xf]
      %v1216 = vpack.c.bf16 %v1192, %v1192
      %v1217 = vpack.c.bf16 %v1198, %v1198
      %v1218 = vld [vmem:[%s9] sm:$0xf]
      %v1219 = vld [vmem:[%s9 + $0x4] sm:$0xf]
      %v1220 = vld [vmem:[%s9 + $0x8] sm:$0xf]
      %v1221 = vld [vmem:[%s9 + $0xc] sm:$0xf]
      %v1222 = vld [vmem:[%s9 + $0x10] sm:$0xf]
      %v1223 = vld [vmem:[%s9 + $0x14] sm:$0xf]
      %v1224 = vld [vmem:[%s9 + $0x18] sm:$0xf]
      %v1225 = vld [vmem:[%s9 + $0x1c] sm:$0xf]
      %v1226 = vld [vmem:[%s9 + $0x20] sm:$0xf]
      %v1227 = vld [vmem:[%s9 + $0x24] sm:$0xf]
      %v1228 = vld [vmem:[%s9 + $0x28] sm:$0xf]
      %v1229 = vld [vmem:[%s9 + $0x2c] sm:$0xf]
      %v1230 = vld [vmem:[%s9 + $0x30] sm:$0xf]
      %v1231 = vld [vmem:[%s9 + $0x34] sm:$0xf]
      %v1232 = vld [vmem:[%s9 + $0x38] sm:$0xf]
      %v1233 = vld [vmem:[%s9 + $0x3c] sm:$0xf]
      %v1236 = vunpack.c.l.b16 %v1216
      %v1237 = vunpack.c.l.b16 %v1217
      %v1238 = vsel %vm1155, %v1237, %v1236
      %v1239 = vpack.c.b16 %v1238, %v1238
      %v1257 = vunpack.c.l.b16 %v1218
      %v1258 = vunpack.c.l.b16 %v1219
      %v1259 = vunpack.c.l.b16 %v1220
      %v1260 = vunpack.c.l.b16 %v1221
      %v1261 = vunpack.c.l.b16 %v1222
      %v1262 = vunpack.c.l.b16 %v1223
      %v1263 = vunpack.c.l.b16 %v1224
      %v1264 = vunpack.c.l.b16 %v1225
      %v1265 = vunpack.c.l.b16 %v1226
      %v1266 = vunpack.c.l.b16 %v1227
      %v1267 = vunpack.c.l.b16 %v1228
      %v1268 = vunpack.c.l.b16 %v1229
      %v1269 = vunpack.c.l.b16 %v1230
      %v1270 = vunpack.c.l.b16 %v1231
      %v1271 = vunpack.c.l.b16 %v1232
      %v1272 = vunpack.c.l.b16 %v1233
      %v1273 = vpack.c.b16 %v1258, %v1257
      %v1274 = vpack.c.b16 %v1260, %v1259
      %v1275 = vpack.c.b16 %v1262, %v1261
      %v1276 = vpack.c.b16 %v1264, %v1263
      %v1277 = vpack.c.b16 %v1266, %v1265
      %v1278 = vpack.c.b16 %v1268, %v1267
      %v1279 = vpack.c.b16 %v1270, %v1269
      %v1280 = vpack.c.b16 %v1272, %v1271
      %1289 = vmatprep.subr.bf16.mxu0 0
      %1290 = vmatpush1.bf16.msra.mxu0 %v1273
      %1291 = vmatprep.subr.bf16.mxu0 0
      %1292 = vmatpush1.bf16.msra.mxu0 %v1274
      %1293 = vmatprep.subr.bf16.mxu0 0
      %1294 = vmatpush1.bf16.msra.mxu0 %v1275
      %1295 = vmatprep.subr.bf16.mxu0 0
      %1296 = vmatpush1.bf16.msra.mxu0 %v1276
      %1297 = vmatprep.subr.bf16.mxu0 0
      %1298 = vmatpush1.bf16.msra.mxu0 %v1277
      %1299 = vmatprep.subr.bf16.mxu0 0
      %1300 = vmatpush1.bf16.msra.mxu0 %v1278
      %1301 = vmatprep.subr.bf16.mxu0 0
      %1302 = vmatpush1.bf16.msra.mxu0 %v1279
      %1303 = vmatprep.subr.bf16.mxu0 0
      %1304 = vmatpush1.bf16.msra.mxu0 %v1280
      %1305 = vmatprep.subr.bf16.mxu0 0
      %1306 = vmatpush1.bf16.msra.mxu0 0
      %1307 = vmatprep.subr.bf16.mxu0 0
      %1308 = vmatpush1.bf16.msra.mxu0 0
      %1309 = vmatprep.subr.bf16.mxu0 0
      %1310 = vmatpush1.bf16.msra.mxu0 0
      %1311 = vmatprep.subr.bf16.mxu0 0
      %1312 = vmatpush1.bf16.msra.mxu0 0
      %1313 = vmatprep.subr.bf16.mxu0 0
      %1314 = vmatpush1.bf16.msra.mxu0 0
      %1315 = vmatprep.subr.bf16.mxu0 0
      %1316 = vmatpush1.bf16.msra.mxu0 0
      %1317 = vmatprep.subr.bf16.mxu0 0
      %1318 = vmatpush1.bf16.msra.mxu0 0
      %1319 = vmatprep.subr.bf16.mxu0 0
      %1320 = vmatpush1.bf16.msra.mxu0 0
      %1321 = vmatprep.mubr.bf16.mxu0 0
      %1322 = vmatmul.mubr.bf16.gmra.mrb[0].mxu0 %v1239
      %v1323 = vpop.f32.mrb[0].mxu0
      %v1324 = vadd.f32 0.0, %v1323
      %v1325 = vpop.f32.mrb[0].mxu0
      %v1326 = vpop.f32.mrb[0].mxu0
      %v1327 = vpop.f32.mrb[0].mxu0
      %1328 = vdwg.mxu0
      %v1345 = vunpack.c.l.b16 %v1200
      %v1346 = vunpack.c.l.b16 %v1201
      %v1347 = vunpack.c.l.b16 %v1202
      %v1348 = vunpack.c.l.b16 %v1203
      %v1349 = vunpack.c.l.b16 %v1204
      %v1350 = vunpack.c.l.b16 %v1205
      %v1351 = vunpack.c.l.b16 %v1206
      %v1352 = vunpack.c.l.b16 %v1207
      %v1353 = vunpack.c.l.b16 %v1208
      %v1354 = vunpack.c.l.b16 %v1209
      %v1355 = vunpack.c.l.b16 %v1210
      %v1356 = vunpack.c.l.b16 %v1211
      %v1357 = vunpack.c.l.b16 %v1212
      %v1358 = vunpack.c.l.b16 %v1213
      %v1359 = vunpack.c.l.b16 %v1214
      %v1360 = vunpack.c.l.b16 %v1215
      %v1361 = vpack.c.b16 %v1346, %v1345
      %v1362 = vpack.c.b16 %v1348, %v1347
      %v1363 = vpack.c.b16 %v1350, %v1349
      %v1364 = vpack.c.b16 %v1352, %v1351
      %v1365 = vpack.c.b16 %v1354, %v1353
      %v1366 = vpack.c.b16 %v1356, %v1355
      %v1367 = vpack.c.b16 %v1358, %v1357
      %v1368 = vpack.c.b16 %v1360, %v1359
      %1377 = vmatprep.subr.bf16.mxu0 0
      %1378 = vmatpush1.bf16.msra.mxu0 %v1361
      %1379 = vmatprep.subr.bf16.mxu0 0
      %1380 = vmatpush1.bf16.msra.mxu0 %v1362
      %1381 = vmatprep.subr.bf16.mxu0 0
      %1382 = vmatpush1.bf16.msra.mxu0 %v1363
      %1383 = vmatprep.subr.bf16.mxu0 0
      %1384 = vmatpush1.bf16.msra.mxu0 %v1364
      %1385 = vmatprep.subr.bf16.mxu0 0
      %1386 = vmatpush1.bf16.msra.mxu0 %v1365
      %1387 = vmatprep.subr.bf16.mxu0 0
      %1388 = vmatpush1.bf16.msra.mxu0 %v1366
      %1389 = vmatprep.subr.bf16.mxu0 0
      %1390 = vmatpush1.bf16.msra.mxu0 %v1367
      %1391 = vmatprep.subr.bf16.mxu0 0
      %1392 = vmatpush1.bf16.msra.mxu0 %v1368
      %1393 = vmatprep.subr.bf16.mxu0 0
      %1394 = vmatpush1.bf16.msra.mxu0 0
      %1395 = vmatprep.subr.bf16.mxu0 0
      %1396 = vmatpush1.bf16.msra.mxu0 0
      %1397 = vmatprep.subr.bf16.mxu0 0
      %1398 = vmatpush1.bf16.msra.mxu0 0
      %1399 = vmatprep.subr.bf16.mxu0 0
      %1400 = vmatpush1.bf16.msra.mxu0 0
      %1401 = vmatprep.subr.bf16.mxu0 0
      %1402 = vmatpush1.bf16.msra.mxu0 0
      %1403 = vmatprep.subr.bf16.mxu0 0
      %1404 = vmatpush1.bf16.msra.mxu0 0
      %1405 = vmatprep.subr.bf16.mxu0 0
      %1406 = vmatpush1.bf16.msra.mxu0 0
      %1407 = vmatprep.subr.bf16.mxu0 0
      %1408 = vmatpush1.bf16.msra.mxu0 0
      %1409 = vmatprep.mubr.bf16.mxu0 0
      %1410 = vmatmul.mubr.bf16.gmra.mrb[0].mxu0 %v1199
      %v1411 = vpop.f32.mrb[0].mxu0
      %v1412 = vadd.f32 %v1324, %v1411
      %v1413 = vpop.f32.mrb[0].mxu0
      %v1414 = vpop.f32.mrb[0].mxu0
      %v1415 = vpop.f32.mrb[0].mxu0
      %1416 = vdwg.mxu0
      %v1417 = vld [vmem:[%s10] sm:$0x1]
      %v1419 = vlaneseq
      %v1420 = vshrl.u32 %v1419, 7
      %v1421 = vsub.s32 0, %v1420
      %v1422 = vrot.slane %v1417, %v1421
      %v1424 = vadd.f32 %v1412, %v1422
      %1425 = vst [vmem:[%s437] sm:$0x3] %v1424
      %vm1426 = vcmask 1041408
      %v1427 = vsel %vm1426, %v1424, -inf
      %1428 = vmax.xlane.f32.xlu0 %v1427
      %v1429 = vpop.xlane.xlu0 %1428
      %vm1430 = vcmp.ge.f32.partialorder %v1424, %v1429
      %v1431 = vsel %vm1430, %v1146, 128
      %v1432 = vsel %vm1426, %v1431, 2147483647
      %v1433 = vand.u32 %v1432, 65535
      %v1434 = vshra.s32 %v1432, 16
      %v1435 = vcvt.s32.f32 %v1433
      %v1436 = vcvt.s32.f32 %v1434
      %1437 = vmin.xlane.f32.xlu0 %v1436
      %v1438 = vpop.xlane.xlu0 %1437
      %vm1439 = vcmp.eq.f32.partialorder %v1436, %v1438
      %v1440 = vsel %vm1439, %v1435, inf
      %1441 = vmin.xlane.f32.xlu0 %v1440
      %v1442 = vpop.xlane.xlu0 %1441
      %v1443 = vcvt.f32.s32 %v1442
      %v1444 = vcvt.f32.s32 %v1438
      %v1445 = vshll.u32 %v1444, 16
      %v1446 = vadd.s32 %v1445, %v1443
      %vm1447 = vcmp.eq.s32.totalorder %v1146, %v1446
      %v1448 = vsel %vm1447, 1, 0
      %v1449 = vcvt.s32.f32 %v1448
      %1450 = vst [vmem:[#allocation3] sm:$0x3] %v1449
      %1451 = vst [vmem:[#allocation2] sm:$0x3] %v1097
      %p1452 = scmp.lt.s32.totalorder %s27, 7
      %s1453 = scalar_select %p1452, %s27, 7
      %p1454 = scmp.lt.s32.totalorder %s26, 0
      %s1455 = scalar_select %p1454, %s26, 0
      %s1456 = sadd.s32 %s1455, %s1453
      %s1457 = smul.addr %s1456, 2
      %s1458 = scalar_lea.vmem %s11, %s1457
      // Predicated region
      $region69: #{seq2seq_forward.5} parent=63 // pred_check
        %p1459 = pneg %p300
      $region70: #{seq2seq_forward.5} parent=63 // pred_check_branch
        %1461 = sbr.rel (%p1459) target = $region72
      $region71: #{seq2seq_forward.5} parent=63 // pred_region
        _
      $region72: #{seq2seq_forward.5} parent=63 // pred_fallthru
        _
    $region64: #{seq2seq_forward.5} parent=5 // pred_fallthru
      _
    %p1462 = scmp.le.s32.totalorder 2, %s17
    // Predicated region
    $region73: #{seq2seq_forward.5} parent=5 // pred_check
      %p1463 = pneg %p1462
    $region74: #{seq2seq_forward.5} parent=5 // pred_check_branch
      %1465 = sbr.rel (%p1463) target = $region76
    $region75: #{seq2seq_forward.5} parent=5 // pred_region
      %s1466 = ssub.s32 %s17, 2
      // Predicated region
      $region77: #{seq2seq_forward.5} parent=75 // pred_check
        %p1467 = pneg %p306
      $region78: #{seq2seq_forward.5} parent=75 // pred_check_branch
        %1469 = sbr.rel (%p1467) target = $region80
      $region79: #{seq2seq_forward.5} parent=75 // pred_region
        %p1470 = scmp.lt.s32.totalorder %s29, 7
        %s1471 = scalar_select %p1470, %s29, 7
        %p1472 = scmp.lt.s32.totalorder %s28, 0
        %s1473 = scalar_select %p1472, %s28, 0
        %s1474 = sadd.s32 %s1473, %s1471
        %s1475 = smul.addr %s1474, 2
        %s1476 = scalar_lea.vmem %s11, %s1475
      $region80: #{seq2seq_forward.5} parent=75 // pred_fallthru
        _
    $region76: #{seq2seq_forward.5} parent=5 // pred_fallthru
      _
  $region6: #{seq2seq_forward.5} parent=0 // loop_footer
    %s21 = sadd.s32 1, %s17
  $region7: #{seq2seq_forward.5} parent=0 // loop_footer_branch
    %16 = sbr.rel target = $region3
  $region8: #{seq2seq_forward.5} parent=0 // loop_exit
    _

// kernel: seq2seq_forward.3
$region0: #{seq2seq_forward.3}
  #allocation0 [shape = 'u32[]', space=smem, size = 0x4, offset = 0x4, fixed_abs, tag = 'smem constant byte address 0x4 - core index']
  #allocation1 [shape = 'u32[144,128]{1,0:T(1,128)}', space=vmem, size = 0x12000, scoped, tag = 'internal scratch']
  #allocation2 [shape = 'f32[2,128]{1,0:T(2,128)}', space=vmem, size = 0x400, scoped, tag = 'scratch operand']
  #allocation3 [shape = 'f32[2,128]{1,0:T(2,128)}', space=vmem, size = 0x400, scoped, tag = 'scratch operand']
  #allocation4 [shape = 'f32[2,128]{1,0:T(2,128)}', space=vmem, size = 0x400, scoped, tag = 'scratch operand']
  #allocation5 [shape = 'f32[2,128]{1,0:T(2,128)}', space=vmem, size = 0x400, scoped, tag = 'scratch operand']
  %s0 = inlined_call_operand.vmem [shape: bf16[8,2,512], index: 0, kind: input, shape index: {}]
  %s1 = inlined_call_operand.vmem [shape: f32[8,2,1], index: 1, kind: input, shape index: {}, may-alias: {1,4}]
  %s2 = inlined_call_operand.vmem [shape: bf16[128,512], index: 2, kind: input, shape index: {}]
  %s3 = inlined_call_operand.vmem [shape: bf16[8,2,512], index: 3, kind: input, shape index: {}]
  %s4 = inlined_call_operand.vmem [shape: f32[8,2,1], index: 4, kind: input, shape index: {}, may-alias: {1,4}]
  %s5 = inlined_call_operand.vmem [shape: bf16[128,512], index: 5, kind: input, shape index: {}]
  %s6 = inlined_call_operand.vmem [shape: bf16[8,2,128], index: 6, kind: output, shape index: {0}]
  %s7 = inlined_call_operand.vmem [shape: bf16[8,2,128], index: 7, kind: output, shape index: {1}]
  %8 = xla_tuple %s6, %s7
  %s9 = sld [smem:[#allocation0]]
  $region46: #{seq2seq_forward.3} parent=0
    _
  %s11 = ssub.s32 1, %s9
  %s12 = scalar_select 0, %s11, %s9
  // Predicated region
  $region2: #{seq2seq_forward.3} parent=0 // pred_check
    _
  $region3: #{seq2seq_forward.3} parent=0 // pred_check_branch
    %14 = sbr.rel (0) target = $region5
  $region4: #{seq2seq_forward.3} parent=0 // pred_region
    _
  $region5: #{seq2seq_forward.3} parent=0 // pred_fallthru
    _
  // Predicated region
  $region6: #{seq2seq_forward.3} parent=0 // pred_check
    _
  $region7: #{seq2seq_forward.3} parent=0 // pred_check_branch
    %16 = sbr.rel (0) target = $region9
  $region8: #{seq2seq_forward.3} parent=0 // pred_region
    _
  $region9: #{seq2seq_forward.3} parent=0 // pred_fallthru
    _
  // Predicated region
  $region10: #{seq2seq_forward.3} parent=0 // pred_check
    _
  $region11: #{seq2seq_forward.3} parent=0 // pred_check_branch
    %18 = sbr.rel (0) target = $region13
  $region12: #{seq2seq_forward.3} parent=0 // pred_region
    _
  $region13: #{seq2seq_forward.3} parent=0 // pred_fallthru
    _
  // Predicated region
  $region14: #{seq2seq_forward.3} parent=0 // pred_check
    _
  $region15: #{seq2seq_forward.3} parent=0 // pred_check_branch
    %20 = sbr.rel (0) target = $region17
  $region16: #{seq2seq_forward.3} parent=0 // pred_region
    %s21 = ssub.s32 0, 0
    %s22 = smul.u32 8, %s21
    %p23 = scmp.lt.s32.totalorder %s22, 7
    %s24 = scalar_select %p23, %s22, 7
    %s25 = smul.addr %s24, 4
    %s26 = scalar_lea.vmem %s3, %s25
    %s27 = ssub.s32 0, 0
    %s28 = smul.u32 8, %s27
  $region17: #{seq2seq_forward.3} parent=0 // pred_fallthru
    _
  // Predicated region
  $region18: #{seq2seq_forward.3} parent=0 // pred_check
    _
  $region19: #{seq2seq_forward.3} parent=0 // pred_check_branch
    %30 = sbr.rel (0) target = $region21
  $region20: #{seq2seq_forward.3} parent=0 // pred_region
    %s31 = ssub.s32 0, 0
    %s32 = smul.u32 8, %s31
    %p33 = scmp.lt.s32.totalorder %s32, 7
    %s34 = scalar_select %p33, %s32, 7
    %s35 = smul.addr %s34, 2
    %s36 = scalar_lea.vmem %s4, %s35
    %s37 = ssub.s32 0, 0
    %s38 = smul.u32 8, %s37
  $region21: #{seq2seq_forward.3} parent=0 // pred_fallthru
    _
  // Predicated region
  $region22: #{seq2seq_forward.3} parent=0 // pred_check
    _
  $region23: #{seq2seq_forward.3} parent=0 // pred_check_branch
    %40 = sbr.rel (0) target = $region25
  $region24: #{seq2seq_forward.3} parent=0 // pred_region
    _
  $region25: #{seq2seq_forward.3} parent=0 // pred_fallthru
    _
  %s41 = ssub.s32 0, 0
  %s42 = smul.u32 8, %s41
  %p43 = scmp.lt.s32.totalorder %s42, 7
  %s44 = scalar_select %p43, %s42, 7
  %s45 = smul.addr %s44, 4
  %s46 = scalar_lea.vmem %s3, %s45
  %s47 = ssub.s32 0, 0
  %s48 = smul.u32 8, %s47
  %p49 = scmp.lt.s32.totalorder %s48, 7
  %s50 = scalar_select %p49, %s48, 7
  %s51 = smul.addr %s50, 2
  %s52 = scalar_lea.vmem %s4, %s51
  %s53 = ssub.s32 0, 0
  %s54 = smul.u32 8, %s53
  %p55 = scmp.lt.s32.totalorder %s54, 7
  %s56 = scalar_select %p55, %s54, 7
  %s57 = scalar_lea.vmem %s7, %s56
  %s58 = ssub.s32 0, 0
  %s59 = smul.u32 8, %s58
  %p60 = scmp.lt.s32.totalorder %s59, 7
  %s61 = scalar_select %p60, %s59, 7
  %s62 = smul.addr %s61, 4
  %s63 = scalar_lea.vmem %s3, %s62
  %s64 = ssub.s32 0, 0
  %s65 = smul.u32 8, %s64
  %s66 = ssub.s32 0, 0
  %s67 = smul.u32 8, %s66
  %p68 = scmp.lt.s32.totalorder %s67, 7
  %s69 = scalar_select %p68, %s67, 7
  %s70 = smul.addr %s69, 2
  %s71 = scalar_lea.vmem %s4, %s70
  %s72 = ssub.s32 0, 0
  %s73 = smul.u32 8, %s72
  %s74 = ssub.s32 0, 0
  %s75 = smul.u32 8, %s74
  %p76 = scmp.lt.s32.totalorder %s75, 7
  %s77 = scalar_select %p76, %s75, 7
  %s78 = scalar_lea.vmem %s7, %s77
  %s79 = ssub.s32 0, 0
  %s80 = smul.u32 8, %s79
  %p82 = scmp.eq.s32.totalorder 0, 0
  // Predicated region
  $region26: #{seq2seq_forward.3} parent=0 // pred_check
    %p83 = pneg %p82
  $region27: #{seq2seq_forward.3} parent=0 // pred_check_branch
    %85 = sbr.rel (%p83) target = $region29
  $region28: #{seq2seq_forward.3} parent=0 // pred_region
    %86 = vst [vmem:[#allocation2] sm:$0x3] 0.0
    %87 = vst [vmem:[#allocation3] sm:$0x3] 0.0
    %88 = vst [vmem:[#allocation4] sm:$0x3] 0.0
    %89 = vst [vmem:[#allocation5] sm:$0x3] 0.0
  $region29: #{seq2seq_forward.3} parent=0 // pred_fallthru
    _
  %v90 = vld [vmem:[#allocation2] sm:$0x3]
  %v91 = vld [vmem:[#allocation3] sm:$0x3]
  %v92 = vld [vmem:[#allocation4] sm:$0x3]
  %v93 = vld [vmem:[#allocation5] sm:$0x3]
  %v94 = vld [vmem:[%s0] sm:$0xf]
  %v95 = vpack.c.bf16 %v90, %v90
  %v96 = vld [vmem:[%s2] sm:$0xff]
  %v97 = vld [vmem:[%s2 + $0x8] sm:$0xff]
  %v98 = vld [vmem:[%s2 + $0x10] sm:$0xff]
  %v99 = vld [vmem:[%s2 + $0x18] sm:$0xff]
  %v100 = vld [vmem:[%s2 + $0x20] sm:$0xff]
  %v101 = vld [vmem:[%s2 + $0x28] sm:$0xff]
  %v102 = vld [vmem:[%s2 + $0x30] sm:$0xff]
  %v103 = vld [vmem:[%s2 + $0x38] sm:$0xff]
  %v104 = vld [vmem:[%s2 + $0x40] sm:$0xff]
  %v105 = vld [vmem:[%s2 + $0x48] sm:$0xff]
  %v106 = vld [vmem:[%s2 + $0x50] sm:$0xff]
  %v107 = vld [vmem:[%s2 + $0x58] sm:$0xff]
  %v108 = vld [vmem:[%s2 + $0x60] sm:$0xff]
  %v109 = vld [vmem:[%s2 + $0x68] sm:$0xff]
  %v110 = vld [vmem:[%s2 + $0x70] sm:$0xff]
  %v111 = vld [vmem:[%s2 + $0x78] sm:$0xff]
  %v112 = vld [vmem:[%s2 + $0x80] sm:$0xff]
  %v113 = vld [vmem:[%s2 + $0x88] sm:$0xff]
  %v114 = vld [vmem:[%s2 + $0x90] sm:$0xff]
  %v115 = vld [vmem:[%s2 + $0x98] sm:$0xff]
  %v116 = vld [vmem:[%s2 + $0xa0] sm:$0xff]
  %v117 = vld [vmem:[%s2 + $0xa8] sm:$0xff]
  %v118 = vld [vmem:[%s2 + $0xb0] sm:$0xff]
  %v119 = vld [vmem:[%s2 + $0xb8] sm:$0xff]
  %v120 = vld [vmem:[%s2 + $0xc0] sm:$0xff]
  %v121 = vld [vmem:[%s2 + $0xc8] sm:$0xff]
  %v122 = vld [vmem:[%s2 + $0xd0] sm:$0xff]
  %v123 = vld [vmem:[%s2 + $0xd8] sm:$0xff]
  %v124 = vld [vmem:[%s2 + $0xe0] sm:$0xff]
  %v125 = vld [vmem:[%s2 + $0xe8] sm:$0xff]
  %v126 = vld [vmem:[%s2 + $0xf0] sm:$0xff]
  %v127 = vld [vmem:[%s2 + $0xf8] sm:$0xff]
  %v160 = vunpack.c.l.b16 %v96
  %v161 = vunpack.c.h.b16 %v96
  %v162 = vunpack.c.l.b16 %v97
  %v163 = vunpack.c.h.b16 %v97
  %v164 = vunpack.c.l.b16 %v98
  %v165 = vunpack.c.h.b16 %v98
  %v166 = vunpack.c.l.b16 %v99
  %v167 = vunpack.c.h.b16 %v99
  %v168 = vunpack.c.l.b16 %v100
  %v169 = vunpack.c.h.b16 %v100
  %v170 = vunpack.c.l.b16 %v101
  %v171 = vunpack.c.h.b16 %v101
  %v172 = vunpack.c.l.b16 %v102
  %v173 = vunpack.c.h.b16 %v102
  %v174 = vunpack.c.l.b16 %v103
  %v175 = vunpack.c.h.b16 %v103
  %v176 = vunpack.c.l.b16 %v104
  %v177 = vunpack.c.h.b16 %v104
  %v178 = vunpack.c.l.b16 %v105
  %v179 = vunpack.c.h.b16 %v105
  %v180 = vunpack.c.l.b16 %v106
  %v181 = vunpack.c.h.b16 %v106
  %v182 = vunpack.c.l.b16 %v107
  %v183 = vunpack.c.h.b16 %v107
  %v184 = vunpack.c.l.b16 %v108
  %v185 = vunpack.c.h.b16 %v108
  %v186 = vunpack.c.l.b16 %v109
  %v187 = vunpack.c.h.b16 %v109
  %v188 = vunpack.c.l.b16 %v110
  %v189 = vunpack.c.h.b16 %v110
  %v190 = vunpack.c.l.b16 %v111
  %v191 = vunpack.c.h.b16 %v111
  %v192 = vunpack.c.l.b16 %v112
  %v193 = vunpack.c.h.b16 %v112
  %v194 = vunpack.c.l.b16 %v113
  %v195 = vunpack.c.h.b16 %v113
  %v196 = vunpack.c.l.b16 %v114
  %v197 = vunpack.c.h.b16 %v114
  %v198 = vunpack.c.l.b16 %v115
  %v199 = vunpack.c.h.b16 %v115
  %v200 = vunpack.c.l.b16 %v116
  %v201 = vunpack.c.h.b16 %v116
  %v202 = vunpack.c.l.b16 %v117
  %v203 = vunpack.c.h.b16 %v117
  %v204 = vunpack.c.l.b16 %v118
  %v205 = vunpack.c.h.b16 %v118
  %v206 = vunpack.c.l.b16 %v119
  %v207 = vunpack.c.h.b16 %v119
  %v208 = vunpack.c.l.b16 %v120
  %v209 = vunpack.c.h.b16 %v120
  %v210 = vunpack.c.l.b16 %v121
  %v211 = vunpack.c.h.b16 %v121
  %v212 = vunpack.c.l.b16 %v122
  %v213 = vunpack.c.h.b16 %v122
  %v214 = vunpack.c.l.b16 %v123
  %v215 = vunpack.c.h.b16 %v123
  %v216 = vunpack.c.l.b16 %v124
  %v217 = vunpack.c.h.b16 %v124
  %v218 = vunpack.c.l.b16 %v125
  %v219 = vunpack.c.h.b16 %v125
  %v220 = vunpack.c.l.b16 %v126
  %v221 = vunpack.c.h.b16 %v126
  %v222 = vunpack.c.l.b16 %v127
  %v223 = vunpack.c.h.b16 %v127
  %v224 = vpack.c.b16 %v164, %v160
  %v225 = vpack.c.b16 %v165, %v161
  %v226 = vpack.c.b16 %v166, %v162
  %v227 = vpack.c.b16 %v167, %v163
  %v228 = vpack.c.b16 %v172, %v168
  %v229 = vpack.c.b16 %v173, %v169
  %v230 = vpack.c.b16 %v174, %v170
  %v231 = vpack.c.b16 %v175, %v171
  %v232 = vpack.c.b16 %v180, %v176
  %v233 = vpack.c.b16 %v181, %v177
  %v234 = vpack.c.b16 %v182, %v178
  %v235 = vpack.c.b16 %v183, %v179
  %v236 = vpack.c.b16 %v188, %v184
  %v237 = vpack.c.b16 %v189, %v185
  %v238 = vpack.c.b16 %v190, %v186
  %v239 = vpack.c.b16 %v191, %v187
  %v240 = vpack.c.b16 %v196, %v192
  %v241 = vpack.c.b16 %v197, %v193
  %v242 = vpack.c.b16 %v198, %v194
  %v243 = vpack.c.b16 %v199, %v195
  %v244 = vpack.c.b16 %v204, %v200
  %v245 = vpack.c.b16 %v205, %v201
  %v246 = vpack.c.b16 %v206, %v202
  %v247 = vpack.c.b16 %v207, %v203
  %v248 = vpack.c.b16 %v212, %v208
  %v249 = vpack.c.b16 %v213, %v209
  %v250 = vpack.c.b16 %v214, %v210
  %v251 = vpack.c.b16 %v215, %v211
  %v252 = vpack.c.b16 %v220, %v216
  %v253 = vpack.c.b16 %v221, %v217
  %v254 = vpack.c.b16 %v222, %v218
  %v255 = vpack.c.b16 %v223, %v219
  %288 = vmatprep.subr.bf16.mxu0 %v225
  %289 = vmatpush1.bf16.msra.mxu0 %v224
  %290 = vmatprep.subr.bf16.mxu0 %v229
  %291 = vmatpush1.bf16.msra.mxu0 %v228
  %292 = vmatprep.subr.bf16.mxu0 %v233
  %293 = vmatpush1.bf16.msra.mxu0 %v232
  %294 = vmatprep.subr.bf16.mxu0 %v237
  %295 = vmatpush1.bf16.msra.mxu0 %v236
  %296 = vmatprep.subr.bf16.mxu0 %v241
  %297 = vmatpush1.bf16.msra.mxu0 %v240
  %298 = vmatprep.subr.bf16.mxu0 %v245
  %299 = vmatpush1.bf16.msra.mxu0 %v244
  %300 = vmatprep.subr.bf16.mxu0 %v249
  %301 = vmatpush1.bf16.msra.mxu0 %v248
  %302 = vmatprep.subr.bf16.mxu0 %v253
  %303 = vmatpush1.bf16.msra.mxu0 %v252
  %304 = vmatprep.subr.bf16.mxu0 0
  %305 = vmatpush1.bf16.msra.mxu0 0
  %306 = vmatprep.subr.bf16.mxu0 0
  %307 = vmatpush1.bf16.msra.mxu0 0
  %308 = vmatprep.subr.bf16.mxu0 0
  %309 = vmatpush1.bf16.msra.mxu0 0
  %310 = vmatprep.subr.bf16.mxu0 0
  %311 = vmatpush1.bf16.msra.mxu0 0
  %312 = vmatprep.subr.bf16.mxu0 0
  %313 = vmatpush1.bf16.msra.mxu0 0
  %314 = vmatprep.subr.bf16.mxu0 0
  %315 = vmatpush1.bf16.msra.mxu0 0
  %316 = vmatprep.subr.bf16.mxu0 0
  %317 = vmatpush1.bf16.msra.mxu0 0
  %318 = vmatprep.subr.bf16.mxu0 0
  %319 = vmatpush1.bf16.msra.mxu0 0
  %320 = vmatprep.mubr.bf16.mxu0 0
  %321 = vmatmul.mubr.bf16.gmra.mrb[0].mxu0 %v95
  %v322 = vpop.f32.mrb[0].mxu0
  %v323 = vadd.f32 0.0, %v322
  %v324 = vpop.f32.mrb[0].mxu0
  %v325 = vadd.f32 0.0, %v324
  %v326 = vpop.f32.mrb[0].mxu0
  %v327 = vpop.f32.mrb[0].mxu0
  %328 = vdwg.mxu0
  %329 = vmatprep.subr.bf16.mxu0 %v227
  %330 = vmatpush1.bf16.msra.mxu0 %v226
  %331 = vmatprep.subr.bf16.mxu0 %v231
  %332 = vmatpush1.bf16.msra.mxu0 %v230
  %333 = vmatprep.subr.bf16.mxu0 %v235
  %334 = vmatpush1.bf16.msra.mxu0 %v234
  %335 = vmatprep.subr.bf16.mxu0 %v239
  %336 = vmatpush1.bf16.msra.mxu0 %v238
  %337 = vmatprep.subr.bf16.mxu0 %v243
  %338 = vmatpush1.bf16.msra.mxu0 %v242
  %339 = vmatprep.subr.bf16.mxu0 %v247
  %340 = vmatpush1.bf16.msra.mxu0 %v246
  %341 = vmatprep.subr.bf16.mxu0 %v251
  %342 = vmatpush1.bf16.msra.mxu0 %v250
  %343 = vmatprep.subr.bf16.mxu0 %v255
  %344 = vmatpush1.bf16.msra.mxu0 %v254
  %345 = vmatprep.subr.bf16.mxu0 0
  %346 = vmatpush1.bf16.msra.mxu0 0
  %347 = vmatprep.subr.bf16.mxu0 0
  %348 = vmatpush1.bf16.msra.mxu0 0
  %349 = vmatprep.subr.bf16.mxu0 0
  %350 = vmatpush1.bf16.msra.mxu0 0
  %351 = vmatprep.subr.bf16.mxu0 0
  %352 = vmatpush1.bf16.msra.mxu0 0
  %353 = vmatprep.subr.bf16.mxu0 0
  %354 = vmatpush1.bf16.msra.mxu0 0
  %355 = vmatprep.subr.bf16.mxu0 0
  %356 = vmatpush1.bf16.msra.mxu0 0
  %357 = vmatprep.subr.bf16.mxu0 0
  %358 = vmatpush1.bf16.msra.mxu0 0
  %359 = vmatprep.subr.bf16.mxu0 0
  %360 = vmatpush1.bf16.msra.mxu0 0
  %361 = vmatprep.mubr.bf16.mxu0 0
  %362 = vmatmul.mubr.bf16.gmra.mrb[0].mxu0 %v95
  %v363 = vpop.f32.mrb[0].mxu0
  %v364 = vadd.f32 0.0, %v363
  %v365 = vpop.f32.mrb[0].mxu0
  %v366 = vadd.f32 0.0, %v365
  %v367 = vpop.f32.mrb[0].mxu0
  %v368 = vpop.f32.mrb[0].mxu0
  %369 = vdwg.mxu0
  %v370 = vunpack.c.l.bf16 %v94
  %v375 = vcombine.low %v323, %v325
  %v376 = vcombine.low %v364, %v366
  %v378 = vunpack.c.l.s4 1983009808
  %v379 = vunpack.c.0.s8 %v378
  %v380 = vlaneseq
  %v381 = vshrl.u32 %v380, 7
  %v382 = vsub.s32 %v379, %v381
  %v383 = vrot.slane %v375, %v382
  %v385 = vunpack.c.l.s4 1983009808
  %v386 = vunpack.c.0.s8 %v385
  %v387 = vlaneseq
  %v388 = vshrl.u32 %v387, 7
  %v389 = vsub.s32 %v386, %v388
  %v390 = vrot.slane %v376, %v389
  %v391 = vcombine.low %v383, %v390
  %v393 = vadd.f32 %v370, %v391
  %s394 = scalar_lea.vmem %s63, 28
  %v395 = vld [vmem:[%s394] sm:$0xf]
  %v396 = vpack.c.bf16 %v92, %v92
  %v397 = vld [vmem:[%s5] sm:$0xff]
  %v398 = vld [vmem:[%s5 + $0x8] sm:$0xff]
  %v399 = vld [vmem:[%s5 + $0x10] sm:$0xff]
  %v400 = vld [vmem:[%s5 + $0x18] sm:$0xff]
  %v401 = vld [vmem:[%s5 + $0x20] sm:$0xff]
  %v402 = vld [vmem:[%s5 + $0x28] sm:$0xff]
  %v403 = vld [vmem:[%s5 + $0x30] sm:$0xff]
  %v404 = vld [vmem:[%s5 + $0x38] sm:$0xff]
  %v405 = vld [vmem:[%s5 + $0x40] sm:$0xff]
  %v406 = vld [vmem:[%s5 + $0x48] sm:$0xff]
  %v407 = vld [vmem:[%s5 + $0x50] sm:$0xff]
  %v408 = vld [vmem:[%s5 + $0x58] sm:$0xff]
  %v409 = vld [vmem:[%s5 + $0x60] sm:$0xff]
  %v410 = vld [vmem:[%s5 + $0x68] sm:$0xff]
  %v411 = vld [vmem:[%s5 + $0x70] sm:$0xff]
  %v412 = vld [vmem:[%s5 + $0x78] sm:$0xff]
  %v413 = vld [vmem:[%s5 + $0x80] sm:$0xff]
  %v414 = vld [vmem:[%s5 + $0x88] sm:$0xff]
  %v415 = vld [vmem:[%s5 + $0x90] sm:$0xff]
  %v416 = vld [vmem:[%s5 + $0x98] sm:$0xff]
  %v417 = vld [vmem:[%s5 + $0xa0] sm:$0xff]
  %v418 = vld [vmem:[%s5 + $0xa8] sm:$0xff]
  %v419 = vld [vmem:[%s5 + $0xb0] sm:$0xff]
  %v420 = vld [vmem:[%s5 + $0xb8] sm:$0xff]
  %v421 = vld [vmem:[%s5 + $0xc0] sm:$0xff]
  %v422 = vld [vmem:[%s5 + $0xc8] sm:$0xff]
  %v423 = vld [vmem:[%s5 + $0xd0] sm:$0xff]
  %v424 = vld [vmem:[%s5 + $0xd8] sm:$0xff]
  %v425 = vld [vmem:[%s5 + $0xe0] sm:$0xff]
  %v426 = vld [vmem:[%s5 + $0xe8] sm:$0xff]
  %v427 = vld [vmem:[%s5 + $0xf0] sm:$0xff]
  %v428 = vld [vmem:[%s5 + $0xf8] sm:$0xff]
  %v461 = vunpack.c.l.b16 %v397
  %v462 = vunpack.c.h.b16 %v397
  %v463 = vunpack.c.l.b16 %v398
  %v464 = vunpack.c.h.b16 %v398
  %v465 = vunpack.c.l.b16 %v399
  %v466 = vunpack.c.h.b16 %v399
  %v467 = vunpack.c.l.b16 %v400
  %v468 = vunpack.c.h.b16 %v400
  %v469 = vunpack.c.l.b16 %v401
  %v470 = vunpack.c.h.b16 %v401
  %v471 = vunpack.c.l.b16 %v402
  %v472 = vunpack.c.h.b16 %v402
  %v473 = vunpack.c.l.b16 %v403
  %v474 = vunpack.c.h.b16 %v403
  %v475 = vunpack.c.l.b16 %v404
  %v476 = vunpack.c.h.b16 %v404
  %v477 = vunpack.c.l.b16 %v405
  %v478 = vunpack.c.h.b16 %v405
  %v479 = vunpack.c.l.b16 %v406
  %v480 = vunpack.c.h.b16 %v406
  %v481 = vunpack.c.l.b16 %v407
  %v482 = vunpack.c.h.b16 %v407
  %v483 = vunpack.c.l.b16 %v408
  %v484 = vunpack.c.h.b16 %v408
  %v485 = vunpack.c.l.b16 %v409
  %v486 = vunpack.c.h.b16 %v409
  %v487 = vunpack.c.l.b16 %v410
  %v488 = vunpack.c.h.b16 %v410
  %v489 = vunpack.c.l.b16 %v411
  %v490 = vunpack.c.h.b16 %v411
  %v491 = vunpack.c.l.b16 %v412
  %v492 = vunpack.c.h.b16 %v412
  %v493 = vunpack.c.l.b16 %v413
  %v494 = vunpack.c.h.b16 %v413
  %v495 = vunpack.c.l.b16 %v414
  %v496 = vunpack.c.h.b16 %v414
  %v497 = vunpack.c.l.b16 %v415
  %v498 = vunpack.c.h.b16 %v415
  %v499 = vunpack.c.l.b16 %v416
  %v500 = vunpack.c.h.b16 %v416
  %v501 = vunpack.c.l.b16 %v417
  %v502 = vunpack.c.h.b16 %v417
  %v503 = vunpack.c.l.b16 %v418
  %v504 = vunpack.c.h.b16 %v418
  %v505 = vunpack.c.l.b16 %v419
  %v506 = vunpack.c.h.b16 %v419
  %v507 = vunpack.c.l.b16 %v420
  %v508 = vunpack.c.h.b16 %v420
  %v509 = vunpack.c.l.b16 %v421
  %v510 = vunpack.c.h.b16 %v421
  %v511 = vunpack.c.l.b16 %v422
  %v512 = vunpack.c.h.b16 %v422
  %v513 = vunpack.c.l.b16 %v423
  %v514 = vunpack.c.h.b16 %v423
  %v515 = vunpack.c.l.b16 %v424
  %v516 = vunpack.c.h.b16 %v424
  %v517 = vunpack.c.l.b16 %v425
  %v518 = vunpack.c.h.b16 %v425
  %v519 = vunpack.c.l.b16 %v426
  %v520 = vunpack.c.h.b16 %v426
  %v521 = vunpack.c.l.b16 %v427
  %v522 = vunpack.c.h.b16 %v427
  %v523 = vunpack.c.l.b16 %v428
  %v524 = vunpack.c.h.b16 %v428
  %v525 = vpack.c.b16 %v465, %v461
  %v526 = vpack.c.b16 %v466, %v462
  %v527 = vpack.c.b16 %v467, %v463
  %v528 = vpack.c.b16 %v468, %v464
  %v529 = vpack.c.b16 %v473, %v469
  %v530 = vpack.c.b16 %v474, %v470
  %v531 = vpack.c.b16 %v475, %v471
  %v532 = vpack.c.b16 %v476, %v472
  %v533 = vpack.c.b16 %v481, %v477
  %v534 = vpack.c.b16 %v482, %v478
  %v535 = vpack.c.b16 %v483, %v479
  %v536 = vpack.c.b16 %v484, %v480
  %v537 = vpack.c.b16 %v489, %v485
  %v538 = vpack.c.b16 %v490, %v486
  %v539 = vpack.c.b16 %v491, %v487
  %v540 = vpack.c.b16 %v492, %v488
  %v541 = vpack.c.b16 %v497, %v493
  %v542 = vpack.c.b16 %v498, %v494
  %v543 = vpack.c.b16 %v499, %v495
  %v544 = vpack.c.b16 %v500, %v496
  %v545 = vpack.c.b16 %v505, %v501
  %v546 = vpack.c.b16 %v506, %v502
  %v547 = vpack.c.b16 %v507, %v503
  %v548 = vpack.c.b16 %v508, %v504
  %v549 = vpack.c.b16 %v513, %v509
  %v550 = vpack.c.b16 %v514, %v510
  %v551 = vpack.c.b16 %v515, %v511
  %v552 = vpack.c.b16 %v516, %v512
  %v553 = vpack.c.b16 %v521, %v517
  %v554 = vpack.c.b16 %v522, %v518
  %v555 = vpack.c.b16 %v523, %v519
  %v556 = vpack.c.b16 %v524, %v520
  %589 = vmatprep.subr.bf16.mxu0 %v526
  %590 = vmatpush1.bf16.msra.mxu0 %v525
  %591 = vmatprep.subr.bf16.mxu0 %v530
  %592 = vmatpush1.bf16.msra.mxu0 %v529
  %593 = vmatprep.subr.bf16.mxu0 %v534
  %594 = vmatpush1.bf16.msra.mxu0 %v533
  %595 = vmatprep.subr.bf16.mxu0 %v538
  %596 = vmatpush1.bf16.msra.mxu0 %v537
  %597 = vmatprep.subr.bf16.mxu0 %v542
  %598 = vmatpush1.bf16.msra.mxu0 %v541
  %599 = vmatprep.subr.bf16.mxu0 %v546
  %600 = vmatpush1.bf16.msra.mxu0 %v545
  %601 = vmatprep.subr.bf16.mxu0 %v550
  %602 = vmatpush1.bf16.msra.mxu0 %v549
  %603 = vmatprep.subr.bf16.mxu0 %v554
  %604 = vmatpush1.bf16.msra.mxu0 %v553
  %605 = vmatprep.subr.bf16.mxu0 0
  %606 = vmatpush1.bf16.msra.mxu0 0
  %607 = vmatprep.subr.bf16.mxu0 0
  %608 = vmatpush1.bf16.msra.mxu0 0
  %609 = vmatprep.subr.bf16.mxu0 0
  %610 = vmatpush1.bf16.msra.mxu0 0
  %611 = vmatprep.subr.bf16.mxu0 0
  %612 = vmatpush1.bf16.msra.mxu0 0
  %613 = vmatprep.subr.bf16.mxu0 0
  %614 = vmatpush1.bf16.msra.mxu0 0
  %615 = vmatprep.subr.bf16.mxu0 0
  %616 = vmatpush1.bf16.msra.mxu0 0
  %617 = vmatprep.subr.bf16.mxu0 0
  %618 = vmatpush1.bf16.msra.mxu0 0
  %619 = vmatprep.subr.bf16.mxu0 0
  %620 = vmatpush1.bf16.msra.mxu0 0
  %621 = vmatprep.mubr.bf16.mxu0 0
  %622 = vmatmul.mubr.bf16.gmra.mrb[0].mxu0 %v396
  %v623 = vpop.f32.mrb[0].mxu0
  %v624 = vadd.f32 0.0, %v623
  %v625 = vpop.f32.mrb[0].mxu0
  %v626 = vadd.f32 0.0, %v625
  %v627 = vpop.f32.mrb[0].mxu0
  %v628 = vpop.f32.mrb[0].mxu0
  %629 = vdwg.mxu0
  %630 = vmatprep.subr.bf16.mxu0 %v528
  %631 = vmatpush1.bf16.msra.mxu0 %v527
  %632 = vmatprep.subr.bf16.mxu0 %v532
  %633 = vmatpush1.bf16.msra.mxu0 %v531
  %634 = vmatprep.subr.bf16.mxu0 %v536
  %635 = vmatpush1.bf16.msra.mxu0 %v535
  %636 = vmatprep.subr.bf16.mxu0 %v540
  %637 = vmatpush1.bf16.msra.mxu0 %v539
  %638 = vmatprep.subr.bf16.mxu0 %v544
  %639 = vmatpush1.bf16.msra.mxu0 %v543
  %640 = vmatprep.subr.bf16.mxu0 %v548
  %641 = vmatpush1.bf16.msra.mxu0 %v547
  %642 = vmatprep.subr.bf16.mxu0 %v552
  %643 = vmatpush1.bf16.msra.mxu0 %v551
  %644 = vmatprep.subr.bf16.mxu0 %v556
  %645 = vmatpush1.bf16.msra.mxu0 %v555
  %646 = vmatprep.subr.bf16.mxu0 0
  %647 = vmatpush1.bf16.msra.mxu0 0
  %648 = vmatprep.subr.bf16.mxu0 0
  %649 = vmatpush1.bf16.msra.mxu0 0
  %650 = vmatprep.subr.bf16.mxu0 0
  %651 = vmatpush1.bf16.msra.mxu0 0
  %652 = vmatprep.subr.bf16.mxu0 0
  %653 = vmatpush1.bf16.msra.mxu0 0
  %654 = vmatprep.subr.bf16.mxu0 0
  %655 = vmatpush1.bf16.msra.mxu0 0
  %656 = vmatprep.subr.bf16.mxu0 0
  %657 = vmatpush1.bf16.msra.mxu0 0
  %658 = vmatprep.subr.bf16.mxu0 0
  %659 = vmatpush1.bf16.msra.mxu0 0
  %660 = vmatprep.subr.bf16.mxu0 0
  %661 = vmatpush1.bf16.msra.mxu0 0
  %662 = vmatprep.mubr.bf16.mxu0 0
  %663 = vmatmul.mubr.bf16.gmra.mrb[0].mxu0 %v396
  %v664 = vpop.f32.mrb[0].mxu0
  %v665 = vadd.f32 0.0, %v664
  %v666 = vpop.f32.mrb[0].mxu0
  %v667 = vadd.f32 0.0, %v666
  %v668 = vpop.f32.mrb[0].mxu0
  %v669 = vpop.f32.mrb[0].mxu0
  %670 = vdwg.mxu0
  %v671 = vunpack.c.l.bf16 %v395
  %v676 = vcombine.low %v624, %v626
  %v677 = vcombine.low %v665, %v667
  %v679 = vunpack.c.l.s4 1983009808
  %v680 = vunpack.c.0.s8 %v679
  %v681 = vlaneseq
  %v682 = vshrl.u32 %v681, 7
  %v683 = vsub.s32 %v680, %v682
  %v684 = vrot.slane %v676, %v683
  %v686 = vunpack.c.l.s4 1983009808
  %v687 = vunpack.c.0.s8 %v686
  %v688 = vlaneseq
  %v689 = vshrl.u32 %v688, 7
  %v690 = vsub.s32 %v687, %v689
  %v691 = vrot.slane %v677, %v690
  %v692 = vcombine.low %v684, %v691
  %v694 = vadd.f32 %v671, %v692
  %v695 = vld [vmem:[%s1] sm:$0x3]
  %v696 = vxor.u32 %v393, 2147483648
  %v697 = vmul.f32 %v696, 1.442695
  %v698 = vpow.pop %v697
  %v699 = vadd.f32 %v698, 1.0
  %v700 = vrcp.pop %v699
  %v701 = vmul.f32 1.0, %v700
  %v703 = vrot.slane %v393, 2
  %v705 = vxor.u32 %v703, 2147483648
  %v706 = vmul.f32 %v705, 1.442695
  %v707 = vpow.pop %v706
  %v708 = vadd.f32 %v707, 1.0
  %v709 = vrcp.pop %v708
  %v710 = vmul.f32 1.0, %v709
  %v711 = vrot.slane %v393, 4
  %v713 = vtanh.pop %v711
  %v714 = vrot.slane %v393, 6
  %v716 = vxor.u32 %v714, 2147483648
  %v717 = vmul.f32 %v716, 1.442695
  %v718 = vpow.pop %v717
  %v719 = vadd.f32 %v718, 1.0
  %v720 = vrcp.pop %v719
  %v721 = vmul.f32 1.0, %v720
  %v722 = vmul.f32 %v710, %v91
  %v723 = vmul.f32 %v701, %v713
  %v724 = vadd.f32 %v722, %v723
  %v725 = vtanh.pop %v724
  %v726 = vmul.f32 %v721, %v725
  %728 = vset.pattern.permute.xlu0 0
  %729 = vperm.xlu0 %728, %v695
  %v730 = vpop.permute.xlu0 %729
  %v732 = vmul.f32 %v730, %v726
  %v733 = vsub.f32 1.0, %v695
  %735 = vset.pattern.permute.xlu0 0
  %736 = vperm.xlu0 %735, %v733
  %v737 = vpop.permute.xlu0 %736
  %v739 = vmul.f32 %v737, %v90
  %v740 = vadd.f32 %v732, %v739
  %v741 = vmul.f32 %v730, %v724
  %v742 = vmul.f32 %v737, %v91
  %v743 = vadd.f32 %v741, %v742
  %s744 = scalar_lea.vmem %s71, 14
  %v745 = vld [vmem:[%s744] sm:$0x3]
  %v746 = vxor.u32 %v694, 2147483648
  %v747 = vmul.f32 %v746, 1.442695
  %v748 = vpow.pop %v747
  %v749 = vadd.f32 %v748, 1.0
  %v750 = vrcp.pop %v749
  %v751 = vmul.f32 1.0, %v750
  %v753 = vrot.slane %v694, 2
  %v755 = vxor.u32 %v753, 2147483648
  %v756 = vmul.f32 %v755, 1.442695
  %v757 = vpow.pop %v756
  %v758 = vadd.f32 %v757, 1.0
  %v759 = vrcp.pop %v758
  %v760 = vmul.f32 1.0, %v759
  %v761 = vrot.slane %v694, 4
  %v763 = vtanh.pop %v761
  %v764 = vrot.slane %v694, 6
  %v766 = vxor.u32 %v764, 2147483648
  %v767 = vmul.f32 %v766, 1.442695
  %v768 = vpow.pop %v767
  %v769 = vadd.f32 %v768, 1.0
  %v770 = vrcp.pop %v769
  %v771 = vmul.f32 1.0, %v770
  %v772 = vmul.f32 %v760, %v93
  %v773 = vmul.f32 %v751, %v763
  %v774 = vadd.f32 %v772, %v773
  %v775 = vtanh.pop %v774
  %v776 = vmul.f32 %v771, %v775
  %778 = vset.pattern.permute.xlu0 0
  %779 = vperm.xlu0 %778, %v745
  %v780 = vpop.permute.xlu0 %779
  %v782 = vmul.f32 %v780, %v776
  %v783 = vsub.f32 1.0, %v745
  %785 = vset.pattern.permute.xlu0 0
  %786 = vperm.xlu0 %785, %v783
  %v787 = vpop.permute.xlu0 %786
  %v789 = vmul.f32 %v787, %v92
  %v790 = vadd.f32 %v782, %v789
  %v791 = vmul.f32 %v780, %v774
  %v792 = vmul.f32 %v787, %v93
  %v793 = vadd.f32 %v791, %v792
  %v794 = vpack.c.bf16 %v732, %v732
  %795 = vst [vmem:[%s6] sm:$0x1] %v794
  %v796 = vpack.c.bf16 %v782, %v782
  %s797 = scalar_lea.vmem %s78, 7
  %798 = vst [vmem:[%s797] sm:$0x1] %v796
  %s799 = scalar_lea.vmem %s0, 4
  %v800 = vld [vmem:[%s799] sm:$0xf]
  %v801 = vpack.c.bf16 %v740, %v740
  %v802 = vld [vmem:[%s2] sm:$0xff]
  %v803 = vld [vmem:[%s2 + $0x8] sm:$0xff]
  %v804 = vld [vmem:[%s2 + $0x10] sm:$0xff]
  %v805 = vld [vmem:[%s2 + $0x18] sm:$0xff]
  %v806 = vld [vmem:[%s2 + $0x20] sm:$0xff]
  %v807 = vld [vmem:[%s2 + $0x28] sm:$0xff]
  %v808 = vld [vmem:[%s2 + $0x30] sm:$0xff]
  %v809 = vld [vmem:[%s2 + $0x38] sm:$0xff]
  %v810 = vld [vmem:[%s2 + $0x40] sm:$0xff]
  %v811 = vld [vmem:[%s2 + $0x48] sm:$0xff]
  %v812 = vld [vmem:[%s2 + $0x50] sm:$0xff]
  %v813 = vld [vmem:[%s2 + $0x58] sm:$0xff]
  %v814 = vld [vmem:[%s2 + $0x60] sm:$0xff]
  %v815 = vld [vmem:[%s2 + $0x68] sm:$0xff]
  %v816 = vld [vmem:[%s2 + $0x70] sm:$0xff]
  %v817 = vld [vmem:[%s2 + $0x78] sm:$0xff]
  %v818 = vld [vmem:[%s2 + $0x80] sm:$0xff]
  %v819 = vld [vmem:[%s2 + $0x88] sm:$0xff]
  %v820 = vld [vmem:[%s2 + $0x90] sm:$0xff]
  %v821 = vld [vmem:[%s2 + $0x98] sm:$0xff]
  %v822 = vld [vmem:[%s2 + $0xa0] sm:$0xff]
  %v823 = vld [vmem:[%s2 + $0xa8] sm:$0xff]
  %v824 = vld [vmem:[%s2 + $0xb0] sm:$0xff]
  %v825 = vld [vmem:[%s2 + $0xb8] sm:$0xff]
  %v826 = vld [vmem:[%s2 + $0xc0] sm:$0xff]
  %v827 = vld [vmem:[%s2 + $0xc8] sm:$0xff]
  %v828 = vld [vmem:[%s2 + $0xd0] sm:$0xff]
  %v829 = vld [vmem:[%s2 + $0xd8] sm:$0xff]
  %v830 = vld [vmem:[%s2 + $0xe0] sm:$0xff]
  %v831 = vld [vmem:[%s2 + $0xe8] sm:$0xff]
  %v832 = vld [vmem:[%s2 + $0xf0] sm:$0xff]
  %v833 = vld [vmem:[%s2 + $0xf8] sm:$0xff]
  %v866 = vunpack.c.l.b16 %v802
  %v867 = vunpack.c.h.b16 %v802
  %v868 = vunpack.c.l.b16 %v803
  %v869 = vunpack.c.h.b16 %v803
  %v870 = vunpack.c.l.b16 %v804
  %v871 = vunpack.c.h.b16 %v804
  %v872 = vunpack.c.l.b16 %v805
  %v873 = vunpack.c.h.b16 %v805
  %v874 = vunpack.c.l.b16 %v806
  %v875 = vunpack.c.h.b16 %v806
  %v876 = vunpack.c.l.b16 %v807
  %v877 = vunpack.c.h.b16 %v807
  %v878 = vunpack.c.l.b16 %v808
  %v879 = vunpack.c.h.b16 %v808
  %v880 = vunpack.c.l.b16 %v809
  %v881 = vunpack.c.h.b16 %v809
  %v882 = vunpack.c.l.b16 %v810
  %v883 = vunpack.c.h.b16 %v810
  %v884 = vunpack.c.l.b16 %v811
  %v885 = vunpack.c.h.b16 %v811
  %v886 = vunpack.c.l.b16 %v812
  %v887 = vunpack.c.h.b16 %v812
  %v888 = vunpack.c.l.b16 %v813
  %v889 = vunpack.c.h.b16 %v813
  %v890 = vunpack.c.l.b16 %v814
  %v891 = vunpack.c.h.b16 %v814
  %v892 = vunpack.c.l.b16 %v815
  %v893 = vunpack.c.h.b16 %v815
  %v894 = vunpack.c.l.b16 %v816
  %v895 = vunpack.c.h.b16 %v816
  %v896 = vunpack.c.l.b16 %v817
  %v897 = vunpack.c.h.b16 %v817
  %v898 = vunpack.c.l.b16 %v818
  %v899 = vunpack.c.h.b16 %v818
  %v900 = vunpack.c.l.b16 %v819
  %v901 = vunpack.c.h.b16 %v819
  %v902 = vunpack.c.l.b16 %v820
  %v903 = vunpack.c.h.b16 %v820
  %v904 = vunpack.c.l.b16 %v821
  %v905 = vunpack.c.h.b16 %v821
  %v906 = vunpack.c.l.b16 %v822
  %v907 = vunpack.c.h.b16 %v822
  %v908 = vunpack.c.l.b16 %v823
  %v909 = vunpack.c.h.b16 %v823
  %v910 = vunpack.c.l.b16 %v824
  %v911 = vunpack.c.h.b16 %v824
  %v912 = vunpack.c.l.b16 %v825
  %v913 = vunpack.c.h.b16 %v825
  %v914 = vunpack.c.l.b16 %v826
  %v915 = vunpack.c.h.b16 %v826
  %v916 = vunpack.c.l.b16 %v827
  %v917 = vunpack.c.h.b16 %v827
  %v918 = vunpack.c.l.b16 %v828
  %v919 = vunpack.c.h.b16 %v828
  %v920 = vunpack.c.l.b16 %v829
  %v921 = vunpack.c.h.b16 %v829
  %v922 = vunpack.c.l.b16 %v830
  %v923 = vunpack.c.h.b16 %v830
  %v924 = vunpack.c.l.b16 %v831
  %v925 = vunpack.c.h.b16 %v831
  %v926 = vunpack.c.l.b16 %v832
  %v927 = vunpack.c.h.b16 %v832
  %v928 = vunpack.c.l.b16 %v833
  %v929 = vunpack.c.h.b16 %v833
  %v930 = vpack.c.b16 %v870, %v866
  %v931 = vpack.c.b16 %v871, %v867
  %v932 = vpack.c.b16 %v872, %v868
  %v933 = vpack.c.b16 %v873, %v869
  %v934 = vpack.c.b16 %v878, %v874
  %v935 = vpack.c.b16 %v879, %v875
  %v936 = vpack.c.b16 %v880, %v876
  %v937 = vpack.c.b16 %v881, %v877
  %v938 = vpack.c.b16 %v886, %v882
  %v939 = vpack.c.b16 %v887, %v883
  %v940 = vpack.c.b16 %v888, %v884
  %v941 = vpack.c.b16 %v889, %v885
  %v942 = vpack.c.b16 %v894, %v890
  %v943 = vpack.c.b16 %v895, %v891
  %v944 = vpack.c.b16 %v896, %v892
  %v945 = vpack.c.b16 %v897, %v893
  %v946 = vpack.c.b16 %v902, %v898
  %v947 = vpack.c.b16 %v903, %v899
  %v948 = vpack.c.b16 %v904, %v900
  %v949 = vpack.c.b16 %v905, %v901
  %v950 = vpack.c.b16 %v910, %v906
  %v951 = vpack.c.b16 %v911, %v907
  %v952 = vpack.c.b16 %v912, %v908
  %v953 = vpack.c.b16 %v913, %v909
  %v954 = vpack.c.b16 %v918, %v914
  %v955 = vpack.c.b16 %v919, %v915
  %v956 = vpack.c.b16 %v920, %v916
  %v957 = vpack.c.b16 %v921, %v917
  %v958 = vpack.c.b16 %v926, %v922
  %v959 = vpack.c.b16 %v927, %v923
  %v960 = vpack.c.b16 %v928, %v924
  %v961 = vpack.c.b16 %v929, %v925
  %994 = vmatprep.subr.bf16.mxu0 %v931
  %995 = vmatpush1.bf16.msra.mxu0 %v930
  %996 = vmatprep.subr.bf16.mxu0 %v935
  %997 = vmatpush1.bf16.msra.mxu0 %v934
  %998 = vmatprep.subr.bf16.mxu0 %v939
  %999 = vmatpush1.bf16.msra.mxu0 %v938
  %1000 = vmatprep.subr.bf16.mxu0 %v943
  %1001 = vmatpush1.bf16.msra.mxu0 %v942
  %1002 = vmatprep.subr.bf16.mxu0 %v947
  %1003 = vmatpush1.bf16.msra.mxu0 %v946
  %1004 = vmatprep.subr.bf16.mxu0 %v951
  %1005 = vmatpush1.bf16.msra.mxu0 %v950
  %1006 = vmatprep.subr.bf16.mxu0 %v955
  %1007 = vmatpush1.bf16.msra.mxu0 %v954
  %1008 = vmatprep.subr.bf16.mxu0 %v959
  %1009 = vmatpush1.bf16.msra.mxu0 %v958
  %1010 = vmatprep.subr.bf16.mxu0 0
  %1011 = vmatpush1.bf16.msra.mxu0 0
  %1012 = vmatprep.subr.bf16.mxu0 0
  %1013 = vmatpush1.bf16.msra.mxu0 0
  %1014 = vmatprep.subr.bf16.mxu0 0
  %1015 = vmatpush1.bf16.msra.mxu0 0
  %1016 = vmatprep.subr.bf16.mxu0 0
  %1017 = vmatpush1.bf16.msra.mxu0 0
  %1018 = vmatprep.subr.bf16.mxu0 0
  %1019 = vmatpush1.bf16.msra.mxu0 0
  %1020 = vmatprep.subr.bf16.mxu0 0
  %1021 = vmatpush1.bf16.msra.mxu0 0
  %1022 = vmatprep.subr.bf16.mxu0 0
  %1023 = vmatpush1.bf16.msra.mxu0 0
  %1024 = vmatprep.subr.bf16.mxu0 0
  %1025 = vmatpush1.bf16.msra.mxu0 0
  %1026 = vmatprep.mubr.bf16.mxu0 0
  %1027 = vmatmul.mubr.bf16.gmra.mrb[0].mxu0 %v801
  %v1028 = vpop.f32.mrb[0].mxu0
  %v1029 = vadd.f32 0.0, %v1028
  %v1030 = vpop.f32.mrb[0].mxu0
  %v1031 = vadd.f32 0.0, %v1030
  %v1032 = vpop.f32.mrb[0].mxu0
  %v1033 = vpop.f32.mrb[0].mxu0
  %1034 = vdwg.mxu0
  %1035 = vmatprep.subr.bf16.mxu0 %v933
  %1036 = vmatpush1.bf16.msra.mxu0 %v932
  %1037 = vmatprep.subr.bf16.mxu0 %v937
  %1038 = vmatpush1.bf16.msra.mxu0 %v936
  %1039 = vmatprep.subr.bf16.mxu0 %v941
  %1040 = vmatpush1.bf16.msra.mxu0 %v940
  %1041 = vmatprep.subr.bf16.mxu0 %v945
  %1042 = vmatpush1.bf16.msra.mxu0 %v944
  %1043 = vmatprep.subr.bf16.mxu0 %v949
  %1044 = vmatpush1.bf16.msra.mxu0 %v948
  %1045 = vmatprep.subr.bf16.mxu0 %v953
  %1046 = vmatpush1.bf16.msra.mxu0 %v952
  %1047 = vmatprep.subr.bf16.mxu0 %v957
  %1048 = vmatpush1.bf16.msra.mxu0 %v956
  %1049 = vmatprep.subr.bf16.mxu0 %v961
  %1050 = vmatpush1.bf16.msra.mxu0 %v960
  %1051 = vmatprep.subr.bf16.mxu0 0
  %1052 = vmatpush1.bf16.msra.mxu0 0
  %1053 = vmatprep.subr.bf16.mxu0 0
  %1054 = vmatpush1.bf16.msra.mxu0 0
  %1055 = vmatprep.subr.bf16.mxu0 0
  %1056 = vmatpush1.bf16.msra.mxu0 0
  %1057 = vmatprep.subr.bf16.mxu0 0
  %1058 = vmatpush1.bf16.msra.mxu0 0
  %1059 = vmatprep.subr.bf16.mxu0 0
  %1060 = vmatpush1.bf16.msra.mxu0 0
  %1061 = vmatprep.subr.bf16.mxu0 0
  %1062 = vmatpush1.bf16.msra.mxu0 0
  %1063 = vmatprep.subr.bf16.mxu0 0
  %1064 = vmatpush1.bf16.msra.mxu0 0
  %1065 = vmatprep.subr.bf16.mxu0 0
  %1066 = vmatpush1.bf16.msra.mxu0 0
  %1067 = vmatprep.mubr.bf16.mxu0 0
  %1068 = vmatmul.mubr.bf16.gmra.mrb[0].mxu0 %v801
  %v1069 = vpop.f32.mrb[0].mxu0
  %v1070 = vadd.f32 0.0, %v1069
  %v1071 = vpop.f32.mrb[0].mxu0
  %v1072 = vadd.f32 0.0, %v1071
  %v1073 = vpop.f32.mrb[0].mxu0
  %v1074 = vpop.f32.mrb[0].mxu0
  %1075 = vdwg.mxu0
  %v1076 = vunpack.c.l.bf16 %v800
  %v1081 = vcombine.low %v1029, %v1031
  %v1082 = vcombine.low %v1070, %v1072
  %v1084 = vunpack.c.l.s4 1983009808
  %v1085 = vunpack.c.0.s8 %v1084
  %v1086 = vlaneseq
  %v1087 = vshrl.u32 %v1086, 7
  %v1088 = vsub.s32 %v1085, %v1087
  %v1089 = vrot.slane %v1081, %v1088
  %v1091 = vunpack.c.l.s4 1983009808
  %v1092 = vunpack.c.0.s8 %v1091
  %v1093 = vlaneseq
  %v1094 = vshrl.u32 %v1093, 7
  %v1095 = vsub.s32 %v1092, %v1094
  %v1096 = vrot.slane %v1082, %v1095
  %v1097 = vcombine.low %v1089, %v1096
  %v1099 = vadd.f32 %v1076, %v1097
  %s1100 = scalar_lea.vmem %s63, 24
  %v1101 = vld [vmem:[%s1100] sm:$0xf]
  %v1102 = vpack.c.bf16 %v790, %v790
  %v1103 = vld [vmem:[%s5] sm:$0xff]
  %v1104 = vld [vmem:[%s5 + $0x8] sm:$0xff]
  %v1105 = vld [vmem:[%s5 + $0x10] sm:$0xff]
  %v1106 = vld [vmem:[%s5 + $0x18] sm:$0xff]
  %v1107 = vld [vmem:[%s5 + $0x20] sm:$0xff]
  %v1108 = vld [vmem:[%s5 + $0x28] sm:$0xff]
  %v1109 = vld [vmem:[%s5 + $0x30] sm:$0xff]
  %v1110 = vld [vmem:[%s5 + $0x38] sm:$0xff]
  %v1111 = vld [vmem:[%s5 + $0x40] sm:$0xff]
  %v1112 = vld [vmem:[%s5 + $0x48] sm:$0xff]
  %v1113 = vld [vmem:[%s5 + $0x50] sm:$0xff]
  %v1114 = vld [vmem:[%s5 + $0x58] sm:$0xff]
  %v1115 = vld [vmem:[%s5 + $0x60] sm:$0xff]
  %v1116 = vld [vmem:[%s5 + $0x68] sm:$0xff]
  %v1117 = vld [vmem:[%s5 + $0x70] sm:$0xff]
  %v1118 = vld [vmem:[%s5 + $0x78] sm:$0xff]
  %v1119 = vld [vmem:[%s5 + $0x80] sm:$0xff]
  %v1120 = vld [vmem:[%s5 + $0x88] sm:$0xff]
  %v1121 = vld [vmem:[%s5 + $0x90] sm:$0xff]
  %v1122 = vld [vmem:[%s5 + $0x98] sm:$0xff]
  %v1123 = vld [vmem:[%s5 + $0xa0] sm:$0xff]
  %v1124 = vld [vmem:[%s5 + $0xa8] sm:$0xff]
  %v1125 = vld [vmem:[%s5 + $0xb0] sm:$0xff]
  %v1126 = vld [vmem:[%s5 + $0xb8] sm:$0xff]
  %v1127 = vld [vmem:[%s5 + $0xc0] sm:$0xff]
  %v1128 = vld [vmem:[%s5 + $0xc8] sm:$0xff]
  %v1129 = vld [vmem:[%s5 + $0xd0] sm:$0xff]
  %v1130 = vld [vmem:[%s5 + $0xd8] sm:$0xff]
  %v1131 = vld [vmem:[%s5 + $0xe0] sm:$0xff]
  %v1132 = vld [vmem:[%s5 + $0xe8] sm:$0xff]
  %v1133 = vld [vmem:[%s5 + $0xf0] sm:$0xff]
  %v1134 = vld [vmem:[%s5 + $0xf8] sm:$0xff]
  %v1167 = vunpack.c.l.b16 %v1103
  %v1168 = vunpack.c.h.b16 %v1103
  %v1169 = vunpack.c.l.b16 %v1104
  %v1170 = vunpack.c.h.b16 %v1104
  %v1171 = vunpack.c.l.b16 %v1105
  %v1172 = vunpack.c.h.b16 %v1105
  %v1173 = vunpack.c.l.b16 %v1106
  %v1174 = vunpack.c.h.b16 %v1106
  %v1175 = vunpack.c.l.b16 %v1107
  %v1176 = vunpack.c.h.b16 %v1107
  %v1177 = vunpack.c.l.b16 %v1108
  %v1178 = vunpack.c.h.b16 %v1108
  %v1179 = vunpack.c.l.b16 %v1109
  %v1180 = vunpack.c.h.b16 %v1109
  %v1181 = vunpack.c.l.b16 %v1110
  %v1182 = vunpack.c.h.b16 %v1110
  %v1183 = vunpack.c.l.b16 %v1111
  %v1184 = vunpack.c.h.b16 %v1111
  %v1185 = vunpack.c.l.b16 %v1112
  %v1186 = vunpack.c.h.b16 %v1112
  %v1187 = vunpack.c.l.b16 %v1113
  %v1188 = vunpack.c.h.b16 %v1113
  %v1189 = vunpack.c.l.b16 %v1114
  %v1190 = vunpack.c.h.b16 %v1114
  %v1191 = vunpack.c.l.b16 %v1115
  %v1192 = vunpack.c.h.b16 %v1115
  %v1193 = vunpack.c.l.b16 %v1116
  %v1194 = vunpack.c.h.b16 %v1116
  %v1195 = vunpack.c.l.b16 %v1117
  %v1196 = vunpack.c.h.b16 %v1117
  %v1197 = vunpack.c.l.b16 %v1118
  %v1198 = vunpack.c.h.b16 %v1118
  %v1199 = vunpack.c.l.b16 %v1119
  %v1200 = vunpack.c.h.b16 %v1119
  %v1201 = vunpack.c.l.b16 %v1120
  %v1202 = vunpack.c.h.b16 %v1120
  %v1203 = vunpack.c.l.b16 %v1121
  %v1204 = vunpack.c.h.b16 %v1121
  %v1205 = vunpack.c.l.b16 %v1122
  %v1206 = vunpack.c.h.b16 %v1122
  %v1207 = vunpack.c.l.b16 %v1123
  %v1208 = vunpack.c.h.b16 %v1123
  %v1209 = vunpack.c.l.b16 %v1124
  %v1210 = vunpack.c.h.b16 %v1124
  %v1211 = vunpack.c.l.b16 %v1125
  %v1212 = vunpack.c.h.b16 %v1125
  %v1213 = vunpack.c.l.b16 %v1126
  %v1214 = vunpack.c.h.b16 %v1126
  %v1215 = vunpack.c.l.b16 %v1127
  %v1216 = vunpack.c.h.b16 %v1127
  %v1217 = vunpack.c.l.b16 %v1128
  %v1218 = vunpack.c.h.b16 %v1128
  %v1219 = vunpack.c.l.b16 %v1129
  %v1220 = vunpack.c.h.b16 %v1129
  %v1221 = vunpack.c.l.b16 %v1130
  %v1222 = vunpack.c.h.b16 %v1130
  %v1223 = vunpack.c.l.b16 %v1131
  %v1224 = vunpack.c.h.b16 %v1131
  %v1225 = vunpack.c.l.b16 %v1132
  %v1226 = vunpack.c.h.b16 %v1132
  %v1227 = vunpack.c.l.b16 %v1133
  %v1228 = vunpack.c.h.b16 %v1133
  %v1229 = vunpack.c.l.b16 %v1134
  %v1230 = vunpack.c.h.b16 %v1134
  %v1231 = vpack.c.b16 %v1171, %v1167
  %v1232 = vpack.c.b16 %v1172, %v1168
  %v1233 = vpack.c.b16 %v1173, %v1169
  %v1234 = vpack.c.b16 %v1174, %v1170
  %v1235 = vpack.c.b16 %v1179, %v1175
  %v1236 = vpack.c.b16 %v1180, %v1176
  %v1237 = vpack.c.b16 %v1181, %v1177
  %v1238 = vpack.c.b16 %v1182, %v1178
  %v1239 = vpack.c.b16 %v1187, %v1183
  %v1240 = vpack.c.b16 %v1188, %v1184
  %v1241 = vpack.c.b16 %v1189, %v1185
  %v1242 = vpack.c.b16 %v1190, %v1186
  %v1243 = vpack.c.b16 %v1195, %v1191
  %v1244 = vpack.c.b16 %v1196, %v1192
  %v1245 = vpack.c.b16 %v1197, %v1193
  %v1246 = vpack.c.b16 %v1198, %v1194
  %v1247 = vpack.c.b16 %v1203, %v1199
  %v1248 = vpack.c.b16 %v1204, %v1200
  %v1249 = vpack.c.b16 %v1205, %v1201
  %v1250 = vpack.c.b16 %v1206, %v1202
  %v1251 = vpack.c.b16 %v1211, %v1207
  %v1252 = vpack.c.b16 %v1212, %v1208
  %v1253 = vpack.c.b16 %v1213, %v1209
  %v1254 = vpack.c.b16 %v1214, %v1210
  %v1255 = vpack.c.b16 %v1219, %v1215
  %v1256 = vpack.c.b16 %v1220, %v1216
  %v1257 = vpack.c.b16 %v1221, %v1217
  %v1258 = vpack.c.b16 %v1222, %v1218
  %v1259 = vpack.c.b16 %v1227, %v1223
  %v1260 = vpack.c.b16 %v1228, %v1224
  %v1261 = vpack.c.b16 %v1229, %v1225
  %v1262 = vpack.c.b16 %v1230, %v1226
  %1295 = vmatprep.subr.bf16.mxu0 %v1232
  %1296 = vmatpush1.bf16.msra.mxu0 %v1231
  %1297 = vmatprep.subr.bf16.mxu0 %v1236
  %1298 = vmatpush1.bf16.msra.mxu0 %v1235
  %1299 = vmatprep.subr.bf16.mxu0 %v1240
  %1300 = vmatpush1.bf16.msra.mxu0 %v1239
  %1301 = vmatprep.subr.bf16.mxu0 %v1244
  %1302 = vmatpush1.bf16.msra.mxu0 %v1243
  %1303 = vmatprep.subr.bf16.mxu0 %v1248
  %1304 = vmatpush1.bf16.msra.mxu0 %v1247
  %1305 = vmatprep.subr.bf16.mxu0 %v1252
  %1306 = vmatpush1.bf16.msra.mxu0 %v1251
  %1307 = vmatprep.subr.bf16.mxu0 %v1256
  %1308 = vmatpush1.bf16.msra.mxu0 %v1255
  %1309 = vmatprep.subr.bf16.mxu0 %v1260
  %1310 = vmatpush1.bf16.msra.mxu0 %v1259
  %1311 = vmatprep.subr.bf16.mxu0 0
  %1312 = vmatpush1.bf16.msra.mxu0 0
  %1313 = vmatprep.subr.bf16.mxu0 0
  %1314 = vmatpush1.bf16.msra.mxu0 0
  %1315 = vmatprep.subr.bf16.mxu0 0
  %1316 = vmatpush1.bf16.msra.mxu0 0
  %1317 = vmatprep.subr.bf16.mxu0 0
  %1318 = vmatpush1.bf16.msra.mxu0 0
  %1319 = vmatprep.subr.bf16.mxu0 0
  %1320 = vmatpush1.bf16.msra.mxu0 0
  %1321 = vmatprep.subr.bf16.mxu0 0
  %1322 = vmatpush1.bf16.msra.mxu0 0
  %1323 = vmatprep.subr.bf16.mxu0 0
  %1324 = vmatpush1.bf16.msra.mxu0 0
  %1325 = vmatprep.subr.bf16.mxu0 0
  %1326 = vmatpush1.bf16.msra.mxu0 0
  %1327 = vmatprep.mubr.bf16.mxu0 0
  %1328 = vmatmul.mubr.bf16.gmra.mrb[0].mxu0 %v1102
  %v1329 = vpop.f32.mrb[0].mxu0
  %v1330 = vadd.f32 0.0, %v1329
  %v1331 = vpop.f32.mrb[0].mxu0
  %v1332 = vadd.f32 0.0, %v1331
  %v1333 = vpop.f32.mrb[0].mxu0
  %v1334 = vpop.f32.mrb[0].mxu0
  %1335 = vdwg.mxu0
  %1336 = vmatprep.subr.bf16.mxu0 %v1234
  %1337 = vmatpush1.bf16.msra.mxu0 %v1233
  %1338 = vmatprep.subr.bf16.mxu0 %v1238
  %1339 = vmatpush1.bf16.msra.mxu0 %v1237
  %1340 = vmatprep.subr.bf16.mxu0 %v1242
  %1341 = vmatpush1.bf16.msra.mxu0 %v1241
  %1342 = vmatprep.subr.bf16.mxu0 %v1246
  %1343 = vmatpush1.bf16.msra.mxu0 %v1245
  %1344 = vmatprep.subr.bf16.mxu0 %v1250
  %1345 = vmatpush1.bf16.msra.mxu0 %v1249
  %1346 = vmatprep.subr.bf16.mxu0 %v1254
  %1347 = vmatpush1.bf16.msra.mxu0 %v1253
  %1348 = vmatprep.subr.bf16.mxu0 %v1258
  %1349 = vmatpush1.bf16.msra.mxu0 %v1257
  %1350 = vmatprep.subr.bf16.mxu0 %v1262
  %1351 = vmatpush1.bf16.msra.mxu0 %v1261
  %1352 = vmatprep.subr.bf16.mxu0 0
  %1353 = vmatpush1.bf16.msra.mxu0 0
  %1354 = vmatprep.subr.bf16.mxu0 0
  %1355 = vmatpush1.bf16.msra.mxu0 0
  %1356 = vmatprep.subr.bf16.mxu0 0
  %1357 = vmatpush1.bf16.msra.mxu0 0
  %1358 = vmatprep.subr.bf16.mxu0 0
  %1359 = vmatpush1.bf16.msra.mxu0 0
  %1360 = vmatprep.subr.bf16.mxu0 0
  %1361 = vmatpush1.bf16.msra.mxu0 0
  %1362 = vmatprep.subr.bf16.mxu0 0
  %1363 = vmatpush1.bf16.msra.mxu0 0
  %1364 = vmatprep.subr.bf16.mxu0 0
  %1365 = vmatpush1.bf16.msra.mxu0 0
  %1366 = vmatprep.subr.bf16.mxu0 0
  %1367 = vmatpush1.bf16.msra.mxu0 0
  %1368 = vmatprep.mubr.bf16.mxu0 0
  %1369 = vmatmul.mubr.bf16.gmra.mrb[0].mxu0 %v1102
  %v1370 = vpop.f32.mrb[0].mxu0
  %v1371 = vadd.f32 0.0, %v1370
  %v1372 = vpop.f32.mrb[0].mxu0
  %v1373 = vadd.f32 0.0, %v1372
  %v1374 = vpop.f32.mrb[0].mxu0
  %v1375 = vpop.f32.mrb[0].mxu0
  %1376 = vdwg.mxu0
  %v1377 = vunpack.c.l.bf16 %v1101
  %v1382 = vcombine.low %v1330, %v1332
  %v1383 = vcombine.low %v1371, %v1373
  %v1385 = vunpack.c.l.s4 1983009808
  %v1386 = vunpack.c.0.s8 %v1385
  %v1387 = vlaneseq
  %v1388 = vshrl.u32 %v1387, 7
  %v1389 = vsub.s32 %v1386, %v1388
  %v1390 = vrot.slane %v1382, %v1389
  %v1392 = vunpack.c.l.s4 1983009808
  %v1393 = vunpack.c.0.s8 %v1392
  %v1394 = vlaneseq
  %v1395 = vshrl.u32 %v1394, 7
  %v1396 = vsub.s32 %v1393, %v1395
  %v1397 = vrot.slane %v1383, %v1396
  %v1398 = vcombine.low %v1390, %v1397
  %v1400 = vadd.f32 %v1377, %v1398
  %s1401 = scalar_lea.vmem %s1, 2
  %v1402 = vld [vmem:[%s1401] sm:$0x3]
  %v1403 = vxor.u32 %v1099, 2147483648
  %v1404 = vmul.f32 %v1403, 1.442695
  %v1405 = vpow.pop %v1404
  %v1406 = vadd.f32 %v1405, 1.0
  %v1407 = vrcp.pop %v1406
  %v1408 = vmul.f32 1.0, %v1407
  %v1410 = vrot.slane %v1099, 2
  %v1412 = vxor.u32 %v1410, 2147483648
  %v1413 = vmul.f32 %v1412, 1.442695
  %v1414 = vpow.pop %v1413
  %v1415 = vadd.f32 %v1414, 1.0
  %v1416 = vrcp.pop %v1415
  %v1417 = vmul.f32 1.0, %v1416
  %v1418 = vrot.slane %v1099, 4
  %v1420 = vtanh.pop %v1418
  %v1421 = vrot.slane %v1099, 6
  %v1423 = vxor.u32 %v1421, 2147483648
  %v1424 = vmul.f32 %v1423, 1.442695
  %v1425 = vpow.pop %v1424
  %v1426 = vadd.f32 %v1425, 1.0
  %v1427 = vrcp.pop %v1426
  %v1428 = vmul.f32 1.0, %v1427
  %v1429 = vmul.f32 %v1417, %v743
  %v1430 = vmul.f32 %v1408, %v1420
  %v1431 = vadd.f32 %v1429, %v1430
  %v1432 = vtanh.pop %v1431
  %v1433 = vmul.f32 %v1428, %v1432
  %1435 = vset.pattern.permute.xlu0 0
  %1436 = vperm.xlu0 %1435, %v1402
  %v1437 = vpop.permute.xlu0 %1436
  %v1439 = vmul.f32 %v1437, %v1433
  %v1440 = vsub.f32 1.0, %v1402
  %1442 = vset.pattern.permute.xlu0 0
  %1443 = vperm.xlu0 %1442, %v1440
  %v1444 = vpop.permute.xlu0 %1443
  %v1446 = vmul.f32 %v1444, %v740
  %v1447 = vadd.f32 %v1439, %v1446
  %v1448 = vmul.f32 %v1437, %v1431
  %v1449 = vmul.f32 %v1444, %v743
  %v1450 = vadd.f32 %v1448, %v1449
  %s1451 = scalar_lea.vmem %s71, 12
  %v1452 = vld [vmem:[%s1451] sm:$0x3]
  %v1453 = vxor.u32 %v1400, 2147483648
  %v1454 = vmul.f32 %v1453, 1.442695
  %v1455 = vpow.pop %v1454
  %v1456 = vadd.f32 %v1455, 1.0
  %v1457 = vrcp.pop %v1456
  %v1458 = vmul.f32 1.0, %v1457
  %v1460 = vrot.slane %v1400, 2
  %v1462 = vxor.u32 %v1460, 2147483648
  %v1463 = vmul.f32 %v1462, 1.442695
  %v1464 = vpow.pop %v1463
  %v1465 = vadd.f32 %v1464, 1.0
  %v1466 = vrcp.pop %v1465
  %v1467 = vmul.f32 1.0, %v1466
  %v1468 = vrot.slane %v1400, 4
  %v1470 = vtanh.pop %v1468
  %v1471 = vrot.slane %v1400, 6
  %v1473 = vxor.u32 %v1471, 2147483648
  %v1474 = vmul.f32 %v1473, 1.442695
  %v1475 = vpow.pop %v1474
  %v1476 = vadd.f32 %v1475, 1.0
  %v1477 = vrcp.pop %v1476
  %v1478 = vmul.f32 1.0, %v1477
  %v1479 = vmul.f32 %v1467, %v793
  %v1480 = vmul.f32 %v1458, %v1470
  %v1481 = vadd.f32 %v1479, %v1480
  %v1482 = vtanh.pop %v1481
  %v1483 = vmul.f32 %v1478, %v1482
  %1485 = vset.pattern.permute.xlu0 0
  %1486 = vperm.xlu0 %1485, %v1452
  %v1487 = vpop.permute.xlu0 %1486
  %v1489 = vmul.f32 %v1487, %v1483
  %v1490 = vsub.f32 1.0, %v1452
  %1492 = vset.pattern.permute.xlu0 0
  %1493 = vperm.xlu0 %1492, %v1490
  %v1494 = vpop.permute.xlu0 %1493
  %v1496 = vmul.f32 %v1494, %v790
  %v1497 = vadd.f32 %v1489, %v1496
  %v1498 = vmul.f32 %v1487, %v1481
  %v1499 = vmul.f32 %v1494, %v793
  %v1500 = vadd.f32 %v1498, %v1499
  %v1501 = vpack.c.bf16 %v1439, %v1439
  %s1502 = scalar_lea.vmem %s6, 1
  %1503 = vst [vmem:[%s1502] sm:$0x1] %v1501
  %v1504 = vpack.c.bf16 %v1489, %v1489
  %s1505 = scalar_lea.vmem %s78, 6
  %1506 = vst [vmem:[%s1505] sm:$0x1] %v1504
  %s1507 = scalar_lea.vmem %s0, 8
  %v1508 = vld [vmem:[%s1507] sm:$0xf]
  %v1509 = vpack.c.bf16 %v1447, %v1447
  %v1510 = vld [vmem:[%s2] sm:$0xff]
  %v1511 = vld [vmem:[%s2 + $0x8] sm:$0xff]
  %v1512 = vld [vmem:[%s2 + $0x10] sm:$0xff]
  %v1513 = vld [vmem:[%s2 + $0x18] sm:$0xff]
  %v1514 = vld [vmem:[%s2 + $0x20] sm:$0xff]
  %v1515 = vld [vmem:[%s2 + $0x28] sm:$0xff]
  %v1516 = vld [vmem:[%s2 + $0x30] sm:$0xff]
  %v1517 = vld [vmem:[%s2 + $0x38] sm:$0xff]
  %v1518 = vld [vmem:[%s2 + $0x40] sm:$0xff]
  %v1519 = vld [vmem:[%s2 + $0x48] sm:$0xff]
  %v1520 = vld [vmem:[%s2 + $0x50] sm:$0xff]
  %v1521 = vld [vmem:[%s2 + $0x58] sm:$0xff]
  %v1522 = vld [vmem:[%s2 + $0x60] sm:$0xff]
  %v1523 = vld [vmem:[%s2 + $0x68] sm:$0xff]
  %v1524 = vld [vmem:[%s2 + $0x70] sm:$0xff]
  %v1525 = vld [vmem:[%s2 + $0x78] sm:$0xff]
  %v1526 = vld [vmem:[%s2 + $0x80] sm:$0xff]
  %v1527 = vld [vmem:[%s2 + $0x88] sm:$0xff]
  %v1528 = vld [vmem:[%s2 + $0x90] sm:$0xff]
  %v1529 = vld [vmem:[%s2 + $0x98] sm:$0xff]
  %v1530 = vld [vmem:[%s2 + $0xa0] sm:$0xff]
  %v1531 = vld [vmem:[%s2 + $0xa8] sm:$0xff]
  %v1532 = vld [vmem:[%s2 + $0xb0] sm:$0xff]
  %v1533 = vld [vmem:[%s2 + $0xb8] sm:$0xff]
  %v1534 = vld [vmem:[%s2 + $0xc0] sm:$0xff]
  %v1535 = vld [vmem:[%s2 + $0xc8] sm:$0xff]
  %v1536 = vld [vmem:[%s2 + $0xd0] sm:$0xff]
  %v1537 = vld [vmem:[%s2 + $0xd8] sm:$0xff]
  %v1538 = vld [vmem:[%s2 + $0xe0] sm:$0xff]
  %v1539 = vld [vmem:[%s2 + $0xe8] sm:$0xff]
  %v1540 = vld [vmem:[%s2 + $0xf0] sm:$0xff]
  %v1541 = vld [vmem:[%s2 + $0xf8] sm:$0xff]
  %v1574 = vunpack.c.l.b16 %v1510
  %v1575 = vunpack.c.h.b16 %v1510
  %v1576 = vunpack.c.l.b16 %v1511
  %v1577 = vunpack.c.h.b16 %v1511
  %v1578 = vunpack.c.l.b16 %v1512
  %v1579 = vunpack.c.h.b16 %v1512
  %v1580 = vunpack.c.l.b16 %v1513
  %v1581 = vunpack.c.h.b16 %v1513
  %v1582 = vunpack.c.l.b16 %v1514
  %v1583 = vunpack.c.h.b16 %v1514
  %v1584 = vunpack.c.l.b16 %v1515
  %v1585 = vunpack.c.h.b16 %v1515
  %v1586 = vunpack.c.l.b16 %v1516
  %v1587 = vunpack.c.h.b16 %v1516
  %v1588 = vunpack.c.l.b16 %v1517
  %v1589 = vunpack.c.h.b16 %v1517
  %v1590 = vunpack.c.l.b16 %v1518
  %v1591 = vunpack.c.h.b16 %v1518
  %v1592 = vunpack.c.l.b16 %v1519
  %v1593 = vunpack.c.h.b16 %v1519
  %v1594 = vunpack.c.l.b16 %v1520
  %v1595 = vunpack.c.h.b16 %v1520
  %v1596 = vunpack.c.l.b16 %v1521
  %v1597 = vunpack.c.h.b16 %v1521
  %v1598 = vunpack.c.l.b16 %v1522
  %v1599 = vunpack.c.h.b16 %v1522
  %v1600 = vunpack.c.l.b16 %v1523
  %v1601 = vunpack.c.h.b16 %v1523
  %v1602 = vunpack.c.l.b16 %v1524
  %v1603 = vunpack.c.h.b16 %v1524
  %v1604 = vunpack.c.l.b16 %v1525
  %v1605 = vunpack.c.h.b16 %v1525
  %v1606 = vunpack.c.l.b16 %v1526
  %v1607 = vunpack.c.h.b16 %v1526
  %v1608 = vunpack.c.l.b16 %v1527
  %v1609 = vunpack.c.h.b16 %v1527
  %v1610 = vunpack.c.l.b16 %v1528
  %v1611 = vunpack.c.h.b16 %v1528
  %v1612 = vunpack.c.l.b16 %v1529
  %v1613 = vunpack.c.h.b16 %v1529
  %v1614 = vunpack.c.l.b16 %v1530
  %v1615 = vunpack.c.h.b16 %v1530
  %v1616 = vunpack.c.l.b16 %v1531
  %v1617 = vunpack.c.h.b16 %v1531
  %v1618 = vunpack.c.l.b16 %v1532
  %v1619 = vunpack.c.h.b16 %v1532
  %v1620 = vunpack.c.l.b16 %v1533
  %v1621 = vunpack.c.h.b16 %v1533
  %v1622 = vunpack.c.l.b16 %v1534
  %v1623 = vunpack.c.h.b16 %v1534
  %v1624 = vunpack.c.l.b16 %v1535
  %v1625 = vunpack.c.h.b16 %v1535
  %v1626 = vunpack.c.l.b16 %v1536
  %v1627 = vunpack.c.h.b16 %v1536
  %v1628 = vunpack.c.l.b16 %v1537
  %v1629 = vunpack.c.h.b16 %v1537
  %v1630 = vunpack.c.l.b16 %v1538
  %v1631 = vunpack.c.h.b16 %v1538
  %v1632 = vunpack.c.l.b16 %v1539
  %v1633 = vunpack.c.h.b16 %v1539
  %v1634 = vunpack.c.l.b16 %v1540
  %v1635 = vunpack.c.h.b16 %v1540
  %v1636 = vunpack.c.l.b16 %v1541
  %v1637 = vunpack.c.h.b16 %v1541
  %v1638 = vpack.c.b16 %v1578, %v1574
  %v1639 = vpack.c.b16 %v1579, %v1575
  %v1640 = vpack.c.b16 %v1580, %v1576
  %v1641 = vpack.c.b16 %v1581, %v1577
  %v1642 = vpack.c.b16 %v1586, %v1582
  %v1643 = vpack.c.b16 %v1587, %v1583
  %v1644 = vpack.c.b16 %v1588, %v1584
  %v1645 = vpack.c.b16 %v1589, %v1585
  %v1646 = vpack.c.b16 %v1594, %v1590
  %v1647 = vpack.c.b16 %v1595, %v1591
  %v1648 = vpack.c.b16 %v1596, %v1592
  %v1649 = vpack.c.b16 %v1597, %v1593
  %v1650 = vpack.c.b16 %v1602, %v1598
  %v1651 = vpack.c.b16 %v1603, %v1599
  %v1652 = vpack.c.b16 %v1604, %v1600
  %v1653 = vpack.c.b16 %v1605, %v1601
  %v1654 = vpack.c.b16 %v1610, %v1606
  %v1655 = vpack.c.b16 %v1611, %v1607
  %v1656 = vpack.c.b16 %v1612, %v1608
  %v1657 = vpack.c.b16 %v1613, %v1609
  %v1658 = vpack.c.b16 %v1618, %v1614
  %v1659 = vpack.c.b16 %v1619, %v1615
  %v1660 = vpack.c.b16 %v1620, %v1616
  %v1661 = vpack.c.b16 %v1621, %v1617
  %v1662 = vpack.c.b16 %v1626, %v1622
  %v1663 = vpack.c.b16 %v1627, %v1623
  %v1664 = vpack.c.b16 %v1628, %v1624
  %v1665 = vpack.c.b16 %v1629, %v1625
  %v1666 = vpack.c.b16 %v1634, %v1630
  %v1667 = vpack.c.b16 %v1635, %v1631
  %v1668 = vpack.c.b16 %v1636, %v1632
  %v1669 = vpack.c.b16 %v1637, %v1633
  %1702 = vmatprep.subr.bf16.mxu0 %v1639
  %1703 = vmatpush1.bf16.msra.mxu0 %v1638
  %1704 = vmatprep.subr.bf16.mxu0 %v1643
  %1705 = vmatpush1.bf16.msra.mxu0 %v1642
  %1706 = vmatprep.subr.bf16.mxu0 %v1647
  %1707 = vmatpush1.bf16.msra.mxu0 %v1646
  %1708 = vmatprep.subr.bf16.mxu0 %v1651
  %1709 = vmatpush1.bf16.msra.mxu0 %v1650
  %1710 = vmatprep.subr.bf16.mxu0 %v1655
  %1711 = vmatpush1.bf16.msra.mxu0 %v1654
  %1712 = vmatprep.subr.bf16.mxu0 %v1659
  %1713 = vmatpush1.bf16.msra.mxu0 %v1658
  %1714 = vmatprep.subr.bf16.mxu0 %v1663
  %1715 = vmatpush1.bf16.msra.mxu0 %v1662
  %1716 = vmatprep.subr.bf16.mxu0 %v1667
  %1717 = vmatpush1.bf16.msra.mxu0 %v1666
  %1718 = vmatprep.subr.bf16.mxu0 0
  %1719 = vmatpush1.bf16.msra.mxu0 0
  %1720 = vmatprep.subr.bf16.mxu0 0
  %1721 = vmatpush1.bf16.msra.mxu0 0
  %1722 = vmatprep.subr.bf16.mxu0 0
  %1723 = vmatpush1.bf16.msra.mxu0 0
  %1724 = vmatprep.subr.bf16.mxu0 0
  %1725 = vmatpush1.bf16.msra.mxu0 0
  %1726 = vmatprep.subr.bf16.mxu0 0
  %1727 = vmatpush1.bf16.msra.mxu0 0
  %1728 = vmatprep.subr.bf16.mxu0 0
  %1729 = vmatpush1.bf16.msra.mxu0 0
  %1730 = vmatprep.subr.bf16.mxu0 0
  %1731 = vmatpush1.bf16.msra.mxu0 0
  %1732 = vmatprep.subr.bf16.mxu0 0
  %1733 = vmatpush1.bf16.msra.mxu0 0
  %1734 = vmatprep.mubr.bf16.mxu0 0
  %1735 = vmatmul.mubr.bf16.gmra.mrb[0].mxu0 %v1509
  %v1736 = vpop.f32.mrb[0].mxu0
  %v1737 = vadd.f32 0.0, %v1736
  %v1738 = vpop.f32.mrb[0].mxu0
  %v1739 = vadd.f32 0.0, %v1738
  %v1740 = vpop.f32.mrb[0].mxu0
  %v1741 = vpop.f32.mrb[0].mxu0
  %1742 = vdwg.mxu0
  %1743 = vmatprep.subr.bf16.mxu0 %v1641
  %1744 = vmatpush1.bf16.msra.mxu0 %v1640
  %1745 = vmatprep.subr.bf16.mxu0 %v1645
  %1746 = vmatpush1.bf16.msra.mxu0 %v1644
  %1747 = vmatprep.subr.bf16.mxu0 %v1649
  %1748 = vmatpush1.bf16.msra.mxu0 %v1648
  %1749 = vmatprep.subr.bf16.mxu0 %v1653
  %1750 = vmatpush1.bf16.msra.mxu0 %v1652
  %1751 = vmatprep.subr.bf16.mxu0 %v1657
  %1752 = vmatpush1.bf16.msra.mxu0 %v1656
  %1753 = vmatprep.subr.bf16.mxu0 %v1661
  %1754 = vmatpush1.bf16.msra.mxu0 %v1660
  %1755 = vmatprep.subr.bf16.mxu0 %v1665
  %1756 = vmatpush1.bf16.msra.mxu0 %v1664
  %1757 = vmatprep.subr.bf16.mxu0 %v1669
  %1758 = vmatpush1.bf16.msra.mxu0 %v1668
  %1759 = vmatprep.subr.bf16.mxu0 0
  %1760 = vmatpush1.bf16.msra.mxu0 0
  %1761 = vmatprep.subr.bf16.mxu0 0
  %1762 = vmatpush1.bf16.msra.mxu0 0
  %1763 = vmatprep.subr.bf16.mxu0 0
  %1764 = vmatpush1.bf16.msra.mxu0 0
  %1765 = vmatprep.subr.bf16.mxu0 0
  %1766 = vmatpush1.bf16.msra.mxu0 0
  %1767 = vmatprep.subr.bf16.mxu0 0
  %1768 = vmatpush1.bf16.msra.mxu0 0
  %1769 = vmatprep.subr.bf16.mxu0 0
  %1770 = vmatpush1.bf16.msra.mxu0 0
  %1771 = vmatprep.subr.bf16.mxu0 0
  %1772 = vmatpush1.bf16.msra.mxu0 0
  %1773 = vmatprep.subr.bf16.mxu0 0
  %1774 = vmatpush1.bf16.msra.mxu0 0
  %1775 = vmatprep.mubr.bf16.mxu0 0
  %1776 = vmatmul.mubr.bf16.gmra.mrb[0].mxu0 %v1509
  %v1777 = vpop.f32.mrb[0].mxu0
  %v1778 = vadd.f32 0.0, %v1777
  %v1779 = vpop.f32.mrb[0].mxu0
  %v1780 = vadd.f32 0.0, %v1779
  %v1781 = vpop.f32.mrb[0].mxu0
  %v1782 = vpop.f32.mrb[0].mxu0
  %1783 = vdwg.mxu0
  %v1784 = vunpack.c.l.bf16 %v1508
  %v1789 = vcombine.low %v1737, %v1739
  %v1790 = vcombine.low %v1778, %v1780
  %v1792 = vunpack.c.l.s4 1983009808
  %v1793 = vunpack.c.0.s8 %v1792
  %v1794 = vlaneseq
  %v1795 = vshrl.u32 %v1794, 7
  %v1796 = vsub.s32 %v1793, %v1795
  %v1797 = vrot.slane %v1789, %v1796
  %v1799 = vunpack.c.l.s4 1983009808
  %v1800 = vunpack.c.0.s8 %v1799
  %v1801 = vlaneseq
  %v1802 = vshrl.u32 %v1801, 7
  %v1803 = vsub.s32 %v1800, %v1802
  %v1804 = vrot.slane %v1790, %v1803
  %v1805 = vcombine.low %v1797, %v1804
  %v1807 = vadd.f32 %v1784, %v1805
  %s1808 = scalar_lea.vmem %s63, 20
  %v1809 = vld [vmem:[%s1808] sm:$0xf]
  %v1810 = vpack.c.bf16 %v1497, %v1497
  %v1811 = vld [vmem:[%s5] sm:$0xff]
  %v1812 = vld [vmem:[%s5 + $0x8] sm:$0xff]
  %v1813 = vld [vmem:[%s5 + $0x10] sm:$0xff]
  %v1814 = vld [vmem:[%s5 + $0x18] sm:$0xff]
  %v1815 = vld [vmem:[%s5 + $0x20] sm:$0xff]
  %v1816 = vld [vmem:[%s5 + $0x28] sm:$0xff]
  %v1817 = vld [vmem:[%s5 + $0x30] sm:$0xff]
  %v1818 = vld [vmem:[%s5 + $0x38] sm:$0xff]
  %v1819 = vld [vmem:[%s5 + $0x40] sm:$0xff]
  %v1820 = vld [vmem:[%s5 + $0x48] sm:$0xff]
  %v1821 = vld [vmem:[%s5 + $0x50] sm:$0xff]
  %v1822 = vld [vmem:[%s5 + $0x58] sm:$0xff]
  %v1823 = vld [vmem:[%s5 + $0x60] sm:$0xff]
  %v1824 = vld [vmem:[%s5 + $0x68] sm:$0xff]
  %v1825 = vld [vmem:[%s5 + $0x70] sm:$0xff]
  %v1826 = vld [vmem:[%s5 + $0x78] sm:$0xff]
  %v1827 = vld [vmem:[%s5 + $0x80] sm:$0xff]
  %v1828 = vld [vmem:[%s5 + $0x88] sm:$0xff]
  %v1829 = vld [vmem:[%s5 + $0x90] sm:$0xff]
  %v1830 = vld [vmem:[%s5 + $0x98] sm:$0xff]
  %v1831 = vld [vmem:[%s5 + $0xa0] sm:$0xff]
  %v1832 = vld [vmem:[%s5 + $0xa8] sm:$0xff]
  %v1833 = vld [vmem:[%s5 + $0xb0] sm:$0xff]
  %v1834 = vld [vmem:[%s5 + $0xb8] sm:$0xff]
  %v1835 = vld [vmem:[%s5 + $0xc0] sm:$0xff]
  %v1836 = vld [vmem:[%s5 + $0xc8] sm:$0xff]
  %v1837 = vld [vmem:[%s5 + $0xd0] sm:$0xff]
  %v1838 = vld [vmem:[%s5 + $0xd8] sm:$0xff]
  %v1839 = vld [vmem:[%s5 + $0xe0] sm:$0xff]
  %v1840 = vld [vmem:[%s5 + $0xe8] sm:$0xff]
  %v1841 = vld [vmem:[%s5 + $0xf0] sm:$0xff]
  %v1842 = vld [vmem:[%s5 + $0xf8] sm:$0xff]
  %v1875 = vunpack.c.l.b16 %v1811
  %v1876 = vunpack.c.h.b16 %v1811
  %v1877 = vunpack.c.l.b16 %v1812
  %v1878 = vunpack.c.h.b16 %v1812
  %v1879 = vunpack.c.l.b16 %v1813
  %v1880 = vunpack.c.h.b16 %v1813
  %v1881 = vunpack.c.l.b16 %v1814
  %v1882 = vunpack.c.h.b16 %v1814
  %v1883 = vunpack.c.l.b16 %v1815
  %v1884 = vunpack.c.h.b16 %v1815
  %v1885 = vunpack.c.l.b16 %v1816
  %v1886 = vunpack.c.h.b16 %v1816
  %v1887 = vunpack.c.l.b16 %v1817
  %v1888 = vunpack.c.h.b16 %v1817
  %v1889 = vunpack.c.l.b16 %v1818
  %v1890 = vunpack.c.h.b16 %v1818
  %v1891 = vunpack.c.l.b16 %v1819
  %v1892 = vunpack.c.h.b16 %v1819
  %v1893 = vunpack.c.l.b16 %v1820
  %v1894 = vunpack.c.h.b16 %v1820
  %v1895 = vunpack.c.l.b16 %v1821
  %v1896 = vunpack.c.h.b16 %v1821
  %v1897 = vunpack.c.l.b16 %v1822
  %v1898 = vunpack.c.h.b16 %v1822
  %v1899 = vunpack.c.l.b16 %v1823
  %v1900 = vunpack.c.h.b16 %v1823
  %v1901 = vunpack.c.l.b16 %v1824
  %v1902 = vunpack.c.h.b16 %v1824
  %v1903 = vunpack.c.l.b16 %v1825
  %v1904 = vunpack.c.h.b16 %v1825
  %v1905 = vunpack.c.l.b16 %v1826
  %v1906 = vunpack.c.h.b16 %v1826
  %v1907 = vunpack.c.l.b16 %v1827
  %v1908 = vunpack.c.h.b16 %v1827
  %v1909 = vunpack.c.l.b16 %v1828
  %v1910 = vunpack.c.h.b16 %v1828
  %v1911 = vunpack.c.l.b16 %v1829
  %v1912 = vunpack.c.h.b16 %v1829
  %v1913 = vunpack.c.l.b16 %v1830
  %v1914 = vunpack.c.h.b16 %v1830
  %v1915 = vunpack.c.l.b16 %v1831
  %v1916 = vunpack.c.h.b16 %v1831
  %v1917 = vunpack.c.l.b16 %v1832
  %v1918 = vunpack.c.h.b16 %v1832
  %v1919 = vunpack.c.l.b16 %v1833
  %v1920 = vunpack.c.h.b16 %v1833
  %v1921 = vunpack.c.l.b16 %v1834
  %v1922 = vunpack.c.h.b16 %v1834
  %v1923 = vunpack.c.l.b16 %v1835
  %v1924 = vunpack.c.h.b16 %v1835
  %v1925 = vunpack.c.l.b16 %v1836
  %v1926 = vunpack.c.h.b16 %v1836
  %v1927 = vunpack.c.l.b16 %v1837
  %v1928 = vunpack.c.h.b16 %v1837
  %v1929 = vunpack.c.l.b16 %v1838
  %v1930 = vunpack.c.h.b16 %v1838
  %v1931 = vunpack.c.l.b16 %v1839
  %v1932 = vunpack.c.h.b16 %v1839
  %v1933 = vunpack.c.l.b16 %v1840
  %v1934 = vunpack.c.h.b16 %v1840
  %v1935 = vunpack.c.l.b16 %v1841
  %v1936 = vunpack.c.h.b16 %v1841
  %v1937 = vunpack.c.l.b16 %v1842
  %v1938 = vunpack.c.h.b16 %v1842
  %v1939 = vpack.c.b16 %v1879, %v1875
  %v1940 = vpack.c.b16 %v1880, %v1876
  %v1941 = vpack.c.b16 %v1881, %v1877
  %v1942 = vpack.c.b16 %v1882, %v1878
  %v1943 = vpack.c.b16 %v1887, %v1883
  %v1944 = vpack.c.b16 %v1888, %v1884
  %v1945 = vpack.c.b16 %v1889, %v1885
  %v1946 = vpack.c.b16 %v1890, %v1886
  %v1947 = vpack.c.b16 %v1895, %v1891
  %v1948 = vpack.c.b16 %v1896, %v1892
  %v1949 = vpack.c.b16 %v1897, %v1893
  %v1950 = vpack.c.b16 %v1898, %v1894
  %v1951 = vpack.c.b16 %v1903, %v1899
  %v1952 = vpack.c.b16 %v1904, %v1900
  %v1953 = vpack.c.b16 %v1905, %v1901
  %v1954 = vpack.c.b16 %v1906, %v1902
  %v1955 = vpack.c.b16 %v1911, %v1907
  %v1956 = vpack.c.b16 %v1912, %v1908
  %v1957 = vpack.c.b16 %v1913, %v1909
  %v1958 = vpack.c.b16 %v1914, %v1910
  %v1959 = vpack.c.b16 %v1919, %v1915
  %v1960 = vpack.c.b16 %v1920, %v1916
  %v1961 = vpack.c.b16 %v1921, %v1917
  %v1962 = vpack.c.b16 %v1922, %v1918
  %v1963 = vpack.c.b16 %v1927, %v1923
  %v1964 = vpack.c.b16 %v1928, %v1924
  %v1965 = vpack.c.b16 %v1929, %v1925
  %v1966 = vpack.c.b16 %v1930, %v1926
  %v1967 = vpack.c.b16 %v1935, %v1931
  %v1968 = vpack.c.b16 %v1936, %v1932
  %v1969 = vpack.c.b16 %v1937, %v1933
  %v1970 = vpack.c.b16 %v1938, %v1934
  %2003 = vmatprep.subr.bf16.mxu0 %v1940
  %2004 = vmatpush1.bf16.msra.mxu0 %v1939
  %2005 = vmatprep.subr.bf16.mxu0 %v1944
  %2006 = vmatpush1.bf16.msra.mxu0 %v1943
  %2007 = vmatprep.subr.bf16.mxu0 %v1948
  %2008 = vmatpush1.bf16.msra.mxu0 %v1947
  %2009 = vmatprep.subr.bf16.mxu0 %v1952
  %2010 = vmatpush1.bf16.msra.mxu0 %v1951
  %2011 = vmatprep.subr.bf16.mxu0 %v1956
  %2012 = vmatpush1.bf16.msra.mxu0 %v1955
  %2013 = vmatprep.subr.bf16.mxu0 %v1960
  %2014 = vmatpush1.bf16.msra.mxu0 %v1959
  %2015 = vmatprep.subr.bf16.mxu0 %v1964
  %2016 = vmatpush1.bf16.msra.mxu0 %v1963
  %2017 = vmatprep.subr.bf16.mxu0 %v1968
  %2018 = vmatpush1.bf16.msra.mxu0 %v1967
  %2019 = vmatprep.subr.bf16.mxu0 0
  %2020 = vmatpush1.bf16.msra.mxu0 0
  %2021 = vmatprep.subr.bf16.mxu0 0
  %2022 = vmatpush1.bf16.msra.mxu0 0
  %2023 = vmatprep.subr.bf16.mxu0 0
  %2024 = vmatpush1.bf16.msra.mxu0 0
  %2025 = vmatprep.subr.bf16.mxu0 0
  %2026 = vmatpush1.bf16.msra.mxu0 0
  %2027 = vmatprep.subr.bf16.mxu0 0
  %2028 = vmatpush1.bf16.msra.mxu0 0
  %2029 = vmatprep.subr.bf16.mxu0 0
  %2030 = vmatpush1.bf16.msra.mxu0 0
  %2031 = vmatprep.subr.bf16.mxu0 0
  %2032 = vmatpush1.bf16.msra.mxu0 0
  %2033 = vmatprep.subr.bf16.mxu0 0
  %2034 = vmatpush1.bf16.msra.mxu0 0
  %2035 = vmatprep.mubr.bf16.mxu0 0
  %2036 = vmatmul.mubr.bf16.gmra.mrb[0].mxu0 %v1810
  %v2037 = vpop.f32.mrb[0].mxu0
  %v2038 = vadd.f32 0.0, %v2037
  %v2039 = vpop.f32.mrb[0].mxu0
  %v2040 = vadd.f32 0.0, %v2039
  %v2041 = vpop.f32.mrb[0].mxu0
  %v2042 = vpop.f32.mrb[0].mxu0
  %2043 = vdwg.mxu0
  %2044 = vmatprep.subr.bf16.mxu0 %v1942
  %2045 = vmatpush1.bf16.msra.mxu0 %v1941
  %2046 = vmatprep.subr.bf16.mxu0 %v1946
  %2047 = vmatpush1.bf16.msra.mxu0 %v1945
  %2048 = vmatprep.subr.bf16.mxu0 %v1950
  %2049 = vmatpush1.bf16.msra.mxu0 %v1949
  %2050 = vmatprep.subr.bf16.mxu0 %v1954
  %2051 = vmatpush1.bf16.msra.mxu0 %v1953
  %2052 = vmatprep.subr.bf16.mxu0 %v1958
  %2053 = vmatpush1.bf16.msra.mxu0 %v1957
  %2054 = vmatprep.subr.bf16.mxu0 %v1962
  %2055 = vmatpush1.bf16.msra.mxu0 %v1961
  %2056 = vmatprep.subr.bf16.mxu0 %v1966
  %2057 = vmatpush1.bf16.msra.mxu0 %v1965
  %2058 = vmatprep.subr.bf16.mxu0 %v1970
  %2059 = vmatpush1.bf16.msra.mxu0 %v1969
  %2060 = vmatprep.subr.bf16.mxu0 0
  %2061 = vmatpush1.bf16.msra.mxu0 0
  %2062 = vmatprep.subr.bf16.mxu0 0
  %2063 = vmatpush1.bf16.msra.mxu0 0
  %2064 = vmatprep.subr.bf16.mxu0 0
  %2065 = vmatpush1.bf16.msra.mxu0 0
  %2066 = vmatprep.subr.bf16.mxu0 0
  %2067 = vmatpush1.bf16.msra.mxu0 0
  %2068 = vmatprep.subr.bf16.mxu0 0
  %2069 = vmatpush1.bf16.msra.mxu0 0
  %2070 = vmatprep.subr.bf16.mxu0 0
  %2071 = vmatpush1.bf16.msra.mxu0 0
  %2072 = vmatprep.subr.bf16.mxu0 0
  %2073 = vmatpush1.bf16.msra.mxu0 0
  %2074 = vmatprep.subr.bf16.mxu0 0
  %2075 = vmatpush1.bf16.msra.mxu0 0
  %2076 = vmatprep.mubr.bf16.mxu0 0
  %2077 = vmatmul.mubr.bf16.gmra.mrb[0].mxu0 %v1810
  %v2078 = vpop.f32.mrb[0].mxu0
  %v2079 = vadd.f32 0.0, %v2078
  %v2080 = vpop.f32.mrb[0].mxu0
  %v2081 = vadd.f32 0.0, %v2080
  %v2082 = vpop.f32.mrb[0].mxu0
  %v2083 = vpop.f32.mrb[0].mxu0
  %2084 = vdwg.mxu0
  %v2085 = vunpack.c.l.bf16 %v1809
  %v2090 = vcombine.low %v2038, %v2040
  %v2091 = vcombine.low %v2079, %v2081
  %v2093 = vunpack.c.l.s4 1983009808
  %v2094 = vunpack.c.0.s8 %v2093
  %v2095 = vlaneseq
  %v2096 = vshrl.u32 %v2095, 7
  %v2097 = vsub.s32 %v2094, %v2096
  %v2098 = vrot.slane %v2090, %v2097
  %v2100 = vunpack.c.l.s4 1983009808
  %v2101 = vunpack.c.0.s8 %v2100
  %v2102 = vlaneseq
  %v2103 = vshrl.u32 %v2102, 7
  %v2104 = vsub.s32 %v2101, %v2103
  %v2105 = vrot.slane %v2091, %v2104
  %v2106 = vcombine.low %v2098, %v2105
  %v2108 = vadd.f32 %v2085, %v2106
  %s2109 = scalar_lea.vmem %s1, 4
  %v2110 = vld [vmem:[%s2109] sm:$0x3]
  %v2111 = vxor.u32 %v1807, 2147483648
  %v2112 = vmul.f32 %v2111, 1.442695
  %v2113 = vpow.pop %v2112
  %v2114 = vadd.f32 %v2113, 1.0
  %v2115 = vrcp.pop %v2114
  %v2116 = vmul.f32 1.0, %v2115
  %v2118 = vrot.slane %v1807, 2
  %v2120 = vxor.u32 %v2118, 2147483648
  %v2121 = vmul.f32 %v2120, 1.442695
  %v2122 = vpow.pop %v2121
  %v2123 = vadd.f32 %v2122, 1.0
  %v2124 = vrcp.pop %v2123
  %v2125 = vmul.f32 1.0, %v2124
  %v2126 = vrot.slane %v1807, 4
  %v2128 = vtanh.pop %v2126
  %v2129 = vrot.slane %v1807, 6
  %v2131 = vxor.u32 %v2129, 2147483648
  %v2132 = vmul.f32 %v2131, 1.442695
  %v2133 = vpow.pop %v2132
  %v2134 = vadd.f32 %v2133, 1.0
  %v2135 = vrcp.pop %v2134
  %v2136 = vmul.f32 1.0, %v2135
  %v2137 = vmul.f32 %v2125, %v1450
  %v2138 = vmul.f32 %v2116, %v2128
  %v2139 = vadd.f32 %v2137, %v2138
  %v2140 = vtanh.pop %v2139
  %v2141 = vmul.f32 %v2136, %v2140
  %2143 = vset.pattern.permute.xlu0 0
  %2144 = vperm.xlu0 %2143, %v2110
  %v2145 = vpop.permute.xlu0 %2144
  %v2147 = vmul.f32 %v2145, %v2141
  %v2148 = vsub.f32 1.0, %v2110
  %2150 = vset.pattern.permute.xlu0 0
  %2151 = vperm.xlu0 %2150, %v2148
  %v2152 = vpop.permute.xlu0 %2151
  %v2154 = vmul.f32 %v2152, %v1447
  %v2155 = vadd.f32 %v2147, %v2154
  %v2156 = vmul.f32 %v2145, %v2139
  %v2157 = vmul.f32 %v2152, %v1450
  %v2158 = vadd.f32 %v2156, %v2157
  %s2159 = scalar_lea.vmem %s71, 10
  %v2160 = vld [vmem:[%s2159] sm:$0x3]
  %v2161 = vxor.u32 %v2108, 2147483648
  %v2162 = vmul.f32 %v2161, 1.442695
  %v2163 = vpow.pop %v2162
  %v2164 = vadd.f32 %v2163, 1.0
  %v2165 = vrcp.pop %v2164
  %v2166 = vmul.f32 1.0, %v2165
  %v2168 = vrot.slane %v2108, 2
  %v2170 = vxor.u32 %v2168, 2147483648
  %v2171 = vmul.f32 %v2170, 1.442695
  %v2172 = vpow.pop %v2171
  %v2173 = vadd.f32 %v2172, 1.0
  %v2174 = vrcp.pop %v2173
  %v2175 = vmul.f32 1.0, %v2174
  %v2176 = vrot.slane %v2108, 4
  %v2178 = vtanh.pop %v2176
  %v2179 = vrot.slane %v2108, 6
  %v2181 = vxor.u32 %v2179, 2147483648
  %v2182 = vmul.f32 %v2181, 1.442695
  %v2183 = vpow.pop %v2182
  %v2184 = vadd.f32 %v2183, 1.0
  %v2185 = vrcp.pop %v2184
  %v2186 = vmul.f32 1.0, %v2185
  %v2187 = vmul.f32 %v2175, %v1500
  %v2188 = vmul.f32 %v2166, %v2178
  %v2189 = vadd.f32 %v2187, %v2188
  %v2190 = vtanh.pop %v2189
  %v2191 = vmul.f32 %v2186, %v2190
  %2193 = vset.pattern.permute.xlu0 0
  %2194 = vperm.xlu0 %2193, %v2160
  %v2195 = vpop.permute.xlu0 %2194
  %v2197 = vmul.f32 %v2195, %v2191
  %v2198 = vsub.f32 1.0, %v2160
  %2200 = vset.pattern.permute.xlu0 0
  %2201 = vperm.xlu0 %2200, %v2198
  %v2202 = vpop.permute.xlu0 %2201
  %v2204 = vmul.f32 %v2202, %v1497
  %v2205 = vadd.f32 %v2197, %v2204
  %v2206 = vmul.f32 %v2195, %v2189
  %v2207 = vmul.f32 %v2202, %v1500
  %v2208 = vadd.f32 %v2206, %v2207
  %v2209 = vpack.c.bf16 %v2147, %v2147
  %s2210 = scalar_lea.vmem %s6, 2
  %2211 = vst [vmem:[%s2210] sm:$0x1] %v2209
  %v2212 = vpack.c.bf16 %v2197, %v2197
  %s2213 = scalar_lea.vmem %s78, 5
  %2214 = vst [vmem:[%s2213] sm:$0x1] %v2212
  %s2215 = scalar_lea.vmem %s0, 12
  %v2216 = vld [vmem:[%s2215] sm:$0xf]
  %v2217 = vpack.c.bf16 %v2155, %v2155
  %v2218 = vld [vmem:[%s2] sm:$0xff]
  %v2219 = vld [vmem:[%s2 + $0x8] sm:$0xff]
  %v2220 = vld [vmem:[%s2 + $0x10] sm:$0xff]
  %v2221 = vld [vmem:[%s2 + $0x18] sm:$0xff]
  %v2222 = vld [vmem:[%s2 + $0x20] sm:$0xff]
  %v2223 = vld [vmem:[%s2 + $0x28] sm:$0xff]
  %v2224 = vld [vmem:[%s2 + $0x30] sm:$0xff]
  %v2225 = vld [vmem:[%s2 + $0x38] sm:$0xff]
  %v2226 = vld [vmem:[%s2 + $0x40] sm:$0xff]
  %v2227 = vld [vmem:[%s2 + $0x48] sm:$0xff]
  %v2228 = vld [vmem:[%s2 + $0x50] sm:$0xff]
  %v2229 = vld [vmem:[%s2 + $0x58] sm:$0xff]
  %v2230 = vld [vmem:[%s2 + $0x60] sm:$0xff]
  %v2231 = vld [vmem:[%s2 + $0x68] sm:$0xff]
  %v2232 = vld [vmem:[%s2 + $0x70] sm:$0xff]
  %v2233 = vld [vmem:[%s2 + $0x78] sm:$0xff]
  %v2234 = vld [vmem:[%s2 + $0x80] sm:$0xff]
  %v2235 = vld [vmem:[%s2 + $0x88] sm:$0xff]
  %v2236 = vld [vmem:[%s2 + $0x90] sm:$0xff]
  %v2237 = vld [vmem:[%s2 + $0x98] sm:$0xff]
  %v2238 = vld [vmem:[%s2 + $0xa0] sm:$0xff]
  %v2239 = vld [vmem:[%s2 + $0xa8] sm:$0xff]
  %v2240 = vld [vmem:[%s2 + $0xb0] sm:$0xff]
  %v2241 = vld [vmem:[%s2 + $0xb8] sm:$0xff]
  %v2242 = vld [vmem:[%s2 + $0xc0] sm:$0xff]
  %v2243 = vld [vmem:[%s2 + $0xc8] sm:$0xff]
  %v2244 = vld [vmem:[%s2 + $0xd0] sm:$0xff]
  %v2245 = vld [vmem:[%s2 + $0xd8] sm:$0xff]
  %v2246 = vld [vmem:[%s2 + $0xe0] sm:$0xff]
  %v2247 = vld [vmem:[%s2 + $0xe8] sm:$0xff]
  %v2248 = vld [vmem:[%s2 + $0xf0] sm:$0xff]
  %v2249 = vld [vmem:[%s2 + $0xf8] sm:$0xff]
  %v2282 = vunpack.c.l.b16 %v2218
  %v2283 = vunpack.c.h.b16 %v2218
  %v2284 = vunpack.c.l.b16 %v2219
  %v2285 = vunpack.c.h.b16 %v2219
  %v2286 = vunpack.c.l.b16 %v2220
  %v2287 = vunpack.c.h.b16 %v2220
  %v2288 = vunpack.c.l.b16 %v2221
  %v2289 = vunpack.c.h.b16 %v2221
  %v2290 = vunpack.c.l.b16 %v2222
  %v2291 = vunpack.c.h.b16 %v2222
  %v2292 = vunpack.c.l.b16 %v2223
  %v2293 = vunpack.c.h.b16 %v2223
  %v2294 = vunpack.c.l.b16 %v2224
  %v2295 = vunpack.c.h.b16 %v2224
  %v2296 = vunpack.c.l.b16 %v2225
  %v2297 = vunpack.c.h.b16 %v2225
  %v2298 = vunpack.c.l.b16 %v2226
  %v2299 = vunpack.c.h.b16 %v2226
  %v2300 = vunpack.c.l.b16 %v2227
  %v2301 = vunpack.c.h.b16 %v2227
  %v2302 = vunpack.c.l.b16 %v2228
  %v2303 = vunpack.c.h.b16 %v2228
  %v2304 = vunpack.c.l.b16 %v2229
  %v2305 = vunpack.c.h.b16 %v2229
  %v2306 = vunpack.c.l.b16 %v2230
  %v2307 = vunpack.c.h.b16 %v2230
  %v2308 = vunpack.c.l.b16 %v2231
  %v2309 = vunpack.c.h.b16 %v2231
  %v2310 = vunpack.c.l.b16 %v2232
  %v2311 = vunpack.c.h.b16 %v2232
  %v2312 = vunpack.c.l.b16 %v2233
  %v2313 = vunpack.c.h.b16 %v2233
  %v2314 = vunpack.c.l.b16 %v2234
  %v2315 = vunpack.c.h.b16 %v2234
  %v2316 = vunpack.c.l.b16 %v2235
  %v2317 = vunpack.c.h.b16 %v2235
  %v2318 = vunpack.c.l.b16 %v2236
  %v2319 = vunpack.c.h.b16 %v2236
  %v2320 = vunpack.c.l.b16 %v2237
  %v2321 = vunpack.c.h.b16 %v2237
  %v2322 = vunpack.c.l.b16 %v2238
  %v2323 = vunpack.c.h.b16 %v2238
  %v2324 = vunpack.c.l.b16 %v2239
  %v2325 = vunpack.c.h.b16 %v2239
  %v2326 = vunpack.c.l.b16 %v2240
  %v2327 = vunpack.c.h.b16 %v2240
  %v2328 = vunpack.c.l.b16 %v2241
  %v2329 = vunpack.c.h.b16 %v2241
  %v2330 = vunpack.c.l.b16 %v2242
  %v2331 = vunpack.c.h.b16 %v2242
  %v2332 = vunpack.c.l.b16 %v2243
  %v2333 = vunpack.c.h.b16 %v2243
  %v2334 = vunpack.c.l.b16 %v2244
  %v2335 = vunpack.c.h.b16 %v2244
  %v2336 = vunpack.c.l.b16 %v2245
  %v2337 = vunpack.c.h.b16 %v2245
  %v2338 = vunpack.c.l.b16 %v2246
  %v2339 = vunpack.c.h.b16 %v2246
  %v2340 = vunpack.c.l.b16 %v2247
  %v2341 = vunpack.c.h.b16 %v2247
  %v2342 = vunpack.c.l.b16 %v2248
  %v2343 = vunpack.c.h.b16 %v2248
  %v2344 = vunpack.c.l.b16 %v2249
  %v2345 = vunpack.c.h.b16 %v2249
  %v2346 = vpack.c.b16 %v2286, %v2282
  %v2347 = vpack.c.b16 %v2287, %v2283
  %v2348 = vpack.c.b16 %v2288, %v2284
  %v2349 = vpack.c.b16 %v2289, %v2285
  %v2350 = vpack.c.b16 %v2294, %v2290
  %v2351 = vpack.c.b16 %v2295, %v2291
  %v2352 = vpack.c.b16 %v2296, %v2292
  %v2353 = vpack.c.b16 %v2297, %v2293
  %v2354 = vpack.c.b16 %v2302, %v2298
  %v2355 = vpack.c.b16 %v2303, %v2299
  %v2356 = vpack.c.b16 %v2304, %v2300
  %v2357 = vpack.c.b16 %v2305, %v2301
  %v2358 = vpack.c.b16 %v2310, %v2306
  %v2359 = vpack.c.b16 %v2311, %v2307
  %v2360 = vpack.c.b16 %v2312, %v2308
  %v2361 = vpack.c.b16 %v2313, %v2309
  %v2362 = vpack.c.b16 %v2318, %v2314
  %v2363 = vpack.c.b16 %v2319, %v2315
  %v2364 = vpack.c.b16 %v2320, %v2316
  %v2365 = vpack.c.b16 %v2321, %v2317
  %v2366 = vpack.c.b16 %v2326, %v2322
  %v2367 = vpack.c.b16 %v2327, %v2323
  %v2368 = vpack.c.b16 %v2328, %v2324
  %v2369 = vpack.c.b16 %v2329, %v2325
  %v2370 = vpack.c.b16 %v2334, %v2330
  %v2371 = vpack.c.b16 %v2335, %v2331
  %v2372 = vpack.c.b16 %v2336, %v2332
  %v2373 = vpack.c.b16 %v2337, %v2333
  %v2374 = vpack.c.b16 %v2342, %v2338
  %v2375 = vpack.c.b16 %v2343, %v2339
  %v2376 = vpack.c.b16 %v2344, %v2340
  %v2377 = vpack.c.b16 %v2345, %v2341
  %2410 = vmatprep.subr.bf16.mxu0 %v2347
  %2411 = vmatpush1.bf16.msra.mxu0 %v2346
  %2412 = vmatprep.subr.bf16.mxu0 %v2351
  %2413 = vmatpush1.bf16.msra.mxu0 %v2350
  %2414 = vmatprep.subr.bf16.mxu0 %v2355
  %2415 = vmatpush1.bf16.msra.mxu0 %v2354
  %2416 = vmatprep.subr.bf16.mxu0 %v2359
  %2417 = vmatpush1.bf16.msra.mxu0 %v2358
  %2418 = vmatprep.subr.bf16.mxu0 %v2363
  %2419 = vmatpush1.bf16.msra.mxu0 %v2362
  %2420 = vmatprep.subr.bf16.mxu0 %v2367
  %2421 = vmatpush1.bf16.msra.mxu0 %v2366
  %2422 = vmatprep.subr.bf16.mxu0 %v2371
  %2423 = vmatpush1.bf16.msra.mxu0 %v2370
  %2424 = vmatprep.subr.bf16.mxu0 %v2375
  %2425 = vmatpush1.bf16.msra.mxu0 %v2374
  %2426 = vmatprep.subr.bf16.mxu0 0
  %2427 = vmatpush1.bf16.msra.mxu0 0
  %2428 = vmatprep.subr.bf16.mxu0 0
  %2429 = vmatpush1.bf16.msra.mxu0 0
  %2430 = vmatprep.subr.bf16.mxu0 0
  %2431 = vmatpush1.bf16.msra.mxu0 0
  %2432 = vmatprep.subr.bf16.mxu0 0
  %2433 = vmatpush1.bf16.msra.mxu0 0
  %2434 = vmatprep.subr.bf16.mxu0 0
  %2435 = vmatpush1.bf16.msra.mxu0 0
  %2436 = vmatprep.subr.bf16.mxu0 0
  %2437 = vmatpush1.bf16.msra.mxu0 0
  %2438 = vmatprep.subr.bf16.mxu0 0
  %2439 = vmatpush1.bf16.msra.mxu0 0
  %2440 = vmatprep.subr.bf16.mxu0 0
  %2441 = vmatpush1.bf16.msra.mxu0 0
  %2442 = vmatprep.mubr.bf16.mxu0 0
  %2443 = vmatmul.mubr.bf16.gmra.mrb[0].mxu0 %v2217
  %v2444 = vpop.f32.mrb[0].mxu0
  %v2445 = vadd.f32 0.0, %v2444
  %v2446 = vpop.f32.mrb[0].mxu0
  %v2447 = vadd.f32 0.0, %v2446
  %v2448 = vpop.f32.mrb[0].mxu0
  %v2449 = vpop.f32.mrb[0].mxu0
  %2450 = vdwg.mxu0
  %2451 = vmatprep.subr.bf16.mxu0 %v2349
  %2452 = vmatpush1.bf16.msra.mxu0 %v2348
  %2453 = vmatprep.subr.bf16.mxu0 %v2353
  %2454 = vmatpush1.bf16.msra.mxu0 %v2352
  %2455 = vmatprep.subr.bf16.mxu0 %v2357
  %2456 = vmatpush1.bf16.msra.mxu0 %v2356
  %2457 = vmatprep.subr.bf16.mxu0 %v2361
  %2458 = vmatpush1.bf16.msra.mxu0 %v2360
  %2459 = vmatprep.subr.bf16.mxu0 %v2365
  %2460 = vmatpush1.bf16.msra.mxu0 %v2364
  %2461 = vmatprep.subr.bf16.mxu0 %v2369
  %2462 = vmatpush1.bf16.msra.mxu0 %v2368
  %2463 = vmatprep.subr.bf16.mxu0 %v2373
  %2464 = vmatpush1.bf16.msra.mxu0 %v2372
  %2465 = vmatprep.subr.bf16.mxu0 %v2377
  %2466 = vmatpush1.bf16.msra.mxu0 %v2376
  %2467 = vmatprep.subr.bf16.mxu0 0
  %2468 = vmatpush1.bf16.msra.mxu0 0
  %2469 = vmatprep.subr.bf16.mxu0 0
  %2470 = vmatpush1.bf16.msra.mxu0 0
  %2471 = vmatprep.subr.bf16.mxu0 0
  %2472 = vmatpush1.bf16.msra.mxu0 0
  %2473 = vmatprep.subr.bf16.mxu0 0
  %2474 = vmatpush1.bf16.msra.mxu0 0
  %2475 = vmatprep.subr.bf16.mxu0 0
  %2476 = vmatpush1.bf16.msra.mxu0 0
  %2477 = vmatprep.subr.bf16.mxu0 0
  %2478 = vmatpush1.bf16.msra.mxu0 0
  %2479 = vmatprep.subr.bf16.mxu0 0
  %2480 = vmatpush1.bf16.msra.mxu0 0
  %2481 = vmatprep.subr.bf16.mxu0 0
  %2482 = vmatpush1.bf16.msra.mxu0 0
  %2483 = vmatprep.mubr.bf16.mxu0 0
  %2484 = vmatmul.mubr.bf16.gmra.mrb[0].mxu0 %v2217
  %v2485 = vpop.f32.mrb[0].mxu0
  %v2486 = vadd.f32 0.0, %v2485
  %v2487 = vpop.f32.mrb[0].mxu0
  %v2488 = vadd.f32 0.0, %v2487
  %v2489 = vpop.f32.mrb[0].mxu0
  %v2490 = vpop.f32.mrb[0].mxu0
  %2491 = vdwg.mxu0
  %v2492 = vunpack.c.l.bf16 %v2216
  %v2497 = vcombine.low %v2445, %v2447
  %v2498 = vcombine.low %v2486, %v2488
  %v2500 = vunpack.c.l.s4 1983009808
  %v2501 = vunpack.c.0.s8 %v2500
  %v2502 = vlaneseq
  %v2503 = vshrl.u32 %v2502, 7
  %v2504 = vsub.s32 %v2501, %v2503
  %v2505 = vrot.slane %v2497, %v2504
  %v2507 = vunpack.c.l.s4 1983009808
  %v2508 = vunpack.c.0.s8 %v2507
  %v2509 = vlaneseq
  %v2510 = vshrl.u32 %v2509, 7
  %v2511 = vsub.s32 %v2508, %v2510
  %v2512 = vrot.slane %v2498, %v2511
  %v2513 = vcombine.low %v2505, %v2512
  %v2515 = vadd.f32 %v2492, %v2513
  %s2516 = scalar_lea.vmem %s63, 16
  %v2517 = vld [vmem:[%s2516] sm:$0xf]
  %v2518 = vpack.c.bf16 %v2205, %v2205
  %v2519 = vld [vmem:[%s5] sm:$0xff]
  %v2520 = vld [vmem:[%s5 + $0x8] sm:$0xff]
  %v2521 = vld [vmem:[%s5 + $0x10] sm:$0xff]
  %v2522 = vld [vmem:[%s5 + $0x18] sm:$0xff]
  %v2523 = vld [vmem:[%s5 + $0x20] sm:$0xff]
  %v2524 = vld [vmem:[%s5 + $0x28] sm:$0xff]
  %v2525 = vld [vmem:[%s5 + $0x30] sm:$0xff]
  %v2526 = vld [vmem:[%s5 + $0x38] sm:$0xff]
  %v2527 = vld [vmem:[%s5 + $0x40] sm:$0xff]
  %v2528 = vld [vmem:[%s5 + $0x48] sm:$0xff]
  %v2529 = vld [vmem:[%s5 + $0x50] sm:$0xff]
  %v2530 = vld [vmem:[%s5 + $0x58] sm:$0xff]
  %v2531 = vld [vmem:[%s5 + $0x60] sm:$0xff]
  %v2532 = vld [vmem:[%s5 + $0x68] sm:$0xff]
  %v2533 = vld [vmem:[%s5 + $0x70] sm:$0xff]
  %v2534 = vld [vmem:[%s5 + $0x78] sm:$0xff]
  %v2535 = vld [vmem:[%s5 + $0x80] sm:$0xff]
  %v2536 = vld [vmem:[%s5 + $0x88] sm:$0xff]
  %v2537 = vld [vmem:[%s5 + $0x90] sm:$0xff]
  %v2538 = vld [vmem:[%s5 + $0x98] sm:$0xff]
  %v2539 = vld [vmem:[%s5 + $0xa0] sm:$0xff]
  %v2540 = vld [vmem:[%s5 + $0xa8] sm:$0xff]
  %v2541 = vld [vmem:[%s5 + $0xb0] sm:$0xff]
  %v2542 = vld [vmem:[%s5 + $0xb8] sm:$0xff]
  %v2543 = vld [vmem:[%s5 + $0xc0] sm:$0xff]
  %v2544 = vld [vmem:[%s5 + $0xc8] sm:$0xff]
  %v2545 = vld [vmem:[%s5 + $0xd0] sm:$0xff]
  %v2546 = vld [vmem:[%s5 + $0xd8] sm:$0xff]
  %v2547 = vld [vmem:[%s5 + $0xe0] sm:$0xff]
  %v2548 = vld [vmem:[%s5 + $0xe8] sm:$0xff]
  %v2549 = vld [vmem:[%s5 + $0xf0] sm:$0xff]
  %v2550 = vld [vmem:[%s5 + $0xf8] sm:$0xff]
  %v2583 = vunpack.c.l.b16 %v2519
  %v2584 = vunpack.c.h.b16 %v2519
  %v2585 = vunpack.c.l.b16 %v2520
  %v2586 = vunpack.c.h.b16 %v2520
  %v2587 = vunpack.c.l.b16 %v2521
  %v2588 = vunpack.c.h.b16 %v2521
  %v2589 = vunpack.c.l.b16 %v2522
  %v2590 = vunpack.c.h.b16 %v2522
  %v2591 = vunpack.c.l.b16 %v2523
  %v2592 = vunpack.c.h.b16 %v2523
  %v2593 = vunpack.c.l.b16 %v2524
  %v2594 = vunpack.c.h.b16 %v2524
  %v2595 = vunpack.c.l.b16 %v2525
  %v2596 = vunpack.c.h.b16 %v2525
  %v2597 = vunpack.c.l.b16 %v2526
  %v2598 = vunpack.c.h.b16 %v2526
  %v2599 = vunpack.c.l.b16 %v2527
  %v2600 = vunpack.c.h.b16 %v2527
  %v2601 = vunpack.c.l.b16 %v2528
  %v2602 = vunpack.c.h.b16 %v2528
  %v2603 = vunpack.c.l.b16 %v2529
  %v2604 = vunpack.c.h.b16 %v2529
  %v2605 = vunpack.c.l.b16 %v2530
  %v2606 = vunpack.c.h.b16 %v2530
  %v2607 = vunpack.c.l.b16 %v2531
  %v2608 = vunpack.c.h.b16 %v2531
  %v2609 = vunpack.c.l.b16 %v2532
  %v2610 = vunpack.c.h.b16 %v2532
  %v2611 = vunpack.c.l.b16 %v2533
  %v2612 = vunpack.c.h.b16 %v2533
  %v2613 = vunpack.c.l.b16 %v2534
  %v2614 = vunpack.c.h.b16 %v2534
  %v2615 = vunpack.c.l.b16 %v2535
  %v2616 = vunpack.c.h.b16 %v2535
  %v2617 = vunpack.c.l.b16 %v2536
  %v2618 = vunpack.c.h.b16 %v2536
  %v2619 = vunpack.c.l.b16 %v2537
  %v2620 = vunpack.c.h.b16 %v2537
  %v2621 = vunpack.c.l.b16 %v2538
  %v2622 = vunpack.c.h.b16 %v2538
  %v2623 = vunpack.c.l.b16 %v2539
  %v2624 = vunpack.c.h.b16 %v2539
  %v2625 = vunpack.c.l.b16 %v2540
  %v2626 = vunpack.c.h.b16 %v2540
  %v2627 = vunpack.c.l.b16 %v2541
  %v2628 = vunpack.c.h.b16 %v2541
  %v2629 = vunpack.c.l.b16 %v2542
  %v2630 = vunpack.c.h.b16 %v2542
  %v2631 = vunpack.c.l.b16 %v2543
  %v2632 = vunpack.c.h.b16 %v2543
  %v2633 = vunpack.c.l.b16 %v2544
  %v2634 = vunpack.c.h.b16 %v2544
  %v2635 = vunpack.c.l.b16 %v2545
  %v2636 = vunpack.c.h.b16 %v2545
  %v2637 = vunpack.c.l.b16 %v2546
  %v2638 = vunpack.c.h.b16 %v2546
  %v2639 = vunpack.c.l.b16 %v2547
  %v2640 = vunpack.c.h.b16 %v2547
  %v2641 = vunpack.c.l.b16 %v2548
  %v2642 = vunpack.c.h.b16 %v2548
  %v2643 = vunpack.c.l.b16 %v2549
  %v2644 = vunpack.c.h.b16 %v2549
  %v2645 = vunpack.c.l.b16 %v2550
  %v2646 = vunpack.c.h.b16 %v2550
  %v2647 = vpack.c.b16 %v2587, %v2583
  %v2648 = vpack.c.b16 %v2588, %v2584
  %v2649 = vpack.c.b16 %v2589, %v2585
  %v2650 = vpack.c.b16 %v2590, %v2586
  %v2651 = vpack.c.b16 %v2595, %v2591
  %v2652 = vpack.c.b16 %v2596, %v2592
  %v2653 = vpack.c.b16 %v2597, %v2593
  %v2654 = vpack.c.b16 %v2598, %v2594
  %v2655 = vpack.c.b16 %v2603, %v2599
  %v2656 = vpack.c.b16 %v2604, %v2600
  %v2657 = vpack.c.b16 %v2605, %v2601
  %v2658 = vpack.c.b16 %v2606, %v2602
  %v2659 = vpack.c.b16 %v2611, %v2607
  %v2660 = vpack.c.b16 %v2612, %v2608
  %v2661 = vpack.c.b16 %v2613, %v2609
  %v2662 = vpack.c.b16 %v2614, %v2610
  %v2663 = vpack.c.b16 %v2619, %v2615
  %v2664 = vpack.c.b16 %v2620, %v2616
  %v2665 = vpack.c.b16 %v2621, %v2617
  %v2666 = vpack.c.b16 %v2622, %v2618
  %v2667 = vpack.c.b16 %v2627, %v2623
  %v2668 = vpack.c.b16 %v2628, %v2624
  %v2669 = vpack.c.b16 %v2629, %v2625
  %v2670 = vpack.c.b16 %v2630, %v2626
  %v2671 = vpack.c.b16 %v2635, %v2631
  %v2672 = vpack.c.b16 %v2636, %v2632
  %v2673 = vpack.c.b16 %v2637, %v2633
  %v2674 = vpack.c.b16 %v2638, %v2634
  %v2675 = vpack.c.b16 %v2643, %v2639
  %v2676 = vpack.c.b16 %v2644, %v2640
  %v2677 = vpack.c.b16 %v2645, %v2641
  %v2678 = vpack.c.b16 %v2646, %v2642
  %2711 = vmatprep.subr.bf16.mxu0 %v2648
  %2712 = vmatpush1.bf16.msra.mxu0 %v2647
  %2713 = vmatprep.subr.bf16.mxu0 %v2652
  %2714 = vmatpush1.bf16.msra.mxu0 %v2651
  %2715 = vmatprep.subr.bf16.mxu0 %v2656
  %2716 = vmatpush1.bf16.msra.mxu0 %v2655
  %2717 = vmatprep.subr.bf16.mxu0 %v2660
  %2718 = vmatpush1.bf16.msra.mxu0 %v2659
  %2719 = vmatprep.subr.bf16.mxu0 %v2664
  %2720 = vmatpush1.bf16.msra.mxu0 %v2663
  %2721 = vmatprep.subr.bf16.mxu0 %v2668
  %2722 = vmatpush1.bf16.msra.mxu0 %v2667
  %2723 = vmatprep.subr.bf16.mxu0 %v2672
  %2724 = vmatpush1.bf16.msra.mxu0 %v2671
  %2725 = vmatprep.subr.bf16.mxu0 %v2676
  %2726 = vmatpush1.bf16.msra.mxu0 %v2675
  %2727 = vmatprep.subr.bf16.mxu0 0
  %2728 = vmatpush1.bf16.msra.mxu0 0
  %2729 = vmatprep.subr.bf16.mxu0 0
  %2730 = vmatpush1.bf16.msra.mxu0 0
  %2731 = vmatprep.subr.bf16.mxu0 0
  %2732 = vmatpush1.bf16.msra.mxu0 0
  %2733 = vmatprep.subr.bf16.mxu0 0
  %2734 = vmatpush1.bf16.msra.mxu0 0
  %2735 = vmatprep.subr.bf16.mxu0 0
  %2736 = vmatpush1.bf16.msra.mxu0 0
  %2737 = vmatprep.subr.bf16.mxu0 0
  %2738 = vmatpush1.bf16.msra.mxu0 0
  %2739 = vmatprep.subr.bf16.mxu0 0
  %2740 = vmatpush1.bf16.msra.mxu0 0
  %2741 = vmatprep.subr.bf16.mxu0 0
  %2742 = vmatpush1.bf16.msra.mxu0 0
  %2743 = vmatprep.mubr.bf16.mxu0 0
  %2744 = vmatmul.mubr.bf16.gmra.mrb[0].mxu0 %v2518
  %v2745 = vpop.f32.mrb[0].mxu0
  %v2746 = vadd.f32 0.0, %v2745
  %v2747 = vpop.f32.mrb[0].mxu0
  %v2748 = vadd.f32 0.0, %v2747
  %v2749 = vpop.f32.mrb[0].mxu0
  %v2750 = vpop.f32.mrb[0].mxu0
  %2751 = vdwg.mxu0
  %2752 = vmatprep.subr.bf16.mxu0 %v2650
  %2753 = vmatpush1.bf16.msra.mxu0 %v2649
  %2754 = vmatprep.subr.bf16.mxu0 %v2654
  %2755 = vmatpush1.bf16.msra.mxu0 %v2653
  %2756 = vmatprep.subr.bf16.mxu0 %v2658
  %2757 = vmatpush1.bf16.msra.mxu0 %v2657
  %2758 = vmatprep.subr.bf16.mxu0 %v2662
  %2759 = vmatpush1.bf16.msra.mxu0 %v2661
  %2760 = vmatprep.subr.bf16.mxu0 %v2666
  %2761 = vmatpush1.bf16.msra.mxu0 %v2665
  %2762 = vmatprep.subr.bf16.mxu0 %v2670
  %2763 = vmatpush1.bf16.msra.mxu0 %v2669
  %2764 = vmatprep.subr.bf16.mxu0 %v2674
  %2765 = vmatpush1.bf16.msra.mxu0 %v2673
  %2766 = vmatprep.subr.bf16.mxu0 %v2678
  %2767 = vmatpush1.bf16.msra.mxu0 %v2677
  %2768 = vmatprep.subr.bf16.mxu0 0
  %2769 = vmatpush1.bf16.msra.mxu0 0
  %2770 = vmatprep.subr.bf16.mxu0 0
  %2771 = vmatpush1.bf16.msra.mxu0 0
  %2772 = vmatprep.subr.bf16.mxu0 0
  %2773 = vmatpush1.bf16.msra.mxu0 0
  %2774 = vmatprep.subr.bf16.mxu0 0
  %2775 = vmatpush1.bf16.msra.mxu0 0
  %2776 = vmatprep.subr.bf16.mxu0 0
  %2777 = vmatpush1.bf16.msra.mxu0 0
  %2778 = vmatprep.subr.bf16.mxu0 0
  %2779 = vmatpush1.bf16.msra.mxu0 0
  %2780 = vmatprep.subr.bf16.mxu0 0
  %2781 = vmatpush1.bf16.msra.mxu0 0
  %2782 = vmatprep.subr.bf16.mxu0 0
  %2783 = vmatpush1.bf16.msra.mxu0 0
  %2784 = vmatprep.mubr.bf16.mxu0 0
  %2785 = vmatmul.mubr.bf16.gmra.mrb[0].mxu0 %v2518
  %v2786 = vpop.f32.mrb[0].mxu0
  %v2787 = vadd.f32 0.0, %v2786
  %v2788 = vpop.f32.mrb[0].mxu0
  %v2789 = vadd.f32 0.0, %v2788
  %v2790 = vpop.f32.mrb[0].mxu0
  %v2791 = vpop.f32.mrb[0].mxu0
  %2792 = vdwg.mxu0
  %v2793 = vunpack.c.l.bf16 %v2517
  %v2798 = vcombine.low %v2746, %v2748
  %v2799 = vcombine.low %v2787, %v2789
  %v2801 = vunpack.c.l.s4 1983009808
  %v2802 = vunpack.c.0.s8 %v2801
  %v2803 = vlaneseq
  %v2804 = vshrl.u32 %v2803, 7
  %v2805 = vsub.s32 %v2802, %v2804
  %v2806 = vrot.slane %v2798, %v2805
  %v2808 = vunpack.c.l.s4 1983009808
  %v2809 = vunpack.c.0.s8 %v2808
  %v2810 = vlaneseq
  %v2811 = vshrl.u32 %v2810, 7
  %v2812 = vsub.s32 %v2809, %v2811
  %v2813 = vrot.slane %v2799, %v2812
  %v2814 = vcombine.low %v2806, %v2813
  %v2816 = vadd.f32 %v2793, %v2814
  %s2817 = scalar_lea.vmem %s1, 6
  %v2818 = vld [vmem:[%s2817] sm:$0x3]
  %v2819 = vxor.u32 %v2515, 2147483648
  %v2820 = vmul.f32 %v2819, 1.442695
  %v2821 = vpow.pop %v2820
  %v2822 = vadd.f32 %v2821, 1.0
  %v2823 = vrcp.pop %v2822
  %v2824 = vmul.f32 1.0, %v2823
  %v2826 = vrot.slane %v2515, 2
  %v2828 = vxor.u32 %v2826, 2147483648
  %v2829 = vmul.f32 %v2828, 1.442695
  %v2830 = vpow.pop %v2829
  %v2831 = vadd.f32 %v2830, 1.0
  %v2832 = vrcp.pop %v2831
  %v2833 = vmul.f32 1.0, %v2832
  %v2834 = vrot.slane %v2515, 4
  %v2836 = vtanh.pop %v2834
  %v2837 = vrot.slane %v2515, 6
  %v2839 = vxor.u32 %v2837, 2147483648
  %v2840 = vmul.f32 %v2839, 1.442695
  %v2841 = vpow.pop %v2840
  %v2842 = vadd.f32 %v2841, 1.0
  %v2843 = vrcp.pop %v2842
  %v2844 = vmul.f32 1.0, %v2843
  %v2845 = vmul.f32 %v2833, %v2158
  %v2846 = vmul.f32 %v2824, %v2836
  %v2847 = vadd.f32 %v2845, %v2846
  %v2848 = vtanh.pop %v2847
  %v2849 = vmul.f32 %v2844, %v2848
  %2851 = vset.pattern.permute.xlu0 0
  %2852 = vperm.xlu0 %2851, %v2818
  %v2853 = vpop.permute.xlu0 %2852
  %v2855 = vmul.f32 %v2853, %v2849
  %v2856 = vsub.f32 1.0, %v2818
  %2858 = vset.pattern.permute.xlu0 0
  %2859 = vperm.xlu0 %2858, %v2856
  %v2860 = vpop.permute.xlu0 %2859
  %v2862 = vmul.f32 %v2860, %v2155
  %v2863 = vadd.f32 %v2855, %v2862
  %v2864 = vmul.f32 %v2853, %v2847
  %v2865 = vmul.f32 %v2860, %v2158
  %v2866 = vadd.f32 %v2864, %v2865
  %s2867 = scalar_lea.vmem %s71, 8
  %v2868 = vld [vmem:[%s2867] sm:$0x3]
  %v2869 = vxor.u32 %v2816, 2147483648
  %v2870 = vmul.f32 %v2869, 1.442695
  %v2871 = vpow.pop %v2870
  %v2872 = vadd.f32 %v2871, 1.0
  %v2873 = vrcp.pop %v2872
  %v2874 = vmul.f32 1.0, %v2873
  %v2876 = vrot.slane %v2816, 2
  %v2878 = vxor.u32 %v2876, 2147483648
  %v2879 = vmul.f32 %v2878, 1.442695
  %v2880 = vpow.pop %v2879
  %v2881 = vadd.f32 %v2880, 1.0
  %v2882 = vrcp.pop %v2881
  %v2883 = vmul.f32 1.0, %v2882
  %v2884 = vrot.slane %v2816, 4
  %v2886 = vtanh.pop %v2884
  %v2887 = vrot.slane %v2816, 6
  %v2889 = vxor.u32 %v2887, 2147483648
  %v2890 = vmul.f32 %v2889, 1.442695
  %v2891 = vpow.pop %v2890
  %v2892 = vadd.f32 %v2891, 1.0
  %v2893 = vrcp.pop %v2892
  %v2894 = vmul.f32 1.0, %v2893
  %v2895 = vmul.f32 %v2883, %v2208
  %v2896 = vmul.f32 %v2874, %v2886
  %v2897 = vadd.f32 %v2895, %v2896
  %v2898 = vtanh.pop %v2897
  %v2899 = vmul.f32 %v2894, %v2898
  %2901 = vset.pattern.permute.xlu0 0
  %2902 = vperm.xlu0 %2901, %v2868
  %v2903 = vpop.permute.xlu0 %2902
  %v2905 = vmul.f32 %v2903, %v2899
  %v2906 = vsub.f32 1.0, %v2868
  %2908 = vset.pattern.permute.xlu0 0
  %2909 = vperm.xlu0 %2908, %v2906
  %v2910 = vpop.permute.xlu0 %2909
  %v2912 = vmul.f32 %v2910, %v2205
  %v2913 = vadd.f32 %v2905, %v2912
  %v2914 = vmul.f32 %v2903, %v2897
  %v2915 = vmul.f32 %v2910, %v2208
  %v2916 = vadd.f32 %v2914, %v2915
  %v2917 = vpack.c.bf16 %v2855, %v2855
  %s2918 = scalar_lea.vmem %s6, 3
  %2919 = vst [vmem:[%s2918] sm:$0x1] %v2917
  %v2920 = vpack.c.bf16 %v2905, %v2905
  %s2921 = scalar_lea.vmem %s78, 4
  %2922 = vst [vmem:[%s2921] sm:$0x1] %v2920
  %s2923 = scalar_lea.vmem %s0, 16
  %v2924 = vld [vmem:[%s2923] sm:$0xf]
  %v2925 = vpack.c.bf16 %v2863, %v2863
  %v2926 = vld [vmem:[%s2] sm:$0xff]
  %v2927 = vld [vmem:[%s2 + $0x8] sm:$0xff]
  %v2928 = vld [vmem:[%s2 + $0x10] sm:$0xff]
  %v2929 = vld [vmem:[%s2 + $0x18] sm:$0xff]
  %v2930 = vld [vmem:[%s2 + $0x20] sm:$0xff]
  %v2931 = vld [vmem:[%s2 + $0x28] sm:$0xff]
  %v2932 = vld [vmem:[%s2 + $0x30] sm:$0xff]
  %v2933 = vld [vmem:[%s2 + $0x38] sm:$0xff]
  %v2934 = vld [vmem:[%s2 + $0x40] sm:$0xff]
  %v2935 = vld [vmem:[%s2 + $0x48] sm:$0xff]
  %v2936 = vld [vmem:[%s2 + $0x50] sm:$0xff]
  %v2937 = vld [vmem:[%s2 + $0x58] sm:$0xff]
  %v2938 = vld [vmem:[%s2 + $0x60] sm:$0xff]
  %v2939 = vld [vmem:[%s2 + $0x68] sm:$0xff]
  %v2940 = vld [vmem:[%s2 + $0x70] sm:$0xff]
  %v2941 = vld [vmem:[%s2 + $0x78] sm:$0xff]
  %v2942 = vld [vmem:[%s2 + $0x80] sm:$0xff]
  %v2943 = vld [vmem:[%s2 + $0x88] sm:$0xff]
  %v2944 = vld [vmem:[%s2 + $0x90] sm:$0xff]
  %v2945 = vld [vmem:[%s2 + $0x98] sm:$0xff]
  %v2946 = vld [vmem:[%s2 + $0xa0] sm:$0xff]
  %v2947 = vld [vmem:[%s2 + $0xa8] sm:$0xff]
  %v2948 = vld [vmem:[%s2 + $0xb0] sm:$0xff]
  %v2949 = vld [vmem:[%s2 + $0xb8] sm:$0xff]
  %v2950 = vld [vmem:[%s2 + $0xc0] sm:$0xff]
  %v2951 = vld [vmem:[%s2 + $0xc8] sm:$0xff]
  %v2952 = vld [vmem:[%s2 + $0xd0] sm:$0xff]
  %v2953 = vld [vmem:[%s2 + $0xd8] sm:$0xff]
  %v2954 = vld [vmem:[%s2 + $0xe0] sm:$0xff]
  %v2955 = vld [vmem:[%s2 + $0xe8] sm:$0xff]
  %v2956 = vld [vmem:[%s2 + $0xf0] sm:$0xff]
  %v2957 = vld [vmem:[%s2 + $0xf8] sm:$0xff]
  %v2990 = vunpack.c.l.b16 %v2926
  %v2991 = vunpack.c.h.b16 %v2926
  %v2992 = vunpack.c.l.b16 %v2927
  %v2993 = vunpack.c.h.b16 %v2927
  %v2994 = vunpack.c.l.b16 %v2928
  %v2995 = vunpack.c.h.b16 %v2928
  %v2996 = vunpack.c.l.b16 %v2929
  %v2997 = vunpack.c.h.b16 %v2929
  %v2998 = vunpack.c.l.b16 %v2930
  %v2999 = vunpack.c.h.b16 %v2930
  %v3000 = vunpack.c.l.b16 %v2931
  %v3001 = vunpack.c.h.b16 %v2931
  %v3002 = vunpack.c.l.b16 %v2932
  %v3003 = vunpack.c.h.b16 %v2932
  %v3004 = vunpack.c.l.b16 %v2933
  %v3005 = vunpack.c.h.b16 %v2933
  %v3006 = vunpack.c.l.b16 %v2934
  %v3007 = vunpack.c.h.b16 %v2934
  %v3008 = vunpack.c.l.b16 %v2935
  %v3009 = vunpack.c.h.b16 %v2935
  %v3010 = vunpack.c.l.b16 %v2936
  %v3011 = vunpack.c.h.b16 %v2936
  %v3012 = vunpack.c.l.b16 %v2937
  %v3013 = vunpack.c.h.b16 %v2937
  %v3014 = vunpack.c.l.b16 %v2938
  %v3015 = vunpack.c.h.b16 %v2938
  %v3016 = vunpack.c.l.b16 %v2939
  %v3017 = vunpack.c.h.b16 %v2939
  %v3018 = vunpack.c.l.b16 %v2940
  %v3019 = vunpack.c.h.b16 %v2940
  %v3020 = vunpack.c.l.b16 %v2941
  %v3021 = vunpack.c.h.b16 %v2941
  %v3022 = vunpack.c.l.b16 %v2942
  %v3023 = vunpack.c.h.b16 %v2942
  %v3024 = vunpack.c.l.b16 %v2943
  %v3025 = vunpack.c.h.b16 %v2943
  %v3026 = vunpack.c.l.b16 %v2944
  %v3027 = vunpack.c.h.b16 %v2944
  %v3028 = vunpack.c.l.b16 %v2945
  %v3029 = vunpack.c.h.b16 %v2945
  %v3030 = vunpack.c.l.b16 %v2946
  %v3031 = vunpack.c.h.b16 %v2946
  %v3032 = vunpack.c.l.b16 %v2947
  %v3033 = vunpack.c.h.b16 %v2947
  %v3034 = vunpack.c.l.b16 %v2948
  %v3035 = vunpack.c.h.b16 %v2948
  %v3036 = vunpack.c.l.b16 %v2949
  %v3037 = vunpack.c.h.b16 %v2949
  %v3038 = vunpack.c.l.b16 %v2950
  %v3039 = vunpack.c.h.b16 %v2950
  %v3040 = vunpack.c.l.b16 %v2951
  %v3041 = vunpack.c.h.b16 %v2951
  %v3042 = vunpack.c.l.b16 %v2952
  %v3043 = vunpack.c.h.b16 %v2952
  %v3044 = vunpack.c.l.b16 %v2953
  %v3045 = vunpack.c.h.b16 %v2953
  %v3046 = vunpack.c.l.b16 %v2954
  %v3047 = vunpack.c.h.b16 %v2954
  %v3048 = vunpack.c.l.b16 %v2955
  %v3049 = vunpack.c.h.b16 %v2955
  %v3050 = vunpack.c.l.b16 %v2956
  %v3051 = vunpack.c.h.b16 %v2956
  %v3052 = vunpack.c.l.b16 %v2957
  %v3053 = vunpack.c.h.b16 %v2957
  %v3054 = vpack.c.b16 %v2994, %v2990
  %v3055 = vpack.c.b16 %v2995, %v2991
  %v3056 = vpack.c.b16 %v2996, %v2992
  %v3057 = vpack.c.b16 %v2997, %v2993
  %v3058 = vpack.c.b16 %v3002, %v2998
  %v3059 = vpack.c.b16 %v3003, %v2999
  %v3060 = vpack.c.b16 %v3004, %v3000
  %v3061 = vpack.c.b16 %v3005, %v3001
  %v3062 = vpack.c.b16 %v3010, %v3006
  %v3063 = vpack.c.b16 %v3011, %v3007
  %v3064 = vpack.c.b16 %v3012, %v3008
  %v3065 = vpack.c.b16 %v3013, %v3009
  %v3066 = vpack.c.b16 %v3018, %v3014
  %v3067 = vpack.c.b16 %v3019, %v3015
  %v3068 = vpack.c.b16 %v3020, %v3016
  %v3069 = vpack.c.b16 %v3021, %v3017
  %v3070 = vpack.c.b16 %v3026, %v3022
  %v3071 = vpack.c.b16 %v3027, %v3023
  %v3072 = vpack.c.b16 %v3028, %v3024
  %v3073 = vpack.c.b16 %v3029, %v3025
  %v3074 = vpack.c.b16 %v3034, %v3030
  %v3075 = vpack.c.b16 %v3035, %v3031
  %v3076 = vpack.c.b16 %v3036, %v3032
  %v3077 = vpack.c.b16 %v3037, %v3033
  %v3078 = vpack.c.b16 %v3042, %v3038
  %v3079 = vpack.c.b16 %v3043, %v3039
  %v3080 = vpack.c.b16 %v3044, %v3040
  %v3081 = vpack.c.b16 %v3045, %v3041
  %v3082 = vpack.c.b16 %v3050, %v3046
  %v3083 = vpack.c.b16 %v3051, %v3047
  %v3084 = vpack.c.b16 %v3052, %v3048
  %v3085 = vpack.c.b16 %v3053, %v3049
  %3118 = vmatprep.subr.bf16.mxu0 %v3055
  %3119 = vmatpush1.bf16.msra.mxu0 %v3054
  %3120 = vmatprep.subr.bf16.mxu0 %v3059
  %3121 = vmatpush1.bf16.msra.mxu0 %v3058
  %3122 = vmatprep.subr.bf16.mxu0 %v3063
  %3123 = vmatpush1.bf16.msra.mxu0 %v3062
  %3124 = vmatprep.subr.bf16.mxu0 %v3067
  %3125 = vmatpush1.bf16.msra.mxu0 %v3066
  %3126 = vmatprep.subr.bf16.mxu0 %v3071
  %3127 = vmatpush1.bf16.msra.mxu0 %v3070
  %3128 = vmatprep.subr.bf16.mxu0 %v3075
  %3129 = vmatpush1.bf16.msra.mxu0 %v3074
  %3130 = vmatprep.subr.bf16.mxu0 %v3079
  %3131 = vmatpush1.bf16.msra.mxu0 %v3078
  %3132 = vmatprep.subr.bf16.mxu0 %v3083
  %3133 = vmatpush1.bf16.msra.mxu0 %v3082
  %3134 = vmatprep.subr.bf16.mxu0 0
  %3135 = vmatpush1.bf16.msra.mxu0 0
  %3136 = vmatprep.subr.bf16.mxu0 0
  %3137 = vmatpush1.bf16.msra.mxu0 0
  %3138 = vmatprep.subr.bf16.mxu0 0
  %3139 = vmatpush1.bf16.msra.mxu0 0
  %3140 = vmatprep.subr.bf16.mxu0 0
  %3141 = vmatpush1.bf16.msra.mxu0 0
  %3142 = vmatprep.subr.bf16.mxu0 0
  %3143 = vmatpush1.bf16.msra.mxu0 0
  %3144 = vmatprep.subr.bf16.mxu0 0
  %3145 = vmatpush1.bf16.msra.mxu0 0
  %3146 = vmatprep.subr.bf16.mxu0 0
  %3147 = vmatpush1.bf16.msra.mxu0 0
  %3148 = vmatprep.subr.bf16.mxu0 0
  %3149 = vmatpush1.bf16.msra.mxu0 0
  %3150 = vmatprep.mubr.bf16.mxu0 0
  %3151 = vmatmul.mubr.bf16.gmra.mrb[0].mxu0 %v2925
  %v3152 = vpop.f32.mrb[0].mxu0
  %v3153 = vadd.f32 0.0, %v3152
  %v3154 = vpop.f32.mrb[0].mxu0
  %v3155 = vadd.f32 0.0, %v3154
  %v3156 = vpop.f32.mrb[0].mxu0
  %v3157 = vpop.f32.mrb[0].mxu0
  %3158 = vdwg.mxu0
  %3159 = vmatprep.subr.bf16.mxu0 %v3057
  %3160 = vmatpush1.bf16.msra.mxu0 %v3056
  %3161 = vmatprep.subr.bf16.mxu0 %v3061
  %3162 = vmatpush1.bf16.msra.mxu0 %v3060
  %3163 = vmatprep.subr.bf16.mxu0 %v3065
  %3164 = vmatpush1.bf16.msra.mxu0 %v3064
  %3165 = vmatprep.subr.bf16.mxu0 %v3069
  %3166 = vmatpush1.bf16.msra.mxu0 %v3068
  %3167 = vmatprep.subr.bf16.mxu0 %v3073
  %3168 = vmatpush1.bf16.msra.mxu0 %v3072
  %3169 = vmatprep.subr.bf16.mxu0 %v3077
  %3170 = vmatpush1.bf16.msra.mxu0 %v3076
  %3171 = vmatprep.subr.bf16.mxu0 %v3081
  %3172 = vmatpush1.bf16.msra.mxu0 %v3080
  %3173 = vmatprep.subr.bf16.mxu0 %v3085
  %3174 = vmatpush1.bf16.msra.mxu0 %v3084
  %3175 = vmatprep.subr.bf16.mxu0 0
  %3176 = vmatpush1.bf16.msra.mxu0 0
  %3177 = vmatprep.subr.bf16.mxu0 0
  %3178 = vmatpush1.bf16.msra.mxu0 0
  %3179 = vmatprep.subr.bf16.mxu0 0
  %3180 = vmatpush1.bf16.msra.mxu0 0
  %3181 = vmatprep.subr.bf16.mxu0 0
  %3182 = vmatpush1.bf16.msra.mxu0 0
  %3183 = vmatprep.subr.bf16.mxu0 0
  %3184 = vmatpush1.bf16.msra.mxu0 0
  %3185 = vmatprep.subr.bf16.mxu0 0
  %3186 = vmatpush1.bf16.msra.mxu0 0
  %3187 = vmatprep.subr.bf16.mxu0 0
  %3188 = vmatpush1.bf16.msra.mxu0 0
  %3189 = vmatprep.subr.bf16.mxu0 0
  %3190 = vmatpush1.bf16.msra.mxu0 0
  %3191 = vmatprep.mubr.bf16.mxu0 0
  %3192 = vmatmul.mubr.bf16.gmra.mrb[0].mxu0 %v2925
  %v3193 = vpop.f32.mrb[0].mxu0
  %v3194 = vadd.f32 0.0, %v3193
  %v3195 = vpop.f32.mrb[0].mxu0
  %v3196 = vadd.f32 0.0, %v3195
  %v3197 = vpop.f32.mrb[0].mxu0
  %v3198 = vpop.f32.mrb[0].mxu0
  %3199 = vdwg.mxu0
  %v3200 = vunpack.c.l.bf16 %v2924
  %v3205 = vcombine.low %v3153, %v3155
  %v3206 = vcombine.low %v3194, %v3196
  %v3208 = vunpack.c.l.s4 1983009808
  %v3209 = vunpack.c.0.s8 %v3208
  %v3210 = vlaneseq
  %v3211 = vshrl.u32 %v3210, 7
  %v3212 = vsub.s32 %v3209, %v3211
  %v3213 = vrot.slane %v3205, %v3212
  %v3215 = vunpack.c.l.s4 1983009808
  %v3216 = vunpack.c.0.s8 %v3215
  %v3217 = vlaneseq
  %v3218 = vshrl.u32 %v3217, 7
  %v3219 = vsub.s32 %v3216, %v3218
  %v3220 = vrot.slane %v3206, %v3219
  %v3221 = vcombine.low %v3213, %v3220
  %v3223 = vadd.f32 %v3200, %v3221
  %s3224 = scalar_lea.vmem %s63, 12
  %v3225 = vld [vmem:[%s3224] sm:$0xf]
  %v3226 = vpack.c.bf16 %v2913, %v2913
  %v3227 = vld [vmem:[%s5] sm:$0xff]
  %v3228 = vld [vmem:[%s5 + $0x8] sm:$0xff]
  %v3229 = vld [vmem:[%s5 + $0x10] sm:$0xff]
  %v3230 = vld [vmem:[%s5 + $0x18] sm:$0xff]
  %v3231 = vld [vmem:[%s5 + $0x20] sm:$0xff]
  %v3232 = vld [vmem:[%s5 + $0x28] sm:$0xff]
  %v3233 = vld [vmem:[%s5 + $0x30] sm:$0xff]
  %v3234 = vld [vmem:[%s5 + $0x38] sm:$0xff]
  %v3235 = vld [vmem:[%s5 + $0x40] sm:$0xff]
  %v3236 = vld [vmem:[%s5 + $0x48] sm:$0xff]
  %v3237 = vld [vmem:[%s5 + $0x50] sm:$0xff]
  %v3238 = vld [vmem:[%s5 + $0x58] sm:$0xff]
  %v3239 = vld [vmem:[%s5 + $0x60] sm:$0xff]
  %v3240 = vld [vmem:[%s5 + $0x68] sm:$0xff]
  %v3241 = vld [vmem:[%s5 + $0x70] sm:$0xff]
  %v3242 = vld [vmem:[%s5 + $0x78] sm:$0xff]
  %v3243 = vld [vmem:[%s5 + $0x80] sm:$0xff]
  %v3244 = vld [vmem:[%s5 + $0x88] sm:$0xff]
  %v3245 = vld [vmem:[%s5 + $0x90] sm:$0xff]
  %v3246 = vld [vmem:[%s5 + $0x98] sm:$0xff]
  %v3247 = vld [vmem:[%s5 + $0xa0] sm:$0xff]
  %v3248 = vld [vmem:[%s5 + $0xa8] sm:$0xff]
  %v3249 = vld [vmem:[%s5 + $0xb0] sm:$0xff]
  %v3250 = vld [vmem:[%s5 + $0xb8] sm:$0xff]
  %v3251 = vld [vmem:[%s5 + $0xc0] sm:$0xff]
  %v3252 = vld [vmem:[%s5 + $0xc8] sm:$0xff]
  %v3253 = vld [vmem:[%s5 + $0xd0] sm:$0xff]
  %v3254 = vld [vmem:[%s5 + $0xd8] sm:$0xff]
  %v3255 = vld [vmem:[%s5 + $0xe0] sm:$0xff]
  %v3256 = vld [vmem:[%s5 + $0xe8] sm:$0xff]
  %v3257 = vld [vmem:[%s5 + $0xf0] sm:$0xff]
  %v3258 = vld [vmem:[%s5 + $0xf8] sm:$0xff]
  %v3291 = vunpack.c.l.b16 %v3227
  %v3292 = vunpack.c.h.b16 %v3227
  %v3293 = vunpack.c.l.b16 %v3228
  %v3294 = vunpack.c.h.b16 %v3228
  %v3295 = vunpack.c.l.b16 %v3229
  %v3296 = vunpack.c.h.b16 %v3229
  %v3297 = vunpack.c.l.b16 %v3230
  %v3298 = vunpack.c.h.b16 %v3230
  %v3299 = vunpack.c.l.b16 %v3231
  %v3300 = vunpack.c.h.b16 %v3231
  %v3301 = vunpack.c.l.b16 %v3232
  %v3302 = vunpack.c.h.b16 %v3232
  %v3303 = vunpack.c.l.b16 %v3233
  %v3304 = vunpack.c.h.b16 %v3233
  %v3305 = vunpack.c.l.b16 %v3234
  %v3306 = vunpack.c.h.b16 %v3234
  %v3307 = vunpack.c.l.b16 %v3235
  %v3308 = vunpack.c.h.b16 %v3235
  %v3309 = vunpack.c.l.b16 %v3236
  %v3310 = vunpack.c.h.b16 %v3236
  %v3311 = vunpack.c.l.b16 %v3237
  %v3312 = vunpack.c.h.b16 %v3237
  %v3313 = vunpack.c.l.b16 %v3238
  %v3314 = vunpack.c.h.b16 %v3238
  %v3315 = vunpack.c.l.b16 %v3239
  %v3316 = vunpack.c.h.b16 %v3239
  %v3317 = vunpack.c.l.b16 %v3240
  %v3318 = vunpack.c.h.b16 %v3240
  %v3319 = vunpack.c.l.b16 %v3241
  %v3320 = vunpack.c.h.b16 %v3241
  %v3321 = vunpack.c.l.b16 %v3242
  %v3322 = vunpack.c.h.b16 %v3242
  %v3323 = vunpack.c.l.b16 %v3243
  %v3324 = vunpack.c.h.b16 %v3243
  %v3325 = vunpack.c.l.b16 %v3244
  %v3326 = vunpack.c.h.b16 %v3244
  %v3327 = vunpack.c.l.b16 %v3245
  %v3328 = vunpack.c.h.b16 %v3245
  %v3329 = vunpack.c.l.b16 %v3246
  %v3330 = vunpack.c.h.b16 %v3246
  %v3331 = vunpack.c.l.b16 %v3247
  %v3332 = vunpack.c.h.b16 %v3247
  %v3333 = vunpack.c.l.b16 %v3248
  %v3334 = vunpack.c.h.b16 %v3248
  %v3335 = vunpack.c.l.b16 %v3249
  %v3336 = vunpack.c.h.b16 %v3249
  %v3337 = vunpack.c.l.b16 %v3250
  %v3338 = vunpack.c.h.b16 %v3250
  %v3339 = vunpack.c.l.b16 %v3251
  %v3340 = vunpack.c.h.b16 %v3251
  %v3341 = vunpack.c.l.b16 %v3252
  %v3342 = vunpack.c.h.b16 %v3252
  %v3343 = vunpack.c.l.b16 %v3253
  %v3344 = vunpack.c.h.b16 %v3253
  %v3345 = vunpack.c.l.b16 %v3254
  %v3346 = vunpack.c.h.b16 %v3254
  %v3347 = vunpack.c.l.b16 %v3255
  %v3348 = vunpack.c.h.b16 %v3255
  %v3349 = vunpack.c.l.b16 %v3256
  %v3350 = vunpack.c.h.b16 %v3256
  %v3351 = vunpack.c.l.b16 %v3257
  %v3352 = vunpack.c.h.b16 %v3257
  %v3353 = vunpack.c.l.b16 %v3258
  %v3354 = vunpack.c.h.b16 %v3258
  %v3355 = vpack.c.b16 %v3295, %v3291
  %v3356 = vpack.c.b16 %v3296, %v3292
  %v3357 = vpack.c.b16 %v3297, %v3293
  %v3358 = vpack.c.b16 %v3298, %v3294
  %v3359 = vpack.c.b16 %v3303, %v3299
  %v3360 = vpack.c.b16 %v3304, %v3300
  %v3361 = vpack.c.b16 %v3305, %v3301
  %v3362 = vpack.c.b16 %v3306, %v3302
  %v3363 = vpack.c.b16 %v3311, %v3307
  %v3364 = vpack.c.b16 %v3312, %v3308
  %v3365 = vpack.c.b16 %v3313, %v3309
  %v3366 = vpack.c.b16 %v3314, %v3310
  %v3367 = vpack.c.b16 %v3319, %v3315
  %v3368 = vpack.c.b16 %v3320, %v3316
  %v3369 = vpack.c.b16 %v3321, %v3317
  %v3370 = vpack.c.b16 %v3322, %v3318
  %v3371 = vpack.c.b16 %v3327, %v3323
  %v3372 = vpack.c.b16 %v3328, %v3324
  %v3373 = vpack.c.b16 %v3329, %v3325
  %v3374 = vpack.c.b16 %v3330, %v3326
  %v3375 = vpack.c.b16 %v3335, %v3331
  %v3376 = vpack.c.b16 %v3336, %v3332
  %v3377 = vpack.c.b16 %v3337, %v3333
  %v3378 = vpack.c.b16 %v3338, %v3334
  %v3379 = vpack.c.b16 %v3343, %v3339
  %v3380 = vpack.c.b16 %v3344, %v3340
  %v3381 = vpack.c.b16 %v3345, %v3341
  %v3382 = vpack.c.b16 %v3346, %v3342
  %v3383 = vpack.c.b16 %v3351, %v3347
  %v3384 = vpack.c.b16 %v3352, %v3348
  %v3385 = vpack.c.b16 %v3353, %v3349
  %v3386 = vpack.c.b16 %v3354, %v3350
  %3419 = vmatprep.subr.bf16.mxu0 %v3356
  %3420 = vmatpush1.bf16.msra.mxu0 %v3355
  %3421 = vmatprep.subr.bf16.mxu0 %v3360
  %3422 = vmatpush1.bf16.msra.mxu0 %v3359
  %3423 = vmatprep.subr.bf16.mxu0 %v3364
  %3424 = vmatpush1.bf16.msra.mxu0 %v3363
  %3425 = vmatprep.subr.bf16.mxu0 %v3368
  %3426 = vmatpush1.bf16.msra.mxu0 %v3367
  %3427 = vmatprep.subr.bf16.mxu0 %v3372
  %3428 = vmatpush1.bf16.msra.mxu0 %v3371
  %3429 = vmatprep.subr.bf16.mxu0 %v3376
  %3430 = vmatpush1.bf16.msra.mxu0 %v3375
  %3431 = vmatprep.subr.bf16.mxu0 %v3380
  %3432 = vmatpush1.bf16.msra.mxu0 %v3379
  %3433 = vmatprep.subr.bf16.mxu0 %v3384
  %3434 = vmatpush1.bf16.msra.mxu0 %v3383
  %3435 = vmatprep.subr.bf16.mxu0 0
  %3436 = vmatpush1.bf16.msra.mxu0 0
  %3437 = vmatprep.subr.bf16.mxu0 0
  %3438 = vmatpush1.bf16.msra.mxu0 0
  %3439 = vmatprep.subr.bf16.mxu0 0
  %3440 = vmatpush1.bf16.msra.mxu0 0
  %3441 = vmatprep.subr.bf16.mxu0 0
  %3442 = vmatpush1.bf16.msra.mxu0 0
  %3443 = vmatprep.subr.bf16.mxu0 0
  %3444 = vmatpush1.bf16.msra.mxu0 0
  %3445 = vmatprep.subr.bf16.mxu0 0
  %3446 = vmatpush1.bf16.msra.mxu0 0
  %3447 = vmatprep.subr.bf16.mxu0 0
  %3448 = vmatpush1.bf16.msra.mxu0 0
  %3449 = vmatprep.subr.bf16.mxu0 0
  %3450 = vmatpush1.bf16.msra.mxu0 0
  %3451 = vmatprep.mubr.bf16.mxu0 0
  %3452 = vmatmul.mubr.bf16.gmra.mrb[0].mxu0 %v3226
  %v3453 = vpop.f32.mrb[0].mxu0
  %v3454 = vadd.f32 0.0, %v3453
  %v3455 = vpop.f32.mrb[0].mxu0
  %v3456 = vadd.f32 0.0, %v3455
  %v3457 = vpop.f32.mrb[0].mxu0
  %v3458 = vpop.f32.mrb[0].mxu0
  %3459 = vdwg.mxu0
  %3460 = vmatprep.subr.bf16.mxu0 %v3358
  %3461 = vmatpush1.bf16.msra.mxu0 %v3357
  %3462 = vmatprep.subr.bf16.mxu0 %v3362
  %3463 = vmatpush1.bf16.msra.mxu0 %v3361
  %3464 = vmatprep.subr.bf16.mxu0 %v3366
  %3465 = vmatpush1.bf16.msra.mxu0 %v3365
  %3466 = vmatprep.subr.bf16.mxu0 %v3370
  %3467 = vmatpush1.bf16.msra.mxu0 %v3369
  %3468 = vmatprep.subr.bf16.mxu0 %v3374
  %3469 = vmatpush1.bf16.msra.mxu0 %v3373
  %3470 = vmatprep.subr.bf16.mxu0 %v3378
  %3471 = vmatpush1.bf16.msra.mxu0 %v3377
  %3472 = vmatprep.subr.bf16.mxu0 %v3382
  %3473 = vmatpush1.bf16.msra.mxu0 %v3381
  %3474 = vmatprep.subr.bf16.mxu0 %v3386
  %3475 = vmatpush1.bf16.msra.mxu0 %v3385
  %3476 = vmatprep.subr.bf16.mxu0 0
  %3477 = vmatpush1.bf16.msra.mxu0 0
  %3478 = vmatprep.subr.bf16.mxu0 0
  %3479 = vmatpush1.bf16.msra.mxu0 0
  %3480 = vmatprep.subr.bf16.mxu0 0
  %3481 = vmatpush1.bf16.msra.mxu0 0
  %3482 = vmatprep.subr.bf16.mxu0 0
  %3483 = vmatpush1.bf16.msra.mxu0 0
  %3484 = vmatprep.subr.bf16.mxu0 0
  %3485 = vmatpush1.bf16.msra.mxu0 0
  %3486 = vmatprep.subr.bf16.mxu0 0
  %3487 = vmatpush1.bf16.msra.mxu0 0
  %3488 = vmatprep.subr.bf16.mxu0 0
  %3489 = vmatpush1.bf16.msra.mxu0 0
  %3490 = vmatprep.subr.bf16.mxu0 0
  %3491 = vmatpush1.bf16.msra.mxu0 0
  %3492 = vmatprep.mubr.bf16.mxu0 0
  %3493 = vmatmul.mubr.bf16.gmra.mrb[0].mxu0 %v3226
  %v3494 = vpop.f32.mrb[0].mxu0
  %v3495 = vadd.f32 0.0, %v3494
  %v3496 = vpop.f32.mrb[0].mxu0
  %v3497 = vadd.f32 0.0, %v3496
  %v3498 = vpop.f32.mrb[0].mxu0
  %v3499 = vpop.f32.mrb[0].mxu0
  %3500 = vdwg.mxu0
  %v3501 = vunpack.c.l.bf16 %v3225
  %v3506 = vcombine.low %v3454, %v3456
  %v3507 = vcombine.low %v3495, %v3497
  %v3509 = vunpack.c.l.s4 1983009808
  %v3510 = vunpack.c.0.s8 %v3509
  %v3511 = vlaneseq
  %v3512 = vshrl.u32 %v3511, 7
  %v3513 = vsub.s32 %v3510, %v3512
  %v3514 = vrot.slane %v3506, %v3513
  %v3516 = vunpack.c.l.s4 1983009808
  %v3517 = vunpack.c.0.s8 %v3516
  %v3518 = vlaneseq
  %v3519 = vshrl.u32 %v3518, 7
  %v3520 = vsub.s32 %v3517, %v3519
  %v3521 = vrot.slane %v3507, %v3520
  %v3522 = vcombine.low %v3514, %v3521
  %v3524 = vadd.f32 %v3501, %v3522
  %s3525 = scalar_lea.vmem %s1, 8
  %v3526 = vld [vmem:[%s3525] sm:$0x3]
  %v3527 = vxor.u32 %v3223, 2147483648
  %v3528 = vmul.f32 %v3527, 1.442695
  %v3529 = vpow.pop %v3528
  %v3530 = vadd.f32 %v3529, 1.0
  %v3531 = vrcp.pop %v3530
  %v3532 = vmul.f32 1.0, %v3531
  %v3534 = vrot.slane %v3223, 2
  %v3536 = vxor.u32 %v3534, 2147483648
  %v3537 = vmul.f32 %v3536, 1.442695
  %v3538 = vpow.pop %v3537
  %v3539 = vadd.f32 %v3538, 1.0
  %v3540 = vrcp.pop %v3539
  %v3541 = vmul.f32 1.0, %v3540
  %v3542 = vrot.slane %v3223, 4
  %v3544 = vtanh.pop %v3542
  %v3545 = vrot.slane %v3223, 6
  %v3547 = vxor.u32 %v3545, 2147483648
  %v3548 = vmul.f32 %v3547, 1.442695
  %v3549 = vpow.pop %v3548
  %v3550 = vadd.f32 %v3549, 1.0
  %v3551 = vrcp.pop %v3550
  %v3552 = vmul.f32 1.0, %v3551
  %v3553 = vmul.f32 %v3541, %v2866
  %v3554 = vmul.f32 %v3532, %v3544
  %v3555 = vadd.f32 %v3553, %v3554
  %v3556 = vtanh.pop %v3555
  %v3557 = vmul.f32 %v3552, %v3556
  %3559 = vset.pattern.permute.xlu0 0
  %3560 = vperm.xlu0 %3559, %v3526
  %v3561 = vpop.permute.xlu0 %3560
  %v3563 = vmul.f32 %v3561, %v3557
  %v3564 = vsub.f32 1.0, %v3526
  %3566 = vset.pattern.permute.xlu0 0
  %3567 = vperm.xlu0 %3566, %v3564
  %v3568 = vpop.permute.xlu0 %3567
  %v3570 = vmul.f32 %v3568, %v2863
  %v3571 = vadd.f32 %v3563, %v3570
  %v3572 = vmul.f32 %v3561, %v3555
  %v3573 = vmul.f32 %v3568, %v2866
  %v3574 = vadd.f32 %v3572, %v3573
  %s3575 = scalar_lea.vmem %s71, 6
  %v3576 = vld [vmem:[%s3575] sm:$0x3]
  %v3577 = vxor.u32 %v3524, 2147483648
  %v3578 = vmul.f32 %v3577, 1.442695
  %v3579 = vpow.pop %v3578
  %v3580 = vadd.f32 %v3579, 1.0
  %v3581 = vrcp.pop %v3580
  %v3582 = vmul.f32 1.0, %v3581
  %v3584 = vrot.slane %v3524, 2
  %v3586 = vxor.u32 %v3584, 2147483648
  %v3587 = vmul.f32 %v3586, 1.442695
  %v3588 = vpow.pop %v3587
  %v3589 = vadd.f32 %v3588, 1.0
  %v3590 = vrcp.pop %v3589
  %v3591 = vmul.f32 1.0, %v3590
  %v3592 = vrot.slane %v3524, 4
  %v3594 = vtanh.pop %v3592
  %v3595 = vrot.slane %v3524, 6
  %v3597 = vxor.u32 %v3595, 2147483648
  %v3598 = vmul.f32 %v3597, 1.442695
  %v3599 = vpow.pop %v3598
  %v3600 = vadd.f32 %v3599, 1.0
  %v3601 = vrcp.pop %v3600
  %v3602 = vmul.f32 1.0, %v3601
  %v3603 = vmul.f32 %v3591, %v2916
  %v3604 = vmul.f32 %v3582, %v3594
  %v3605 = vadd.f32 %v3603, %v3604
  %v3606 = vtanh.pop %v3605
  %v3607 = vmul.f32 %v3602, %v3606
  %3609 = vset.pattern.permute.xlu0 0
  %3610 = vperm.xlu0 %3609, %v3576
  %v3611 = vpop.permute.xlu0 %3610
  %v3613 = vmul.f32 %v3611, %v3607
  %v3614 = vsub.f32 1.0, %v3576
  %3616 = vset.pattern.permute.xlu0 0
  %3617 = vperm.xlu0 %3616, %v3614
  %v3618 = vpop.permute.xlu0 %3617
  %v3620 = vmul.f32 %v3618, %v2913
  %v3621 = vadd.f32 %v3613, %v3620
  %v3622 = vmul.f32 %v3611, %v3605
  %v3623 = vmul.f32 %v3618, %v2916
  %v3624 = vadd.f32 %v3622, %v3623
  %v3625 = vpack.c.bf16 %v3563, %v3563
  %s3626 = scalar_lea.vmem %s6, 4
  %3627 = vst [vmem:[%s3626] sm:$0x1] %v3625
  %v3628 = vpack.c.bf16 %v3613, %v3613
  %s3629 = scalar_lea.vmem %s78, 3
  %3630 = vst [vmem:[%s3629] sm:$0x1] %v3628
  %s3631 = scalar_lea.vmem %s0, 20
  %v3632 = vld [vmem:[%s3631] sm:$0xf]
  %v3633 = vpack.c.bf16 %v3571, %v3571
  %v3634 = vld [vmem:[%s2] sm:$0xff]
  %v3635 = vld [vmem:[%s2 + $0x8] sm:$0xff]
  %v3636 = vld [vmem:[%s2 + $0x10] sm:$0xff]
  %v3637 = vld [vmem:[%s2 + $0x18] sm:$0xff]
  %v3638 = vld [vmem:[%s2 + $0x20] sm:$0xff]
  %v3639 = vld [vmem:[%s2 + $0x28] sm:$0xff]
  %v3640 = vld [vmem:[%s2 + $0x30] sm:$0xff]
  %v3641 = vld [vmem:[%s2 + $0x38] sm:$0xff]
  %v3642 = vld [vmem:[%s2 + $0x40] sm:$0xff]
  %v3643 = vld [vmem:[%s2 + $0x48] sm:$0xff]
  %v3644 = vld [vmem:[%s2 + $0x50] sm:$0xff]
  %v3645 = vld [vmem:[%s2 + $0x58] sm:$0xff]
  %v3646 = vld [vmem:[%s2 + $0x60] sm:$0xff]
  %v3647 = vld [vmem:[%s2 + $0x68] sm:$0xff]
  %v3648 = vld [vmem:[%s2 + $0x70] sm:$0xff]
  %v3649 = vld [vmem:[%s2 + $0x78] sm:$0xff]
  %v3650 = vld [vmem:[%s2 + $0x80] sm:$0xff]
  %v3651 = vld [vmem:[%s2 + $0x88] sm:$0xff]
  %v3652 = vld [vmem:[%s2 + $0x90] sm:$0xff]
  %v3653 = vld [vmem:[%s2 + $0x98] sm:$0xff]
  %v3654 = vld [vmem:[%s2 + $0xa0] sm:$0xff]
  %v3655 = vld [vmem:[%s2 + $0xa8] sm:$0xff]
  %v3656 = vld [vmem:[%s2 + $0xb0] sm:$0xff]
  %v3657 = vld [vmem:[%s2 + $0xb8] sm:$0xff]
  %v3658 = vld [vmem:[%s2 + $0xc0] sm:$0xff]
  %v3659 = vld [vmem:[%s2 + $0xc8] sm:$0xff]
  %v3660 = vld [vmem:[%s2 + $0xd0] sm:$0xff]
  %v3661 = vld [vmem:[%s2 + $0xd8] sm:$0xff]
  %v3662 = vld [vmem:[%s2 + $0xe0] sm:$0xff]
  %v3663 = vld [vmem:[%s2 + $0xe8] sm:$0xff]
  %v3664 = vld [vmem:[%s2 + $0xf0] sm:$0xff]
  %v3665 = vld [vmem:[%s2 + $0xf8] sm:$0xff]
  %v3698 = vunpack.c.l.b16 %v3634
  %v3699 = vunpack.c.h.b16 %v3634
  %v3700 = vunpack.c.l.b16 %v3635
  %v3701 = vunpack.c.h.b16 %v3635
  %v3702 = vunpack.c.l.b16 %v3636
  %v3703 = vunpack.c.h.b16 %v3636
  %v3704 = vunpack.c.l.b16 %v3637
  %v3705 = vunpack.c.h.b16 %v3637
  %v3706 = vunpack.c.l.b16 %v3638
  %v3707 = vunpack.c.h.b16 %v3638
  %v3708 = vunpack.c.l.b16 %v3639
  %v3709 = vunpack.c.h.b16 %v3639
  %v3710 = vunpack.c.l.b16 %v3640
  %v3711 = vunpack.c.h.b16 %v3640
  %v3712 = vunpack.c.l.b16 %v3641
  %v3713 = vunpack.c.h.b16 %v3641
  %v3714 = vunpack.c.l.b16 %v3642
  %v3715 = vunpack.c.h.b16 %v3642
  %v3716 = vunpack.c.l.b16 %v3643
  %v3717 = vunpack.c.h.b16 %v3643
  %v3718 = vunpack.c.l.b16 %v3644
  %v3719 = vunpack.c.h.b16 %v3644
  %v3720 = vunpack.c.l.b16 %v3645
  %v3721 = vunpack.c.h.b16 %v3645
  %v3722 = vunpack.c.l.b16 %v3646
  %v3723 = vunpack.c.h.b16 %v3646
  %v3724 = vunpack.c.l.b16 %v3647
  %v3725 = vunpack.c.h.b16 %v3647
  %v3726 = vunpack.c.l.b16 %v3648
  %v3727 = vunpack.c.h.b16 %v3648
  %v3728 = vunpack.c.l.b16 %v3649
  %v3729 = vunpack.c.h.b16 %v3649
  %v3730 = vunpack.c.l.b16 %v3650
  %v3731 = vunpack.c.h.b16 %v3650
  %v3732 = vunpack.c.l.b16 %v3651
  %v3733 = vunpack.c.h.b16 %v3651
  %v3734 = vunpack.c.l.b16 %v3652
  %v3735 = vunpack.c.h.b16 %v3652
  %v3736 = vunpack.c.l.b16 %v3653
  %v3737 = vunpack.c.h.b16 %v3653
  %v3738 = vunpack.c.l.b16 %v3654
  %v3739 = vunpack.c.h.b16 %v3654
  %v3740 = vunpack.c.l.b16 %v3655
  %v3741 = vunpack.c.h.b16 %v3655
  %v3742 = vunpack.c.l.b16 %v3656
  %v3743 = vunpack.c.h.b16 %v3656
  %v3744 = vunpack.c.l.b16 %v3657
  %v3745 = vunpack.c.h.b16 %v3657
  %v3746 = vunpack.c.l.b16 %v3658
  %v3747 = vunpack.c.h.b16 %v3658
  %v3748 = vunpack.c.l.b16 %v3659
  %v3749 = vunpack.c.h.b16 %v3659
  %v3750 = vunpack.c.l.b16 %v3660
  %v3751 = vunpack.c.h.b16 %v3660
  %v3752 = vunpack.c.l.b16 %v3661
  %v3753 = vunpack.c.h.b16 %v3661
  %v3754 = vunpack.c.l.b16 %v3662
  %v3755 = vunpack.c.h.b16 %v3662
  %v3756 = vunpack.c.l.b16 %v3663
  %v3757 = vunpack.c.h.b16 %v3663
  %v3758 = vunpack.c.l.b16 %v3664
  %v3759 = vunpack.c.h.b16 %v3664
  %v3760 = vunpack.c.l.b16 %v3665
  %v3761 = vunpack.c.h.b16 %v3665
  %v3762 = vpack.c.b16 %v3702, %v3698
  %v3763 = vpack.c.b16 %v3703, %v3699
  %v3764 = vpack.c.b16 %v3704, %v3700
  %v3765 = vpack.c.b16 %v3705, %v3701
  %v3766 = vpack.c.b16 %v3710, %v3706
  %v3767 = vpack.c.b16 %v3711, %v3707
  %v3768 = vpack.c.b16 %v3712, %v3708
  %v3769 = vpack.c.b16 %v3713, %v3709
  %v3770 = vpack.c.b16 %v3718, %v3714
  %v3771 = vpack.c.b16 %v3719, %v3715
  %v3772 = vpack.c.b16 %v3720, %v3716
  %v3773 = vpack.c.b16 %v3721, %v3717
  %v3774 = vpack.c.b16 %v3726, %v3722
  %v3775 = vpack.c.b16 %v3727, %v3723
  %v3776 = vpack.c.b16 %v3728, %v3724
  %v3777 = vpack.c.b16 %v3729, %v3725
  %v3778 = vpack.c.b16 %v3734, %v3730
  %v3779 = vpack.c.b16 %v3735, %v3731
  %v3780 = vpack.c.b16 %v3736, %v3732
  %v3781 = vpack.c.b16 %v3737, %v3733
  %v3782 = vpack.c.b16 %v3742, %v3738
  %v3783 = vpack.c.b16 %v3743, %v3739
  %v3784 = vpack.c.b16 %v3744, %v3740
  %v3785 = vpack.c.b16 %v3745, %v3741
  %v3786 = vpack.c.b16 %v3750, %v3746
  %v3787 = vpack.c.b16 %v3751, %v3747
  %v3788 = vpack.c.b16 %v3752, %v3748
  %v3789 = vpack.c.b16 %v3753, %v3749
  %v3790 = vpack.c.b16 %v3758, %v3754
  %v3791 = vpack.c.b16 %v3759, %v3755
  %v3792 = vpack.c.b16 %v3760, %v3756
  %v3793 = vpack.c.b16 %v3761, %v3757
  %3826 = vmatprep.subr.bf16.mxu0 %v3763
  %3827 = vmatpush1.bf16.msra.mxu0 %v3762
  %3828 = vmatprep.subr.bf16.mxu0 %v3767
  %3829 = vmatpush1.bf16.msra.mxu0 %v3766
  %3830 = vmatprep.subr.bf16.mxu0 %v3771
  %3831 = vmatpush1.bf16.msra.mxu0 %v3770
  %3832 = vmatprep.subr.bf16.mxu0 %v3775
  %3833 = vmatpush1.bf16.msra.mxu0 %v3774
  %3834 = vmatprep.subr.bf16.mxu0 %v3779
  %3835 = vmatpush1.bf16.msra.mxu0 %v3778
  %3836 = vmatprep.subr.bf16.mxu0 %v3783
  %3837 = vmatpush1.bf16.msra.mxu0 %v3782
  %3838 = vmatprep.subr.bf16.mxu0 %v3787
  %3839 = vmatpush1.bf16.msra.mxu0 %v3786
  %3840 = vmatprep.subr.bf16.mxu0 %v3791
  %3841 = vmatpush1.bf16.msra.mxu0 %v3790
  %3842 = vmatprep.subr.bf16.mxu0 0
  %3843 = vmatpush1.bf16.msra.mxu0 0
  %3844 = vmatprep.subr.bf16.mxu0 0
  %3845 = vmatpush1.bf16.msra.mxu0 0
  %3846 = vmatprep.subr.bf16.mxu0 0
  %3847 = vmatpush1.bf16.msra.mxu0 0
  %3848 = vmatprep.subr.bf16.mxu0 0
  %3849 = vmatpush1.bf16.msra.mxu0 0
  %3850 = vmatprep.subr.bf16.mxu0 0
  %3851 = vmatpush1.bf16.msra.mxu0 0
  %3852 = vmatprep.subr.bf16.mxu0 0
  %3853 = vmatpush1.bf16.msra.mxu0 0
  %3854 = vmatprep.subr.bf16.mxu0 0
  %3855 = vmatpush1.bf16.msra.mxu0 0
  %3856 = vmatprep.subr.bf16.mxu0 0
  %3857 = vmatpush1.bf16.msra.mxu0 0
  %3858 = vmatprep.mubr.bf16.mxu0 0
  %3859 = vmatmul.mubr.bf16.gmra.mrb[0].mxu0 %v3633
  %v3860 = vpop.f32.mrb[0].mxu0
  %v3861 = vadd.f32 0.0, %v3860
  %v3862 = vpop.f32.mrb[0].mxu0
  %v3863 = vadd.f32 0.0, %v3862
  %v3864 = vpop.f32.mrb[0].mxu0
  %v3865 = vpop.f32.mrb[0].mxu0
  %3866 = vdwg.mxu0
  %3867 = vmatprep.subr.bf16.mxu0 %v3765
  %3868 = vmatpush1.bf16.msra.mxu0 %v3764
  %3869 = vmatprep.subr.bf16.mxu0 %v3769
  %3870 = vmatpush1.bf16.msra.mxu0 %v3768
  %3871 = vmatprep.subr.bf16.mxu0 %v3773
  %3872 = vmatpush1.bf16.msra.mxu0 %v3772
  %3873 = vmatprep.subr.bf16.mxu0 %v3777
  %3874 = vmatpush1.bf16.msra.mxu0 %v3776
  %3875 = vmatprep.subr.bf16.mxu0 %v3781
  %3876 = vmatpush1.bf16.msra.mxu0 %v3780
  %3877 = vmatprep.subr.bf16.mxu0 %v3785
  %3878 = vmatpush1.bf16.msra.mxu0 %v3784
  %3879 = vmatprep.subr.bf16.mxu0 %v3789
  %3880 = vmatpush1.bf16.msra.mxu0 %v3788
  %3881 = vmatprep.subr.bf16.mxu0 %v3793
  %3882 = vmatpush1.bf16.msra.mxu0 %v3792
  %3883 = vmatprep.subr.bf16.mxu0 0
  %3884 = vmatpush1.bf16.msra.mxu0 0
  %3885 = vmatprep.subr.bf16.mxu0 0
  %3886 = vmatpush1.bf16.msra.mxu0 0
  %3887 = vmatprep.subr.bf16.mxu0 0
  %3888 = vmatpush1.bf16.msra.mxu0 0
  %3889 = vmatprep.subr.bf16.mxu0 0
  %3890 = vmatpush1.bf16.msra.mxu0 0
  %3891 = vmatprep.subr.bf16.mxu0 0
  %3892 = vmatpush1.bf16.msra.mxu0 0
  %3893 = vmatprep.subr.bf16.mxu0 0
  %3894 = vmatpush1.bf16.msra.mxu0 0
  %3895 = vmatprep.subr.bf16.mxu0 0
  %3896 = vmatpush1.bf16.msra.mxu0 0
  %3897 = vmatprep.subr.bf16.mxu0 0
  %3898 = vmatpush1.bf16.msra.mxu0 0
  %3899 = vmatprep.mubr.bf16.mxu0 0
  %3900 = vmatmul.mubr.bf16.gmra.mrb[0].mxu0 %v3633
  %v3901 = vpop.f32.mrb[0].mxu0
  %v3902 = vadd.f32 0.0, %v3901
  %v3903 = vpop.f32.mrb[0].mxu0
  %v3904 = vadd.f32 0.0, %v3903
  %v3905 = vpop.f32.mrb[0].mxu0
  %v3906 = vpop.f32.mrb[0].mxu0
  %3907 = vdwg.mxu0
  %v3908 = vunpack.c.l.bf16 %v3632
  %v3913 = vcombine.low %v3861, %v3863
  %v3914 = vcombine.low %v3902, %v3904
  %v3916 = vunpack.c.l.s4 1983009808
  %v3917 = vunpack.c.0.s8 %v3916
  %v3918 = vlaneseq
  %v3919 = vshrl.u32 %v3918, 7
  %v3920 = vsub.s32 %v3917, %v3919
  %v3921 = vrot.slane %v3913, %v3920
  %v3923 = vunpack.c.l.s4 1983009808
  %v3924 = vunpack.c.0.s8 %v3923
  %v3925 = vlaneseq
  %v3926 = vshrl.u32 %v3925, 7
  %v3927 = vsub.s32 %v3924, %v3926
  %v3928 = vrot.slane %v3914, %v3927
  %v3929 = vcombine.low %v3921, %v3928
  %v3931 = vadd.f32 %v3908, %v3929
  %s3932 = scalar_lea.vmem %s63, 8
  %v3933 = vld [vmem:[%s3932] sm:$0xf]
  %v3934 = vpack.c.bf16 %v3621, %v3621
  %v3935 = vld [vmem:[%s5] sm:$0xff]
  %v3936 = vld [vmem:[%s5 + $0x8] sm:$0xff]
  %v3937 = vld [vmem:[%s5 + $0x10] sm:$0xff]
  %v3938 = vld [vmem:[%s5 + $0x18] sm:$0xff]
  %v3939 = vld [vmem:[%s5 + $0x20] sm:$0xff]
  %v3940 = vld [vmem:[%s5 + $0x28] sm:$0xff]
  %v3941 = vld [vmem:[%s5 + $0x30] sm:$0xff]
  %v3942 = vld [vmem:[%s5 + $0x38] sm:$0xff]
  %v3943 = vld [vmem:[%s5 + $0x40] sm:$0xff]
  %v3944 = vld [vmem:[%s5 + $0x48] sm:$0xff]
  %v3945 = vld [vmem:[%s5 + $0x50] sm:$0xff]
  %v3946 = vld [vmem:[%s5 + $0x58] sm:$0xff]
  %v3947 = vld [vmem:[%s5 + $0x60] sm:$0xff]
  %v3948 = vld [vmem:[%s5 + $0x68] sm:$0xff]
  %v3949 = vld [vmem:[%s5 + $0x70] sm:$0xff]
  %v3950 = vld [vmem:[%s5 + $0x78] sm:$0xff]
  %v3951 = vld [vmem:[%s5 + $0x80] sm:$0xff]
  %v3952 = vld [vmem:[%s5 + $0x88] sm:$0xff]
  %v3953 = vld [vmem:[%s5 + $0x90] sm:$0xff]
  %v3954 = vld [vmem:[%s5 + $0x98] sm:$0xff]
  %v3955 = vld [vmem:[%s5 + $0xa0] sm:$0xff]
  %v3956 = vld [vmem:[%s5 + $0xa8] sm:$0xff]
  %v3957 = vld [vmem:[%s5 + $0xb0] sm:$0xff]
  %v3958 = vld [vmem:[%s5 + $0xb8] sm:$0xff]
  %v3959 = vld [vmem:[%s5 + $0xc0] sm:$0xff]
  %v3960 = vld [vmem:[%s5 + $0xc8] sm:$0xff]
  %v3961 = vld [vmem:[%s5 + $0xd0] sm:$0xff]
  %v3962 = vld [vmem:[%s5 + $0xd8] sm:$0xff]
  %v3963 = vld [vmem:[%s5 + $0xe0] sm:$0xff]
  %v3964 = vld [vmem:[%s5 + $0xe8] sm:$0xff]
  %v3965 = vld [vmem:[%s5 + $0xf0] sm:$0xff]
  %v3966 = vld [vmem:[%s5 + $0xf8] sm:$0xff]
  %v3999 = vunpack.c.l.b16 %v3935
  %v4000 = vunpack.c.h.b16 %v3935
  %v4001 = vunpack.c.l.b16 %v3936
  %v4002 = vunpack.c.h.b16 %v3936
  %v4003 = vunpack.c.l.b16 %v3937
  %v4004 = vunpack.c.h.b16 %v3937
  %v4005 = vunpack.c.l.b16 %v3938
  %v4006 = vunpack.c.h.b16 %v3938
  %v4007 = vunpack.c.l.b16 %v3939
  %v4008 = vunpack.c.h.b16 %v3939
  %v4009 = vunpack.c.l.b16 %v3940
  %v4010 = vunpack.c.h.b16 %v3940
  %v4011 = vunpack.c.l.b16 %v3941
  %v4012 = vunpack.c.h.b16 %v3941
  %v4013 = vunpack.c.l.b16 %v3942
  %v4014 = vunpack.c.h.b16 %v3942
  %v4015 = vunpack.c.l.b16 %v3943
  %v4016 = vunpack.c.h.b16 %v3943
  %v4017 = vunpack.c.l.b16 %v3944
  %v4018 = vunpack.c.h.b16 %v3944
  %v4019 = vunpack.c.l.b16 %v3945
  %v4020 = vunpack.c.h.b16 %v3945
  %v4021 = vunpack.c.l.b16 %v3946
  %v4022 = vunpack.c.h.b16 %v3946
  %v4023 = vunpack.c.l.b16 %v3947
  %v4024 = vunpack.c.h.b16 %v3947
  %v4025 = vunpack.c.l.b16 %v3948
  %v4026 = vunpack.c.h.b16 %v3948
  %v4027 = vunpack.c.l.b16 %v3949
  %v4028 = vunpack.c.h.b16 %v3949
  %v4029 = vunpack.c.l.b16 %v3950
  %v4030 = vunpack.c.h.b16 %v3950
  %v4031 = vunpack.c.l.b16 %v3951
  %v4032 = vunpack.c.h.b16 %v3951
  %v4033 = vunpack.c.l.b16 %v3952
  %v4034 = vunpack.c.h.b16 %v3952
  %v4035 = vunpack.c.l.b16 %v3953
  %v4036 = vunpack.c.h.b16 %v3953
  %v4037 = vunpack.c.l.b16 %v3954
  %v4038 = vunpack.c.h.b16 %v3954
  %v4039 = vunpack.c.l.b16 %v3955
  %v4040 = vunpack.c.h.b16 %v3955
  %v4041 = vunpack.c.l.b16 %v3956
  %v4042 = vunpack.c.h.b16 %v3956
  %v4043 = vunpack.c.l.b16 %v3957
  %v4044 = vunpack.c.h.b16 %v3957
  %v4045 = vunpack.c.l.b16 %v3958
  %v4046 = vunpack.c.h.b16 %v3958
  %v4047 = vunpack.c.l.b16 %v3959
  %v4048 = vunpack.c.h.b16 %v3959
  %v4049 = vunpack.c.l.b16 %v3960
  %v4050 = vunpack.c.h.b16 %v3960
  %v4051 = vunpack.c.l.b16 %v3961
  %v4052 = vunpack.c.h.b16 %v3961
  %v4053 = vunpack.c.l.b16 %v3962
  %v4054 = vunpack.c.h.b16 %v3962
  %v4055 = vunpack.c.l.b16 %v3963
  %v4056 = vunpack.c.h.b16 %v3963
  %v4057 = vunpack.c.l.b16 %v3964
  %v4058 = vunpack.c.h.b16 %v3964
  %v4059 = vunpack.c.l.b16 %v3965
  %v4060 = vunpack.c.h.b16 %v3965
  %v4061 = vunpack.c.l.b16 %v3966
  %v4062 = vunpack.c.h.b16 %v3966
  %v4063 = vpack.c.b16 %v4003, %v3999
  %v4064 = vpack.c.b16 %v4004, %v4000
  %v4065 = vpack.c.b16 %v4005, %v4001
  %v4066 = vpack.c.b16 %v4006, %v4002
  %v4067 = vpack.c.b16 %v4011, %v4007
  %v4068 = vpack.c.b16 %v4012, %v4008
  %v4069 = vpack.c.b16 %v4013, %v4009
  %v4070 = vpack.c.b16 %v4014, %v4010
  %v4071 = vpack.c.b16 %v4019, %v4015
  %v4072 = vpack.c.b16 %v4020, %v4016
  %v4073 = vpack.c.b16 %v4021, %v4017
  %v4074 = vpack.c.b16 %v4022, %v4018
  %v4075 = vpack.c.b16 %v4027, %v4023
  %v4076 = vpack.c.b16 %v4028, %v4024
  %v4077 = vpack.c.b16 %v4029, %v4025
  %v4078 = vpack.c.b16 %v4030, %v4026
  %v4079 = vpack.c.b16 %v4035, %v4031
  %v4080 = vpack.c.b16 %v4036, %v4032
  %v4081 = vpack.c.b16 %v4037, %v4033
  %v4082 = vpack.c.b16 %v4038, %v4034
  %v4083 = vpack.c.b16 %v4043, %v4039
  %v4084 = vpack.c.b16 %v4044, %v4040
  %v4085 = vpack.c.b16 %v4045, %v4041
  %v4086 = vpack.c.b16 %v4046, %v4042
  %v4087 = vpack.c.b16 %v4051, %v4047
  %v4088 = vpack.c.b16 %v4052, %v4048
  %v4089 = vpack.c.b16 %v4053, %v4049
  %v4090 = vpack.c.b16 %v4054, %v4050
  %v4091 = vpack.c.b16 %v4059, %v4055
  %v4092 = vpack.c.b16 %v4060, %v4056
  %v4093 = vpack.c.b16 %v4061, %v4057
  %v4094 = vpack.c.b16 %v4062, %v4058
  %4127 = vmatprep.subr.bf16.mxu0 %v4064
  %4128 = vmatpush1.bf16.msra.mxu0 %v4063
  %4129 = vmatprep.subr.bf16.mxu0 %v4068
  %4130 = vmatpush1.bf16.msra.mxu0 %v4067
  %4131 = vmatprep.subr.bf16.mxu0 %v4072
  %4132 = vmatpush1.bf16.msra.mxu0 %v4071
  %4133 = vmatprep.subr.bf16.mxu0 %v4076
  %4134 = vmatpush1.bf16.msra.mxu0 %v4075
  %4135 = vmatprep.subr.bf16.mxu0 %v4080
  %4136 = vmatpush1.bf16.msra.mxu0 %v4079
  %4137 = vmatprep.subr.bf16.mxu0 %v4084
  %4138 = vmatpush1.bf16.msra.mxu0 %v4083
  %4139 = vmatprep.subr.bf16.mxu0 %v4088
  %4140 = vmatpush1.bf16.msra.mxu0 %v4087
  %4141 = vmatprep.subr.bf16.mxu0 %v4092
  %4142 = vmatpush1.bf16.msra.mxu0 %v4091
  %4143 = vmatprep.subr.bf16.mxu0 0
  %4144 = vmatpush1.bf16.msra.mxu0 0
  %4145 = vmatprep.subr.bf16.mxu0 0
  %4146 = vmatpush1.bf16.msra.mxu0 0
  %4147 = vmatprep.subr.bf16.mxu0 0
  %4148 = vmatpush1.bf16.msra.mxu0 0
  %4149 = vmatprep.subr.bf16.mxu0 0
  %4150 = vmatpush1.bf16.msra.mxu0 0
  %4151 = vmatprep.subr.bf16.mxu0 0
  %4152 = vmatpush1.bf16.msra.mxu0 0
  %4153 = vmatprep.subr.bf16.mxu0 0
  %4154 = vmatpush1.bf16.msra.mxu0 0
  %4155 = vmatprep.subr.bf16.mxu0 0
  %4156 = vmatpush1.bf16.msra.mxu0 0
  %4157 = vmatprep.subr.bf16.mxu0 0
  %4158 = vmatpush1.bf16.msra.mxu0 0
  %4159 = vmatprep.mubr.bf16.mxu0 0
  %4160 = vmatmul.mubr.bf16.gmra.mrb[0].mxu0 %v3934
  %v4161 = vpop.f32.mrb[0].mxu0
  %v4162 = vadd.f32 0.0, %v4161
  %v4163 = vpop.f32.mrb[0].mxu0
  %v4164 = vadd.f32 0.0, %v4163
  %v4165 = vpop.f32.mrb[0].mxu0
  %v4166 = vpop.f32.mrb[0].mxu0
  %4167 = vdwg.mxu0
  %4168 = vmatprep.subr.bf16.mxu0 %v4066
  %4169 = vmatpush1.bf16.msra.mxu0 %v4065
  %4170 = vmatprep.subr.bf16.mxu0 %v4070
  %4171 = vmatpush1.bf16.msra.mxu0 %v4069
  %4172 = vmatprep.subr.bf16.mxu0 %v4074
  %4173 = vmatpush1.bf16.msra.mxu0 %v4073
  %4174 = vmatprep.subr.bf16.mxu0 %v4078
  %4175 = vmatpush1.bf16.msra.mxu0 %v4077
  %4176 = vmatprep.subr.bf16.mxu0 %v4082
  %4177 = vmatpush1.bf16.msra.mxu0 %v4081
  %4178 = vmatprep.subr.bf16.mxu0 %v4086
  %4179 = vmatpush1.bf16.msra.mxu0 %v4085
  %4180 = vmatprep.subr.bf16.mxu0 %v4090
  %4181 = vmatpush1.bf16.msra.mxu0 %v4089
  %4182 = vmatprep.subr.bf16.mxu0 %v4094
  %4183 = vmatpush1.bf16.msra.mxu0 %v4093
  %4184 = vmatprep.subr.bf16.mxu0 0
  %4185 = vmatpush1.bf16.msra.mxu0 0
  %4186 = vmatprep.subr.bf16.mxu0 0
  %4187 = vmatpush1.bf16.msra.mxu0 0
  %4188 = vmatprep.subr.bf16.mxu0 0
  %4189 = vmatpush1.bf16.msra.mxu0 0
  %4190 = vmatprep.subr.bf16.mxu0 0
  %4191 = vmatpush1.bf16.msra.mxu0 0
  %4192 = vmatprep.subr.bf16.mxu0 0
  %4193 = vmatpush1.bf16.msra.mxu0 0
  %4194 = vmatprep.subr.bf16.mxu0 0
  %4195 = vmatpush1.bf16.msra.mxu0 0
  %4196 = vmatprep.subr.bf16.mxu0 0
  %4197 = vmatpush1.bf16.msra.mxu0 0
  %4198 = vmatprep.subr.bf16.mxu0 0
  %4199 = vmatpush1.bf16.msra.mxu0 0
  %4200 = vmatprep.mubr.bf16.mxu0 0
  %4201 = vmatmul.mubr.bf16.gmra.mrb[0].mxu0 %v3934
  %v4202 = vpop.f32.mrb[0].mxu0
  %v4203 = vadd.f32 0.0, %v4202
  %v4204 = vpop.f32.mrb[0].mxu0
  %v4205 = vadd.f32 0.0, %v4204
  %v4206 = vpop.f32.mrb[0].mxu0
  %v4207 = vpop.f32.mrb[0].mxu0
  %4208 = vdwg.mxu0
  %v4209 = vunpack.c.l.bf16 %v3933
  %v4214 = vcombine.low %v4162, %v4164
  %v4215 = vcombine.low %v4203, %v4205
  %v4217 = vunpack.c.l.s4 1983009808
  %v4218 = vunpack.c.0.s8 %v4217
  %v4219 = vlaneseq
  %v4220 = vshrl.u32 %v4219, 7
  %v4221 = vsub.s32 %v4218, %v4220
  %v4222 = vrot.slane %v4214, %v4221
  %v4224 = vunpack.c.l.s4 1983009808
  %v4225 = vunpack.c.0.s8 %v4224
  %v4226 = vlaneseq
  %v4227 = vshrl.u32 %v4226, 7
  %v4228 = vsub.s32 %v4225, %v4227
  %v4229 = vrot.slane %v4215, %v4228
  %v4230 = vcombine.low %v4222, %v4229
  %v4232 = vadd.f32 %v4209, %v4230
  %s4233 = scalar_lea.vmem %s1, 10
  %v4234 = vld [vmem:[%s4233] sm:$0x3]
  %v4235 = vxor.u32 %v3931, 2147483648
  %v4236 = vmul.f32 %v4235, 1.442695
  %v4237 = vpow.pop %v4236
  %v4238 = vadd.f32 %v4237, 1.0
  %v4239 = vrcp.pop %v4238
  %v4240 = vmul.f32 1.0, %v4239
  %v4242 = vrot.slane %v3931, 2
  %v4244 = vxor.u32 %v4242, 2147483648
  %v4245 = vmul.f32 %v4244, 1.442695
  %v4246 = vpow.pop %v4245
  %v4247 = vadd.f32 %v4246, 1.0
  %v4248 = vrcp.pop %v4247
  %v4249 = vmul.f32 1.0, %v4248
  %v4250 = vrot.slane %v3931, 4
  %v4252 = vtanh.pop %v4250
  %v4253 = vrot.slane %v3931, 6
  %v4255 = vxor.u32 %v4253, 2147483648
  %v4256 = vmul.f32 %v4255, 1.442695
  %v4257 = vpow.pop %v4256
  %v4258 = vadd.f32 %v4257, 1.0
  %v4259 = vrcp.pop %v4258
  %v4260 = vmul.f32 1.0, %v4259
  %v4261 = vmul.f32 %v4249, %v3574
  %v4262 = vmul.f32 %v4240, %v4252
  %v4263 = vadd.f32 %v4261, %v4262
  %v4264 = vtanh.pop %v4263
  %v4265 = vmul.f32 %v4260, %v4264
  %4267 = vset.pattern.permute.xlu0 0
  %4268 = vperm.xlu0 %4267, %v4234
  %v4269 = vpop.permute.xlu0 %4268
  %v4271 = vmul.f32 %v4269, %v4265
  %v4272 = vsub.f32 1.0, %v4234
  %4274 = vset.pattern.permute.xlu0 0
  %4275 = vperm.xlu0 %4274, %v4272
  %v4276 = vpop.permute.xlu0 %4275
  %v4278 = vmul.f32 %v4276, %v3571
  %v4279 = vadd.f32 %v4271, %v4278
  %v4280 = vmul.f32 %v4269, %v4263
  %v4281 = vmul.f32 %v4276, %v3574
  %v4282 = vadd.f32 %v4280, %v4281
  %s4283 = scalar_lea.vmem %s71, 4
  %v4284 = vld [vmem:[%s4283] sm:$0x3]
  %v4285 = vxor.u32 %v4232, 2147483648
  %v4286 = vmul.f32 %v4285, 1.442695
  %v4287 = vpow.pop %v4286
  %v4288 = vadd.f32 %v4287, 1.0
  %v4289 = vrcp.pop %v4288
  %v4290 = vmul.f32 1.0, %v4289
  %v4292 = vrot.slane %v4232, 2
  %v4294 = vxor.u32 %v4292, 2147483648
  %v4295 = vmul.f32 %v4294, 1.442695
  %v4296 = vpow.pop %v4295
  %v4297 = vadd.f32 %v4296, 1.0
  %v4298 = vrcp.pop %v4297
  %v4299 = vmul.f32 1.0, %v4298
  %v4300 = vrot.slane %v4232, 4
  %v4302 = vtanh.pop %v4300
  %v4303 = vrot.slane %v4232, 6
  %v4305 = vxor.u32 %v4303, 2147483648
  %v4306 = vmul.f32 %v4305, 1.442695
  %v4307 = vpow.pop %v4306
  %v4308 = vadd.f32 %v4307, 1.0
  %v4309 = vrcp.pop %v4308
  %v4310 = vmul.f32 1.0, %v4309
  %v4311 = vmul.f32 %v4299, %v3624
  %v4312 = vmul.f32 %v4290, %v4302
  %v4313 = vadd.f32 %v4311, %v4312
  %v4314 = vtanh.pop %v4313
  %v4315 = vmul.f32 %v4310, %v4314
  %4317 = vset.pattern.permute.xlu0 0
  %4318 = vperm.xlu0 %4317, %v4284
  %v4319 = vpop.permute.xlu0 %4318
  %v4321 = vmul.f32 %v4319, %v4315
  %v4322 = vsub.f32 1.0, %v4284
  %4324 = vset.pattern.permute.xlu0 0
  %4325 = vperm.xlu0 %4324, %v4322
  %v4326 = vpop.permute.xlu0 %4325
  %v4328 = vmul.f32 %v4326, %v3621
  %v4329 = vadd.f32 %v4321, %v4328
  %v4330 = vmul.f32 %v4319, %v4313
  %v4331 = vmul.f32 %v4326, %v3624
  %v4332 = vadd.f32 %v4330, %v4331
  %v4333 = vpack.c.bf16 %v4271, %v4271
  %s4334 = scalar_lea.vmem %s6, 5
  %4335 = vst [vmem:[%s4334] sm:$0x1] %v4333
  %v4336 = vpack.c.bf16 %v4321, %v4321
  %s4337 = scalar_lea.vmem %s78, 2
  %4338 = vst [vmem:[%s4337] sm:$0x1] %v4336
  %s4339 = scalar_lea.vmem %s0, 24
  %v4340 = vld [vmem:[%s4339] sm:$0xf]
  %v4341 = vpack.c.bf16 %v4279, %v4279
  %v4342 = vld [vmem:[%s2] sm:$0xff]
  %v4343 = vld [vmem:[%s2 + $0x8] sm:$0xff]
  %v4344 = vld [vmem:[%s2 + $0x10] sm:$0xff]
  %v4345 = vld [vmem:[%s2 + $0x18] sm:$0xff]
  %v4346 = vld [vmem:[%s2 + $0x20] sm:$0xff]
  %v4347 = vld [vmem:[%s2 + $0x28] sm:$0xff]
  %v4348 = vld [vmem:[%s2 + $0x30] sm:$0xff]
  %v4349 = vld [vmem:[%s2 + $0x38] sm:$0xff]
  %v4350 = vld [vmem:[%s2 + $0x40] sm:$0xff]
  %v4351 = vld [vmem:[%s2 + $0x48] sm:$0xff]
  %v4352 = vld [vmem:[%s2 + $0x50] sm:$0xff]
  %v4353 = vld [vmem:[%s2 + $0x58] sm:$0xff]
  %v4354 = vld [vmem:[%s2 + $0x60] sm:$0xff]
  %v4355 = vld [vmem:[%s2 + $0x68] sm:$0xff]
  %v4356 = vld [vmem:[%s2 + $0x70] sm:$0xff]
  %v4357 = vld [vmem:[%s2 + $0x78] sm:$0xff]
  %v4358 = vld [vmem:[%s2 + $0x80] sm:$0xff]
  %v4359 = vld [vmem:[%s2 + $0x88] sm:$0xff]
  %v4360 = vld [vmem:[%s2 + $0x90] sm:$0xff]
  %v4361 = vld [vmem:[%s2 + $0x98] sm:$0xff]
  %v4362 = vld [vmem:[%s2 + $0xa0] sm:$0xff]
  %v4363 = vld [vmem:[%s2 + $0xa8] sm:$0xff]
  %v4364 = vld [vmem:[%s2 + $0xb0] sm:$0xff]
  %v4365 = vld [vmem:[%s2 + $0xb8] sm:$0xff]
  %v4366 = vld [vmem:[%s2 + $0xc0] sm:$0xff]
  %v4367 = vld [vmem:[%s2 + $0xc8] sm:$0xff]
  %v4368 = vld [vmem:[%s2 + $0xd0] sm:$0xff]
  %v4369 = vld [vmem:[%s2 + $0xd8] sm:$0xff]
  %v4370 = vld [vmem:[%s2 + $0xe0] sm:$0xff]
  %v4371 = vld [vmem:[%s2 + $0xe8] sm:$0xff]
  %v4372 = vld [vmem:[%s2 + $0xf0] sm:$0xff]
  %v4373 = vld [vmem:[%s2 + $0xf8] sm:$0xff]
  %v4406 = vunpack.c.l.b16 %v4342
  %v4407 = vunpack.c.h.b16 %v4342
  %v4408 = vunpack.c.l.b16 %v4343
  %v4409 = vunpack.c.h.b16 %v4343
  %v4410 = vunpack.c.l.b16 %v4344
  %v4411 = vunpack.c.h.b16 %v4344
  %v4412 = vunpack.c.l.b16 %v4345
  %v4413 = vunpack.c.h.b16 %v4345
  %v4414 = vunpack.c.l.b16 %v4346
  %v4415 = vunpack.c.h.b16 %v4346
  %v4416 = vunpack.c.l.b16 %v4347
  %v4417 = vunpack.c.h.b16 %v4347
  %v4418 = vunpack.c.l.b16 %v4348
  %v4419 = vunpack.c.h.b16 %v4348
  %v4420 = vunpack.c.l.b16 %v4349
  %v4421 = vunpack.c.h.b16 %v4349
  %v4422 = vunpack.c.l.b16 %v4350
  %v4423 = vunpack.c.h.b16 %v4350
  %v4424 = vunpack.c.l.b16 %v4351
  %v4425 = vunpack.c.h.b16 %v4351
  %v4426 = vunpack.c.l.b16 %v4352
  %v4427 = vunpack.c.h.b16 %v4352
  %v4428 = vunpack.c.l.b16 %v4353
  %v4429 = vunpack.c.h.b16 %v4353
  %v4430 = vunpack.c.l.b16 %v4354
  %v4431 = vunpack.c.h.b16 %v4354
  %v4432 = vunpack.c.l.b16 %v4355
  %v4433 = vunpack.c.h.b16 %v4355
  %v4434 = vunpack.c.l.b16 %v4356
  %v4435 = vunpack.c.h.b16 %v4356
  %v4436 = vunpack.c.l.b16 %v4357
  %v4437 = vunpack.c.h.b16 %v4357
  %v4438 = vunpack.c.l.b16 %v4358
  %v4439 = vunpack.c.h.b16 %v4358
  %v4440 = vunpack.c.l.b16 %v4359
  %v4441 = vunpack.c.h.b16 %v4359
  %v4442 = vunpack.c.l.b16 %v4360
  %v4443 = vunpack.c.h.b16 %v4360
  %v4444 = vunpack.c.l.b16 %v4361
  %v4445 = vunpack.c.h.b16 %v4361
  %v4446 = vunpack.c.l.b16 %v4362
  %v4447 = vunpack.c.h.b16 %v4362
  %v4448 = vunpack.c.l.b16 %v4363
  %v4449 = vunpack.c.h.b16 %v4363
  %v4450 = vunpack.c.l.b16 %v4364
  %v4451 = vunpack.c.h.b16 %v4364
  %v4452 = vunpack.c.l.b16 %v4365
  %v4453 = vunpack.c.h.b16 %v4365
  %v4454 = vunpack.c.l.b16 %v4366
  %v4455 = vunpack.c.h.b16 %v4366
  %v4456 = vunpack.c.l.b16 %v4367
  %v4457 = vunpack.c.h.b16 %v4367
  %v4458 = vunpack.c.l.b16 %v4368
  %v4459 = vunpack.c.h.b16 %v4368
  %v4460 = vunpack.c.l.b16 %v4369
  %v4461 = vunpack.c.h.b16 %v4369
  %v4462 = vunpack.c.l.b16 %v4370
  %v4463 = vunpack.c.h.b16 %v4370
  %v4464 = vunpack.c.l.b16 %v4371
  %v4465 = vunpack.c.h.b16 %v4371
  %v4466 = vunpack.c.l.b16 %v4372
  %v4467 = vunpack.c.h.b16 %v4372
  %v4468 = vunpack.c.l.b16 %v4373
  %v4469 = vunpack.c.h.b16 %v4373
  %v4470 = vpack.c.b16 %v4410, %v4406
  %v4471 = vpack.c.b16 %v4411, %v4407
  %v4472 = vpack.c.b16 %v4412, %v4408
  %v4473 = vpack.c.b16 %v4413, %v4409
  %v4474 = vpack.c.b16 %v4418, %v4414
  %v4475 = vpack.c.b16 %v4419, %v4415
  %v4476 = vpack.c.b16 %v4420, %v4416
  %v4477 = vpack.c.b16 %v4421, %v4417
  %v4478 = vpack.c.b16 %v4426, %v4422
  %v4479 = vpack.c.b16 %v4427, %v4423
  %v4480 = vpack.c.b16 %v4428, %v4424
  %v4481 = vpack.c.b16 %v4429, %v4425
  %v4482 = vpack.c.b16 %v4434, %v4430
  %v4483 = vpack.c.b16 %v4435, %v4431
  %v4484 = vpack.c.b16 %v4436, %v4432
  %v4485 = vpack.c.b16 %v4437, %v4433
  %v4486 = vpack.c.b16 %v4442, %v4438
  %v4487 = vpack.c.b16 %v4443, %v4439
  %v4488 = vpack.c.b16 %v4444, %v4440
  %v4489 = vpack.c.b16 %v4445, %v4441
  %v4490 = vpack.c.b16 %v4450, %v4446
  %v4491 = vpack.c.b16 %v4451, %v4447
  %v4492 = vpack.c.b16 %v4452, %v4448
  %v4493 = vpack.c.b16 %v4453, %v4449
  %v4494 = vpack.c.b16 %v4458, %v4454
  %v4495 = vpack.c.b16 %v4459, %v4455
  %v4496 = vpack.c.b16 %v4460, %v4456
  %v4497 = vpack.c.b16 %v4461, %v4457
  %v4498 = vpack.c.b16 %v4466, %v4462
  %v4499 = vpack.c.b16 %v4467, %v4463
  %v4500 = vpack.c.b16 %v4468, %v4464
  %v4501 = vpack.c.b16 %v4469, %v4465
  %4534 = vmatprep.subr.bf16.mxu0 %v4471
  %4535 = vmatpush1.bf16.msra.mxu0 %v4470
  %4536 = vmatprep.subr.bf16.mxu0 %v4475
  %4537 = vmatpush1.bf16.msra.mxu0 %v4474
  %4538 = vmatprep.subr.bf16.mxu0 %v4479
  %4539 = vmatpush1.bf16.msra.mxu0 %v4478
  %4540 = vmatprep.subr.bf16.mxu0 %v4483
  %4541 = vmatpush1.bf16.msra.mxu0 %v4482
  %4542 = vmatprep.subr.bf16.mxu0 %v4487
  %4543 = vmatpush1.bf16.msra.mxu0 %v4486
  %4544 = vmatprep.subr.bf16.mxu0 %v4491
  %4545 = vmatpush1.bf16.msra.mxu0 %v4490
  %4546 = vmatprep.subr.bf16.mxu0 %v4495
  %4547 = vmatpush1.bf16.msra.mxu0 %v4494
  %4548 = vmatprep.subr.bf16.mxu0 %v4499
  %4549 = vmatpush1.bf16.msra.mxu0 %v4498
  %4550 = vmatprep.subr.bf16.mxu0 0
  %4551 = vmatpush1.bf16.msra.mxu0 0
  %4552 = vmatprep.subr.bf16.mxu0 0
  %4553 = vmatpush1.bf16.msra.mxu0 0
  %4554 = vmatprep.subr.bf16.mxu0 0
  %4555 = vmatpush1.bf16.msra.mxu0 0
  %4556 = vmatprep.subr.bf16.mxu0 0
  %4557 = vmatpush1.bf16.msra.mxu0 0
  %4558 = vmatprep.subr.bf16.mxu0 0
  %4559 = vmatpush1.bf16.msra.mxu0 0
  %4560 = vmatprep.subr.bf16.mxu0 0
  %4561 = vmatpush1.bf16.msra.mxu0 0
  %4562 = vmatprep.subr.bf16.mxu0 0
  %4563 = vmatpush1.bf16.msra.mxu0 0
  %4564 = vmatprep.subr.bf16.mxu0 0
  %4565 = vmatpush1.bf16.msra.mxu0 0
  %4566 = vmatprep.mubr.bf16.mxu0 0
  %4567 = vmatmul.mubr.bf16.gmra.mrb[0].mxu0 %v4341
  %v4568 = vpop.f32.mrb[0].mxu0
  %v4569 = vadd.f32 0.0, %v4568
  %v4570 = vpop.f32.mrb[0].mxu0
  %v4571 = vadd.f32 0.0, %v4570
  %v4572 = vpop.f32.mrb[0].mxu0
  %v4573 = vpop.f32.mrb[0].mxu0
  %4574 = vdwg.mxu0
  %4575 = vmatprep.subr.bf16.mxu0 %v4473
  %4576 = vmatpush1.bf16.msra.mxu0 %v4472
  %4577 = vmatprep.subr.bf16.mxu0 %v4477
  %4578 = vmatpush1.bf16.msra.mxu0 %v4476
  %4579 = vmatprep.subr.bf16.mxu0 %v4481
  %4580 = vmatpush1.bf16.msra.mxu0 %v4480
  %4581 = vmatprep.subr.bf16.mxu0 %v4485
  %4582 = vmatpush1.bf16.msra.mxu0 %v4484
  %4583 = vmatprep.subr.bf16.mxu0 %v4489
  %4584 = vmatpush1.bf16.msra.mxu0 %v4488
  %4585 = vmatprep.subr.bf16.mxu0 %v4493
  %4586 = vmatpush1.bf16.msra.mxu0 %v4492
  %4587 = vmatprep.subr.bf16.mxu0 %v4497
  %4588 = vmatpush1.bf16.msra.mxu0 %v4496
  %4589 = vmatprep.subr.bf16.mxu0 %v4501
  %4590 = vmatpush1.bf16.msra.mxu0 %v4500
  %4591 = vmatprep.subr.bf16.mxu0 0
  %4592 = vmatpush1.bf16.msra.mxu0 0
  %4593 = vmatprep.subr.bf16.mxu0 0
  %4594 = vmatpush1.bf16.msra.mxu0 0
  %4595 = vmatprep.subr.bf16.mxu0 0
  %4596 = vmatpush1.bf16.msra.mxu0 0
  %4597 = vmatprep.subr.bf16.mxu0 0
  %4598 = vmatpush1.bf16.msra.mxu0 0
  %4599 = vmatprep.subr.bf16.mxu0 0
  %4600 = vmatpush1.bf16.msra.mxu0 0
  %4601 = vmatprep.subr.bf16.mxu0 0
  %4602 = vmatpush1.bf16.msra.mxu0 0
  %4603 = vmatprep.subr.bf16.mxu0 0
  %4604 = vmatpush1.bf16.msra.mxu0 0
  %4605 = vmatprep.subr.bf16.mxu0 0
  %4606 = vmatpush1.bf16.msra.mxu0 0
  %4607 = vmatprep.mubr.bf16.mxu0 0
  %4608 = vmatmul.mubr.bf16.gmra.mrb[0].mxu0 %v4341
  %v4609 = vpop.f32.mrb[0].mxu0
  %v4610 = vadd.f32 0.0, %v4609
  %v4611 = vpop.f32.mrb[0].mxu0
  %v4612 = vadd.f32 0.0, %v4611
  %v4613 = vpop.f32.mrb[0].mxu0
  %v4614 = vpop.f32.mrb[0].mxu0
  %4615 = vdwg.mxu0
  %v4616 = vunpack.c.l.bf16 %v4340
  %v4621 = vcombine.low %v4569, %v4571
  %v4622 = vcombine.low %v4610, %v4612
  %v4624 = vunpack.c.l.s4 1983009808
  %v4625 = vunpack.c.0.s8 %v4624
  %v4626 = vlaneseq
  %v4627 = vshrl.u32 %v4626, 7
  %v4628 = vsub.s32 %v4625, %v4627
  %v4629 = vrot.slane %v4621, %v4628
  %v4631 = vunpack.c.l.s4 1983009808
  %v4632 = vunpack.c.0.s8 %v4631
  %v4633 = vlaneseq
  %v4634 = vshrl.u32 %v4633, 7
  %v4635 = vsub.s32 %v4632, %v4634
  %v4636 = vrot.slane %v4622, %v4635
  %v4637 = vcombine.low %v4629, %v4636
  %v4639 = vadd.f32 %v4616, %v4637
  %s4640 = scalar_lea.vmem %s63, 4
  %v4641 = vld [vmem:[%s4640] sm:$0xf]
  %v4642 = vpack.c.bf16 %v4329, %v4329
  %v4643 = vld [vmem:[%s5] sm:$0xff]
  %v4644 = vld [vmem:[%s5 + $0x8] sm:$0xff]
  %v4645 = vld [vmem:[%s5 + $0x10] sm:$0xff]
  %v4646 = vld [vmem:[%s5 + $0x18] sm:$0xff]
  %v4647 = vld [vmem:[%s5 + $0x20] sm:$0xff]
  %v4648 = vld [vmem:[%s5 + $0x28] sm:$0xff]
  %v4649 = vld [vmem:[%s5 + $0x30] sm:$0xff]
  %v4650 = vld [vmem:[%s5 + $0x38] sm:$0xff]
  %v4651 = vld [vmem:[%s5 + $0x40] sm:$0xff]
  %v4652 = vld [vmem:[%s5 + $0x48] sm:$0xff]
  %v4653 = vld [vmem:[%s5 + $0x50] sm:$0xff]
  %v4654 = vld [vmem:[%s5 + $0x58] sm:$0xff]
  %v4655 = vld [vmem:[%s5 + $0x60] sm:$0xff]
  %v4656 = vld [vmem:[%s5 + $0x68] sm:$0xff]
  %v4657 = vld [vmem:[%s5 + $0x70] sm:$0xff]
  %v4658 = vld [vmem:[%s5 + $0x78] sm:$0xff]
  %v4659 = vld [vmem:[%s5 + $0x80] sm:$0xff]
  %v4660 = vld [vmem:[%s5 + $0x88] sm:$0xff]
  %v4661 = vld [vmem:[%s5 + $0x90] sm:$0xff]
  %v4662 = vld [vmem:[%s5 + $0x98] sm:$0xff]
  %v4663 = vld [vmem:[%s5 + $0xa0] sm:$0xff]
  %v4664 = vld [vmem:[%s5 + $0xa8] sm:$0xff]
  %v4665 = vld [vmem:[%s5 + $0xb0] sm:$0xff]
  %v4666 = vld [vmem:[%s5 + $0xb8] sm:$0xff]
  %v4667 = vld [vmem:[%s5 + $0xc0] sm:$0xff]
  %v4668 = vld [vmem:[%s5 + $0xc8] sm:$0xff]
  %v4669 = vld [vmem:[%s5 + $0xd0] sm:$0xff]
  %v4670 = vld [vmem:[%s5 + $0xd8] sm:$0xff]
  %v4671 = vld [vmem:[%s5 + $0xe0] sm:$0xff]
  %v4672 = vld [vmem:[%s5 + $0xe8] sm:$0xff]
  %v4673 = vld [vmem:[%s5 + $0xf0] sm:$0xff]
  %v4674 = vld [vmem:[%s5 + $0xf8] sm:$0xff]
  %v4707 = vunpack.c.l.b16 %v4643
  %v4708 = vunpack.c.h.b16 %v4643
  %v4709 = vunpack.c.l.b16 %v4644
  %v4710 = vunpack.c.h.b16 %v4644
  %v4711 = vunpack.c.l.b16 %v4645
  %v4712 = vunpack.c.h.b16 %v4645
  %v4713 = vunpack.c.l.b16 %v4646
  %v4714 = vunpack.c.h.b16 %v4646
  %v4715 = vunpack.c.l.b16 %v4647
  %v4716 = vunpack.c.h.b16 %v4647
  %v4717 = vunpack.c.l.b16 %v4648
  %v4718 = vunpack.c.h.b16 %v4648
  %v4719 = vunpack.c.l.b16 %v4649
  %v4720 = vunpack.c.h.b16 %v4649
  %v4721 = vunpack.c.l.b16 %v4650
  %v4722 = vunpack.c.h.b16 %v4650
  %v4723 = vunpack.c.l.b16 %v4651
  %v4724 = vunpack.c.h.b16 %v4651
  %v4725 = vunpack.c.l.b16 %v4652
  %v4726 = vunpack.c.h.b16 %v4652
  %v4727 = vunpack.c.l.b16 %v4653
  %v4728 = vunpack.c.h.b16 %v4653
  %v4729 = vunpack.c.l.b16 %v4654
  %v4730 = vunpack.c.h.b16 %v4654
  %v4731 = vunpack.c.l.b16 %v4655
  %v4732 = vunpack.c.h.b16 %v4655
  %v4733 = vunpack.c.l.b16 %v4656
  %v4734 = vunpack.c.h.b16 %v4656
  %v4735 = vunpack.c.l.b16 %v4657
  %v4736 = vunpack.c.h.b16 %v4657
  %v4737 = vunpack.c.l.b16 %v4658
  %v4738 = vunpack.c.h.b16 %v4658
  %v4739 = vunpack.c.l.b16 %v4659
  %v4740 = vunpack.c.h.b16 %v4659
  %v4741 = vunpack.c.l.b16 %v4660
  %v4742 = vunpack.c.h.b16 %v4660
  %v4743 = vunpack.c.l.b16 %v4661
  %v4744 = vunpack.c.h.b16 %v4661
  %v4745 = vunpack.c.l.b16 %v4662
  %v4746 = vunpack.c.h.b16 %v4662
  %v4747 = vunpack.c.l.b16 %v4663
  %v4748 = vunpack.c.h.b16 %v4663
  %v4749 = vunpack.c.l.b16 %v4664
  %v4750 = vunpack.c.h.b16 %v4664
  %v4751 = vunpack.c.l.b16 %v4665
  %v4752 = vunpack.c.h.b16 %v4665
  %v4753 = vunpack.c.l.b16 %v4666
  %v4754 = vunpack.c.h.b16 %v4666
  %v4755 = vunpack.c.l.b16 %v4667
  %v4756 = vunpack.c.h.b16 %v4667
  %v4757 = vunpack.c.l.b16 %v4668
  %v4758 = vunpack.c.h.b16 %v4668
  %v4759 = vunpack.c.l.b16 %v4669
  %v4760 = vunpack.c.h.b16 %v4669
  %v4761 = vunpack.c.l.b16 %v4670
  %v4762 = vunpack.c.h.b16 %v4670
  %v4763 = vunpack.c.l.b16 %v4671
  %v4764 = vunpack.c.h.b16 %v4671
  %v4765 = vunpack.c.l.b16 %v4672
  %v4766 = vunpack.c.h.b16 %v4672
  %v4767 = vunpack.c.l.b16 %v4673
  %v4768 = vunpack.c.h.b16 %v4673
  %v4769 = vunpack.c.l.b16 %v4674
  %v4770 = vunpack.c.h.b16 %v4674
  %v4771 = vpack.c.b16 %v4711, %v4707
  %v4772 = vpack.c.b16 %v4712, %v4708
  %v4773 = vpack.c.b16 %v4713, %v4709
  %v4774 = vpack.c.b16 %v4714, %v4710
  %v4775 = vpack.c.b16 %v4719, %v4715
  %v4776 = vpack.c.b16 %v4720, %v4716
  %v4777 = vpack.c.b16 %v4721, %v4717
  %v4778 = vpack.c.b16 %v4722, %v4718
  %v4779 = vpack.c.b16 %v4727, %v4723
  %v4780 = vpack.c.b16 %v4728, %v4724
  %v4781 = vpack.c.b16 %v4729, %v4725
  %v4782 = vpack.c.b16 %v4730, %v4726
  %v4783 = vpack.c.b16 %v4735, %v4731
  %v4784 = vpack.c.b16 %v4736, %v4732
  %v4785 = vpack.c.b16 %v4737, %v4733
  %v4786 = vpack.c.b16 %v4738, %v4734
  %v4787 = vpack.c.b16 %v4743, %v4739
  %v4788 = vpack.c.b16 %v4744, %v4740
  %v4789 = vpack.c.b16 %v4745, %v4741
  %v4790 = vpack.c.b16 %v4746, %v4742
  %v4791 = vpack.c.b16 %v4751, %v4747
  %v4792 = vpack.c.b16 %v4752, %v4748
  %v4793 = vpack.c.b16 %v4753, %v4749
  %v4794 = vpack.c.b16 %v4754, %v4750
  %v4795 = vpack.c.b16 %v4759, %v4755
  %v4796 = vpack.c.b16 %v4760, %v4756
  %v4797 = vpack.c.b16 %v4761, %v4757
  %v4798 = vpack.c.b16 %v4762, %v4758
  %v4799 = vpack.c.b16 %v4767, %v4763
  %v4800 = vpack.c.b16 %v4768, %v4764
  %v4801 = vpack.c.b16 %v4769, %v4765
  %v4802 = vpack.c.b16 %v4770, %v4766
  %4835 = vmatprep.subr.bf16.mxu0 %v4772
  %4836 = vmatpush1.bf16.msra.mxu0 %v4771
  %4837 = vmatprep.subr.bf16.mxu0 %v4776
  %4838 = vmatpush1.bf16.msra.mxu0 %v4775
  %4839 = vmatprep.subr.bf16.mxu0 %v4780
  %4840 = vmatpush1.bf16.msra.mxu0 %v4779
  %4841 = vmatprep.subr.bf16.mxu0 %v4784
  %4842 = vmatpush1.bf16.msra.mxu0 %v4783
  %4843 = vmatprep.subr.bf16.mxu0 %v4788
  %4844 = vmatpush1.bf16.msra.mxu0 %v4787
  %4845 = vmatprep.subr.bf16.mxu0 %v4792
  %4846 = vmatpush1.bf16.msra.mxu0 %v4791
  %4847 = vmatprep.subr.bf16.mxu0 %v4796
  %4848 = vmatpush1.bf16.msra.mxu0 %v4795
  %4849 = vmatprep.subr.bf16.mxu0 %v4800
  %4850 = vmatpush1.bf16.msra.mxu0 %v4799
  %4851 = vmatprep.subr.bf16.mxu0 0
  %4852 = vmatpush1.bf16.msra.mxu0 0
  %4853 = vmatprep.subr.bf16.mxu0 0
  %4854 = vmatpush1.bf16.msra.mxu0 0
  %4855 = vmatprep.subr.bf16.mxu0 0
  %4856 = vmatpush1.bf16.msra.mxu0 0
  %4857 = vmatprep.subr.bf16.mxu0 0
  %4858 = vmatpush1.bf16.msra.mxu0 0
  %4859 = vmatprep.subr.bf16.mxu0 0
  %4860 = vmatpush1.bf16.msra.mxu0 0
  %4861 = vmatprep.subr.bf16.mxu0 0
  %4862 = vmatpush1.bf16.msra.mxu0 0
  %4863 = vmatprep.subr.bf16.mxu0 0
  %4864 = vmatpush1.bf16.msra.mxu0 0
  %4865 = vmatprep.subr.bf16.mxu0 0
  %4866 = vmatpush1.bf16.msra.mxu0 0
  %4867 = vmatprep.mubr.bf16.mxu0 0
  %4868 = vmatmul.mubr.bf16.gmra.mrb[0].mxu0 %v4642
  %v4869 = vpop.f32.mrb[0].mxu0
  %v4870 = vadd.f32 0.0, %v4869
  %v4871 = vpop.f32.mrb[0].mxu0
  %v4872 = vadd.f32 0.0, %v4871
  %v4873 = vpop.f32.mrb[0].mxu0
  %v4874 = vpop.f32.mrb[0].mxu0
  %4875 = vdwg.mxu0
  %4876 = vmatprep.subr.bf16.mxu0 %v4774
  %4877 = vmatpush1.bf16.msra.mxu0 %v4773
  %4878 = vmatprep.subr.bf16.mxu0 %v4778
  %4879 = vmatpush1.bf16.msra.mxu0 %v4777
  %4880 = vmatprep.subr.bf16.mxu0 %v4782
  %4881 = vmatpush1.bf16.msra.mxu0 %v4781
  %4882 = vmatprep.subr.bf16.mxu0 %v4786
  %4883 = vmatpush1.bf16.msra.mxu0 %v4785
  %4884 = vmatprep.subr.bf16.mxu0 %v4790
  %4885 = vmatpush1.bf16.msra.mxu0 %v4789
  %4886 = vmatprep.subr.bf16.mxu0 %v4794
  %4887 = vmatpush1.bf16.msra.mxu0 %v4793
  %4888 = vmatprep.subr.bf16.mxu0 %v4798
  %4889 = vmatpush1.bf16.msra.mxu0 %v4797
  %4890 = vmatprep.subr.bf16.mxu0 %v4802
  %4891 = vmatpush1.bf16.msra.mxu0 %v4801
  %4892 = vmatprep.subr.bf16.mxu0 0
  %4893 = vmatpush1.bf16.msra.mxu0 0
  %4894 = vmatprep.subr.bf16.mxu0 0
  %4895 = vmatpush1.bf16.msra.mxu0 0
  %4896 = vmatprep.subr.bf16.mxu0 0
  %4897 = vmatpush1.bf16.msra.mxu0 0
  %4898 = vmatprep.subr.bf16.mxu0 0
  %4899 = vmatpush1.bf16.msra.mxu0 0
  %4900 = vmatprep.subr.bf16.mxu0 0
  %4901 = vmatpush1.bf16.msra.mxu0 0
  %4902 = vmatprep.subr.bf16.mxu0 0
  %4903 = vmatpush1.bf16.msra.mxu0 0
  %4904 = vmatprep.subr.bf16.mxu0 0
  %4905 = vmatpush1.bf16.msra.mxu0 0
  %4906 = vmatprep.subr.bf16.mxu0 0
  %4907 = vmatpush1.bf16.msra.mxu0 0
  %4908 = vmatprep.mubr.bf16.mxu0 0
  %4909 = vmatmul.mubr.bf16.gmra.mrb[0].mxu0 %v4642
  %v4910 = vpop.f32.mrb[0].mxu0
  %v4911 = vadd.f32 0.0, %v4910
  %v4912 = vpop.f32.mrb[0].mxu0
  %v4913 = vadd.f32 0.0, %v4912
  %v4914 = vpop.f32.mrb[0].mxu0
  %v4915 = vpop.f32.mrb[0].mxu0
  %4916 = vdwg.mxu0
  %v4917 = vunpack.c.l.bf16 %v4641
  %v4922 = vcombine.low %v4870, %v4872
  %v4923 = vcombine.low %v4911, %v4913
  %v4925 = vunpack.c.l.s4 1983009808
  %v4926 = vunpack.c.0.s8 %v4925
  %v4927 = vlaneseq
  %v4928 = vshrl.u32 %v4927, 7
  %v4929 = vsub.s32 %v4926, %v4928
  %v4930 = vrot.slane %v4922, %v4929
  %v4932 = vunpack.c.l.s4 1983009808
  %v4933 = vunpack.c.0.s8 %v4932
  %v4934 = vlaneseq
  %v4935 = vshrl.u32 %v4934, 7
  %v4936 = vsub.s32 %v4933, %v4935
  %v4937 = vrot.slane %v4923, %v4936
  %v4938 = vcombine.low %v4930, %v4937
  %v4940 = vadd.f32 %v4917, %v4938
  %s4941 = scalar_lea.vmem %s1, 12
  %v4942 = vld [vmem:[%s4941] sm:$0x3]
  %v4943 = vxor.u32 %v4639, 2147483648
  %v4944 = vmul.f32 %v4943, 1.442695
  %v4945 = vpow.pop %v4944
  %v4946 = vadd.f32 %v4945, 1.0
  %v4947 = vrcp.pop %v4946
  %v4948 = vmul.f32 1.0, %v4947
  %v4950 = vrot.slane %v4639, 2
  %v4952 = vxor.u32 %v4950, 2147483648
  %v4953 = vmul.f32 %v4952, 1.442695
  %v4954 = vpow.pop %v4953
  %v4955 = vadd.f32 %v4954, 1.0
  %v4956 = vrcp.pop %v4955
  %v4957 = vmul.f32 1.0, %v4956
  %v4958 = vrot.slane %v4639, 4
  %v4960 = vtanh.pop %v4958
  %v4961 = vrot.slane %v4639, 6
  %v4963 = vxor.u32 %v4961, 2147483648
  %v4964 = vmul.f32 %v4963, 1.442695
  %v4965 = vpow.pop %v4964
  %v4966 = vadd.f32 %v4965, 1.0
  %v4967 = vrcp.pop %v4966
  %v4968 = vmul.f32 1.0, %v4967
  %v4969 = vmul.f32 %v4957, %v4282
  %v4970 = vmul.f32 %v4948, %v4960
  %v4971 = vadd.f32 %v4969, %v4970
  %v4972 = vtanh.pop %v4971
  %v4973 = vmul.f32 %v4968, %v4972
  %4975 = vset.pattern.permute.xlu0 0
  %4976 = vperm.xlu0 %4975, %v4942
  %v4977 = vpop.permute.xlu0 %4976
  %v4979 = vmul.f32 %v4977, %v4973
  %v4980 = vsub.f32 1.0, %v4942
  %4982 = vset.pattern.permute.xlu0 0
  %4983 = vperm.xlu0 %4982, %v4980
  %v4984 = vpop.permute.xlu0 %4983
  %v4986 = vmul.f32 %v4984, %v4279
  %v4987 = vadd.f32 %v4979, %v4986
  %v4988 = vmul.f32 %v4977, %v4971
  %v4989 = vmul.f32 %v4984, %v4282
  %v4990 = vadd.f32 %v4988, %v4989
  %s4991 = scalar_lea.vmem %s71, 2
  %v4992 = vld [vmem:[%s4991] sm:$0x3]
  %v4993 = vxor.u32 %v4940, 2147483648
  %v4994 = vmul.f32 %v4993, 1.442695
  %v4995 = vpow.pop %v4994
  %v4996 = vadd.f32 %v4995, 1.0
  %v4997 = vrcp.pop %v4996
  %v4998 = vmul.f32 1.0, %v4997
  %v5000 = vrot.slane %v4940, 2
  %v5002 = vxor.u32 %v5000, 2147483648
  %v5003 = vmul.f32 %v5002, 1.442695
  %v5004 = vpow.pop %v5003
  %v5005 = vadd.f32 %v5004, 1.0
  %v5006 = vrcp.pop %v5005
  %v5007 = vmul.f32 1.0, %v5006
  %v5008 = vrot.slane %v4940, 4
  %v5010 = vtanh.pop %v5008
  %v5011 = vrot.slane %v4940, 6
  %v5013 = vxor.u32 %v5011, 2147483648
  %v5014 = vmul.f32 %v5013, 1.442695
  %v5015 = vpow.pop %v5014
  %v5016 = vadd.f32 %v5015, 1.0
  %v5017 = vrcp.pop %v5016
  %v5018 = vmul.f32 1.0, %v5017
  %v5019 = vmul.f32 %v5007, %v4332
  %v5020 = vmul.f32 %v4998, %v5010
  %v5021 = vadd.f32 %v5019, %v5020
  %v5022 = vtanh.pop %v5021
  %v5023 = vmul.f32 %v5018, %v5022
  %5025 = vset.pattern.permute.xlu0 0
  %5026 = vperm.xlu0 %5025, %v4992
  %v5027 = vpop.permute.xlu0 %5026
  %v5029 = vmul.f32 %v5027, %v5023
  %v5030 = vsub.f32 1.0, %v4992
  %5032 = vset.pattern.permute.xlu0 0
  %5033 = vperm.xlu0 %5032, %v5030
  %v5034 = vpop.permute.xlu0 %5033
  %v5036 = vmul.f32 %v5034, %v4329
  %v5037 = vadd.f32 %v5029, %v5036
  %v5038 = vmul.f32 %v5027, %v5021
  %v5039 = vmul.f32 %v5034, %v4332
  %v5040 = vadd.f32 %v5038, %v5039
  %v5041 = vpack.c.bf16 %v4979, %v4979
  %s5042 = scalar_lea.vmem %s6, 6
  %5043 = vst [vmem:[%s5042] sm:$0x1] %v5041
  %v5044 = vpack.c.bf16 %v5029, %v5029
  %s5045 = scalar_lea.vmem %s78, 1
  %5046 = vst [vmem:[%s5045] sm:$0x1] %v5044
  %s5047 = scalar_lea.vmem %s0, 28
  %v5048 = vld [vmem:[%s5047] sm:$0xf]
  %v5049 = vpack.c.bf16 %v4987, %v4987
  %v5050 = vld [vmem:[%s2] sm:$0xff]
  %v5051 = vld [vmem:[%s2 + $0x8] sm:$0xff]
  %v5052 = vld [vmem:[%s2 + $0x10] sm:$0xff]
  %v5053 = vld [vmem:[%s2 + $0x18] sm:$0xff]
  %v5054 = vld [vmem:[%s2 + $0x20] sm:$0xff]
  %v5055 = vld [vmem:[%s2 + $0x28] sm:$0xff]
  %v5056 = vld [vmem:[%s2 + $0x30] sm:$0xff]
  %v5057 = vld [vmem:[%s2 + $0x38] sm:$0xff]
  %v5058 = vld [vmem:[%s2 + $0x40] sm:$0xff]
  %v5059 = vld [vmem:[%s2 + $0x48] sm:$0xff]
  %v5060 = vld [vmem:[%s2 + $0x50] sm:$0xff]
  %v5061 = vld [vmem:[%s2 + $0x58] sm:$0xff]
  %v5062 = vld [vmem:[%s2 + $0x60] sm:$0xff]
  %v5063 = vld [vmem:[%s2 + $0x68] sm:$0xff]
  %v5064 = vld [vmem:[%s2 + $0x70] sm:$0xff]
  %v5065 = vld [vmem:[%s2 + $0x78] sm:$0xff]
  %v5066 = vld [vmem:[%s2 + $0x80] sm:$0xff]
  %v5067 = vld [vmem:[%s2 + $0x88] sm:$0xff]
  %v5068 = vld [vmem:[%s2 + $0x90] sm:$0xff]
  %v5069 = vld [vmem:[%s2 + $0x98] sm:$0xff]
  %v5070 = vld [vmem:[%s2 + $0xa0] sm:$0xff]
  %v5071 = vld [vmem:[%s2 + $0xa8] sm:$0xff]
  %v5072 = vld [vmem:[%s2 + $0xb0] sm:$0xff]
  %v5073 = vld [vmem:[%s2 + $0xb8] sm:$0xff]
  %v5074 = vld [vmem:[%s2 + $0xc0] sm:$0xff]
  %v5075 = vld [vmem:[%s2 + $0xc8] sm:$0xff]
  %v5076 = vld [vmem:[%s2 + $0xd0] sm:$0xff]
  %v5077 = vld [vmem:[%s2 + $0xd8] sm:$0xff]
  %v5078 = vld [vmem:[%s2 + $0xe0] sm:$0xff]
  %v5079 = vld [vmem:[%s2 + $0xe8] sm:$0xff]
  %v5080 = vld [vmem:[%s2 + $0xf0] sm:$0xff]
  %v5081 = vld [vmem:[%s2 + $0xf8] sm:$0xff]
  %v5114 = vunpack.c.l.b16 %v5050
  %v5115 = vunpack.c.h.b16 %v5050
  %v5116 = vunpack.c.l.b16 %v5051
  %v5117 = vunpack.c.h.b16 %v5051
  %v5118 = vunpack.c.l.b16 %v5052
  %v5119 = vunpack.c.h.b16 %v5052
  %v5120 = vunpack.c.l.b16 %v5053
  %v5121 = vunpack.c.h.b16 %v5053
  %v5122 = vunpack.c.l.b16 %v5054
  %v5123 = vunpack.c.h.b16 %v5054
  %v5124 = vunpack.c.l.b16 %v5055
  %v5125 = vunpack.c.h.b16 %v5055
  %v5126 = vunpack.c.l.b16 %v5056
  %v5127 = vunpack.c.h.b16 %v5056
  %v5128 = vunpack.c.l.b16 %v5057
  %v5129 = vunpack.c.h.b16 %v5057
  %v5130 = vunpack.c.l.b16 %v5058
  %v5131 = vunpack.c.h.b16 %v5058
  %v5132 = vunpack.c.l.b16 %v5059
  %v5133 = vunpack.c.h.b16 %v5059
  %v5134 = vunpack.c.l.b16 %v5060
  %v5135 = vunpack.c.h.b16 %v5060
  %v5136 = vunpack.c.l.b16 %v5061
  %v5137 = vunpack.c.h.b16 %v5061
  %v5138 = vunpack.c.l.b16 %v5062
  %v5139 = vunpack.c.h.b16 %v5062
  %v5140 = vunpack.c.l.b16 %v5063
  %v5141 = vunpack.c.h.b16 %v5063
  %v5142 = vunpack.c.l.b16 %v5064
  %v5143 = vunpack.c.h.b16 %v5064
  %v5144 = vunpack.c.l.b16 %v5065
  %v5145 = vunpack.c.h.b16 %v5065
  %v5146 = vunpack.c.l.b16 %v5066
  %v5147 = vunpack.c.h.b16 %v5066
  %v5148 = vunpack.c.l.b16 %v5067
  %v5149 = vunpack.c.h.b16 %v5067
  %v5150 = vunpack.c.l.b16 %v5068
  %v5151 = vunpack.c.h.b16 %v5068
  %v5152 = vunpack.c.l.b16 %v5069
  %v5153 = vunpack.c.h.b16 %v5069
  %v5154 = vunpack.c.l.b16 %v5070
  %v5155 = vunpack.c.h.b16 %v5070
  %v5156 = vunpack.c.l.b16 %v5071
  %v5157 = vunpack.c.h.b16 %v5071
  %v5158 = vunpack.c.l.b16 %v5072
  %v5159 = vunpack.c.h.b16 %v5072
  %v5160 = vunpack.c.l.b16 %v5073
  %v5161 = vunpack.c.h.b16 %v5073
  %v5162 = vunpack.c.l.b16 %v5074
  %v5163 = vunpack.c.h.b16 %v5074
  %v5164 = vunpack.c.l.b16 %v5075
  %v5165 = vunpack.c.h.b16 %v5075
  %v5166 = vunpack.c.l.b16 %v5076
  %v5167 = vunpack.c.h.b16 %v5076
  %v5168 = vunpack.c.l.b16 %v5077
  %v5169 = vunpack.c.h.b16 %v5077
  %v5170 = vunpack.c.l.b16 %v5078
  %v5171 = vunpack.c.h.b16 %v5078
  %v5172 = vunpack.c.l.b16 %v5079
  %v5173 = vunpack.c.h.b16 %v5079
  %v5174 = vunpack.c.l.b16 %v5080
  %v5175 = vunpack.c.h.b16 %v5080
  %v5176 = vunpack.c.l.b16 %v5081
  %v5177 = vunpack.c.h.b16 %v5081
  %v5178 = vpack.c.b16 %v5118, %v5114
  %v5179 = vpack.c.b16 %v5119, %v5115
  %v5180 = vpack.c.b16 %v5120, %v5116
  %v5181 = vpack.c.b16 %v5121, %v5117
  %v5182 = vpack.c.b16 %v5126, %v5122
  %v5183 = vpack.c.b16 %v5127, %v5123
  %v5184 = vpack.c.b16 %v5128, %v5124
  %v5185 = vpack.c.b16 %v5129, %v5125
  %v5186 = vpack.c.b16 %v5134, %v5130
  %v5187 = vpack.c.b16 %v5135, %v5131
  %v5188 = vpack.c.b16 %v5136, %v5132
  %v5189 = vpack.c.b16 %v5137, %v5133
  %v5190 = vpack.c.b16 %v5142, %v5138
  %v5191 = vpack.c.b16 %v5143, %v5139
  %v5192 = vpack.c.b16 %v5144, %v5140
  %v5193 = vpack.c.b16 %v5145, %v5141
  %v5194 = vpack.c.b16 %v5150, %v5146
  %v5195 = vpack.c.b16 %v5151, %v5147
  %v5196 = vpack.c.b16 %v5152, %v5148
  %v5197 = vpack.c.b16 %v5153, %v5149
  %v5198 = vpack.c.b16 %v5158, %v5154
  %v5199 = vpack.c.b16 %v5159, %v5155
  %v5200 = vpack.c.b16 %v5160, %v5156
  %v5201 = vpack.c.b16 %v5161, %v5157
  %v5202 = vpack.c.b16 %v5166, %v5162
  %v5203 = vpack.c.b16 %v5167, %v5163
  %v5204 = vpack.c.b16 %v5168, %v5164
  %v5205 = vpack.c.b16 %v5169, %v5165
  %v5206 = vpack.c.b16 %v5174, %v5170
  %v5207 = vpack.c.b16 %v5175, %v5171
  %v5208 = vpack.c.b16 %v5176, %v5172
  %v5209 = vpack.c.b16 %v5177, %v5173
  %5242 = vmatprep.subr.bf16.mxu0 %v5179
  %5243 = vmatpush1.bf16.msra.mxu0 %v5178
  %5244 = vmatprep.subr.bf16.mxu0 %v5183
  %5245 = vmatpush1.bf16.msra.mxu0 %v5182
  %5246 = vmatprep.subr.bf16.mxu0 %v5187
  %5247 = vmatpush1.bf16.msra.mxu0 %v5186
  %5248 = vmatprep.subr.bf16.mxu0 %v5191
  %5249 = vmatpush1.bf16.msra.mxu0 %v5190
  %5250 = vmatprep.subr.bf16.mxu0 %v5195
  %5251 = vmatpush1.bf16.msra.mxu0 %v5194
  %5252 = vmatprep.subr.bf16.mxu0 %v5199
  %5253 = vmatpush1.bf16.msra.mxu0 %v5198
  %5254 = vmatprep.subr.bf16.mxu0 %v5203
  %5255 = vmatpush1.bf16.msra.mxu0 %v5202
  %5256 = vmatprep.subr.bf16.mxu0 %v5207
  %5257 = vmatpush1.bf16.msra.mxu0 %v5206
  %5258 = vmatprep.subr.bf16.mxu0 0
  %5259 = vmatpush1.bf16.msra.mxu0 0
  %5260 = vmatprep.subr.bf16.mxu0 0
  %5261 = vmatpush1.bf16.msra.mxu0 0
  %5262 = vmatprep.subr.bf16.mxu0 0
  %5263 = vmatpush1.bf16.msra.mxu0 0
  %5264 = vmatprep.subr.bf16.mxu0 0
  %5265 = vmatpush1.bf16.msra.mxu0 0
  %5266 = vmatprep.subr.bf16.mxu0 0
  %5267 = vmatpush1.bf16.msra.mxu0 0
  %5268 = vmatprep.subr.bf16.mxu0 0
  %5269 = vmatpush1.bf16.msra.mxu0 0
  %5270 = vmatprep.subr.bf16.mxu0 0
  %5271 = vmatpush1.bf16.msra.mxu0 0
  %5272 = vmatprep.subr.bf16.mxu0 0
  %5273 = vmatpush1.bf16.msra.mxu0 0
  %5274 = vmatprep.mubr.bf16.mxu0 0
  %5275 = vmatmul.mubr.bf16.gmra.mrb[0].mxu0 %v5049
  %v5276 = vpop.f32.mrb[0].mxu0
  %v5277 = vadd.f32 0.0, %v5276
  %v5278 = vpop.f32.mrb[0].mxu0
  %v5279 = vadd.f32 0.0, %v5278
  %v5280 = vpop.f32.mrb[0].mxu0
  %v5281 = vpop.f32.mrb[0].mxu0
  %5282 = vdwg.mxu0
  %5283 = vmatprep.subr.bf16.mxu0 %v5181
  %5284 = vmatpush1.bf16.msra.mxu0 %v5180
  %5285 = vmatprep.subr.bf16.mxu0 %v5185
  %5286 = vmatpush1.bf16.msra.mxu0 %v5184
  %5287 = vmatprep.subr.bf16.mxu0 %v5189
  %5288 = vmatpush1.bf16.msra.mxu0 %v5188
  %5289 = vmatprep.subr.bf16.mxu0 %v5193
  %5290 = vmatpush1.bf16.msra.mxu0 %v5192
  %5291 = vmatprep.subr.bf16.mxu0 %v5197
  %5292 = vmatpush1.bf16.msra.mxu0 %v5196
  %5293 = vmatprep.subr.bf16.mxu0 %v5201
  %5294 = vmatpush1.bf16.msra.mxu0 %v5200
  %5295 = vmatprep.subr.bf16.mxu0 %v5205
  %5296 = vmatpush1.bf16.msra.mxu0 %v5204
  %5297 = vmatprep.subr.bf16.mxu0 %v5209
  %5298 = vmatpush1.bf16.msra.mxu0 %v5208
  %5299 = vmatprep.subr.bf16.mxu0 0
  %5300 = vmatpush1.bf16.msra.mxu0 0
  %5301 = vmatprep.subr.bf16.mxu0 0
  %5302 = vmatpush1.bf16.msra.mxu0 0
  %5303 = vmatprep.subr.bf16.mxu0 0
  %5304 = vmatpush1.bf16.msra.mxu0 0
  %5305 = vmatprep.subr.bf16.mxu0 0
  %5306 = vmatpush1.bf16.msra.mxu0 0
  %5307 = vmatprep.subr.bf16.mxu0 0
  %5308 = vmatpush1.bf16.msra.mxu0 0
  %5309 = vmatprep.subr.bf16.mxu0 0
  %5310 = vmatpush1.bf16.msra.mxu0 0
  %5311 = vmatprep.subr.bf16.mxu0 0
  %5312 = vmatpush1.bf16.msra.mxu0 0
  %5313 = vmatprep.subr.bf16.mxu0 0
  %5314 = vmatpush1.bf16.msra.mxu0 0
  %5315 = vmatprep.mubr.bf16.mxu0 0
  %5316 = vmatmul.mubr.bf16.gmra.mrb[0].mxu0 %v5049
  %v5317 = vpop.f32.mrb[0].mxu0
  %v5318 = vadd.f32 0.0, %v5317
  %v5319 = vpop.f32.mrb[0].mxu0
  %v5320 = vadd.f32 0.0, %v5319
  %v5321 = vpop.f32.mrb[0].mxu0
  %v5322 = vpop.f32.mrb[0].mxu0
  %5323 = vdwg.mxu0
  %v5324 = vunpack.c.l.bf16 %v5048
  %v5329 = vcombine.low %v5277, %v5279
  %v5330 = vcombine.low %v5318, %v5320
  %v5332 = vunpack.c.l.s4 1983009808
  %v5333 = vunpack.c.0.s8 %v5332
  %v5334 = vlaneseq
  %v5335 = vshrl.u32 %v5334, 7
  %v5336 = vsub.s32 %v5333, %v5335
  %v5337 = vrot.slane %v5329, %v5336
  %v5339 = vunpack.c.l.s4 1983009808
  %v5340 = vunpack.c.0.s8 %v5339
  %v5341 = vlaneseq
  %v5342 = vshrl.u32 %v5341, 7
  %v5343 = vsub.s32 %v5340, %v5342
  %v5344 = vrot.slane %v5330, %v5343
  %v5345 = vcombine.low %v5337, %v5344
  %v5347 = vadd.f32 %v5324, %v5345
  %v5348 = vld [vmem:[%s63] sm:$0xf]
  %v5349 = vpack.c.bf16 %v5037, %v5037
  %v5350 = vld [vmem:[%s5] sm:$0xff]
  %v5351 = vld [vmem:[%s5 + $0x8] sm:$0xff]
  %v5352 = vld [vmem:[%s5 + $0x10] sm:$0xff]
  %v5353 = vld [vmem:[%s5 + $0x18] sm:$0xff]
  %v5354 = vld [vmem:[%s5 + $0x20] sm:$0xff]
  %v5355 = vld [vmem:[%s5 + $0x28] sm:$0xff]
  %v5356 = vld [vmem:[%s5 + $0x30] sm:$0xff]
  %v5357 = vld [vmem:[%s5 + $0x38] sm:$0xff]
  %v5358 = vld [vmem:[%s5 + $0x40] sm:$0xff]
  %v5359 = vld [vmem:[%s5 + $0x48] sm:$0xff]
  %v5360 = vld [vmem:[%s5 + $0x50] sm:$0xff]
  %v5361 = vld [vmem:[%s5 + $0x58] sm:$0xff]
  %v5362 = vld [vmem:[%s5 + $0x60] sm:$0xff]
  %v5363 = vld [vmem:[%s5 + $0x68] sm:$0xff]
  %v5364 = vld [vmem:[%s5 + $0x70] sm:$0xff]
  %v5365 = vld [vmem:[%s5 + $0x78] sm:$0xff]
  %v5366 = vld [vmem:[%s5 + $0x80] sm:$0xff]
  %v5367 = vld [vmem:[%s5 + $0x88] sm:$0xff]
  %v5368 = vld [vmem:[%s5 + $0x90] sm:$0xff]
  %v5369 = vld [vmem:[%s5 + $0x98] sm:$0xff]
  %v5370 = vld [vmem:[%s5 + $0xa0] sm:$0xff]
  %v5371 = vld [vmem:[%s5 + $0xa8] sm:$0xff]
  %v5372 = vld [vmem:[%s5 + $0xb0] sm:$0xff]
  %v5373 = vld [vmem:[%s5 + $0xb8] sm:$0xff]
  %v5374 = vld [vmem:[%s5 + $0xc0] sm:$0xff]
  %v5375 = vld [vmem:[%s5 + $0xc8] sm:$0xff]
  %v5376 = vld [vmem:[%s5 + $0xd0] sm:$0xff]
  %v5377 = vld [vmem:[%s5 + $0xd8] sm:$0xff]
  %v5378 = vld [vmem:[%s5 + $0xe0] sm:$0xff]
  %v5379 = vld [vmem:[%s5 + $0xe8] sm:$0xff]
  %v5380 = vld [vmem:[%s5 + $0xf0] sm:$0xff]
  %v5381 = vld [vmem:[%s5 + $0xf8] sm:$0xff]
  %v5414 = vunpack.c.l.b16 %v5350
  %v5415 = vunpack.c.h.b16 %v5350
  %v5416 = vunpack.c.l.b16 %v5351
  %v5417 = vunpack.c.h.b16 %v5351
  %v5418 = vunpack.c.l.b16 %v5352
  %v5419 = vunpack.c.h.b16 %v5352
  %v5420 = vunpack.c.l.b16 %v5353
  %v5421 = vunpack.c.h.b16 %v5353
  %v5422 = vunpack.c.l.b16 %v5354
  %v5423 = vunpack.c.h.b16 %v5354
  %v5424 = vunpack.c.l.b16 %v5355
  %v5425 = vunpack.c.h.b16 %v5355
  %v5426 = vunpack.c.l.b16 %v5356
  %v5427 = vunpack.c.h.b16 %v5356
  %v5428 = vunpack.c.l.b16 %v5357
  %v5429 = vunpack.c.h.b16 %v5357
  %v5430 = vunpack.c.l.b16 %v5358
  %v5431 = vunpack.c.h.b16 %v5358
  %v5432 = vunpack.c.l.b16 %v5359
  %v5433 = vunpack.c.h.b16 %v5359
  %v5434 = vunpack.c.l.b16 %v5360
  %v5435 = vunpack.c.h.b16 %v5360
  %v5436 = vunpack.c.l.b16 %v5361
  %v5437 = vunpack.c.h.b16 %v5361
  %v5438 = vunpack.c.l.b16 %v5362
  %v5439 = vunpack.c.h.b16 %v5362
  %v5440 = vunpack.c.l.b16 %v5363
  %v5441 = vunpack.c.h.b16 %v5363
  %v5442 = vunpack.c.l.b16 %v5364
  %v5443 = vunpack.c.h.b16 %v5364
  %v5444 = vunpack.c.l.b16 %v5365
  %v5445 = vunpack.c.h.b16 %v5365
  %v5446 = vunpack.c.l.b16 %v5366
  %v5447 = vunpack.c.h.b16 %v5366
  %v5448 = vunpack.c.l.b16 %v5367
  %v5449 = vunpack.c.h.b16 %v5367
  %v5450 = vunpack.c.l.b16 %v5368
  %v5451 = vunpack.c.h.b16 %v5368
  %v5452 = vunpack.c.l.b16 %v5369
  %v5453 = vunpack.c.h.b16 %v5369
  %v5454 = vunpack.c.l.b16 %v5370
  %v5455 = vunpack.c.h.b16 %v5370
  %v5456 = vunpack.c.l.b16 %v5371
  %v5457 = vunpack.c.h.b16 %v5371
  %v5458 = vunpack.c.l.b16 %v5372
  %v5459 = vunpack.c.h.b16 %v5372
  %v5460 = vunpack.c.l.b16 %v5373
  %v5461 = vunpack.c.h.b16 %v5373
  %v5462 = vunpack.c.l.b16 %v5374
  %v5463 = vunpack.c.h.b16 %v5374
  %v5464 = vunpack.c.l.b16 %v5375
  %v5465 = vunpack.c.h.b16 %v5375
  %v5466 = vunpack.c.l.b16 %v5376
  %v5467 = vunpack.c.h.b16 %v5376
  %v5468 = vunpack.c.l.b16 %v5377
  %v5469 = vunpack.c.h.b16 %v5377
  %v5470 = vunpack.c.l.b16 %v5378
  %v5471 = vunpack.c.h.b16 %v5378
  %v5472 = vunpack.c.l.b16 %v5379
  %v5473 = vunpack.c.h.b16 %v5379
  %v5474 = vunpack.c.l.b16 %v5380
  %v5475 = vunpack.c.h.b16 %v5380
  %v5476 = vunpack.c.l.b16 %v5381
  %v5477 = vunpack.c.h.b16 %v5381
  %v5478 = vpack.c.b16 %v5418, %v5414
  %v5479 = vpack.c.b16 %v5419, %v5415
  %v5480 = vpack.c.b16 %v5420, %v5416
  %v5481 = vpack.c.b16 %v5421, %v5417
  %v5482 = vpack.c.b16 %v5426, %v5422
  %v5483 = vpack.c.b16 %v5427, %v5423
  %v5484 = vpack.c.b16 %v5428, %v5424
  %v5485 = vpack.c.b16 %v5429, %v5425
  %v5486 = vpack.c.b16 %v5434, %v5430
  %v5487 = vpack.c.b16 %v5435, %v5431
  %v5488 = vpack.c.b16 %v5436, %v5432
  %v5489 = vpack.c.b16 %v5437, %v5433
  %v5490 = vpack.c.b16 %v5442, %v5438
  %v5491 = vpack.c.b16 %v5443, %v5439
  %v5492 = vpack.c.b16 %v5444, %v5440
  %v5493 = vpack.c.b16 %v5445, %v5441
  %v5494 = vpack.c.b16 %v5450, %v5446
  %v5495 = vpack.c.b16 %v5451, %v5447
  %v5496 = vpack.c.b16 %v5452, %v5448
  %v5497 = vpack.c.b16 %v5453, %v5449
  %v5498 = vpack.c.b16 %v5458, %v5454
  %v5499 = vpack.c.b16 %v5459, %v5455
  %v5500 = vpack.c.b16 %v5460, %v5456
  %v5501 = vpack.c.b16 %v5461, %v5457
  %v5502 = vpack.c.b16 %v5466, %v5462
  %v5503 = vpack.c.b16 %v5467, %v5463
  %v5504 = vpack.c.b16 %v5468, %v5464
  %v5505 = vpack.c.b16 %v5469, %v5465
  %v5506 = vpack.c.b16 %v5474, %v5470
  %v5507 = vpack.c.b16 %v5475, %v5471
  %v5508 = vpack.c.b16 %v5476, %v5472
  %v5509 = vpack.c.b16 %v5477, %v5473
  %5542 = vmatprep.subr.bf16.mxu0 %v5479
  %5543 = vmatpush1.bf16.msra.mxu0 %v5478
  %5544 = vmatprep.subr.bf16.mxu0 %v5483
  %5545 = vmatpush1.bf16.msra.mxu0 %v5482
  %5546 = vmatprep.subr.bf16.mxu0 %v5487
  %5547 = vmatpush1.bf16.msra.mxu0 %v5486
  %5548 = vmatprep.subr.bf16.mxu0 %v5491
  %5549 = vmatpush1.bf16.msra.mxu0 %v5490
  %5550 = vmatprep.subr.bf16.mxu0 %v5495
  %5551 = vmatpush1.bf16.msra.mxu0 %v5494
  %5552 = vmatprep.subr.bf16.mxu0 %v5499
  %5553 = vmatpush1.bf16.msra.mxu0 %v5498
  %5554 = vmatprep.subr.bf16.mxu0 %v5503
  %5555 = vmatpush1.bf16.msra.mxu0 %v5502
  %5556 = vmatprep.subr.bf16.mxu0 %v5507
  %5557 = vmatpush1.bf16.msra.mxu0 %v5506
  %5558 = vmatprep.subr.bf16.mxu0 0
  %5559 = vmatpush1.bf16.msra.mxu0 0
  %5560 = vmatprep.subr.bf16.mxu0 0
  %5561 = vmatpush1.bf16.msra.mxu0 0
  %5562 = vmatprep.subr.bf16.mxu0 0
  %5563 = vmatpush1.bf16.msra.mxu0 0
  %5564 = vmatprep.subr.bf16.mxu0 0
  %5565 = vmatpush1.bf16.msra.mxu0 0
  %5566 = vmatprep.subr.bf16.mxu0 0
  %5567 = vmatpush1.bf16.msra.mxu0 0
  %5568 = vmatprep.subr.bf16.mxu0 0
  %5569 = vmatpush1.bf16.msra.mxu0 0
  %5570 = vmatprep.subr.bf16.mxu0 0
  %5571 = vmatpush1.bf16.msra.mxu0 0
  %5572 = vmatprep.subr.bf16.mxu0 0
  %5573 = vmatpush1.bf16.msra.mxu0 0
  %5574 = vmatprep.mubr.bf16.mxu0 0
  %5575 = vmatmul.mubr.bf16.gmra.mrb[0].mxu0 %v5349
  %v5576 = vpop.f32.mrb[0].mxu0
  %v5577 = vadd.f32 0.0, %v5576
  %v5578 = vpop.f32.mrb[0].mxu0
  %v5579 = vadd.f32 0.0, %v5578
  %v5580 = vpop.f32.mrb[0].mxu0
  %v5581 = vpop.f32.mrb[0].mxu0
  %5582 = vdwg.mxu0
  %5583 = vmatprep.subr.bf16.mxu0 %v5481
  %5584 = vmatpush1.bf16.msra.mxu0 %v5480
  %5585 = vmatprep.subr.bf16.mxu0 %v5485
  %5586 = vmatpush1.bf16.msra.mxu0 %v5484
  %5587 = vmatprep.subr.bf16.mxu0 %v5489
  %5588 = vmatpush1.bf16.msra.mxu0 %v5488
  %5589 = vmatprep.subr.bf16.mxu0 %v5493
  %5590 = vmatpush1.bf16.msra.mxu0 %v5492
  %5591 = vmatprep.subr.bf16.mxu0 %v5497
  %5592 = vmatpush1.bf16.msra.mxu0 %v5496
  %5593 = vmatprep.subr.bf16.mxu0 %v5501
  %5594 = vmatpush1.bf16.msra.mxu0 %v5500
  %5595 = vmatprep.subr.bf16.mxu0 %v5505
  %5596 = vmatpush1.bf16.msra.mxu0 %v5504
  %5597 = vmatprep.subr.bf16.mxu0 %v5509
  %5598 = vmatpush1.bf16.msra.mxu0 %v5508
  %5599 = vmatprep.subr.bf16.mxu0 0
  %5600 = vmatpush1.bf16.msra.mxu0 0
  %5601 = vmatprep.subr.bf16.mxu0 0
  %5602 = vmatpush1.bf16.msra.mxu0 0
  %5603 = vmatprep.subr.bf16.mxu0 0
  %5604 = vmatpush1.bf16.msra.mxu0 0
  %5605 = vmatprep.subr.bf16.mxu0 0
  %5606 = vmatpush1.bf16.msra.mxu0 0
  %5607 = vmatprep.subr.bf16.mxu0 0
  %5608 = vmatpush1.bf16.msra.mxu0 0
  %5609 = vmatprep.subr.bf16.mxu0 0
  %5610 = vmatpush1.bf16.msra.mxu0 0
  %5611 = vmatprep.subr.bf16.mxu0 0
  %5612 = vmatpush1.bf16.msra.mxu0 0
  %5613 = vmatprep.subr.bf16.mxu0 0
  %5614 = vmatpush1.bf16.msra.mxu0 0
  %5615 = vmatprep.mubr.bf16.mxu0 0
  %5616 = vmatmul.mubr.bf16.gmra.mrb[0].mxu0 %v5349
  %v5617 = vpop.f32.mrb[0].mxu0
  %v5618 = vadd.f32 0.0, %v5617
  %v5619 = vpop.f32.mrb[0].mxu0
  %v5620 = vadd.f32 0.0, %v5619
  %v5621 = vpop.f32.mrb[0].mxu0
  %v5622 = vpop.f32.mrb[0].mxu0
  %5623 = vdwg.mxu0
  %v5624 = vunpack.c.l.bf16 %v5348
  %v5629 = vcombine.low %v5577, %v5579
  %v5630 = vcombine.low %v5618, %v5620
  %v5632 = vunpack.c.l.s4 1983009808
  %v5633 = vunpack.c.0.s8 %v5632
  %v5634 = vlaneseq
  %v5635 = vshrl.u32 %v5634, 7
  %v5636 = vsub.s32 %v5633, %v5635
  %v5637 = vrot.slane %v5629, %v5636
  %v5639 = vunpack.c.l.s4 1983009808
  %v5640 = vunpack.c.0.s8 %v5639
  %v5641 = vlaneseq
  %v5642 = vshrl.u32 %v5641, 7
  %v5643 = vsub.s32 %v5640, %v5642
  %v5644 = vrot.slane %v5630, %v5643
  %v5645 = vcombine.low %v5637, %v5644
  %v5647 = vadd.f32 %v5624, %v5645
  %s5648 = scalar_lea.vmem %s1, 14
  %v5649 = vld [vmem:[%s5648] sm:$0x3]
  %v5650 = vxor.u32 %v5347, 2147483648
  %v5651 = vmul.f32 %v5650, 1.442695
  %v5652 = vpow.pop %v5651
  %v5653 = vadd.f32 %v5652, 1.0
  %v5654 = vrcp.pop %v5653
  %v5655 = vmul.f32 1.0, %v5654
  %v5657 = vrot.slane %v5347, 2
  %v5659 = vxor.u32 %v5657, 2147483648
  %v5660 = vmul.f32 %v5659, 1.442695
  %v5661 = vpow.pop %v5660
  %v5662 = vadd.f32 %v5661, 1.0
  %v5663 = vrcp.pop %v5662
  %v5664 = vmul.f32 1.0, %v5663
  %v5665 = vrot.slane %v5347, 4
  %v5667 = vtanh.pop %v5665
  %v5668 = vrot.slane %v5347, 6
  %v5670 = vxor.u32 %v5668, 2147483648
  %v5671 = vmul.f32 %v5670, 1.442695
  %v5672 = vpow.pop %v5671
  %v5673 = vadd.f32 %v5672, 1.0
  %v5674 = vrcp.pop %v5673
  %v5675 = vmul.f32 1.0, %v5674
  %v5676 = vmul.f32 %v5664, %v4990
  %v5677 = vmul.f32 %v5655, %v5667
  %v5678 = vadd.f32 %v5676, %v5677
  %v5679 = vtanh.pop %v5678
  %v5680 = vmul.f32 %v5675, %v5679
  %5682 = vset.pattern.permute.xlu0 0
  %5683 = vperm.xlu0 %5682, %v5649
  %v5684 = vpop.permute.xlu0 %5683
  %v5686 = vmul.f32 %v5684, %v5680
  %v5687 = vsub.f32 1.0, %v5649
  %5689 = vset.pattern.permute.xlu0 0
  %5690 = vperm.xlu0 %5689, %v5687
  %v5691 = vpop.permute.xlu0 %5690
  %v5693 = vmul.f32 %v5691, %v4987
  %v5694 = vadd.f32 %v5686, %v5693
  %v5695 = vmul.f32 %v5684, %v5678
  %v5696 = vmul.f32 %v5691, %v4990
  %v5697 = vadd.f32 %v5695, %v5696
  %v5698 = vld [vmem:[%s71] sm:$0x3]
  %v5699 = vxor.u32 %v5647, 2147483648
  %v5700 = vmul.f32 %v5699, 1.442695
  %v5701 = vpow.pop %v5700
  %v5702 = vadd.f32 %v5701, 1.0
  %v5703 = vrcp.pop %v5702
  %v5704 = vmul.f32 1.0, %v5703
  %v5706 = vrot.slane %v5647, 2
  %v5708 = vxor.u32 %v5706, 2147483648
  %v5709 = vmul.f32 %v5708, 1.442695
  %v5710 = vpow.pop %v5709
  %v5711 = vadd.f32 %v5710, 1.0
  %v5712 = vrcp.pop %v5711
  %v5713 = vmul.f32 1.0, %v5712
  %v5714 = vrot.slane %v5647, 4
  %v5716 = vtanh.pop %v5714
  %v5717 = vrot.slane %v5647, 6
  %v5719 = vxor.u32 %v5717, 2147483648
  %v5720 = vmul.f32 %v5719, 1.442695
  %v5721 = vpow.pop %v5720
  %v5722 = vadd.f32 %v5721, 1.0
  %v5723 = vrcp.pop %v5722
  %v5724 = vmul.f32 1.0, %v5723
  %v5725 = vmul.f32 %v5713, %v5040
  %v5726 = vmul.f32 %v5704, %v5716
  %v5727 = vadd.f32 %v5725, %v5726
  %v5728 = vtanh.pop %v5727
  %v5729 = vmul.f32 %v5724, %v5728
  %5731 = vset.pattern.permute.xlu0 0
  %5732 = vperm.xlu0 %5731, %v5698
  %v5733 = vpop.permute.xlu0 %5732
  %v5735 = vmul.f32 %v5733, %v5729
  %v5736 = vsub.f32 1.0, %v5698
  %5738 = vset.pattern.permute.xlu0 0
  %5739 = vperm.xlu0 %5738, %v5736
  %v5740 = vpop.permute.xlu0 %5739
  %v5742 = vmul.f32 %v5740, %v5037
  %v5743 = vadd.f32 %v5735, %v5742
  %v5744 = vmul.f32 %v5733, %v5727
  %v5745 = vmul.f32 %v5740, %v5040
  %v5746 = vadd.f32 %v5744, %v5745
  %v5747 = vpack.c.bf16 %v5686, %v5686
  %s5748 = scalar_lea.vmem %s6, 7
  %5749 = vst [vmem:[%s5748] sm:$0x1] %v5747
  %v5750 = vpack.c.bf16 %v5735, %v5735
  %5751 = vst [vmem:[%s78] sm:$0x1] %v5750
  %5752 = vst [vmem:[#allocation2] sm:$0x3] %v5694
  %5753 = vst [vmem:[#allocation3] sm:$0x3] %v5697
  %5754 = vst [vmem:[#allocation4] sm:$0x3] %v5743
  %5755 = vst [vmem:[#allocation5] sm:$0x3] %v5746
  %s5756 = ssub.s32 0, 0
  %s5757 = smul.u32 8, %s5756
  %p5758 = scmp.lt.s32.totalorder %s5757, 7
  %s5759 = scalar_select %p5758, %s5757, 7
  %s5760 = scalar_lea.vmem %s7, %s5759
  // Predicated region
  $region30: #{seq2seq_forward.3} parent=0 // pred_check
    _
  $region31: #{seq2seq_forward.3} parent=0 // pred_check_branch
    %5762 = sbr.rel (0) target = $region33
  $region32: #{seq2seq_forward.3} parent=0 // pred_region
    _
  $region33: #{seq2seq_forward.3} parent=0 // pred_fallthru
    _
  // Predicated region
  $region34: #{seq2seq_forward.3} parent=0 // pred_check
    _
  $region35: #{seq2seq_forward.3} parent=0 // pred_check_branch
    %5764 = sbr.rel (0) target = $region37
  $region36: #{seq2seq_forward.3} parent=0 // pred_region
    %s5765 = ssub.s32 0, 0
    %s5766 = smul.u32 8, %s5765
  $region37: #{seq2seq_forward.3} parent=0 // pred_fallthru
    _
  // Predicated region
  $region38: #{seq2seq_forward.3} parent=0 // pred_check
    _
  $region39: #{seq2seq_forward.3} parent=0 // pred_check_branch
    %5768 = sbr.rel (0) target = $region41
  $region40: #{seq2seq_forward.3} parent=0 // pred_region
    _
  $region41: #{seq2seq_forward.3} parent=0 // pred_fallthru
    _
  // Predicated region
  $region42: #{seq2seq_forward.3} parent=0 // pred_check
    _
  $region43: #{seq2seq_forward.3} parent=0 // pred_check_branch
    %5770 = sbr.rel (0) target = $region45
  $region44: #{seq2seq_forward.3} parent=0 // pred_region
    %s5771 = ssub.s32 0, 0
    %s5772 = smul.u32 8, %s5771
    %p5773 = scmp.lt.s32.totalorder %s5772, 7
    %s5774 = scalar_select %p5773, %s5772, 7
    %s5775 = scalar_lea.vmem %s7, %s5774
  $region45: #{seq2seq_forward.3} parent=0 // pred_fallthru
    _

</llo_original>
